<compile_context>
chip_gen: v7x
topology: tpu7x:2x2x1
jax: 0.10.0
libtpu: 0.0.40
codegen_flags: <defaults>
</compile_context>

<pallas_src>
import jax
import jax.numpy as jnp
from jax.experimental import pallas as pl
from jax.experimental.pallas import tpu as pltpu

BN_EPS = 1e-5


# ----------------------------------------------------------------------------
# Fused bottleneck kernel (one grid step == one image)
# ----------------------------------------------------------------------------
def _bottleneck_kernel(x_ref, w1_ref, w2_ref, w3_ref, b1_ref, b2_ref, b3_ref,
                       o_ref, pad1_ref, acc2_ref):
    """x_ref:   (H, W, Cin)        bf16   (Cin == 4*planes)
       w1_ref:  (Cin, P)           bf16   (BN1 scale folded in)
       w2_ref:  (3, 3, P, P)       bf16   (kh, kw, cin, cout; BN2 scale folded)
       w3_ref:  (P, Cout)          bf16   (BN3 scale folded in)
       b*_ref:  (1, C)             f32    (BN shifts)
       o_ref:   (H, W, Cout)       f32
       pad1_ref:(H+2, W+2, P)      bf16   VMEM scratch (stage-1 out, 0-padded)
       acc2_ref:(H*W, P)           f32    VMEM scratch (stage-2 accumulator)
    """
    H, W, cin = x_ref.shape
    planes = w1_ref.shape[1]
    cout = w3_ref.shape[1]

    # Zero the padded scratch every step (grid steps may be split across
    # TensorCores, so no cross-step state is assumed).  Interior gets
    # overwritten below; only the 1-pixel halo needs to be zero.
    pad1_ref[...] = jnp.zeros_like(pad1_ref)

    x2d = x_ref[...].reshape(H * W, cin)                      # bf16

    # ---- stage 1: 1x1 conv (+BN scale folded) + shift + ReLU --------------
    y1 = jnp.dot(x2d, w1_ref[...], preferred_element_type=jnp.float32)
    y1 = jnp.maximum(y1 + b1_ref[...], 0.0)
    pad1_ref[pl.ds(1, H), pl.ds(1, W), :] = (
        y1.reshape(H, W, planes).astype(pad1_ref.dtype))

    # ---- stage 2: 3x3 conv (pad=1) as 9 shifted matmuls, f32 VMEM accum ---
    acc2_ref[...] = jnp.zeros_like(acc2_ref)
    for kh in range(3):
        for kw in range(3):
            win = pad1_ref[pl.ds(kh, H), pl.ds(kw, W), :].reshape(H * W, planes)
            acc2_ref[...] += jnp.dot(win, w2_ref[kh, kw],
                                     preferred_element_type=jnp.float32)
    y2 = jnp.maximum(acc2_ref[...] + b2_ref[...], 0.0).astype(jnp.bfloat16)

    # ---- stage 3: 1x1 conv + shift + identity residual + ReLU -------------
    y3 = jnp.dot(y2, w3_ref[...], preferred_element_type=jnp.float32)
    y3 = y3 + b3_ref[...] + x2d.astype(jnp.float32)
    o_ref[...] = jnp.maximum(y3, 0.0).reshape(H, W, cout).astype(o_ref.dtype)


# ----------------------------------------------------------------------------
# Wrapper: layout conversion, BN folding, pallas_call
# ----------------------------------------------------------------------------
def _fold_bn(gamma, beta, mean, var, eps=BN_EPS):
    scale = gamma / jnp.sqrt(var + eps)
    shift = beta - mean * scale
    return scale, shift


def bottleneck_forward(x_nchw, params, stride=1):
    """Pallas implementation of Bottleneck.forward (downsample=None)."""
    # TODO(synk): stride>1 / downsample branch not implemented (downsample=None
    # in this config forces an identity residual, hence stride == 1).
    assert stride == 1, "downsample=None requires identity residual (stride=1)"

    x = jnp.transpose(x_nchw, (0, 2, 3, 1))  # NCHW -> NHWC
    N, H, W, cin = x.shape
    planes = params["w1"].shape[0]
    cout = params["w3"].shape[0]
    assert cout == cin, "downsample=None requires inplanes == 4*planes"

    s1, b1 = _fold_bn(params["g1"], params["b1"], params["m1"], params["v1"])
    s2, b2 = _fold_bn(params["g2"], params["b2"], params["m2"], params["v2"])
    s3, b3 = _fold_bn(params["g3"], params["b3"], params["m3"], params["v3"])

    # Fold the BN scale into the weight columns; only the shift stays in-kernel.
    w1 = jnp.transpose(params["w1"][:, :, 0, 0], (1, 0)) * s1[None, :]          # (Cin, P)
    w2 = jnp.transpose(params["w2"], (2, 3, 1, 0)) * s2[None, None, None, :]    # (3,3,P,P)
    w3 = jnp.transpose(params["w3"][:, :, 0, 0], (1, 0)) * s3[None, :]          # (P, Cout)

    bf16 = jnp.bfloat16
    x_bf = x.astype(bf16)
    w1_bf, w2_bf, w3_bf = w1.astype(bf16), w2.astype(bf16), w3.astype(bf16)
    b1_2d = b1.reshape(1, planes).astype(jnp.float32)
    b2_2d = b2.reshape(1, planes).astype(jnp.float32)
    b3_2d = b3.reshape(1, cout).astype(jnp.float32)

    out = pl.pallas_call(
        _bottleneck_kernel,
        out_shape=jax.ShapeDtypeStruct((N, H, W, cout), jnp.float32),
        grid=(N,),
        in_specs=[
            pl.BlockSpec((None, H, W, cin), lambda n: (n, 0, 0, 0)),   # x / residual
            pl.BlockSpec((cin, planes), lambda n: (0, 0)),             # w1 (resident)
            pl.BlockSpec((3, 3, planes, planes), lambda n: (0, 0, 0, 0)),  # w2
            pl.BlockSpec((planes, cout), lambda n: (0, 0)),            # w3
            pl.BlockSpec((1, planes), lambda n: (0, 0)),               # BN1 shift
            pl.BlockSpec((1, planes), lambda n: (0, 0)),               # BN2 shift
            pl.BlockSpec((1, cout), lambda n: (0, 0)),                 # BN3 shift
        ],
        out_specs=pl.BlockSpec((None, H, W, cout), lambda n: (n, 0, 0, 0)),
        scratch_shapes=[
            pltpu.VMEM((H + 2, W + 2, planes), bf16),   # padded stage-1 output
            pltpu.VMEM((H * W, planes), jnp.float32),   # stage-2 accumulator
        ],
        compiler_params=pltpu.CompilerParams(
            dimension_semantics=("parallel",),
            vmem_limit_bytes=48 * 1024 * 1024,
        ),
    )(x_bf, w1_bf, w2_bf, w3_bf, b1_2d, b2_2d, b3_2d)

    return jnp.transpose(out, (0, 3, 1, 2))  # NHWC -> NCHW


# ----------------------------------------------------------------------------
# Pure-JAX reference (eval-mode BN), for correctness checking
# ----------------------------------------------------------------------------
def reference_forward(x, p, stride=1, eps=BN_EPS):
    def conv(x, w, s=1, pad=0):
        return jax.lax.conv_general_dilated(
            x, w, (s, s), [(pad, pad), (pad, pad)],
            dimension_numbers=("NCHW", "OIHW", "NCHW"))

    def bn(x, g, b, m, v):
        sc = (g / jnp.sqrt(v + eps))[None, :, None, None]
        return (x - m[None, :, None, None]) * sc + b[None, :, None, None]

    out = jax.nn.relu(bn(conv(x, p["w1"]), p["g1"], p["b1"], p["m1"], p["v1"]))
    out = jax.nn.relu(bn(conv(out, p["w2"], stride, 1),
                         p["g2"], p["b2"], p["m2"], p["v2"]))
    out = bn(conv(out, p["w3"]), p["g3"], p["b3"], p["m3"], p["v3"])
    return jax.nn.relu(out + x)


# ----------------------------------------------------------------------------
def make_params(key, inplanes, planes):
    expansion = 4
    ks = jax.random.split(key, 6)
    f32 = jnp.float32

    def bn_params(k, c):
        k1, k2, k3, k4 = jax.random.split(k, 4)
        return (jax.random.uniform(k1, (c,), f32, 0.5, 1.5),   # gamma
                jax.random.normal(k2, (c,), f32) * 0.1,        # beta
                jax.random.normal(k3, (c,), f32) * 0.1,        # running_mean
                jax.random.uniform(k4, (c,), f32, 0.5, 1.5))   # running_var

    p = {}
    p["w1"] = jax.random.normal(ks[0], (planes, inplanes, 1, 1), f32) * 0.1
    p["w2"] = jax.random.normal(ks[1], (planes, planes, 3, 3), f32) * 0.1
    p["w3"] = jax.random.normal(ks[2], (planes * expansion, planes, 1, 1), f32) * 0.1
    p["g1"], p["b1"], p["m1"], p["v1"] = bn_params(ks[3], planes)
    p["g2"], p["b2"], p["m2"], p["v2"] = bn_params(ks[4], planes)
    p["g3"], p["b3"], p["m3"], p["v3"] = bn_params(ks[5], planes * expansion)
    return p


if __name__ == "__main__":
    # Small shapes: batch=2, inplanes=16, planes=4 (expansion 4 -> out=16), 16x16.
    N, inplanes, planes, H, W = 2, 16, 4, 16, 16
    stride = 1  # downsample=None => identity residual => stride must be 1

    key = jax.random.PRNGKey(0)
    kx, kp = jax.random.split(key)
    x = jax.random.normal(kx, (N, inplanes, H, W), jnp.float32)
    params = make_params(kp, inplanes, planes)

    out = bottleneck_forward(x, params, stride=stride)
    out = jax.block_until_ready(out)

    ref = jax.block_until_ready(reference_forward(x, params, stride=stride))
    assert out.shape == ref.shape == (N, planes * 4, H, W)
    # bf16 activations/weights (f32 accumulation) => loosened tolerance.
    assert jnp.allclose(out, ref, atol=5e-2, rtol=5e-2), \
        float(jnp.max(jnp.abs(out - ref)))

    print("KERNEL_OK")
</pallas_src>

<mosaic_0001>
module attributes {stable_mosaic.version = 11 : i64} {
  func.func @_bottleneck_kernel(%arg0: i32, %arg1: memref<1x16x16x16xbf16, #tpu.memory_space<vmem>>, %arg2: memref<16x4xbf16, #tpu.memory_space<vmem>>, %arg3: memref<3x3x4x4xbf16, #tpu.memory_space<vmem>>, %arg4: memref<4x16xbf16, #tpu.memory_space<vmem>>, %arg5: memref<1x4xf32, #tpu.memory_space<vmem>>, %arg6: memref<1x4xf32, #tpu.memory_space<vmem>>, %arg7: memref<1x16xf32, #tpu.memory_space<vmem>>, %arg8: memref<1x16x16x16xf32, #tpu.memory_space<vmem>>, %arg9: memref<18x18x4xbf16, #tpu.memory_space<vmem>>, %arg10: memref<256x4xf32, #tpu.memory_space<vmem>>) attributes {dimension_semantics = [#tpu.dimension_semantics<parallel>], iteration_bounds = array<i64: 2>, scalar_prefetch = 0 : i64, scratch_operands = 2 : i64, tpu.core_type = #tpu.core_type<tc>, window_params = [{transform_indices = @transform_0, window_bounds = array<i64: 1, 16, 16, 16>}, {pipeline_mode = #tpu.pipeline_mode<synchronous>, transform_indices = @transform_1, window_bounds = array<i64: 16, 4>}, {pipeline_mode = #tpu.pipeline_mode<synchronous>, transform_indices = @transform_2, window_bounds = array<i64: 3, 3, 4, 4>}, {pipeline_mode = #tpu.pipeline_mode<synchronous>, transform_indices = @transform_3, window_bounds = array<i64: 4, 16>}, {pipeline_mode = #tpu.pipeline_mode<synchronous>, transform_indices = @transform_4, window_bounds = array<i64: 1, 4>}, {pipeline_mode = #tpu.pipeline_mode<synchronous>, transform_indices = @transform_5, window_bounds = array<i64: 1, 4>}, {pipeline_mode = #tpu.pipeline_mode<synchronous>, transform_indices = @transform_6, window_bounds = array<i64: 1, 16>}, {transform_indices = @transform_7, window_bounds = array<i64: 1, 16, 16, 16>}]} {
    %cst = arith.constant 0.000000e+00 : bf16
    %0 = vector.broadcast %cst : bf16 to vector<18x18x4xbf16>
    %c0 = arith.constant 0 : index
    %c0_0 = arith.constant 0 : index
    %c0_1 = arith.constant 0 : index
    %1 = vector.load %arg9[%c0, %c0_0, %c0_1] : memref<18x18x4xbf16, #tpu.memory_space<vmem>>, vector<18x18x4xbf16>
    tpu.vector_store %arg9[%c0, %c0_0, %c0_1], %0 {strides = array<i32>} : memref<18x18x4xbf16, #tpu.memory_space<vmem>>, vector<18x18x4xbf16>,
    %c0_2 = arith.constant 0 : index
    %c0_3 = arith.constant 0 : index
    %c0_4 = arith.constant 0 : index
    %c0_5 = arith.constant 0 : index
    %2 = vector.load %arg1[%c0_2, %c0_3, %c0_4, %c0_5] : memref<1x16x16x16xbf16, #tpu.memory_space<vmem>>, vector<1x16x16x16xbf16>
    %3 = vector.shape_cast %2 : vector<1x16x16x16xbf16> to vector<16x16x16xbf16>
    %4 = vector.shape_cast %3 : vector<16x16x16xbf16> to vector<256x16xbf16>
    %c0_6 = arith.constant 0 : index
    %c0_7 = arith.constant 0 : index
    %5 = vector.load %arg2[%c0_6, %c0_7] : memref<16x4xbf16, #tpu.memory_space<vmem>>, vector<16x4xbf16>
    %cst_8 = arith.constant dense<0.000000e+00> : vector<256x4xf32>
    %6 = tpu.matmul %4, %5, %cst_8 {dimension_numbers = #tpu.dot_dimension_numbers<[1], [0], [0], [1], [0, 0, 1, 1], [], []>} : vector<256x16xbf16>, vector<16x4xbf16>, vector<256x4xf32> -> vector<256x4xf32>
    %c0_9 = arith.constant 0 : index
    %c0_10 = arith.constant 0 : index
    %7 = vector.load %arg5[%c0_9, %c0_10] : memref<1x4xf32, #tpu.memory_space<vmem>>, vector<1x4xf32>
    %8 = vector.broadcast %7 : vector<1x4xf32> to vector<256x4xf32>
    %9 = arith.addf %6, %8 : vector<256x4xf32>
    %cst_11 = arith.constant 0.000000e+00 : f32
    %10 = vector.broadcast %cst_11 : f32 to vector<256x4xf32>
    %11 = arith.maximumf %9, %10 : vector<256x4xf32>
    %12 = vector.shape_cast %11 : vector<256x4xf32> to vector<16x16x4xf32>
    %13 = arith.truncf %12 : vector<16x16x4xf32> to vector<16x16x4xbf16>
    %c1 = arith.constant 1 : index
    %c1_12 = arith.constant 1 : index
    %c0_13 = arith.constant 0 : index
    %14 = vector.load %arg9[%c1, %c1_12, %c0_13] : memref<18x18x4xbf16, #tpu.memory_space<vmem>>, vector<16x16x4xbf16>
    tpu.vector_store %arg9[%c1, %c1_12, %c0_13], %13 {strides = array<i32>} : memref<18x18x4xbf16, #tpu.memory_space<vmem>>, vector<16x16x4xbf16>,
    %cst_14 = arith.constant 0.000000e+00 : f32
    %15 = vector.broadcast %cst_14 : f32 to vector<256x4xf32>
    %c0_15 = arith.constant 0 : index
    %c0_16 = arith.constant 0 : index
    %16 = vector.load %arg10[%c0_15, %c0_16] : memref<256x4xf32, #tpu.memory_space<vmem>>, vector<256x4xf32>
    tpu.vector_store %arg10[%c0_15, %c0_16], %15 {strides = array<i32>} : memref<256x4xf32, #tpu.memory_space<vmem>>, vector<256x4xf32>,
    %c0_17 = arith.constant 0 : index
    %c0_18 = arith.constant 0 : index
    %c0_19 = arith.constant 0 : index
    %17 = vector.load %arg9[%c0_17, %c0_18, %c0_19] : memref<18x18x4xbf16, #tpu.memory_space<vmem>>, vector<16x16x4xbf16>
    %18 = vector.shape_cast %17 : vector<16x16x4xbf16> to vector<256x4xbf16>
    %c0_20 = arith.constant 0 : index
    %c0_21 = arith.constant 0 : index
    %19 = vector.load %arg10[%c0_20, %c0_21] : memref<256x4xf32, #tpu.memory_space<vmem>>, vector<256x4xf32>
    %c0_22 = arith.constant 0 : index
    %c0_23 = arith.constant 0 : index
    %c0_24 = arith.constant 0 : index
    %c0_25 = arith.constant 0 : index
    %20 = vector.load %arg3[%c0_22, %c0_23, %c0_24, %c0_25] : memref<3x3x4x4xbf16, #tpu.memory_space<vmem>>, vector<1x1x4x4xbf16>
    %21 = vector.shape_cast %20 : vector<1x1x4x4xbf16> to vector<4x4xbf16>
    %cst_26 = arith.constant dense<0.000000e+00> : vector<256x4xf32>
    %22 = tpu.matmul %18, %21, %cst_26 {dimension_numbers = #tpu.dot_dimension_numbers<[1], [0], [0], [1], [0, 0, 1, 1], [], []>} : vector<256x4xbf16>, vector<4x4xbf16>, vector<256x4xf32> -> vector<256x4xf32>
    %23 = arith.addf %19, %22 : vector<256x4xf32>
    %c0_27 = arith.constant 0 : index
    %c0_28 = arith.constant 0 : index
    %24 = vector.load %arg10[%c0_27, %c0_28] : memref<256x4xf32, #tpu.memory_space<vmem>>, vector<256x4xf32>
    tpu.vector_store %arg10[%c0_27, %c0_28], %23 {strides = array<i32>} : memref<256x4xf32, #tpu.memory_space<vmem>>, vector<256x4xf32>,
    %c0_29 = arith.constant 0 : index
    %c1_30 = arith.constant 1 : index
    %c0_31 = arith.constant 0 : index
    %25 = vector.load %arg9[%c0_29, %c1_30, %c0_31] : memref<18x18x4xbf16, #tpu.memory_space<vmem>>, vector<16x16x4xbf16>
    %26 = vector.shape_cast %25 : vector<16x16x4xbf16> to vector<256x4xbf16>
    %c0_32 = arith.constant 0 : index
    %c0_33 = arith.constant 0 : index
    %27 = vector.load %arg10[%c0_32, %c0_33] : memref<256x4xf32, #tpu.memory_space<vmem>>, vector<256x4xf32>
    %c0_34 = arith.constant 0 : index
    %c1_35 = arith.constant 1 : index
    %c0_36 = arith.constant 0 : index
    %c0_37 = arith.constant 0 : index
    %28 = vector.load %arg3[%c0_34, %c1_35, %c0_36, %c0_37] : memref<3x3x4x4xbf16, #tpu.memory_space<vmem>>, vector<1x1x4x4xbf16>
    %29 = vector.shape_cast %28 : vector<1x1x4x4xbf16> to vector<4x4xbf16>
    %cst_38 = arith.constant dense<0.000000e+00> : vector<256x4xf32>
    %30 = tpu.matmul %26, %29, %cst_38 {dimension_numbers = #tpu.dot_dimension_numbers<[1], [0], [0], [1], [0, 0, 1, 1], [], []>} : vector<256x4xbf16>, vector<4x4xbf16>, vector<256x4xf32> -> vector<256x4xf32>
    %31 = arith.addf %27, %30 : vector<256x4xf32>
    %c0_39 = arith.constant 0 : index
    %c0_40 = arith.constant 0 : index
    %32 = vector.load %arg10[%c0_39, %c0_40] : memref<256x4xf32, #tpu.memory_space<vmem>>, vector<256x4xf32>
    tpu.vector_store %arg10[%c0_39, %c0_40], %31 {strides = array<i32>} : memref<256x4xf32, #tpu.memory_space<vmem>>, vector<256x4xf32>,
    %c0_41 = arith.constant 0 : index
    %c2 = arith.constant 2 : index
    %c0_42 = arith.constant 0 : index
    %33 = vector.load %arg9[%c0_41, %c2, %c0_42] : memref<18x18x4xbf16, #tpu.memory_space<vmem>>, vector<16x16x4xbf16>
    %34 = vector.shape_cast %33 : vector<16x16x4xbf16> to vector<256x4xbf16>
    %c0_43 = arith.constant 0 : index
    %c0_44 = arith.constant 0 : index
    %35 = vector.load %arg10[%c0_43, %c0_44] : memref<256x4xf32, #tpu.memory_space<vmem>>, vector<256x4xf32>
    %c0_45 = arith.constant 0 : index
    %c2_46 = arith.constant 2 : index
    %c0_47 = arith.constant 0 : index
    %c0_48 = arith.constant 0 : index
    %36 = vector.load %arg3[%c0_45, %c2_46, %c0_47, %c0_48] : memref<3x3x4x4xbf16, #tpu.memory_space<vmem>>, vector<1x1x4x4xbf16>
    %37 = vector.shape_cast %36 : vector<1x1x4x4xbf16> to vector<4x4xbf16>
    %cst_49 = arith.constant dense<0.000000e+00> : vector<256x4xf32>
    %38 = tpu.matmul %34, %37, %cst_49 {dimension_numbers = #tpu.dot_dimension_numbers<[1], [0], [0], [1], [0, 0, 1, 1], [], []>} : vector<256x4xbf16>, vector<4x4xbf16>, vector<256x4xf32> -> vector<256x4xf32>
    %39 = arith.addf %35, %38 : vector<256x4xf32>
    %c0_50 = arith.constant 0 : index
    %c0_51 = arith.constant 0 : index
    %40 = vector.load %arg10[%c0_50, %c0_51] : memref<256x4xf32, #tpu.memory_space<vmem>>, vector<256x4xf32>
    tpu.vector_store %arg10[%c0_50, %c0_51], %39 {strides = array<i32>} : memref<256x4xf32, #tpu.memory_space<vmem>>, vector<256x4xf32>,
    %c1_52 = arith.constant 1 : index
    %c0_53 = arith.constant 0 : index
    %c0_54 = arith.constant 0 : index
    %41 = vector.load %arg9[%c1_52, %c0_53, %c0_54] : memref<18x18x4xbf16, #tpu.memory_space<vmem>>, vector<16x16x4xbf16>
    %42 = vector.shape_cast %41 : vector<16x16x4xbf16> to vector<256x4xbf16>
    %c0_55 = arith.constant 0 : index
    %c0_56 = arith.constant 0 : index
    %43 = vector.load %arg10[%c0_55, %c0_56] : memref<256x4xf32, #tpu.memory_space<vmem>>, vector<256x4xf32>
    %c1_57 = arith.constant 1 : index
    %c0_58 = arith.constant 0 : index
    %c0_59 = arith.constant 0 : index
    %c0_60 = arith.constant 0 : index
    %44 = vector.load %arg3[%c1_57, %c0_58, %c0_59, %c0_60] : memref<3x3x4x4xbf16, #tpu.memory_space<vmem>>, vector<1x1x4x4xbf16>
    %45 = vector.shape_cast %44 : vector<1x1x4x4xbf16> to vector<4x4xbf16>
    %cst_61 = arith.constant dense<0.000000e+00> : vector<256x4xf32>
    %46 = tpu.matmul %42, %45, %cst_61 {dimension_numbers = #tpu.dot_dimension_numbers<[1], [0], [0], [1], [0, 0, 1, 1], [], []>} : vector<256x4xbf16>, vector<4x4xbf16>, vector<256x4xf32> -> vector<256x4xf32>
    %47 = arith.addf %43, %46 : vector<256x4xf32>
    %c0_62 = arith.constant 0 : index
    %c0_63 = arith.constant 0 : index
    %48 = vector.load %arg10[%c0_62, %c0_63] : memref<256x4xf32, #tpu.memory_space<vmem>>, vector<256x4xf32>
    tpu.vector_store %arg10[%c0_62, %c0_63], %47 {strides = array<i32>} : memref<256x4xf32, #tpu.memory_space<vmem>>, vector<256x4xf32>,
    %c1_64 = arith.constant 1 : index
    %c1_65 = arith.constant 1 : index
    %c0_66 = arith.constant 0 : index
    %49 = vector.load %arg9[%c1_64, %c1_65, %c0_66] : memref<18x18x4xbf16, #tpu.memory_space<vmem>>, vector<16x16x4xbf16>
    %50 = vector.shape_cast %49 : vector<16x16x4xbf16> to vector<256x4xbf16>
    %c0_67 = arith.constant 0 : index
    %c0_68 = arith.constant 0 : index
    %51 = vector.load %arg10[%c0_67, %c0_68] : memref<256x4xf32, #tpu.memory_space<vmem>>, vector<256x4xf32>
    %c1_69 = arith.constant 1 : index
    %c1_70 = arith.constant 1 : index
    %c0_71 = arith.constant 0 : index
    %c0_72 = arith.constant 0 : index
    %52 = vector.load %arg3[%c1_69, %c1_70, %c0_71, %c0_72] : memref<3x3x4x4xbf16, #tpu.memory_space<vmem>>, vector<1x1x4x4xbf16>
    %53 = vector.shape_cast %52 : vector<1x1x4x4xbf16> to vector<4x4xbf16>
    %cst_73 = arith.constant dense<0.000000e+00> : vector<256x4xf32>
    %54 = tpu.matmul %50, %53, %cst_73 {dimension_numbers = #tpu.dot_dimension_numbers<[1], [0], [0], [1], [0, 0, 1, 1], [], []>} : vector<256x4xbf16>, vector<4x4xbf16>, vector<256x4xf32> -> vector<256x4xf32>
    %55 = arith.addf %51, %54 : vector<256x4xf32>
    %c0_74 = arith.constant 0 : index
    %c0_75 = arith.constant 0 : index
    %56 = vector.load %arg10[%c0_74, %c0_75] : memref<256x4xf32, #tpu.memory_space<vmem>>, vector<256x4xf32>
    tpu.vector_store %arg10[%c0_74, %c0_75], %55 {strides = array<i32>} : memref<256x4xf32, #tpu.memory_space<vmem>>, vector<256x4xf32>,
    %c1_76 = arith.constant 1 : index
    %c2_77 = arith.constant 2 : index
    %c0_78 = arith.constant 0 : index
    %57 = vector.load %arg9[%c1_76, %c2_77, %c0_78] : memref<18x18x4xbf16, #tpu.memory_space<vmem>>, vector<16x16x4xbf16>
    %58 = vector.shape_cast %57 : vector<16x16x4xbf16> to vector<256x4xbf16>
    %c0_79 = arith.constant 0 : index
    %c0_80 = arith.constant 0 : index
    %59 = vector.load %arg10[%c0_79, %c0_80] : memref<256x4xf32, #tpu.memory_space<vmem>>, vector<256x4xf32>
    %c1_81 = arith.constant 1 : index
    %c2_82 = arith.constant 2 : index
    %c0_83 = arith.constant 0 : index
    %c0_84 = arith.constant 0 : index
    %60 = vector.load %arg3[%c1_81, %c2_82, %c0_83, %c0_84] : memref<3x3x4x4xbf16, #tpu.memory_space<vmem>>, vector<1x1x4x4xbf16>
    %61 = vector.shape_cast %60 : vector<1x1x4x4xbf16> to vector<4x4xbf16>
    %cst_85 = arith.constant dense<0.000000e+00> : vector<256x4xf32>
    %62 = tpu.matmul %58, %61, %cst_85 {dimension_numbers = #tpu.dot_dimension_numbers<[1], [0], [0], [1], [0, 0, 1, 1], [], []>} : vector<256x4xbf16>, vector<4x4xbf16>, vector<256x4xf32> -> vector<256x4xf32>
    %63 = arith.addf %59, %62 : vector<256x4xf32>
    %c0_86 = arith.constant 0 : index
    %c0_87 = arith.constant 0 : index
    %64 = vector.load %arg10[%c0_86, %c0_87] : memref<256x4xf32, #tpu.memory_space<vmem>>, vector<256x4xf32>
    tpu.vector_store %arg10[%c0_86, %c0_87], %63 {strides = array<i32>} : memref<256x4xf32, #tpu.memory_space<vmem>>, vector<256x4xf32>,
    %c2_88 = arith.constant 2 : index
    %c0_89 = arith.constant 0 : index
    %c0_90 = arith.constant 0 : index
    %65 = vector.load %arg9[%c2_88, %c0_89, %c0_90] : memref<18x18x4xbf16, #tpu.memory_space<vmem>>, vector<16x16x4xbf16>
    %66 = vector.shape_cast %65 : vector<16x16x4xbf16> to vector<256x4xbf16>
    %c0_91 = arith.constant 0 : index
    %c0_92 = arith.constant 0 : index
    %67 = vector.load %arg10[%c0_91, %c0_92] : memref<256x4xf32, #tpu.memory_space<vmem>>, vector<256x4xf32>
    %c2_93 = arith.constant 2 : index
    %c0_94 = arith.constant 0 : index
    %c0_95 = arith.constant 0 : index
    %c0_96 = arith.constant 0 : index
    %68 = vector.load %arg3[%c2_93, %c0_94, %c0_95, %c0_96] : memref<3x3x4x4xbf16, #tpu.memory_space<vmem>>, vector<1x1x4x4xbf16>
    %69 = vector.shape_cast %68 : vector<1x1x4x4xbf16> to vector<4x4xbf16>
    %cst_97 = arith.constant dense<0.000000e+00> : vector<256x4xf32>
    %70 = tpu.matmul %66, %69, %cst_97 {dimension_numbers = #tpu.dot_dimension_numbers<[1], [0], [0], [1], [0, 0, 1, 1], [], []>} : vector<256x4xbf16>, vector<4x4xbf16>, vector<256x4xf32> -> vector<256x4xf32>
    %71 = arith.addf %67, %70 : vector<256x4xf32>
    %c0_98 = arith.constant 0 : index
    %c0_99 = arith.constant 0 : index
    %72 = vector.load %arg10[%c0_98, %c0_99] : memref<256x4xf32, #tpu.memory_space<vmem>>, vector<256x4xf32>
    tpu.vector_store %arg10[%c0_98, %c0_99], %71 {strides = array<i32>} : memref<256x4xf32, #tpu.memory_space<vmem>>, vector<256x4xf32>,
    %c2_100 = arith.constant 2 : index
    %c1_101 = arith.constant 1 : index
    %c0_102 = arith.constant 0 : index
    %73 = vector.load %arg9[%c2_100, %c1_101, %c0_102] : memref<18x18x4xbf16, #tpu.memory_space<vmem>>, vector<16x16x4xbf16>
    %74 = vector.shape_cast %73 : vector<16x16x4xbf16> to vector<256x4xbf16>
    %c0_103 = arith.constant 0 : index
    %c0_104 = arith.constant 0 : index
    %75 = vector.load %arg10[%c0_103, %c0_104] : memref<256x4xf32, #tpu.memory_space<vmem>>, vector<256x4xf32>
    %c2_105 = arith.constant 2 : index
    %c1_106 = arith.constant 1 : index
    %c0_107 = arith.constant 0 : index
    %c0_108 = arith.constant 0 : index
    %76 = vector.load %arg3[%c2_105, %c1_106, %c0_107, %c0_108] : memref<3x3x4x4xbf16, #tpu.memory_space<vmem>>, vector<1x1x4x4xbf16>
    %77 = vector.shape_cast %76 : vector<1x1x4x4xbf16> to vector<4x4xbf16>
    %cst_109 = arith.constant dense<0.000000e+00> : vector<256x4xf32>
    %78 = tpu.matmul %74, %77, %cst_109 {dimension_numbers = #tpu.dot_dimension_numbers<[1], [0], [0], [1], [0, 0, 1, 1], [], []>} : vector<256x4xbf16>, vector<4x4xbf16>, vector<256x4xf32> -> vector<256x4xf32>
    %79 = arith.addf %75, %78 : vector<256x4xf32>
    %c0_110 = arith.constant 0 : index
    %c0_111 = arith.constant 0 : index
    %80 = vector.load %arg10[%c0_110, %c0_111] : memref<256x4xf32, #tpu.memory_space<vmem>>, vector<256x4xf32>
    tpu.vector_store %arg10[%c0_110, %c0_111], %79 {strides = array<i32>} : memref<256x4xf32, #tpu.memory_space<vmem>>, vector<256x4xf32>,
    %c2_112 = arith.constant 2 : index
    %c2_113 = arith.constant 2 : index
    %c0_114 = arith.constant 0 : index
    %81 = vector.load %arg9[%c2_112, %c2_113, %c0_114] : memref<18x18x4xbf16, #tpu.memory_space<vmem>>, vector<16x16x4xbf16>
    %82 = vector.shape_cast %81 : vector<16x16x4xbf16> to vector<256x4xbf16>
    %c0_115 = arith.constant 0 : index
    %c0_116 = arith.constant 0 : index
    %83 = vector.load %arg10[%c0_115, %c0_116] : memref<256x4xf32, #tpu.memory_space<vmem>>, vector<256x4xf32>
    %c2_117 = arith.constant 2 : index
    %c2_118 = arith.constant 2 : index
    %c0_119 = arith.constant 0 : index
    %c0_120 = arith.constant 0 : index
    %84 = vector.load %arg3[%c2_117, %c2_118, %c0_119, %c0_120] : memref<3x3x4x4xbf16, #tpu.memory_space<vmem>>, vector<1x1x4x4xbf16>
    %85 = vector.shape_cast %84 : vector<1x1x4x4xbf16> to vector<4x4xbf16>
    %cst_121 = arith.constant dense<0.000000e+00> : vector<256x4xf32>
    %86 = tpu.matmul %82, %85, %cst_121 {dimension_numbers = #tpu.dot_dimension_numbers<[1], [0], [0], [1], [0, 0, 1, 1], [], []>} : vector<256x4xbf16>, vector<4x4xbf16>, vector<256x4xf32> -> vector<256x4xf32>
    %87 = arith.addf %83, %86 : vector<256x4xf32>
    %c0_122 = arith.constant 0 : index
    %c0_123 = arith.constant 0 : index
    %88 = vector.load %arg10[%c0_122, %c0_123] : memref<256x4xf32, #tpu.memory_space<vmem>>, vector<256x4xf32>
    tpu.vector_store %arg10[%c0_122, %c0_123], %87 {strides = array<i32>} : memref<256x4xf32, #tpu.memory_space<vmem>>, vector<256x4xf32>,
    %c0_124 = arith.constant 0 : index
    %c0_125 = arith.constant 0 : index
    %89 = vector.load %arg10[%c0_124, %c0_125] : memref<256x4xf32, #tpu.memory_space<vmem>>, vector<256x4xf32>
    %c0_126 = arith.constant 0 : index
    %c0_127 = arith.constant 0 : index
    %90 = vector.load %arg6[%c0_126, %c0_127] : memref<1x4xf32, #tpu.memory_space<vmem>>, vector<1x4xf32>
    %91 = vector.broadcast %90 : vector<1x4xf32> to vector<256x4xf32>
    %92 = arith.addf %89, %91 : vector<256x4xf32>
    %cst_128 = arith.constant 0.000000e+00 : f32
    %93 = vector.broadcast %cst_128 : f32 to vector<256x4xf32>
    %94 = arith.maximumf %92, %93 : vector<256x4xf32>
    %95 = arith.truncf %94 : vector<256x4xf32> to vector<256x4xbf16>
    %c0_129 = arith.constant 0 : index
    %c0_130 = arith.constant 0 : index
    %96 = vector.load %arg4[%c0_129, %c0_130] : memref<4x16xbf16, #tpu.memory_space<vmem>>, vector<4x16xbf16>
    %cst_131 = arith.constant dense<0.000000e+00> : vector<256x16xf32>
    %97 = tpu.matmul %95, %96, %cst_131 {dimension_numbers = #tpu.dot_dimension_numbers<[1], [0], [0], [1], [0, 0, 1, 1], [], []>} : vector<256x4xbf16>, vector<4x16xbf16>, vector<256x16xf32> -> vector<256x16xf32>
    %c0_132 = arith.constant 0 : index
    %c0_133 = arith.constant 0 : index
    %98 = vector.load %arg7[%c0_132, %c0_133] : memref<1x16xf32, #tpu.memory_space<vmem>>, vector<1x16xf32>
    %99 = vector.broadcast %98 : vector<1x16xf32> to vector<256x16xf32>
    %100 = arith.addf %97, %99 : vector<256x16xf32>
    %101 = arith.extf %4 : vector<256x16xbf16> to vector<256x16xf32>
    %102 = arith.addf %100, %101 : vector<256x16xf32>
    %cst_134 = arith.constant 0.000000e+00 : f32
    %103 = vector.broadcast %cst_134 : f32 to vector<256x16xf32>
    %104 = arith.maximumf %102, %103 : vector<256x16xf32>
    %105 = vector.shape_cast %104 : vector<256x16xf32> to vector<16x16x16xf32>
    %c0_135 = arith.constant 0 : index
    %c0_136 = arith.constant 0 : index
    %c0_137 = arith.constant 0 : index
    %c0_138 = arith.constant 0 : index
    %106 = vector.load %arg8[%c0_135, %c0_136, %c0_137, %c0_138] : memref<1x16x16x16xf32, #tpu.memory_space<vmem>>, vector<1x16x16x16xf32>
    %107 = vector.shape_cast %106 : vector<1x16x16x16xf32> to vector<16x16x16xf32>
    %108 = vector.shape_cast %105 : vector<16x16x16xf32> to vector<1x16x16x16xf32>
    tpu.vector_store %arg8[%c0_135, %c0_136, %c0_137, %c0_138], %108 {strides = array<i32>} : memref<1x16x16x16xf32, #tpu.memory_space<vmem>>, vector<1x16x16x16xf32>,
    return
  }
  func.func @transform_0(%arg0: i32) -> (i32, i32, i32, i32) {
    %c0_i32 = arith.constant 0 : i32
    %c0_i32_0 = arith.constant 0 : i32
    %c0_i32_1 = arith.constant 0 : i32
    %c0_i32_2 = arith.constant 0 : i32
    return %arg0, %c0_i32, %c0_i32_0, %c0_i32_1 : i32, i32, i32, i32
  }
  func.func @transform_1(%arg0: i32) -> (i32, i32) {
    %c0_i32 = arith.constant 0 : i32
    %c0_i32_0 = arith.constant 0 : i32
    %c0_i32_1 = arith.constant 0 : i32
    return %c0_i32, %c0_i32_0 : i32, i32
  }
  func.func @transform_2(%arg0: i32) -> (i32, i32, i32, i32) {
    %c0_i32 = arith.constant 0 : i32
    %c0_i32_0 = arith.constant 0 : i32
    %c0_i32_1 = arith.constant 0 : i32
    %c0_i32_2 = arith.constant 0 : i32
    %c0_i32_3 = arith.constant 0 : i32
    return %c0_i32, %c0_i32_0, %c0_i32_1, %c0_i32_2 : i32, i32, i32, i32
  }
  func.func @transform_3(%arg0: i32) -> (i32, i32) {
    %c0_i32 = arith.constant 0 : i32
    %c0_i32_0 = arith.constant 0 : i32
    %c0_i32_1 = arith.constant 0 : i32
    return %c0_i32, %c0_i32_0 : i32, i32
  }
  func.func @transform_4(%arg0: i32) -> (i32, i32) {
    %c0_i32 = arith.constant 0 : i32
    %c0_i32_0 = arith.constant 0 : i32
    %c0_i32_1 = arith.constant 0 : i32
    return %c0_i32, %c0_i32_0 : i32, i32
  }
  func.func @transform_5(%arg0: i32) -> (i32, i32) {
    %c0_i32 = arith.constant 0 : i32
    %c0_i32_0 = arith.constant 0 : i32
    %c0_i32_1 = arith.constant 0 : i32
    return %c0_i32, %c0_i32_0 : i32, i32
  }
  func.func @transform_6(%arg0: i32) -> (i32, i32) {
    %c0_i32 = arith.constant 0 : i32
    %c0_i32_0 = arith.constant 0 : i32
    %c0_i32_1 = arith.constant 0 : i32
    return %c0_i32, %c0_i32_0 : i32, i32
  }
  func.func @transform_7(%arg0: i32) -> (i32, i32, i32, i32) {
    %c0_i32 = arith.constant 0 : i32
    %c0_i32_0 = arith.constant 0 : i32
    %c0_i32_1 = arith.constant 0 : i32
    %c0_i32_2 = arith.constant 0 : i32
    return %arg0, %c0_i32, %c0_i32_0, %c0_i32_1 : i32, i32, i32, i32
  }
}

</mosaic_0001>

<llo_original>
// kernel: tpu_custom_call.1
$region0: #{tpu_custom_call.1}
  #allocation0 [shape = 'u32[]', space=smem, size = 0x4, offset = 0x4, fixed_abs, tag = 'smem constant byte address 0x4 - core index']
  #allocation1 [shape = 'u32[144,128]{1,0:T(1,128)}', space=vmem, size = 0x12000, scoped, tag = 'internal scratch']
  #allocation2 [shape = 'bf16[18,18,4]{2,1,0:T(8,128)(2,1)}', space=vmem, size = 0x1b000, scoped, tag = 'scratch operand']
  #allocation3 [shape = 'f32[256,4]{1,0:T(8,128)}', space=vmem, size = 0x20000, scoped, tag = 'scratch operand']
  %s0 = inlined_call_operand.hbm [shape: bf16[2,16,16,16], index: 0, kind: input, shape index: {}]
  %s1 = inlined_call_operand.vmem [shape: bf16[16,4], index: 1, kind: input, shape index: {}]
  %s2 = inlined_call_operand.hbm [shape: bf16[3,3,4,4], index: 2, kind: input, shape index: {}]
  %s3 = inlined_call_operand.vmem [shape: bf16[4,16], index: 3, kind: input, shape index: {}]
  %s4 = inlined_call_operand.vmem [shape: f32[1,4], index: 4, kind: input, shape index: {}]
  %s5 = inlined_call_operand.vmem [shape: f32[1,4], index: 5, kind: input, shape index: {}]
  %s6 = inlined_call_operand.vmem [shape: f32[1,16], index: 6, kind: input, shape index: {}]
  %s7 = inlined_call_operand.hbm [shape: f32[2,16,16,16], index: 7, kind: output, shape index: {}]
  %s8 = sld [smem:[#allocation0]]
  $region69: #{tpu_custom_call.1} parent=0
    _
  %s10 = ssub.s32 1, %s8
  %s11 = scalar_select 0, %s10, %s8
  $region1: #{tpu_custom_call.1} parent=0
    #allocation4 [shape = 'u8[131072]{0}', space=vmem, size = 0x20000, scoped, tag = 'input window, operand 0']
    #allocation5 [shape = 's32[2]{0}', space=sflag, size = 0x8, scoped, tag = 'scoped memory for tpu_custom_call.1']
    #allocation6 [shape = 's32[2]{0}', space=sflag, size = 0x8, scoped, tag = 'scoped memory for tpu_custom_call.1']
    #allocation7 [shape = 'u8[9216]{0}', space=vmem, size = 0x2400, scoped, tag = 'input window, operand 2, single buffered']
    #allocation8 [shape = 's32[1]{0}', space=sflag, size = 0x4, scoped, tag = 'scoped memory for tpu_custom_call.1']
    #allocation9 [shape = 'u8[262144]{0}', space=vmem, size = 0x40000, scoped, tag = 'output window, operand 0']
    %12 = vsyncpa [#allocation5], 0
    %s13 = scalar_lea.sflag [#allocation5], 1
    %14 = vsyncpa %s13, 0
    %15 = vsyncpa [#allocation8], 0
    %16 = vsyncpa [#allocation6], 0
    %s17 = scalar_lea.sflag [#allocation6], 1
    %18 = vsyncpa %s17, 0
    loop: start=0, step=1, limit=4
    $region2: #{tpu_custom_call.1} parent=1 // loop_pre_header
      _
    $region3: #{tpu_custom_call.1} parent=1 // loop_header
      %s20 = sphi 0, %s24
      %p21 = scmp.ge.s32.totalorder %s20, 4
      %s30 = sphi 0, %s32
      %s33 = sphi 0, %s30
      %s34 = sphi 0, %s33
      %s50 = sphi 0, %s34
      %s54 = sphi 0, %s54
      %s56 = sphi 0, %s54
      %s57 = sphi 0, %s56
      %s71 = sphi 0, %s57
      %s75 = sphi 0, %s75
      %s77 = sphi 0, %s75
      %s78 = sphi 0, %s77
      %s92 = sphi 0, %s78
      %s96 = sphi 0, %s96
      %s98 = sphi 0, %s96
      %s99 = sphi 0, %s98
      %s113 = sphi 0, %s99
      %s117 = sphi 0, %s117
      %s119 = sphi 0, %s117
      %s120 = sphi 0, %s119
      %s134 = sphi 0, %s120
      %s138 = sphi 0, %s138
      %s140 = sphi 0, %s138
      %s141 = sphi 0, %s140
      %s155 = sphi 0, %s141
      %s159 = sphi 0, %s159
      %s161 = sphi 0, %s159
      %s162 = sphi 0, %s161
      %s176 = sphi 0, %s162
      %s182 = sphi 0, %s184
      %s185 = sphi 0, %s182
      %s186 = sphi 0, %s185
      %s202 = sphi 0, %s186
    $region4: #{tpu_custom_call.1} parent=1 // loop_header_branch
      %23 = sbr.rel (%p21) target = $region8
    $region5: #{tpu_custom_call.1} parent=1 // loop_body
      %s25 = ssub.s32 %s20, 1
      %s26 = ssub.s32 %s20, 2
      %s27 = sadd.s32 %s20, 1
      %s28 = ssub.s32 %s20, %s27
      %p29 = scmp.eq.s32.totalorder %s28, 0
      %s31 = sadd.s32 %s30, 1
      %s32 = scalar_select %p29, %s30, %s31
      %p35 = pneg %p29
      %p36 = scmp.eq.s32.totalorder %s20, 1
      %p37 = por %p35, %p36
      %p38 = scmp.ne.s32.totalorder %s30, %s33
      %p39 = scmp.eq.s32.totalorder %s20, 0
      %p40 = por %p38, %p39
      %p41 = scmp.ne.s32.totalorder %s30, %s33
      %p42 = scmp.eq.s32.totalorder %s25, 1
      %p43 = por %p41, %p42
      %p44 = scmp.ne.s32.totalorder %s33, %s34
      %p45 = scmp.eq.s32.totalorder %s25, 0
      %p46 = por %p44, %p45
      %p47 = scmp.ne.s32.totalorder %s33, %s34
      %p48 = scmp.eq.s32.totalorder %s26, 1
      %p49 = por %p47, %p48
      %p51 = scmp.ne.s32.totalorder %s34, %s50
      %p52 = scmp.eq.s32.totalorder %s26, 0
      %p53 = por %p51, %p52
      %s55 = sadd.s32 %s54, 1
      %p58 = scmp.eq.s32.totalorder %s20, 1
      %p59 = scmp.ne.s32.totalorder %s54, %s56
      %p60 = scmp.eq.s32.totalorder %s20, 0
      %p61 = por %p59, %p60
      %p62 = scmp.ne.s32.totalorder %s54, %s56
      %p63 = scmp.eq.s32.totalorder %s25, 1
      %p64 = por %p62, %p63
      %p65 = scmp.ne.s32.totalorder %s56, %s57
      %p66 = scmp.eq.s32.totalorder %s25, 0
      %p67 = por %p65, %p66
      %p68 = scmp.ne.s32.totalorder %s56, %s57
      %p69 = scmp.eq.s32.totalorder %s26, 1
      %p70 = por %p68, %p69
      %p72 = scmp.ne.s32.totalorder %s57, %s71
      %p73 = scmp.eq.s32.totalorder %s26, 0
      %p74 = por %p72, %p73
      %s76 = sadd.s32 %s75, 1
      %p79 = scmp.eq.s32.totalorder %s20, 1
      %p80 = scmp.ne.s32.totalorder %s75, %s77
      %p81 = scmp.eq.s32.totalorder %s20, 0
      %p82 = por %p80, %p81
      %p83 = scmp.ne.s32.totalorder %s75, %s77
      %p84 = scmp.eq.s32.totalorder %s25, 1
      %p85 = por %p83, %p84
      %p86 = scmp.ne.s32.totalorder %s77, %s78
      %p87 = scmp.eq.s32.totalorder %s25, 0
      %p88 = por %p86, %p87
      %p89 = scmp.ne.s32.totalorder %s77, %s78
      %p90 = scmp.eq.s32.totalorder %s26, 1
      %p91 = por %p89, %p90
      %p93 = scmp.ne.s32.totalorder %s78, %s92
      %p94 = scmp.eq.s32.totalorder %s26, 0
      %p95 = por %p93, %p94
      %s97 = sadd.s32 %s96, 1
      %p100 = scmp.eq.s32.totalorder %s20, 1
      %p101 = scmp.ne.s32.totalorder %s96, %s98
      %p102 = scmp.eq.s32.totalorder %s20, 0
      %p103 = por %p101, %p102
      %p104 = scmp.ne.s32.totalorder %s96, %s98
      %p105 = scmp.eq.s32.totalorder %s25, 1
      %p106 = por %p104, %p105
      %p107 = scmp.ne.s32.totalorder %s98, %s99
      %p108 = scmp.eq.s32.totalorder %s25, 0
      %p109 = por %p107, %p108
      %p110 = scmp.ne.s32.totalorder %s98, %s99
      %p111 = scmp.eq.s32.totalorder %s26, 1
      %p112 = por %p110, %p111
      %p114 = scmp.ne.s32.totalorder %s99, %s113
      %p115 = scmp.eq.s32.totalorder %s26, 0
      %p116 = por %p114, %p115
      %s118 = sadd.s32 %s117, 1
      %p121 = scmp.eq.s32.totalorder %s20, 1
      %p122 = scmp.ne.s32.totalorder %s117, %s119
      %p123 = scmp.eq.s32.totalorder %s20, 0
      %p124 = por %p122, %p123
      %p125 = scmp.ne.s32.totalorder %s117, %s119
      %p126 = scmp.eq.s32.totalorder %s25, 1
      %p127 = por %p125, %p126
      %p128 = scmp.ne.s32.totalorder %s119, %s120
      %p129 = scmp.eq.s32.totalorder %s25, 0
      %p130 = por %p128, %p129
      %p131 = scmp.ne.s32.totalorder %s119, %s120
      %p132 = scmp.eq.s32.totalorder %s26, 1
      %p133 = por %p131, %p132
      %p135 = scmp.ne.s32.totalorder %s120, %s134
      %p136 = scmp.eq.s32.totalorder %s26, 0
      %p137 = por %p135, %p136
      %s139 = sadd.s32 %s138, 1
      %p142 = scmp.eq.s32.totalorder %s20, 1
      %p143 = scmp.ne.s32.totalorder %s138, %s140
      %p144 = scmp.eq.s32.totalorder %s20, 0
      %p145 = por %p143, %p144
      %p146 = scmp.ne.s32.totalorder %s138, %s140
      %p147 = scmp.eq.s32.totalorder %s25, 1
      %p148 = por %p146, %p147
      %p149 = scmp.ne.s32.totalorder %s140, %s141
      %p150 = scmp.eq.s32.totalorder %s25, 0
      %p151 = por %p149, %p150
      %p152 = scmp.ne.s32.totalorder %s140, %s141
      %p153 = scmp.eq.s32.totalorder %s26, 1
      %p154 = por %p152, %p153
      %p156 = scmp.ne.s32.totalorder %s141, %s155
      %p157 = scmp.eq.s32.totalorder %s26, 0
      %p158 = por %p156, %p157
      %s160 = sadd.s32 %s159, 1
      %p163 = scmp.eq.s32.totalorder %s20, 1
      %p164 = scmp.ne.s32.totalorder %s159, %s161
      %p165 = scmp.eq.s32.totalorder %s20, 0
      %p166 = por %p164, %p165
      %p167 = scmp.ne.s32.totalorder %s159, %s161
      %p168 = scmp.eq.s32.totalorder %s25, 1
      %p169 = por %p167, %p168
      %p170 = scmp.ne.s32.totalorder %s161, %s162
      %p171 = scmp.eq.s32.totalorder %s25, 0
      %p172 = por %p170, %p171
      %p173 = scmp.ne.s32.totalorder %s161, %s162
      %p174 = scmp.eq.s32.totalorder %s26, 1
      %p175 = por %p173, %p174
      %p177 = scmp.ne.s32.totalorder %s162, %s176
      %p178 = scmp.eq.s32.totalorder %s26, 0
      %p179 = por %p177, %p178
      %s180 = ssub.s32 %s20, %s27
      %p181 = scmp.eq.s32.totalorder %s180, 0
      %s183 = sadd.s32 %s182, 1
      %s184 = scalar_select %p181, %s182, %s183
      %p187 = pneg %p181
      %p188 = scmp.eq.s32.totalorder %s20, 1
      %p189 = por %p187, %p188
      %p190 = scmp.ne.s32.totalorder %s182, %s185
      %p191 = scmp.eq.s32.totalorder %s20, 0
      %p192 = por %p190, %p191
      %p193 = scmp.ne.s32.totalorder %s182, %s185
      %p194 = scmp.eq.s32.totalorder %s25, 1
      %p195 = por %p193, %p194
      %p196 = scmp.ne.s32.totalorder %s185, %s186
      %p197 = scmp.eq.s32.totalorder %s25, 0
      %p198 = por %p196, %p197
      %p199 = scmp.ne.s32.totalorder %s185, %s186
      %p200 = scmp.eq.s32.totalorder %s26, 1
      %p201 = por %p199, %p200
      %p203 = scmp.ne.s32.totalorder %s186, %s202
      %p204 = scmp.eq.s32.totalorder %s26, 0
      %p205 = por %p203, %p204
      %p206 = scmp.le.s32.totalorder 1, %s20
      %p207 = scmp.lt.s32.totalorder %s20, 3
      %p208 = pnand %p206, %p207
      %p209 = pneg %p208
      // Predicated region
      $region9: #{tpu_custom_call.1} parent=5 // pred_check
        _
      $region10: #{tpu_custom_call.1} parent=5 // pred_check_branch
        %211 = sbr.rel (%p208) target = $region12
      $region11: #{tpu_custom_call.1} parent=5 // pred_region
        %s212 = ssub.s32 %s20, 1
        // Predicated region
        $region13: #{tpu_custom_call.1} parent=11 // pred_check
          %p213 = pneg %p67
        $region14: #{tpu_custom_call.1} parent=11 // pred_check_branch
          %215 = sbr.rel (%p213) target = $region16
        $region15: #{tpu_custom_call.1} parent=11 // pred_region
          _
        $region16: #{tpu_custom_call.1} parent=11 // pred_fallthru
          _
        // Predicated region
        $region17: #{tpu_custom_call.1} parent=11 // pred_check
          %p216 = pneg %p88
        $region18: #{tpu_custom_call.1} parent=11 // pred_check_branch
          %218 = sbr.rel (%p216) target = $region20
        $region19: #{tpu_custom_call.1} parent=11 // pred_region
          %s220 = ssub.s32 288, 288
          %221 = vsyncadd [#allocation8], %s220
          %s222 = sshll.u32 [#allocation7], 4
          %s223 = int_to_ptr.vmem [resolvable:$true] %s222
          %228 = dma.hbm_to_vmem [thread:$0]  %s2, 288, %s223, [#allocation8], 32, 32, 2
        $region20: #{tpu_custom_call.1} parent=11 // pred_fallthru
          _
        // Predicated region
        $region21: #{tpu_custom_call.1} parent=11 // pred_check
          %p229 = pneg %p109
        $region22: #{tpu_custom_call.1} parent=11 // pred_check_branch
          %231 = sbr.rel (%p229) target = $region24
        $region23: #{tpu_custom_call.1} parent=11 // pred_region
          _
        $region24: #{tpu_custom_call.1} parent=11 // pred_fallthru
          _
        // Predicated region
        $region25: #{tpu_custom_call.1} parent=11 // pred_check
          %p232 = pneg %p130
        $region26: #{tpu_custom_call.1} parent=11 // pred_check_branch
          %234 = sbr.rel (%p232) target = $region28
        $region27: #{tpu_custom_call.1} parent=11 // pred_region
          _
        $region28: #{tpu_custom_call.1} parent=11 // pred_fallthru
          _
        // Predicated region
        $region29: #{tpu_custom_call.1} parent=11 // pred_check
          %p235 = pneg %p151
        $region30: #{tpu_custom_call.1} parent=11 // pred_check_branch
          %237 = sbr.rel (%p235) target = $region32
        $region31: #{tpu_custom_call.1} parent=11 // pred_region
          _
        $region32: #{tpu_custom_call.1} parent=11 // pred_fallthru
          _
        // Predicated region
        $region33: #{tpu_custom_call.1} parent=11 // pred_check
          %p238 = pneg %p172
        $region34: #{tpu_custom_call.1} parent=11 // pred_check_branch
          %240 = sbr.rel (%p238) target = $region36
        $region35: #{tpu_custom_call.1} parent=11 // pred_region
          _
        $region36: #{tpu_custom_call.1} parent=11 // pred_fallthru
          _
      $region12: #{tpu_custom_call.1} parent=5 // pred_fallthru
        _
      %p241 = scmp.lt.s32.totalorder %s20, 2
      // Predicated region
      $region37: #{tpu_custom_call.1} parent=5 // pred_check
        %p242 = pneg %p241
      $region38: #{tpu_custom_call.1} parent=5 // pred_check_branch
        %244 = sbr.rel (%p242) target = $region40
      $region39: #{tpu_custom_call.1} parent=5 // pred_region
        // Predicated region
        $region41: #{tpu_custom_call.1} parent=39 // pred_check
          %p245 = pneg %p40
        $region42: #{tpu_custom_call.1} parent=39 // pred_check_branch
          %247 = sbr.rel (%p245) target = $region44
        $region43: #{tpu_custom_call.1} parent=39 // pred_region
          %s248 = sand.u32 %s30, 1
          %s249 = scalar_lea.sflag [#allocation5], %s248
          %s250 = sand.u32 %s30, 1
          %s251 = smul.addr %s250, 128
          %s252 = scalar_lea.vmem [#allocation4], %s251
          %s254 = ssub.s32 2048, 2048
          %255 = vsyncadd %s249, %s254
          %s256 = smul.addr %s20, 32
          %s257 = smul.addr %s256, 64
          %s258 = scalar_lea.hbm %s0, %s257
          %s259 = sshll.u32 %s252, 4
          %s260 = int_to_ptr.vmem [resolvable:$true] %s259
          %265 = dma.hbm_to_vmem [thread:$0]  %s258, 2048, %s260, %s249, 64, 64, 4
        $region44: #{tpu_custom_call.1} parent=39 // pred_fallthru
          _
      $region40: #{tpu_custom_call.1} parent=5 // pred_fallthru
        _
      %p266 = scmp.le.s32.totalorder 1, %s20
      %p267 = scmp.lt.s32.totalorder %s20, 3
      %p268 = pnand %p266, %p267
      %p269 = pneg %p268
      // Predicated region
      $region45: #{tpu_custom_call.1} parent=5 // pred_check
        _
      $region46: #{tpu_custom_call.1} parent=5 // pred_check_branch
        %271 = sbr.rel (%p268) target = $region48
      $region47: #{tpu_custom_call.1} parent=5 // pred_region
        %s272 = ssub.s32 %s20, 1
        %s273 = sand.u32 %s33, 1
        %s274 = scalar_lea.sflag [#allocation5], %s273
        %s275 = sand.u32 %s33, 1
        %s276 = smul.addr %s275, 128
        %s277 = scalar_lea.vmem [#allocation4], %s276
        // Predicated region
        $region49: #{tpu_custom_call.1} parent=47 // pred_check
          %p278 = pneg %p46
        $region50: #{tpu_custom_call.1} parent=47 // pred_check_branch
          %280 = sbr.rel (%p278) target = $region52
        $region51: #{tpu_custom_call.1} parent=47 // pred_region
          %281 = dma.done %s274, 2048
        $region52: #{tpu_custom_call.1} parent=47 // pred_fallthru
          _
        // Predicated region
        $region53: #{tpu_custom_call.1} parent=47 // pred_check
          %p282 = pneg %p88
        $region54: #{tpu_custom_call.1} parent=47 // pred_check_branch
          %284 = sbr.rel (%p282) target = $region56
        $region55: #{tpu_custom_call.1} parent=47 // pred_region
          %285 = dma.done [#allocation8], 288
        $region56: #{tpu_custom_call.1} parent=47 // pred_fallthru
          _
        %s286 = sand.u32 %s33, 1
        %s287 = scalar_lea.sflag [#allocation5], %s286
        %s288 = sand.u32 %s33, 1
        %s289 = smul.addr %s288, 128
        %s290 = scalar_lea.vmem [#allocation4], %s289
        %p291 = pneg %p46
        %p292 = pneg %p43
        %p293 = pneg %p67
        %p294 = pneg %p64
        %p295 = pneg %p88
        %p296 = pneg %p85
        %p297 = pneg %p109
        %p298 = pneg %p106
        %p299 = pneg %p130
        %p300 = pneg %p127
        %p301 = pneg %p151
        %p302 = pneg %p148
        %p303 = pneg %p172
        %p304 = pneg %p169
        %p305 = pneg %p198
        %p306 = pneg %p195
        %s307 = sand.u32 %s185, 1
        %s308 = scalar_lea.sflag [#allocation6], %s307
        %s309 = sand.u32 %s185, 1
        %s310 = smul.addr %s309, 256
        %s311 = scalar_lea.vmem [#allocation9], %s310
        %vm313 = vcmask 27648
        %314 = vst.msk [vmem:[#allocation2] sm:$0xf] %vm313, 0
        %315 = vst.msk [vmem:[#allocation2 + $0x4] sm:$0xf] %vm313, 0
        %vm316 = vcmask 24576
        %317 = vst.msk [vmem:[#allocation2 + $0x8] sm:$0x1] %vm316, 0
        %318 = vst.msk [vmem:[#allocation2 + $0xc] sm:$0xf] %vm313, 0
        %319 = vst.msk [vmem:[#allocation2 + $0x10] sm:$0xf] %vm313, 0
        %320 = vst.msk [vmem:[#allocation2 + $0x14] sm:$0x1] %vm316, 0
        %321 = vst.msk [vmem:[#allocation2 + $0x18] sm:$0xf] %vm313, 0
        %322 = vst.msk [vmem:[#allocation2 + $0x1c] sm:$0xf] %vm313, 0
        %323 = vst.msk [vmem:[#allocation2 + $0x20] sm:$0x1] %vm316, 0
        %324 = vst.msk [vmem:[#allocation2 + $0x24] sm:$0xf] %vm313, 0
        %325 = vst.msk [vmem:[#allocation2 + $0x28] sm:$0xf] %vm313, 0
        %326 = vst.msk [vmem:[#allocation2 + $0x2c] sm:$0x1] %vm316, 0
        %327 = vst.msk [vmem:[#allocation2 + $0x30] sm:$0xf] %vm313, 0
        %328 = vst.msk [vmem:[#allocation2 + $0x34] sm:$0xf] %vm313, 0
        %329 = vst.msk [vmem:[#allocation2 + $0x38] sm:$0x1] %vm316, 0
        %330 = vst.msk [vmem:[#allocation2 + $0x3c] sm:$0xf] %vm313, 0
        %331 = vst.msk [vmem:[#allocation2 + $0x40] sm:$0xf] %vm313, 0
        %332 = vst.msk [vmem:[#allocation2 + $0x44] sm:$0x1] %vm316, 0
        %333 = vst.msk [vmem:[#allocation2 + $0x48] sm:$0xf] %vm313, 0
        %334 = vst.msk [vmem:[#allocation2 + $0x4c] sm:$0xf] %vm313, 0
        %335 = vst.msk [vmem:[#allocation2 + $0x50] sm:$0x1] %vm316, 0
        %336 = vst.msk [vmem:[#allocation2 + $0x54] sm:$0xf] %vm313, 0
        %337 = vst.msk [vmem:[#allocation2 + $0x58] sm:$0xf] %vm313, 0
        %338 = vst.msk [vmem:[#allocation2 + $0x5c] sm:$0x1] %vm316, 0
        %339 = vst.msk [vmem:[#allocation2 + $0x60] sm:$0xf] %vm313, 0
        %340 = vst.msk [vmem:[#allocation2 + $0x64] sm:$0xf] %vm313, 0
        %341 = vst.msk [vmem:[#allocation2 + $0x68] sm:$0x1] %vm316, 0
        %342 = vst.msk [vmem:[#allocation2 + $0x6c] sm:$0xf] %vm313, 0
        %343 = vst.msk [vmem:[#allocation2 + $0x70] sm:$0xf] %vm313, 0
        %344 = vst.msk [vmem:[#allocation2 + $0x74] sm:$0x1] %vm316, 0
        %345 = vst.msk [vmem:[#allocation2 + $0x78] sm:$0xf] %vm313, 0
        %346 = vst.msk [vmem:[#allocation2 + $0x7c] sm:$0xf] %vm313, 0
        %347 = vst.msk [vmem:[#allocation2 + $0x80] sm:$0x1] %vm316, 0
        %348 = vst.msk [vmem:[#allocation2 + $0x84] sm:$0xf] %vm313, 0
        %349 = vst.msk [vmem:[#allocation2 + $0x88] sm:$0xf] %vm313, 0
        %350 = vst.msk [vmem:[#allocation2 + $0x8c] sm:$0x1] %vm316, 0
        %351 = vst.msk [vmem:[#allocation2 + $0x90] sm:$0xf] %vm313, 0
        %352 = vst.msk [vmem:[#allocation2 + $0x94] sm:$0xf] %vm313, 0
        %353 = vst.msk [vmem:[#allocation2 + $0x98] sm:$0x1] %vm316, 0
        %354 = vst.msk [vmem:[#allocation2 + $0x9c] sm:$0xf] %vm313, 0
        %355 = vst.msk [vmem:[#allocation2 + $0xa0] sm:$0xf] %vm313, 0
        %356 = vst.msk [vmem:[#allocation2 + $0xa4] sm:$0x1] %vm316, 0
        %357 = vst.msk [vmem:[#allocation2 + $0xa8] sm:$0xf] %vm313, 0
        %358 = vst.msk [vmem:[#allocation2 + $0xac] sm:$0xf] %vm313, 0
        %359 = vst.msk [vmem:[#allocation2 + $0xb0] sm:$0x1] %vm316, 0
        %360 = vst.msk [vmem:[#allocation2 + $0xb4] sm:$0xf] %vm313, 0
        %361 = vst.msk [vmem:[#allocation2 + $0xb8] sm:$0xf] %vm313, 0
        %362 = vst.msk [vmem:[#allocation2 + $0xbc] sm:$0x1] %vm316, 0
        %363 = vst.msk [vmem:[#allocation2 + $0xc0] sm:$0xf] %vm313, 0
        %364 = vst.msk [vmem:[#allocation2 + $0xc4] sm:$0xf] %vm313, 0
        %365 = vst.msk [vmem:[#allocation2 + $0xc8] sm:$0x1] %vm316, 0
        %366 = vst.msk [vmem:[#allocation2 + $0xcc] sm:$0xf] %vm313, 0
        %367 = vst.msk [vmem:[#allocation2 + $0xd0] sm:$0xf] %vm313, 0
        %368 = vst.msk [vmem:[#allocation2 + $0xd4] sm:$0x1] %vm316, 0
        %v369 = vld [vmem:[%s277] sm:$0xf]
        %v370 = vld [vmem:[%s277 + $0x4] sm:$0xf]
        %v371 = vld [vmem:[%s277 + $0x8] sm:$0xf]
        %v372 = vld [vmem:[%s277 + $0xc] sm:$0xf]
        %v373 = vld [vmem:[%s277 + $0x10] sm:$0xf]
        %v374 = vld [vmem:[%s277 + $0x14] sm:$0xf]
        %v375 = vld [vmem:[%s277 + $0x18] sm:$0xf]
        %v376 = vld [vmem:[%s277 + $0x1c] sm:$0xf]
        %v377 = vld [vmem:[%s277 + $0x20] sm:$0xf]
        %v378 = vld [vmem:[%s277 + $0x24] sm:$0xf]
        %v379 = vld [vmem:[%s277 + $0x28] sm:$0xf]
        %v380 = vld [vmem:[%s277 + $0x2c] sm:$0xf]
        %v381 = vld [vmem:[%s277 + $0x30] sm:$0xf]
        %v382 = vld [vmem:[%s277 + $0x34] sm:$0xf]
        %v383 = vld [vmem:[%s277 + $0x38] sm:$0xf]
        %v384 = vld [vmem:[%s277 + $0x3c] sm:$0xf]
        %v385 = vld [vmem:[%s277 + $0x40] sm:$0xf]
        %v386 = vld [vmem:[%s277 + $0x44] sm:$0xf]
        %v387 = vld [vmem:[%s277 + $0x48] sm:$0xf]
        %v388 = vld [vmem:[%s277 + $0x4c] sm:$0xf]
        %v389 = vld [vmem:[%s277 + $0x50] sm:$0xf]
        %v390 = vld [vmem:[%s277 + $0x54] sm:$0xf]
        %v391 = vld [vmem:[%s277 + $0x58] sm:$0xf]
        %v392 = vld [vmem:[%s277 + $0x5c] sm:$0xf]
        %v393 = vld [vmem:[%s277 + $0x60] sm:$0xf]
        %v394 = vld [vmem:[%s277 + $0x64] sm:$0xf]
        %v395 = vld [vmem:[%s277 + $0x68] sm:$0xf]
        %v396 = vld [vmem:[%s277 + $0x6c] sm:$0xf]
        %v397 = vld [vmem:[%s277 + $0x70] sm:$0xf]
        %v398 = vld [vmem:[%s277 + $0x74] sm:$0xf]
        %v399 = vld [vmem:[%s277 + $0x78] sm:$0xf]
        %v400 = vld [vmem:[%s277 + $0x7c] sm:$0xf]
        %v401 = vld [vmem:[%s1] sm:$0xf]
        %v402 = vld [vmem:[%s1 + $0x4] sm:$0xf]
        %v403 = vld [vmem:[%s4] sm:$0x1]
        %v405 = vlaneseq
        %v406 = vshrl.u32 %v405, 7
        %v407 = vsub.s32 0, %v406
        %v408 = vrot.slane %v403, %v407
        %v442 = vunpack.c.l.b16 %v369
        %v443 = vunpack.c.l.b16 %v370
        %v444 = vunpack.c.l.b16 %v371
        %v445 = vunpack.c.l.b16 %v372
        %v446 = vunpack.c.l.b16 %v373
        %v447 = vunpack.c.l.b16 %v374
        %v448 = vunpack.c.l.b16 %v375
        %v449 = vunpack.c.l.b16 %v376
        %v450 = vunpack.c.l.b16 %v377
        %v451 = vunpack.c.l.b16 %v378
        %v452 = vunpack.c.l.b16 %v379
        %v453 = vunpack.c.l.b16 %v380
        %v454 = vunpack.c.l.b16 %v381
        %v455 = vunpack.c.l.b16 %v382
        %v456 = vunpack.c.l.b16 %v383
        %v457 = vunpack.c.l.b16 %v384
        %v458 = vunpack.c.l.b16 %v385
        %v459 = vunpack.c.l.b16 %v386
        %v460 = vunpack.c.l.b16 %v387
        %v461 = vunpack.c.l.b16 %v388
        %v462 = vunpack.c.l.b16 %v389
        %v463 = vunpack.c.l.b16 %v390
        %v464 = vunpack.c.l.b16 %v391
        %v465 = vunpack.c.l.b16 %v392
        %v466 = vunpack.c.l.b16 %v393
        %v467 = vunpack.c.l.b16 %v394
        %v468 = vunpack.c.l.b16 %v395
        %v469 = vunpack.c.l.b16 %v396
        %v470 = vunpack.c.l.b16 %v397
        %v471 = vunpack.c.l.b16 %v398
        %v472 = vunpack.c.l.b16 %v399
        %v473 = vunpack.c.l.b16 %v400
        %v474 = vpack.c.b16 %v443, %v442
        %v475 = vpack.c.b16 %v445, %v444
        %v476 = vpack.c.b16 %v447, %v446
        %v477 = vpack.c.b16 %v449, %v448
        %v478 = vpack.c.b16 %v451, %v450
        %v479 = vpack.c.b16 %v453, %v452
        %v480 = vpack.c.b16 %v455, %v454
        %v481 = vpack.c.b16 %v457, %v456
        %v482 = vpack.c.b16 %v459, %v458
        %v483 = vpack.c.b16 %v461, %v460
        %v484 = vpack.c.b16 %v463, %v462
        %v485 = vpack.c.b16 %v465, %v464
        %v486 = vpack.c.b16 %v467, %v466
        %v487 = vpack.c.b16 %v469, %v468
        %v488 = vpack.c.b16 %v471, %v470
        %v489 = vpack.c.b16 %v473, %v472
        %v492 = vunpack.c.l.b16 %v401
        %v493 = vunpack.c.l.b16 %v402
        %v494 = vpack.c.b16 %v493, %v492
        %vm496 = vcmask 130048
        %v498 = vsel %vm496, %v474, 0
        %v501 = vsel %vm496, %v475, 0
        %v504 = vsel %vm496, %v476, 0
        %v507 = vsel %vm496, %v477, 0
        %v510 = vsel %vm496, %v478, 0
        %v513 = vsel %vm496, %v479, 0
        %v516 = vsel %vm496, %v480, 0
        %v519 = vsel %vm496, %v481, 0
        %v522 = vsel %vm496, %v482, 0
        %v525 = vsel %vm496, %v483, 0
        %v528 = vsel %vm496, %v484, 0
        %v531 = vsel %vm496, %v485, 0
        %v534 = vsel %vm496, %v486, 0
        %v537 = vsel %vm496, %v487, 0
        %v540 = vsel %vm496, %v488, 0
        %v543 = vsel %vm496, %v489, 0
        %545 = vmatprep.subr.bf16.mxu0 0
        %546 = vmatpush1.bf16.msra.mxu0 %v494
        %547 = vmatprep.subr.bf16.mxu0 0
        %548 = vmatpush1.bf16.msra.mxu0 0
        %549 = vmatprep.subr.bf16.mxu0 0
        %550 = vmatpush1.bf16.msra.mxu0 0
        %551 = vmatprep.subr.bf16.mxu0 0
        %552 = vmatpush1.bf16.msra.mxu0 0
        %553 = vmatprep.subr.bf16.mxu0 0
        %554 = vmatpush1.bf16.msra.mxu0 0
        %555 = vmatprep.subr.bf16.mxu0 0
        %556 = vmatpush1.bf16.msra.mxu0 0
        %557 = vmatprep.subr.bf16.mxu0 0
        %558 = vmatpush1.bf16.msra.mxu0 0
        %559 = vmatprep.subr.bf16.mxu0 0
        %560 = vmatpush1.bf16.msra.mxu0 0
        %561 = vmatprep.subr.bf16.mxu0 0
        %562 = vmatpush1.bf16.msra.mxu0 0
        %563 = vmatprep.subr.bf16.mxu0 0
        %564 = vmatpush1.bf16.msra.mxu0 0
        %565 = vmatprep.subr.bf16.mxu0 0
        %566 = vmatpush1.bf16.msra.mxu0 0
        %567 = vmatprep.subr.bf16.mxu0 0
        %568 = vmatpush1.bf16.msra.mxu0 0
        %569 = vmatprep.subr.bf16.mxu0 0
        %570 = vmatpush1.bf16.msra.mxu0 0
        %571 = vmatprep.subr.bf16.mxu0 0
        %572 = vmatpush1.bf16.msra.mxu0 0
        %573 = vmatprep.subr.bf16.mxu0 0
        %574 = vmatpush1.bf16.msra.mxu0 0
        %575 = vmatprep.subr.bf16.mxu0 0
        %576 = vmatpush1.bf16.msra.mxu0 0
        %577 = vmatprep.mubr.bf16.mxu0 0
        %578 = vmatmul.mubr.bf16.gmra.mrb[0].mxu0 %v498
        %v579 = vpop.f32.mrb[0].mxu0
        %v580 = vadd.f32 %v408, %v579
        %v581 = vpop.f32.mrb[0].mxu0
        %v582 = vpop.f32.mrb[0].mxu0
        %v583 = vadd.f32 %v408, %v582
        %v584 = vpop.f32.mrb[0].mxu0
        %585 = vmatprep.mubr.bf16.mxu0 0
        %586 = vmatmul.mubr.bf16.gmra.mrb[0].mxu0 %v501
        %v587 = vpop.f32.mrb[0].mxu0
        %v588 = vadd.f32 %v408, %v587
        %v589 = vpop.f32.mrb[0].mxu0
        %v590 = vpop.f32.mrb[0].mxu0
        %v591 = vadd.f32 %v408, %v590
        %v592 = vpop.f32.mrb[0].mxu0
        %593 = vmatprep.mubr.bf16.mxu0 0
        %594 = vmatmul.mubr.bf16.gmra.mrb[0].mxu0 %v504
        %v595 = vpop.f32.mrb[0].mxu0
        %v596 = vadd.f32 %v408, %v595
        %v597 = vpop.f32.mrb[0].mxu0
        %v598 = vpop.f32.mrb[0].mxu0
        %v599 = vadd.f32 %v408, %v598
        %v600 = vpop.f32.mrb[0].mxu0
        %601 = vmatprep.mubr.bf16.mxu0 0
        %602 = vmatmul.mubr.bf16.gmra.mrb[0].mxu0 %v507
        %v603 = vpop.f32.mrb[0].mxu0
        %v604 = vadd.f32 %v408, %v603
        %v605 = vpop.f32.mrb[0].mxu0
        %v606 = vpop.f32.mrb[0].mxu0
        %v607 = vadd.f32 %v408, %v606
        %v608 = vpop.f32.mrb[0].mxu0
        %609 = vmatprep.mubr.bf16.mxu0 0
        %610 = vmatmul.mubr.bf16.gmra.mrb[0].mxu0 %v510
        %v611 = vpop.f32.mrb[0].mxu0
        %v612 = vadd.f32 %v408, %v611
        %v613 = vpop.f32.mrb[0].mxu0
        %v614 = vpop.f32.mrb[0].mxu0
        %v615 = vadd.f32 %v408, %v614
        %v616 = vpop.f32.mrb[0].mxu0
        %617 = vmatprep.mubr.bf16.mxu0 0
        %618 = vmatmul.mubr.bf16.gmra.mrb[0].mxu0 %v513
        %v619 = vpop.f32.mrb[0].mxu0
        %v620 = vadd.f32 %v408, %v619
        %v621 = vpop.f32.mrb[0].mxu0
        %v622 = vpop.f32.mrb[0].mxu0
        %v623 = vadd.f32 %v408, %v622
        %v624 = vpop.f32.mrb[0].mxu0
        %625 = vmatprep.mubr.bf16.mxu0 0
        %626 = vmatmul.mubr.bf16.gmra.mrb[0].mxu0 %v516
        %v627 = vpop.f32.mrb[0].mxu0
        %v628 = vadd.f32 %v408, %v627
        %v629 = vpop.f32.mrb[0].mxu0
        %v630 = vpop.f32.mrb[0].mxu0
        %v631 = vadd.f32 %v408, %v630
        %v632 = vpop.f32.mrb[0].mxu0
        %633 = vmatprep.mubr.bf16.mxu0 0
        %634 = vmatmul.mubr.bf16.gmra.mrb[0].mxu0 %v519
        %v635 = vpop.f32.mrb[0].mxu0
        %v636 = vadd.f32 %v408, %v635
        %v637 = vpop.f32.mrb[0].mxu0
        %v638 = vpop.f32.mrb[0].mxu0
        %v639 = vadd.f32 %v408, %v638
        %v640 = vpop.f32.mrb[0].mxu0
        %641 = vmatprep.mubr.bf16.mxu0 0
        %642 = vmatmul.mubr.bf16.gmra.mrb[0].mxu0 %v522
        %v643 = vpop.f32.mrb[0].mxu0
        %v644 = vadd.f32 %v408, %v643
        %v645 = vpop.f32.mrb[0].mxu0
        %v646 = vpop.f32.mrb[0].mxu0
        %v647 = vadd.f32 %v408, %v646
        %v648 = vpop.f32.mrb[0].mxu0
        %649 = vmatprep.mubr.bf16.mxu0 0
        %650 = vmatmul.mubr.bf16.gmra.mrb[0].mxu0 %v525
        %v651 = vpop.f32.mrb[0].mxu0
        %v652 = vadd.f32 %v408, %v651
        %v653 = vpop.f32.mrb[0].mxu0
        %v654 = vpop.f32.mrb[0].mxu0
        %v655 = vadd.f32 %v408, %v654
        %v656 = vpop.f32.mrb[0].mxu0
        %657 = vmatprep.mubr.bf16.mxu0 0
        %658 = vmatmul.mubr.bf16.gmra.mrb[0].mxu0 %v528
        %v659 = vpop.f32.mrb[0].mxu0
        %v660 = vadd.f32 %v408, %v659
        %v661 = vpop.f32.mrb[0].mxu0
        %v662 = vpop.f32.mrb[0].mxu0
        %v663 = vadd.f32 %v408, %v662
        %v664 = vpop.f32.mrb[0].mxu0
        %665 = vmatprep.mubr.bf16.mxu0 0
        %666 = vmatmul.mubr.bf16.gmra.mrb[0].mxu0 %v531
        %v667 = vpop.f32.mrb[0].mxu0
        %v668 = vadd.f32 %v408, %v667
        %v669 = vpop.f32.mrb[0].mxu0
        %v670 = vpop.f32.mrb[0].mxu0
        %v671 = vadd.f32 %v408, %v670
        %v672 = vpop.f32.mrb[0].mxu0
        %673 = vmatprep.mubr.bf16.mxu0 0
        %674 = vmatmul.mubr.bf16.gmra.mrb[0].mxu0 %v534
        %v675 = vpop.f32.mrb[0].mxu0
        %v676 = vadd.f32 %v408, %v675
        %v677 = vpop.f32.mrb[0].mxu0
        %v678 = vpop.f32.mrb[0].mxu0
        %v679 = vadd.f32 %v408, %v678
        %v680 = vpop.f32.mrb[0].mxu0
        %681 = vmatprep.mubr.bf16.mxu0 0
        %682 = vmatmul.mubr.bf16.gmra.mrb[0].mxu0 %v537
        %v683 = vpop.f32.mrb[0].mxu0
        %v684 = vadd.f32 %v408, %v683
        %v685 = vpop.f32.mrb[0].mxu0
        %v686 = vpop.f32.mrb[0].mxu0
        %v687 = vadd.f32 %v408, %v686
        %v688 = vpop.f32.mrb[0].mxu0
        %689 = vmatprep.mubr.bf16.mxu0 0
        %690 = vmatmul.mubr.bf16.gmra.mrb[0].mxu0 %v540
        %v691 = vpop.f32.mrb[0].mxu0
        %v692 = vadd.f32 %v408, %v691
        %v693 = vpop.f32.mrb[0].mxu0
        %v694 = vpop.f32.mrb[0].mxu0
        %v695 = vadd.f32 %v408, %v694
        %v696 = vpop.f32.mrb[0].mxu0
        %697 = vmatprep.mubr.bf16.mxu0 0
        %698 = vmatmul.mubr.bf16.gmra.mrb[0].mxu0 %v543
        %v699 = vpop.f32.mrb[0].mxu0
        %v700 = vadd.f32 %v408, %v699
        %v701 = vpop.f32.mrb[0].mxu0
        %v702 = vpop.f32.mrb[0].mxu0
        %v703 = vadd.f32 %v408, %v702
        %v704 = vpop.f32.mrb[0].mxu0
        %705 = vdwg.mxu0
        %v706 = vmax.f32 %v580, 0.0
        %v707 = vmax.f32 %v583, 0.0
        %v708 = vmax.f32 %v588, 0.0
        %v709 = vmax.f32 %v591, 0.0
        %v710 = vmax.f32 %v596, 0.0
        %v711 = vmax.f32 %v599, 0.0
        %v712 = vmax.f32 %v604, 0.0
        %v713 = vmax.f32 %v607, 0.0
        %v714 = vmax.f32 %v612, 0.0
        %v715 = vmax.f32 %v615, 0.0
        %v716 = vmax.f32 %v620, 0.0
        %v717 = vmax.f32 %v623, 0.0
        %v718 = vmax.f32 %v628, 0.0
        %v719 = vmax.f32 %v631, 0.0
        %v720 = vmax.f32 %v636, 0.0
        %v721 = vmax.f32 %v639, 0.0
        %v722 = vmax.f32 %v644, 0.0
        %v723 = vmax.f32 %v647, 0.0
        %v724 = vmax.f32 %v652, 0.0
        %v725 = vmax.f32 %v655, 0.0
        %v726 = vmax.f32 %v660, 0.0
        %v727 = vmax.f32 %v663, 0.0
        %v728 = vmax.f32 %v668, 0.0
        %v729 = vmax.f32 %v671, 0.0
        %v730 = vmax.f32 %v676, 0.0
        %v731 = vmax.f32 %v679, 0.0
        %v732 = vmax.f32 %v684, 0.0
        %v733 = vmax.f32 %v687, 0.0
        %v734 = vmax.f32 %v692, 0.0
        %v735 = vmax.f32 %v695, 0.0
        %v736 = vmax.f32 %v700, 0.0
        %v737 = vmax.f32 %v703, 0.0
        %v738 = vpack.c.bf16 %v707, %v706
        %v739 = vpack.c.bf16 %v709, %v708
        %v740 = vpack.c.bf16 %v711, %v710
        %v741 = vpack.c.bf16 %v713, %v712
        %v742 = vpack.c.bf16 %v715, %v714
        %v743 = vpack.c.bf16 %v717, %v716
        %v744 = vpack.c.bf16 %v719, %v718
        %v745 = vpack.c.bf16 %v721, %v720
        %v746 = vpack.c.bf16 %v723, %v722
        %v747 = vpack.c.bf16 %v725, %v724
        %v748 = vpack.c.bf16 %v727, %v726
        %v749 = vpack.c.bf16 %v729, %v728
        %v750 = vpack.c.bf16 %v731, %v730
        %v751 = vpack.c.bf16 %v733, %v732
        %v752 = vpack.c.bf16 %v735, %v734
        %v753 = vpack.c.bf16 %v737, %v736
        %v770 = vunpack.c.l.b16 %v738
        %v771 = vunpack.c.h.b16 %v738
        %v772 = vunpack.c.l.b16 %v739
        %v773 = vunpack.c.h.b16 %v739
        %v774 = vunpack.c.l.b16 %v740
        %v775 = vunpack.c.h.b16 %v740
        %v776 = vunpack.c.l.b16 %v741
        %v777 = vunpack.c.h.b16 %v741
        %v778 = vunpack.c.l.b16 %v742
        %v779 = vunpack.c.h.b16 %v742
        %v780 = vunpack.c.l.b16 %v743
        %v781 = vunpack.c.h.b16 %v743
        %v782 = vunpack.c.l.b16 %v744
        %v783 = vunpack.c.h.b16 %v744
        %v784 = vunpack.c.l.b16 %v745
        %v785 = vunpack.c.h.b16 %v745
        %v786 = vunpack.c.l.b16 %v746
        %v787 = vunpack.c.h.b16 %v746
        %v788 = vunpack.c.l.b16 %v747
        %v789 = vunpack.c.h.b16 %v747
        %v790 = vunpack.c.l.b16 %v748
        %v791 = vunpack.c.h.b16 %v748
        %v792 = vunpack.c.l.b16 %v749
        %v793 = vunpack.c.h.b16 %v749
        %v794 = vunpack.c.l.b16 %v750
        %v795 = vunpack.c.h.b16 %v750
        %v796 = vunpack.c.l.b16 %v751
        %v797 = vunpack.c.h.b16 %v751
        %v798 = vunpack.c.l.b16 %v752
        %v799 = vunpack.c.h.b16 %v752
        %v800 = vunpack.c.l.b16 %v753
        %v801 = vunpack.c.h.b16 %v753
        %v802 = vpack.c.b16 %v770, %v770
        %v803 = vpack.c.b16 %v771, %v771
        %v804 = vpack.c.b16 %v772, %v772
        %v805 = vpack.c.b16 %v773, %v773
        %v806 = vpack.c.b16 %v774, %v774
        %v807 = vpack.c.b16 %v775, %v775
        %v808 = vpack.c.b16 %v776, %v776
        %v809 = vpack.c.b16 %v777, %v777
        %v810 = vpack.c.b16 %v778, %v778
        %v811 = vpack.c.b16 %v779, %v779
        %v812 = vpack.c.b16 %v780, %v780
        %v813 = vpack.c.b16 %v781, %v781
        %v814 = vpack.c.b16 %v782, %v782
        %v815 = vpack.c.b16 %v783, %v783
        %v816 = vpack.c.b16 %v784, %v784
        %v817 = vpack.c.b16 %v785, %v785
        %v818 = vpack.c.b16 %v786, %v786
        %v819 = vpack.c.b16 %v787, %v787
        %v820 = vpack.c.b16 %v788, %v788
        %v821 = vpack.c.b16 %v789, %v789
        %v822 = vpack.c.b16 %v790, %v790
        %v823 = vpack.c.b16 %v791, %v791
        %v824 = vpack.c.b16 %v792, %v792
        %v825 = vpack.c.b16 %v793, %v793
        %v826 = vpack.c.b16 %v794, %v794
        %v827 = vpack.c.b16 %v795, %v795
        %v828 = vpack.c.b16 %v796, %v796
        %v829 = vpack.c.b16 %v797, %v797
        %v830 = vpack.c.b16 %v798, %v798
        %v831 = vpack.c.b16 %v799, %v799
        %v832 = vpack.c.b16 %v800, %v800
        %v833 = vpack.c.b16 %v801, %v801
        %vm834 = vsmask.f32 256
        %vm835 = vsmask.f32 4368
        %vm836 = vmor %vm834, %vm835
        %v838 = vshrl.u32 %v802, 16
        %v840 = vrot.slane %v838, 7
        %v841 = vshll.u32 %v802, 16
        %v843 = vor.u32 %v840, %v841
        %v844 = vrot.slane %v840, 4
        %v846 = vshrl.u32 %v803, 16
        %v848 = vrot.slane %v846, 7
        %v849 = vshll.u32 %v803, 16
        %v851 = vor.u32 %v848, %v849
        %v852 = vsel %vm836, %v844, %v851
        %v853 = vrot.slane %v848, 4
        %v855 = vshrl.u32 %v804, 16
        %v857 = vrot.slane %v855, 7
        %v858 = vshll.u32 %v804, 16
        %v860 = vor.u32 %v857, %v858
        %v861 = vrot.slane %v857, 4
        %v863 = vshrl.u32 %v805, 16
        %v865 = vrot.slane %v863, 7
        %v866 = vshll.u32 %v805, 16
        %v868 = vor.u32 %v865, %v866
        %v869 = vsel %vm836, %v861, %v868
        %v870 = vrot.slane %v865, 4
        %v872 = vshrl.u32 %v806, 16
        %v874 = vrot.slane %v872, 7
        %v875 = vshll.u32 %v806, 16
        %v877 = vor.u32 %v874, %v875
        %v878 = vrot.slane %v874, 4
        %v880 = vshrl.u32 %v807, 16
        %v882 = vrot.slane %v880, 7
        %v883 = vshll.u32 %v807, 16
        %v885 = vor.u32 %v882, %v883
        %v886 = vsel %vm836, %v878, %v885
        %v887 = vrot.slane %v882, 4
        %v889 = vshrl.u32 %v808, 16
        %v891 = vrot.slane %v889, 7
        %v892 = vshll.u32 %v808, 16
        %v894 = vor.u32 %v891, %v892
        %v895 = vrot.slane %v891, 4
        %v897 = vshrl.u32 %v809, 16
        %v899 = vrot.slane %v897, 7
        %v900 = vshll.u32 %v809, 16
        %v902 = vor.u32 %v899, %v900
        %v903 = vsel %vm836, %v895, %v902
        %v904 = vrot.slane %v899, 4
        %v906 = vshrl.u32 %v810, 16
        %v908 = vrot.slane %v906, 7
        %v909 = vshll.u32 %v810, 16
        %v911 = vor.u32 %v908, %v909
        %v912 = vrot.slane %v908, 4
        %v914 = vshrl.u32 %v811, 16
        %v916 = vrot.slane %v914, 7
        %v917 = vshll.u32 %v811, 16
        %v919 = vor.u32 %v916, %v917
        %v920 = vsel %vm836, %v912, %v919
        %v921 = vrot.slane %v916, 4
        %v923 = vshrl.u32 %v812, 16
        %v925 = vrot.slane %v923, 7
        %v926 = vshll.u32 %v812, 16
        %v928 = vor.u32 %v925, %v926
        %v929 = vrot.slane %v925, 4
        %v931 = vshrl.u32 %v813, 16
        %v933 = vrot.slane %v931, 7
        %v934 = vshll.u32 %v813, 16
        %v936 = vor.u32 %v933, %v934
        %v937 = vsel %vm836, %v929, %v936
        %v938 = vrot.slane %v933, 4
        %v940 = vshrl.u32 %v814, 16
        %v942 = vrot.slane %v940, 7
        %v943 = vshll.u32 %v814, 16
        %v945 = vor.u32 %v942, %v943
        %v946 = vrot.slane %v942, 4
        %v948 = vshrl.u32 %v815, 16
        %v950 = vrot.slane %v948, 7
        %v951 = vshll.u32 %v815, 16
        %v953 = vor.u32 %v950, %v951
        %v954 = vsel %vm836, %v946, %v953
        %v955 = vrot.slane %v950, 4
        %v957 = vshrl.u32 %v816, 16
        %v959 = vrot.slane %v957, 7
        %v960 = vshll.u32 %v816, 16
        %v962 = vor.u32 %v959, %v960
        %v963 = vrot.slane %v959, 4
        %v965 = vshrl.u32 %v817, 16
        %v967 = vrot.slane %v965, 7
        %v968 = vshll.u32 %v817, 16
        %v970 = vor.u32 %v967, %v968
        %v971 = vsel %vm836, %v963, %v970
        %v972 = vrot.slane %v967, 4
        %v974 = vshrl.u32 %v818, 16
        %v976 = vrot.slane %v974, 7
        %v977 = vshll.u32 %v818, 16
        %v979 = vor.u32 %v976, %v977
        %v980 = vrot.slane %v976, 4
        %v982 = vshrl.u32 %v819, 16
        %v984 = vrot.slane %v982, 7
        %v985 = vshll.u32 %v819, 16
        %v987 = vor.u32 %v984, %v985
        %v988 = vsel %vm836, %v980, %v987
        %v989 = vrot.slane %v984, 4
        %v991 = vshrl.u32 %v820, 16
        %v993 = vrot.slane %v991, 7
        %v994 = vshll.u32 %v820, 16
        %v996 = vor.u32 %v993, %v994
        %v997 = vrot.slane %v993, 4
        %v999 = vshrl.u32 %v821, 16
        %v1001 = vrot.slane %v999, 7
        %v1002 = vshll.u32 %v821, 16
        %v1004 = vor.u32 %v1001, %v1002
        %v1005 = vsel %vm836, %v997, %v1004
        %v1006 = vrot.slane %v1001, 4
        %v1008 = vshrl.u32 %v822, 16
        %v1010 = vrot.slane %v1008, 7
        %v1011 = vshll.u32 %v822, 16
        %v1013 = vor.u32 %v1010, %v1011
        %v1014 = vrot.slane %v1010, 4
        %v1016 = vshrl.u32 %v823, 16
        %v1018 = vrot.slane %v1016, 7
        %v1019 = vshll.u32 %v823, 16
        %v1021 = vor.u32 %v1018, %v1019
        %v1022 = vsel %vm836, %v1014, %v1021
        %v1023 = vrot.slane %v1018, 4
        %v1025 = vshrl.u32 %v824, 16
        %v1027 = vrot.slane %v1025, 7
        %v1028 = vshll.u32 %v824, 16
        %v1030 = vor.u32 %v1027, %v1028
        %v1031 = vrot.slane %v1027, 4
        %v1033 = vshrl.u32 %v825, 16
        %v1035 = vrot.slane %v1033, 7
        %v1036 = vshll.u32 %v825, 16
        %v1038 = vor.u32 %v1035, %v1036
        %v1039 = vsel %vm836, %v1031, %v1038
        %v1040 = vrot.slane %v1035, 4
        %v1042 = vshrl.u32 %v826, 16
        %v1044 = vrot.slane %v1042, 7
        %v1045 = vshll.u32 %v826, 16
        %v1047 = vor.u32 %v1044, %v1045
        %v1048 = vrot.slane %v1044, 4
        %v1050 = vshrl.u32 %v827, 16
        %v1052 = vrot.slane %v1050, 7
        %v1053 = vshll.u32 %v827, 16
        %v1055 = vor.u32 %v1052, %v1053
        %v1056 = vsel %vm836, %v1048, %v1055
        %v1057 = vrot.slane %v1052, 4
        %v1059 = vshrl.u32 %v828, 16
        %v1061 = vrot.slane %v1059, 7
        %v1062 = vshll.u32 %v828, 16
        %v1064 = vor.u32 %v1061, %v1062
        %v1065 = vrot.slane %v1061, 4
        %v1067 = vshrl.u32 %v829, 16
        %v1069 = vrot.slane %v1067, 7
        %v1070 = vshll.u32 %v829, 16
        %v1072 = vor.u32 %v1069, %v1070
        %v1073 = vsel %vm836, %v1065, %v1072
        %v1074 = vrot.slane %v1069, 4
        %v1076 = vshrl.u32 %v830, 16
        %v1078 = vrot.slane %v1076, 7
        %v1079 = vshll.u32 %v830, 16
        %v1081 = vor.u32 %v1078, %v1079
        %v1082 = vrot.slane %v1078, 4
        %v1084 = vshrl.u32 %v831, 16
        %v1086 = vrot.slane %v1084, 7
        %v1087 = vshll.u32 %v831, 16
        %v1089 = vor.u32 %v1086, %v1087
        %v1090 = vsel %vm836, %v1082, %v1089
        %v1091 = vrot.slane %v1086, 4
        %v1093 = vshrl.u32 %v832, 16
        %v1095 = vrot.slane %v1093, 7
        %v1096 = vshll.u32 %v832, 16
        %v1098 = vor.u32 %v1095, %v1096
        %v1099 = vrot.slane %v1095, 4
        %v1101 = vshrl.u32 %v833, 16
        %v1103 = vrot.slane %v1101, 7
        %v1104 = vshll.u32 %v833, 16
        %v1106 = vor.u32 %v1103, %v1104
        %v1107 = vsel %vm836, %v1099, %v1106
        %v1108 = vrot.slane %v1103, 4
        %s1157 = scalar_lea.vmem [#allocation2], 12
        %vm1158 = vcmask 27648
        %vm1159 = vsmask.f32 7938
        %vm1160 = vmand %vm1158, %vm1159
        %v1161 = vld [vmem:[%s1157] sm:$0xf]
        %v1162 = vsel %vm1160, %v843, %v1161
        %1163 = vst [vmem:[%s1157] sm:$0xf] %v1162
        %1164 = vst.msk [vmem:[%s1157 + $0x4] sm:$0xf] %vm313, %v852
        %vm1165 = vcmask 24576
        %vm1166 = vmand %vm1165, %vm834
        %v1167 = vld [vmem:[%s1157 + $0x8] sm:$0x1]
        %v1168 = vsel %vm1166, %v853, %v1167
        %1169 = vst [vmem:[%s1157 + $0x8] sm:$0x1] %v1168
        %v1170 = vld [vmem:[%s1157 + $0xc] sm:$0xf]
        %v1171 = vsel %vm1160, %v860, %v1170
        %1172 = vst [vmem:[%s1157 + $0xc] sm:$0xf] %v1171
        %1173 = vst.msk [vmem:[%s1157 + $0x10] sm:$0xf] %vm313, %v869
        %v1174 = vld [vmem:[%s1157 + $0x14] sm:$0x1]
        %v1175 = vsel %vm1166, %v870, %v1174
        %1176 = vst [vmem:[%s1157 + $0x14] sm:$0x1] %v1175
        %v1177 = vld [vmem:[%s1157 + $0x18] sm:$0xf]
        %v1178 = vsel %vm1160, %v877, %v1177
        %1179 = vst [vmem:[%s1157 + $0x18] sm:$0xf] %v1178
        %1180 = vst.msk [vmem:[%s1157 + $0x1c] sm:$0xf] %vm313, %v886
        %v1181 = vld [vmem:[%s1157 + $0x20] sm:$0x1]
        %v1182 = vsel %vm1166, %v887, %v1181
        %1183 = vst [vmem:[%s1157 + $0x20] sm:$0x1] %v1182
        %v1184 = vld [vmem:[%s1157 + $0x24] sm:$0xf]
        %v1185 = vsel %vm1160, %v894, %v1184
        %1186 = vst [vmem:[%s1157 + $0x24] sm:$0xf] %v1185
        %1187 = vst.msk [vmem:[%s1157 + $0x28] sm:$0xf] %vm313, %v903
        %v1188 = vld [vmem:[%s1157 + $0x2c] sm:$0x1]
        %v1189 = vsel %vm1166, %v904, %v1188
        %1190 = vst [vmem:[%s1157 + $0x2c] sm:$0x1] %v1189
        %v1191 = vld [vmem:[%s1157 + $0x30] sm:$0xf]
        %v1192 = vsel %vm1160, %v911, %v1191
        %1193 = vst [vmem:[%s1157 + $0x30] sm:$0xf] %v1192
        %1194 = vst.msk [vmem:[%s1157 + $0x34] sm:$0xf] %vm313, %v920
        %v1195 = vld [vmem:[%s1157 + $0x38] sm:$0x1]
        %v1196 = vsel %vm1166, %v921, %v1195
        %1197 = vst [vmem:[%s1157 + $0x38] sm:$0x1] %v1196
        %v1198 = vld [vmem:[%s1157 + $0x3c] sm:$0xf]
        %v1199 = vsel %vm1160, %v928, %v1198
        %1200 = vst [vmem:[%s1157 + $0x3c] sm:$0xf] %v1199
        %1201 = vst.msk [vmem:[%s1157 + $0x40] sm:$0xf] %vm313, %v937
        %v1202 = vld [vmem:[%s1157 + $0x44] sm:$0x1]
        %v1203 = vsel %vm1166, %v938, %v1202
        %1204 = vst [vmem:[%s1157 + $0x44] sm:$0x1] %v1203
        %v1205 = vld [vmem:[%s1157 + $0x48] sm:$0xf]
        %v1206 = vsel %vm1160, %v945, %v1205
        %1207 = vst [vmem:[%s1157 + $0x48] sm:$0xf] %v1206
        %1208 = vst.msk [vmem:[%s1157 + $0x4c] sm:$0xf] %vm313, %v954
        %v1209 = vld [vmem:[%s1157 + $0x50] sm:$0x1]
        %v1210 = vsel %vm1166, %v955, %v1209
        %1211 = vst [vmem:[%s1157 + $0x50] sm:$0x1] %v1210
        %v1212 = vld [vmem:[%s1157 + $0x54] sm:$0xf]
        %v1213 = vsel %vm1160, %v962, %v1212
        %1214 = vst [vmem:[%s1157 + $0x54] sm:$0xf] %v1213
        %1215 = vst.msk [vmem:[%s1157 + $0x58] sm:$0xf] %vm313, %v971
        %v1216 = vld [vmem:[%s1157 + $0x5c] sm:$0x1]
        %v1217 = vsel %vm1166, %v972, %v1216
        %1218 = vst [vmem:[%s1157 + $0x5c] sm:$0x1] %v1217
        %v1219 = vld [vmem:[%s1157 + $0x60] sm:$0xf]
        %v1220 = vsel %vm1160, %v979, %v1219
        %1221 = vst [vmem:[%s1157 + $0x60] sm:$0xf] %v1220
        %1222 = vst.msk [vmem:[%s1157 + $0x64] sm:$0xf] %vm313, %v988
        %v1223 = vld [vmem:[%s1157 + $0x68] sm:$0x1]
        %v1224 = vsel %vm1166, %v989, %v1223
        %1225 = vst [vmem:[%s1157 + $0x68] sm:$0x1] %v1224
        %v1226 = vld [vmem:[%s1157 + $0x6c] sm:$0xf]
        %v1227 = vsel %vm1160, %v996, %v1226
        %1228 = vst [vmem:[%s1157 + $0x6c] sm:$0xf] %v1227
        %1229 = vst.msk [vmem:[%s1157 + $0x70] sm:$0xf] %vm313, %v1005
        %v1230 = vld [vmem:[%s1157 + $0x74] sm:$0x1]
        %v1231 = vsel %vm1166, %v1006, %v1230
        %1232 = vst [vmem:[%s1157 + $0x74] sm:$0x1] %v1231
        %v1233 = vld [vmem:[%s1157 + $0x78] sm:$0xf]
        %v1234 = vsel %vm1160, %v1013, %v1233
        %1235 = vst [vmem:[%s1157 + $0x78] sm:$0xf] %v1234
        %1236 = vst.msk [vmem:[%s1157 + $0x7c] sm:$0xf] %vm313, %v1022
        %v1237 = vld [vmem:[%s1157 + $0x80] sm:$0x1]
        %v1238 = vsel %vm1166, %v1023, %v1237
        %1239 = vst [vmem:[%s1157 + $0x80] sm:$0x1] %v1238
        %v1240 = vld [vmem:[%s1157 + $0x84] sm:$0xf]
        %v1241 = vsel %vm1160, %v1030, %v1240
        %1242 = vst [vmem:[%s1157 + $0x84] sm:$0xf] %v1241
        %1243 = vst.msk [vmem:[%s1157 + $0x88] sm:$0xf] %vm313, %v1039
        %v1244 = vld [vmem:[%s1157 + $0x8c] sm:$0x1]
        %v1245 = vsel %vm1166, %v1040, %v1244
        %1246 = vst [vmem:[%s1157 + $0x8c] sm:$0x1] %v1245
        %v1247 = vld [vmem:[%s1157 + $0x90] sm:$0xf]
        %v1248 = vsel %vm1160, %v1047, %v1247
        %1249 = vst [vmem:[%s1157 + $0x90] sm:$0xf] %v1248
        %1250 = vst.msk [vmem:[%s1157 + $0x94] sm:$0xf] %vm313, %v1056
        %v1251 = vld [vmem:[%s1157 + $0x98] sm:$0x1]
        %v1252 = vsel %vm1166, %v1057, %v1251
        %1253 = vst [vmem:[%s1157 + $0x98] sm:$0x1] %v1252
        %v1254 = vld [vmem:[%s1157 + $0x9c] sm:$0xf]
        %v1255 = vsel %vm1160, %v1064, %v1254
        %1256 = vst [vmem:[%s1157 + $0x9c] sm:$0xf] %v1255
        %1257 = vst.msk [vmem:[%s1157 + $0xa0] sm:$0xf] %vm313, %v1073
        %v1258 = vld [vmem:[%s1157 + $0xa4] sm:$0x1]
        %v1259 = vsel %vm1166, %v1074, %v1258
        %1260 = vst [vmem:[%s1157 + $0xa4] sm:$0x1] %v1259
        %v1261 = vld [vmem:[%s1157 + $0xa8] sm:$0xf]
        %v1262 = vsel %vm1160, %v1081, %v1261
        %1263 = vst [vmem:[%s1157 + $0xa8] sm:$0xf] %v1262
        %1264 = vst.msk [vmem:[%s1157 + $0xac] sm:$0xf] %vm313, %v1090
        %v1265 = vld [vmem:[%s1157 + $0xb0] sm:$0x1]
        %v1266 = vsel %vm1166, %v1091, %v1265
        %1267 = vst [vmem:[%s1157 + $0xb0] sm:$0x1] %v1266
        %v1268 = vld [vmem:[%s1157 + $0xb4] sm:$0xf]
        %v1269 = vsel %vm1160, %v1098, %v1268
        %1270 = vst [vmem:[%s1157 + $0xb4] sm:$0xf] %v1269
        %1271 = vst.msk [vmem:[%s1157 + $0xb8] sm:$0xf] %vm313, %v1107
        %v1272 = vld [vmem:[%s1157 + $0xbc] sm:$0x1]
        %v1273 = vsel %vm1166, %v1108, %v1272
        %1274 = vst [vmem:[%s1157 + $0xbc] sm:$0x1] %v1273
        %vm1275 = vcmask 31744
        %1276 = vst.msk [vmem:[#allocation3] sm:$0xff] %vm1275, 0.0
        %1277 = vst.msk [vmem:[#allocation3 + $0x8] sm:$0xff] %vm1275, 0.0
        %1278 = vst.msk [vmem:[#allocation3 + $0x10] sm:$0xff] %vm1275, 0.0
        %1279 = vst.msk [vmem:[#allocation3 + $0x18] sm:$0xff] %vm1275, 0.0
        %1280 = vst.msk [vmem:[#allocation3 + $0x20] sm:$0xff] %vm1275, 0.0
        %1281 = vst.msk [vmem:[#allocation3 + $0x28] sm:$0xff] %vm1275, 0.0
        %1282 = vst.msk [vmem:[#allocation3 + $0x30] sm:$0xff] %vm1275, 0.0
        %1283 = vst.msk [vmem:[#allocation3 + $0x38] sm:$0xff] %vm1275, 0.0
        %1284 = vst.msk [vmem:[#allocation3 + $0x40] sm:$0xff] %vm1275, 0.0
        %1285 = vst.msk [vmem:[#allocation3 + $0x48] sm:$0xff] %vm1275, 0.0
        %1286 = vst.msk [vmem:[#allocation3 + $0x50] sm:$0xff] %vm1275, 0.0
        %1287 = vst.msk [vmem:[#allocation3 + $0x58] sm:$0xff] %vm1275, 0.0
        %1288 = vst.msk [vmem:[#allocation3 + $0x60] sm:$0xff] %vm1275, 0.0
        %1289 = vst.msk [vmem:[#allocation3 + $0x68] sm:$0xff] %vm1275, 0.0
        %1290 = vst.msk [vmem:[#allocation3 + $0x70] sm:$0xff] %vm1275, 0.0
        %1291 = vst.msk [vmem:[#allocation3 + $0x78] sm:$0xff] %vm1275, 0.0
        %1292 = vst.msk [vmem:[#allocation3 + $0x80] sm:$0xff] %vm1275, 0.0
        %1293 = vst.msk [vmem:[#allocation3 + $0x88] sm:$0xff] %vm1275, 0.0
        %1294 = vst.msk [vmem:[#allocation3 + $0x90] sm:$0xff] %vm1275, 0.0
        %1295 = vst.msk [vmem:[#allocation3 + $0x98] sm:$0xff] %vm1275, 0.0
        %1296 = vst.msk [vmem:[#allocation3 + $0xa0] sm:$0xff] %vm1275, 0.0
        %1297 = vst.msk [vmem:[#allocation3 + $0xa8] sm:$0xff] %vm1275, 0.0
        %1298 = vst.msk [vmem:[#allocation3 + $0xb0] sm:$0xff] %vm1275, 0.0
        %1299 = vst.msk [vmem:[#allocation3 + $0xb8] sm:$0xff] %vm1275, 0.0
        %1300 = vst.msk [vmem:[#allocation3 + $0xc0] sm:$0xff] %vm1275, 0.0
        %1301 = vst.msk [vmem:[#allocation3 + $0xc8] sm:$0xff] %vm1275, 0.0
        %1302 = vst.msk [vmem:[#allocation3 + $0xd0] sm:$0xff] %vm1275, 0.0
        %1303 = vst.msk [vmem:[#allocation3 + $0xd8] sm:$0xff] %vm1275, 0.0
        %1304 = vst.msk [vmem:[#allocation3 + $0xe0] sm:$0xff] %vm1275, 0.0
        %1305 = vst.msk [vmem:[#allocation3 + $0xe8] sm:$0xff] %vm1275, 0.0
        %1306 = vst.msk [vmem:[#allocation3 + $0xf0] sm:$0xff] %vm1275, 0.0
        %1307 = vst.msk [vmem:[#allocation3 + $0xf8] sm:$0xff] %vm1275, 0.0
        %v1308 = vld [vmem:[#allocation2] sm:$0xf]
        %v1309 = vld [vmem:[#allocation2 + $0x4] sm:$0xf]
        %v1310 = vld [vmem:[#allocation2 + $0xc] sm:$0xf]
        %v1311 = vld [vmem:[#allocation2 + $0x10] sm:$0xf]
        %v1312 = vld [vmem:[#allocation2 + $0x18] sm:$0xf]
        %v1313 = vld [vmem:[#allocation2 + $0x1c] sm:$0xf]
        %v1314 = vld [vmem:[#allocation2 + $0x24] sm:$0xf]
        %v1315 = vld [vmem:[#allocation2 + $0x28] sm:$0xf]
        %v1316 = vld [vmem:[#allocation2 + $0x30] sm:$0xf]
        %v1317 = vld [vmem:[#allocation2 + $0x34] sm:$0xf]
        %v1318 = vld [vmem:[#allocation2 + $0x3c] sm:$0xf]
        %v1319 = vld [vmem:[#allocation2 + $0x40] sm:$0xf]
        %v1320 = vld [vmem:[#allocation2 + $0x48] sm:$0xf]
        %v1321 = vld [vmem:[#allocation2 + $0x4c] sm:$0xf]
        %v1322 = vld [vmem:[#allocation2 + $0x54] sm:$0xf]
        %v1323 = vld [vmem:[#allocation2 + $0x58] sm:$0xf]
        %v1324 = vld [vmem:[#allocation2 + $0x60] sm:$0xf]
        %v1325 = vld [vmem:[#allocation2 + $0x64] sm:$0xf]
        %v1326 = vld [vmem:[#allocation2 + $0x6c] sm:$0xf]
        %v1327 = vld [vmem:[#allocation2 + $0x70] sm:$0xf]
        %v1328 = vld [vmem:[#allocation2 + $0x78] sm:$0xf]
        %v1329 = vld [vmem:[#allocation2 + $0x7c] sm:$0xf]
        %v1330 = vld [vmem:[#allocation2 + $0x84] sm:$0xf]
        %v1331 = vld [vmem:[#allocation2 + $0x88] sm:$0xf]
        %v1332 = vld [vmem:[#allocation2 + $0x90] sm:$0xf]
        %v1333 = vld [vmem:[#allocation2 + $0x94] sm:$0xf]
        %v1334 = vld [vmem:[#allocation2 + $0x9c] sm:$0xf]
        %v1335 = vld [vmem:[#allocation2 + $0xa0] sm:$0xf]
        %v1336 = vld [vmem:[#allocation2 + $0xa8] sm:$0xf]
        %v1337 = vld [vmem:[#allocation2 + $0xac] sm:$0xf]
        %v1338 = vld [vmem:[#allocation2 + $0xb4] sm:$0xf]
        %v1339 = vld [vmem:[#allocation2 + $0xb8] sm:$0xf]
        %v1340 = vld [vmem:[#allocation3] sm:$0xff]
        %v1341 = vld [vmem:[#allocation3 + $0x8] sm:$0xff]
        %v1342 = vld [vmem:[#allocation3 + $0x10] sm:$0xff]
        %v1343 = vld [vmem:[#allocation3 + $0x18] sm:$0xff]
        %v1344 = vld [vmem:[#allocation3 + $0x20] sm:$0xff]
        %v1345 = vld [vmem:[#allocation3 + $0x28] sm:$0xff]
        %v1346 = vld [vmem:[#allocation3 + $0x30] sm:$0xff]
        %v1347 = vld [vmem:[#allocation3 + $0x38] sm:$0xff]
        %v1348 = vld [vmem:[#allocation3 + $0x40] sm:$0xff]
        %v1349 = vld [vmem:[#allocation3 + $0x48] sm:$0xff]
        %v1350 = vld [vmem:[#allocation3 + $0x50] sm:$0xff]
        %v1351 = vld [vmem:[#allocation3 + $0x58] sm:$0xff]
        %v1352 = vld [vmem:[#allocation3 + $0x60] sm:$0xff]
        %v1353 = vld [vmem:[#allocation3 + $0x68] sm:$0xff]
        %v1354 = vld [vmem:[#allocation3 + $0x70] sm:$0xff]
        %v1355 = vld [vmem:[#allocation3 + $0x78] sm:$0xff]
        %v1356 = vld [vmem:[#allocation3 + $0x80] sm:$0xff]
        %v1357 = vld [vmem:[#allocation3 + $0x88] sm:$0xff]
        %v1358 = vld [vmem:[#allocation3 + $0x90] sm:$0xff]
        %v1359 = vld [vmem:[#allocation3 + $0x98] sm:$0xff]
        %v1360 = vld [vmem:[#allocation3 + $0xa0] sm:$0xff]
        %v1361 = vld [vmem:[#allocation3 + $0xa8] sm:$0xff]
        %v1362 = vld [vmem:[#allocation3 + $0xb0] sm:$0xff]
        %v1363 = vld [vmem:[#allocation3 + $0xb8] sm:$0xff]
        %v1364 = vld [vmem:[#allocation3 + $0xc0] sm:$0xff]
        %v1365 = vld [vmem:[#allocation3 + $0xc8] sm:$0xff]
        %v1366 = vld [vmem:[#allocation3 + $0xd0] sm:$0xff]
        %v1367 = vld [vmem:[#allocation3 + $0xd8] sm:$0xff]
        %v1368 = vld [vmem:[#allocation3 + $0xe0] sm:$0xff]
        %v1369 = vld [vmem:[#allocation3 + $0xe8] sm:$0xff]
        %v1370 = vld [vmem:[#allocation3 + $0xf0] sm:$0xff]
        %v1371 = vld [vmem:[#allocation3 + $0xf8] sm:$0xff]
        %v1372 = vld [vmem:[#allocation7] sm:$0x3]
        %v1405 = vunpack.c.l.b16 %v1308
        %v1406 = vunpack.c.l.b16 %v1309
        %v1407 = vunpack.c.l.b16 %v1310
        %v1408 = vunpack.c.l.b16 %v1311
        %v1409 = vunpack.c.l.b16 %v1312
        %v1410 = vunpack.c.l.b16 %v1313
        %v1411 = vunpack.c.l.b16 %v1314
        %v1412 = vunpack.c.l.b16 %v1315
        %v1413 = vunpack.c.l.b16 %v1316
        %v1414 = vunpack.c.l.b16 %v1317
        %v1415 = vunpack.c.l.b16 %v1318
        %v1416 = vunpack.c.l.b16 %v1319
        %v1417 = vunpack.c.l.b16 %v1320
        %v1418 = vunpack.c.l.b16 %v1321
        %v1419 = vunpack.c.l.b16 %v1322
        %v1420 = vunpack.c.l.b16 %v1323
        %v1421 = vunpack.c.l.b16 %v1324
        %v1422 = vunpack.c.l.b16 %v1325
        %v1423 = vunpack.c.l.b16 %v1326
        %v1424 = vunpack.c.l.b16 %v1327
        %v1425 = vunpack.c.l.b16 %v1328
        %v1426 = vunpack.c.l.b16 %v1329
        %v1427 = vunpack.c.l.b16 %v1330
        %v1428 = vunpack.c.l.b16 %v1331
        %v1429 = vunpack.c.l.b16 %v1332
        %v1430 = vunpack.c.l.b16 %v1333
        %v1431 = vunpack.c.l.b16 %v1334
        %v1432 = vunpack.c.l.b16 %v1335
        %v1433 = vunpack.c.l.b16 %v1336
        %v1434 = vunpack.c.l.b16 %v1337
        %v1435 = vunpack.c.l.b16 %v1338
        %v1436 = vunpack.c.l.b16 %v1339
        %v1437 = vpack.c.b16 %v1406, %v1405
        %v1438 = vpack.c.b16 %v1408, %v1407
        %v1439 = vpack.c.b16 %v1410, %v1409
        %v1440 = vpack.c.b16 %v1412, %v1411
        %v1441 = vpack.c.b16 %v1414, %v1413
        %v1442 = vpack.c.b16 %v1416, %v1415
        %v1443 = vpack.c.b16 %v1418, %v1417
        %v1444 = vpack.c.b16 %v1420, %v1419
        %v1445 = vpack.c.b16 %v1422, %v1421
        %v1446 = vpack.c.b16 %v1424, %v1423
        %v1447 = vpack.c.b16 %v1426, %v1425
        %v1448 = vpack.c.b16 %v1428, %v1427
        %v1449 = vpack.c.b16 %v1430, %v1429
        %v1450 = vpack.c.b16 %v1432, %v1431
        %v1451 = vpack.c.b16 %v1434, %v1433
        %v1452 = vpack.c.b16 %v1436, %v1435
        %v1454 = vsel %vm1275, %v1437, 0
        %v1457 = vsel %vm1275, %v1438, 0
        %v1460 = vsel %vm1275, %v1439, 0
        %v1463 = vsel %vm1275, %v1440, 0
        %v1466 = vsel %vm1275, %v1441, 0
        %v1469 = vsel %vm1275, %v1442, 0
        %v1472 = vsel %vm1275, %v1443, 0
        %v1475 = vsel %vm1275, %v1444, 0
        %v1478 = vsel %vm1275, %v1445, 0
        %v1481 = vsel %vm1275, %v1446, 0
        %v1484 = vsel %vm1275, %v1447, 0
        %v1487 = vsel %vm1275, %v1448, 0
        %v1490 = vsel %vm1275, %v1449, 0
        %v1493 = vsel %vm1275, %v1450, 0
        %v1496 = vsel %vm1275, %v1451, 0
        %v1499 = vsel %vm1275, %v1452, 0
        %vm1501 = vcmask 1041408
        %v1503 = vsel %vm1501, %v1372, 0
        %1505 = vmatprep.subr.bf16.mxu0 0
        %1506 = vmatpush1.bf16.msra.mxu0 %v1503
        %1507 = vmatprep.subr.bf16.mxu0 0
        %1508 = vmatpush1.bf16.msra.mxu0 0
        %1509 = vmatprep.subr.bf16.mxu0 0
        %1510 = vmatpush1.bf16.msra.mxu0 0
        %1511 = vmatprep.subr.bf16.mxu0 0
        %1512 = vmatpush1.bf16.msra.mxu0 0
        %1513 = vmatprep.subr.bf16.mxu0 0
        %1514 = vmatpush1.bf16.msra.mxu0 0
        %1515 = vmatprep.subr.bf16.mxu0 0
        %1516 = vmatpush1.bf16.msra.mxu0 0
        %1517 = vmatprep.subr.bf16.mxu0 0
        %1518 = vmatpush1.bf16.msra.mxu0 0
        %1519 = vmatprep.subr.bf16.mxu0 0
        %1520 = vmatpush1.bf16.msra.mxu0 0
        %1521 = vmatprep.subr.bf16.mxu0 0
        %1522 = vmatpush1.bf16.msra.mxu0 0
        %1523 = vmatprep.subr.bf16.mxu0 0
        %1524 = vmatpush1.bf16.msra.mxu0 0
        %1525 = vmatprep.subr.bf16.mxu0 0
        %1526 = vmatpush1.bf16.msra.mxu0 0
        %1527 = vmatprep.subr.bf16.mxu0 0
        %1528 = vmatpush1.bf16.msra.mxu0 0
        %1529 = vmatprep.subr.bf16.mxu0 0
        %1530 = vmatpush1.bf16.msra.mxu0 0
        %1531 = vmatprep.subr.bf16.mxu0 0
        %1532 = vmatpush1.bf16.msra.mxu0 0
        %1533 = vmatprep.subr.bf16.mxu0 0
        %1534 = vmatpush1.bf16.msra.mxu0 0
        %1535 = vmatprep.subr.bf16.mxu0 0
        %1536 = vmatpush1.bf16.msra.mxu0 0
        %1537 = vmatprep.mubr.bf16.mxu0 0
        %1538 = vmatmul.mubr.bf16.gmra.mrb[0].mxu0 %v1454
        %v1539 = vpop.f32.mrb[0].mxu0
        %v1540 = vadd.f32 0.0, %v1539
        %v1541 = vpop.f32.mrb[0].mxu0
        %v1542 = vpop.f32.mrb[0].mxu0
        %v1543 = vadd.f32 0.0, %v1542
        %v1544 = vpop.f32.mrb[0].mxu0
        %1545 = vmatprep.mubr.bf16.mxu0 0
        %1546 = vmatmul.mubr.bf16.gmra.mrb[0].mxu0 %v1457
        %v1547 = vpop.f32.mrb[0].mxu0
        %v1548 = vadd.f32 0.0, %v1547
        %v1549 = vpop.f32.mrb[0].mxu0
        %v1550 = vpop.f32.mrb[0].mxu0
        %v1551 = vadd.f32 0.0, %v1550
        %v1552 = vpop.f32.mrb[0].mxu0
        %1553 = vmatprep.mubr.bf16.mxu0 0
        %1554 = vmatmul.mubr.bf16.gmra.mrb[0].mxu0 %v1460
        %v1555 = vpop.f32.mrb[0].mxu0
        %v1556 = vadd.f32 0.0, %v1555
        %v1557 = vpop.f32.mrb[0].mxu0
        %v1558 = vpop.f32.mrb[0].mxu0
        %v1559 = vadd.f32 0.0, %v1558
        %v1560 = vpop.f32.mrb[0].mxu0
        %1561 = vmatprep.mubr.bf16.mxu0 0
        %1562 = vmatmul.mubr.bf16.gmra.mrb[0].mxu0 %v1463
        %v1563 = vpop.f32.mrb[0].mxu0
        %v1564 = vadd.f32 0.0, %v1563
        %v1565 = vpop.f32.mrb[0].mxu0
        %v1566 = vpop.f32.mrb[0].mxu0
        %v1567 = vadd.f32 0.0, %v1566
        %v1568 = vpop.f32.mrb[0].mxu0
        %1569 = vmatprep.mubr.bf16.mxu0 0
        %1570 = vmatmul.mubr.bf16.gmra.mrb[0].mxu0 %v1466
        %v1571 = vpop.f32.mrb[0].mxu0
        %v1572 = vadd.f32 0.0, %v1571
        %v1573 = vpop.f32.mrb[0].mxu0
        %v1574 = vpop.f32.mrb[0].mxu0
        %v1575 = vadd.f32 0.0, %v1574
        %v1576 = vpop.f32.mrb[0].mxu0
        %1577 = vmatprep.mubr.bf16.mxu0 0
        %1578 = vmatmul.mubr.bf16.gmra.mrb[0].mxu0 %v1469
        %v1579 = vpop.f32.mrb[0].mxu0
        %v1580 = vadd.f32 0.0, %v1579
        %v1581 = vpop.f32.mrb[0].mxu0
        %v1582 = vpop.f32.mrb[0].mxu0
        %v1583 = vadd.f32 0.0, %v1582
        %v1584 = vpop.f32.mrb[0].mxu0
        %1585 = vmatprep.mubr.bf16.mxu0 0
        %1586 = vmatmul.mubr.bf16.gmra.mrb[0].mxu0 %v1472
        %v1587 = vpop.f32.mrb[0].mxu0
        %v1588 = vadd.f32 0.0, %v1587
        %v1589 = vpop.f32.mrb[0].mxu0
        %v1590 = vpop.f32.mrb[0].mxu0
        %v1591 = vadd.f32 0.0, %v1590
        %v1592 = vpop.f32.mrb[0].mxu0
        %1593 = vmatprep.mubr.bf16.mxu0 0
        %1594 = vmatmul.mubr.bf16.gmra.mrb[0].mxu0 %v1475
        %v1595 = vpop.f32.mrb[0].mxu0
        %v1596 = vadd.f32 0.0, %v1595
        %v1597 = vpop.f32.mrb[0].mxu0
        %v1598 = vpop.f32.mrb[0].mxu0
        %v1599 = vadd.f32 0.0, %v1598
        %v1600 = vpop.f32.mrb[0].mxu0
        %1601 = vmatprep.mubr.bf16.mxu0 0
        %1602 = vmatmul.mubr.bf16.gmra.mrb[0].mxu0 %v1478
        %v1603 = vpop.f32.mrb[0].mxu0
        %v1604 = vadd.f32 0.0, %v1603
        %v1605 = vpop.f32.mrb[0].mxu0
        %v1606 = vpop.f32.mrb[0].mxu0
        %v1607 = vadd.f32 0.0, %v1606
        %v1608 = vpop.f32.mrb[0].mxu0
        %1609 = vmatprep.mubr.bf16.mxu0 0
        %1610 = vmatmul.mubr.bf16.gmra.mrb[0].mxu0 %v1481
        %v1611 = vpop.f32.mrb[0].mxu0
        %v1612 = vadd.f32 0.0, %v1611
        %v1613 = vpop.f32.mrb[0].mxu0
        %v1614 = vpop.f32.mrb[0].mxu0
        %v1615 = vadd.f32 0.0, %v1614
        %v1616 = vpop.f32.mrb[0].mxu0
        %1617 = vmatprep.mubr.bf16.mxu0 0
        %1618 = vmatmul.mubr.bf16.gmra.mrb[0].mxu0 %v1484
        %v1619 = vpop.f32.mrb[0].mxu0
        %v1620 = vadd.f32 0.0, %v1619
        %v1621 = vpop.f32.mrb[0].mxu0
        %v1622 = vpop.f32.mrb[0].mxu0
        %v1623 = vadd.f32 0.0, %v1622
        %v1624 = vpop.f32.mrb[0].mxu0
        %1625 = vmatprep.mubr.bf16.mxu0 0
        %1626 = vmatmul.mubr.bf16.gmra.mrb[0].mxu0 %v1487
        %v1627 = vpop.f32.mrb[0].mxu0
        %v1628 = vadd.f32 0.0, %v1627
        %v1629 = vpop.f32.mrb[0].mxu0
        %v1630 = vpop.f32.mrb[0].mxu0
        %v1631 = vadd.f32 0.0, %v1630
        %v1632 = vpop.f32.mrb[0].mxu0
        %1633 = vmatprep.mubr.bf16.mxu0 0
        %1634 = vmatmul.mubr.bf16.gmra.mrb[0].mxu0 %v1490
        %v1635 = vpop.f32.mrb[0].mxu0
        %v1636 = vadd.f32 0.0, %v1635
        %v1637 = vpop.f32.mrb[0].mxu0
        %v1638 = vpop.f32.mrb[0].mxu0
        %v1639 = vadd.f32 0.0, %v1638
        %v1640 = vpop.f32.mrb[0].mxu0
        %1641 = vmatprep.mubr.bf16.mxu0 0
        %1642 = vmatmul.mubr.bf16.gmra.mrb[0].mxu0 %v1493
        %v1643 = vpop.f32.mrb[0].mxu0
        %v1644 = vadd.f32 0.0, %v1643
        %v1645 = vpop.f32.mrb[0].mxu0
        %v1646 = vpop.f32.mrb[0].mxu0
        %v1647 = vadd.f32 0.0, %v1646
        %v1648 = vpop.f32.mrb[0].mxu0
        %1649 = vmatprep.mubr.bf16.mxu0 0
        %1650 = vmatmul.mubr.bf16.gmra.mrb[0].mxu0 %v1496
        %v1651 = vpop.f32.mrb[0].mxu0
        %v1652 = vadd.f32 0.0, %v1651
        %v1653 = vpop.f32.mrb[0].mxu0
        %v1654 = vpop.f32.mrb[0].mxu0
        %v1655 = vadd.f32 0.0, %v1654
        %v1656 = vpop.f32.mrb[0].mxu0
        %1657 = vmatprep.mubr.bf16.mxu0 0
        %1658 = vmatmul.mubr.bf16.gmra.mrb[0].mxu0 %v1499
        %v1659 = vpop.f32.mrb[0].mxu0
        %v1660 = vadd.f32 0.0, %v1659
        %v1661 = vpop.f32.mrb[0].mxu0
        %v1662 = vpop.f32.mrb[0].mxu0
        %v1663 = vadd.f32 0.0, %v1662
        %v1664 = vpop.f32.mrb[0].mxu0
        %1665 = vdwg.mxu0
        %v1666 = vadd.f32 %v1340, %v1540
        %v1667 = vadd.f32 %v1341, %v1543
        %v1668 = vadd.f32 %v1342, %v1548
        %v1669 = vadd.f32 %v1343, %v1551
        %v1670 = vadd.f32 %v1344, %v1556
        %v1671 = vadd.f32 %v1345, %v1559
        %v1672 = vadd.f32 %v1346, %v1564
        %v1673 = vadd.f32 %v1347, %v1567
        %v1674 = vadd.f32 %v1348, %v1572
        %v1675 = vadd.f32 %v1349, %v1575
        %v1676 = vadd.f32 %v1350, %v1580
        %v1677 = vadd.f32 %v1351, %v1583
        %v1678 = vadd.f32 %v1352, %v1588
        %v1679 = vadd.f32 %v1353, %v1591
        %v1680 = vadd.f32 %v1354, %v1596
        %v1681 = vadd.f32 %v1355, %v1599
        %v1682 = vadd.f32 %v1356, %v1604
        %v1683 = vadd.f32 %v1357, %v1607
        %v1684 = vadd.f32 %v1358, %v1612
        %v1685 = vadd.f32 %v1359, %v1615
        %v1686 = vadd.f32 %v1360, %v1620
        %v1687 = vadd.f32 %v1361, %v1623
        %v1688 = vadd.f32 %v1362, %v1628
        %v1689 = vadd.f32 %v1363, %v1631
        %v1690 = vadd.f32 %v1364, %v1636
        %v1691 = vadd.f32 %v1365, %v1639
        %v1692 = vadd.f32 %v1366, %v1644
        %v1693 = vadd.f32 %v1367, %v1647
        %v1694 = vadd.f32 %v1368, %v1652
        %v1695 = vadd.f32 %v1369, %v1655
        %v1696 = vadd.f32 %v1370, %v1660
        %v1697 = vadd.f32 %v1371, %v1663
        %1698 = vst.msk [vmem:[#allocation3] sm:$0xff] %vm1275, %v1666
        %1699 = vst.msk [vmem:[#allocation3 + $0x8] sm:$0xff] %vm1275, %v1667
        %1700 = vst.msk [vmem:[#allocation3 + $0x10] sm:$0xff] %vm1275, %v1668
        %1701 = vst.msk [vmem:[#allocation3 + $0x18] sm:$0xff] %vm1275, %v1669
        %1702 = vst.msk [vmem:[#allocation3 + $0x20] sm:$0xff] %vm1275, %v1670
        %1703 = vst.msk [vmem:[#allocation3 + $0x28] sm:$0xff] %vm1275, %v1671
        %1704 = vst.msk [vmem:[#allocation3 + $0x30] sm:$0xff] %vm1275, %v1672
        %1705 = vst.msk [vmem:[#allocation3 + $0x38] sm:$0xff] %vm1275, %v1673
        %1706 = vst.msk [vmem:[#allocation3 + $0x40] sm:$0xff] %vm1275, %v1674
        %1707 = vst.msk [vmem:[#allocation3 + $0x48] sm:$0xff] %vm1275, %v1675
        %1708 = vst.msk [vmem:[#allocation3 + $0x50] sm:$0xff] %vm1275, %v1676
        %1709 = vst.msk [vmem:[#allocation3 + $0x58] sm:$0xff] %vm1275, %v1677
        %1710 = vst.msk [vmem:[#allocation3 + $0x60] sm:$0xff] %vm1275, %v1678
        %1711 = vst.msk [vmem:[#allocation3 + $0x68] sm:$0xff] %vm1275, %v1679
        %1712 = vst.msk [vmem:[#allocation3 + $0x70] sm:$0xff] %vm1275, %v1680
        %1713 = vst.msk [vmem:[#allocation3 + $0x78] sm:$0xff] %vm1275, %v1681
        %1714 = vst.msk [vmem:[#allocation3 + $0x80] sm:$0xff] %vm1275, %v1682
        %1715 = vst.msk [vmem:[#allocation3 + $0x88] sm:$0xff] %vm1275, %v1683
        %1716 = vst.msk [vmem:[#allocation3 + $0x90] sm:$0xff] %vm1275, %v1684
        %1717 = vst.msk [vmem:[#allocation3 + $0x98] sm:$0xff] %vm1275, %v1685
        %1718 = vst.msk [vmem:[#allocation3 + $0xa0] sm:$0xff] %vm1275, %v1686
        %1719 = vst.msk [vmem:[#allocation3 + $0xa8] sm:$0xff] %vm1275, %v1687
        %1720 = vst.msk [vmem:[#allocation3 + $0xb0] sm:$0xff] %vm1275, %v1688
        %1721 = vst.msk [vmem:[#allocation3 + $0xb8] sm:$0xff] %vm1275, %v1689
        %1722 = vst.msk [vmem:[#allocation3 + $0xc0] sm:$0xff] %vm1275, %v1690
        %1723 = vst.msk [vmem:[#allocation3 + $0xc8] sm:$0xff] %vm1275, %v1691
        %1724 = vst.msk [vmem:[#allocation3 + $0xd0] sm:$0xff] %vm1275, %v1692
        %1725 = vst.msk [vmem:[#allocation3 + $0xd8] sm:$0xff] %vm1275, %v1693
        %1726 = vst.msk [vmem:[#allocation3 + $0xe0] sm:$0xff] %vm1275, %v1694
        %1727 = vst.msk [vmem:[#allocation3 + $0xe8] sm:$0xff] %vm1275, %v1695
        %1728 = vst.msk [vmem:[#allocation3 + $0xf0] sm:$0xff] %vm1275, %v1696
        %1729 = vst.msk [vmem:[#allocation3 + $0xf8] sm:$0xff] %vm1275, %v1697
        %v1730 = vld [vmem:[#allocation2] sm:$0xf]
        %v1731 = vld [vmem:[#allocation2 + $0x4] sm:$0xf]
        %v1732 = vld [vmem:[#allocation2 + $0x8] sm:$0x1]
        %v1733 = vld [vmem:[#allocation2 + $0xc] sm:$0xf]
        %v1734 = vld [vmem:[#allocation2 + $0x10] sm:$0xf]
        %v1735 = vld [vmem:[#allocation2 + $0x14] sm:$0x1]
        %v1736 = vld [vmem:[#allocation2 + $0x18] sm:$0xf]
        %v1737 = vld [vmem:[#allocation2 + $0x1c] sm:$0xf]
        %v1738 = vld [vmem:[#allocation2 + $0x20] sm:$0x1]
        %v1739 = vld [vmem:[#allocation2 + $0x24] sm:$0xf]
        %v1740 = vld [vmem:[#allocation2 + $0x28] sm:$0xf]
        %v1741 = vld [vmem:[#allocation2 + $0x2c] sm:$0x1]
        %v1742 = vld [vmem:[#allocation2 + $0x30] sm:$0xf]
        %v1743 = vld [vmem:[#allocation2 + $0x34] sm:$0xf]
        %v1744 = vld [vmem:[#allocation2 + $0x38] sm:$0x1]
        %v1745 = vld [vmem:[#allocation2 + $0x3c] sm:$0xf]
        %v1746 = vld [vmem:[#allocation2 + $0x40] sm:$0xf]
        %v1747 = vld [vmem:[#allocation2 + $0x44] sm:$0x1]
        %v1748 = vld [vmem:[#allocation2 + $0x48] sm:$0xf]
        %v1749 = vld [vmem:[#allocation2 + $0x4c] sm:$0xf]
        %v1750 = vld [vmem:[#allocation2 + $0x50] sm:$0x1]
        %v1751 = vld [vmem:[#allocation2 + $0x54] sm:$0xf]
        %v1752 = vld [vmem:[#allocation2 + $0x58] sm:$0xf]
        %v1753 = vld [vmem:[#allocation2 + $0x5c] sm:$0x1]
        %v1754 = vld [vmem:[#allocation2 + $0x60] sm:$0xf]
        %v1755 = vld [vmem:[#allocation2 + $0x64] sm:$0xf]
        %v1756 = vld [vmem:[#allocation2 + $0x68] sm:$0x1]
        %v1757 = vld [vmem:[#allocation2 + $0x6c] sm:$0xf]
        %v1758 = vld [vmem:[#allocation2 + $0x70] sm:$0xf]
        %v1759 = vld [vmem:[#allocation2 + $0x74] sm:$0x1]
        %v1760 = vld [vmem:[#allocation2 + $0x78] sm:$0xf]
        %v1761 = vld [vmem:[#allocation2 + $0x7c] sm:$0xf]
        %v1762 = vld [vmem:[#allocation2 + $0x80] sm:$0x1]
        %v1763 = vld [vmem:[#allocation2 + $0x84] sm:$0xf]
        %v1764 = vld [vmem:[#allocation2 + $0x88] sm:$0xf]
        %v1765 = vld [vmem:[#allocation2 + $0x8c] sm:$0x1]
        %v1766 = vld [vmem:[#allocation2 + $0x90] sm:$0xf]
        %v1767 = vld [vmem:[#allocation2 + $0x94] sm:$0xf]
        %v1768 = vld [vmem:[#allocation2 + $0x98] sm:$0x1]
        %v1769 = vld [vmem:[#allocation2 + $0x9c] sm:$0xf]
        %v1770 = vld [vmem:[#allocation2 + $0xa0] sm:$0xf]
        %v1771 = vld [vmem:[#allocation2 + $0xa4] sm:$0x1]
        %v1772 = vld [vmem:[#allocation2 + $0xa8] sm:$0xf]
        %v1773 = vld [vmem:[#allocation2 + $0xac] sm:$0xf]
        %v1774 = vld [vmem:[#allocation2 + $0xb0] sm:$0x1]
        %v1775 = vld [vmem:[#allocation2 + $0xb4] sm:$0xf]
        %v1776 = vld [vmem:[#allocation2 + $0xb8] sm:$0xf]
        %v1777 = vld [vmem:[#allocation2 + $0xbc] sm:$0x1]
        %vm1778 = vsmask.f32 3328
        %vm1779 = vsmask.f32 7440
        %vm1780 = vmor %vm1778, %vm1779
        %v1782 = vshrl.u32 %v1730, 16
        %v1784 = vrot.slane %v1782, 4
        %v1785 = vshll.u32 %v1730, 16
        %v1787 = vrot.slane %v1785, 5
        %v1788 = vor.u32 %v1784, %v1787
        %v1789 = vrot.slane %v1788, 4
        %v1791 = vshll.u32 %v1731, 16
        %v1793 = vrot.slane %v1791, 5
        %v1794 = vsel %vm1780, %v1789, %v1793
        %v1795 = vshrl.u32 %v1731, 16
        %v1797 = vrot.slane %v1795, 4
        %v1798 = vor.u32 %v1797, %v1793
        %v1799 = vrot.slane %v1798, 4
        %v1801 = vshll.u32 %v1732, 16
        %v1803 = vrot.slane %v1801, 5
        %v1804 = vsel %vm1780, %v1799, %v1803
        %v1806 = vshrl.u32 %v1733, 16
        %v1808 = vrot.slane %v1806, 4
        %v1809 = vshll.u32 %v1733, 16
        %v1811 = vrot.slane %v1809, 5
        %v1812 = vor.u32 %v1808, %v1811
        %v1813 = vrot.slane %v1812, 4
        %v1815 = vshll.u32 %v1734, 16
        %v1817 = vrot.slane %v1815, 5
        %v1818 = vsel %vm1780, %v1813, %v1817
        %v1819 = vshrl.u32 %v1734, 16
        %v1821 = vrot.slane %v1819, 4
        %v1822 = vor.u32 %v1821, %v1817
        %v1823 = vrot.slane %v1822, 4
        %v1825 = vshll.u32 %v1735, 16
        %v1827 = vrot.slane %v1825, 5
        %v1828 = vsel %vm1780, %v1823, %v1827
        %v1830 = vshrl.u32 %v1736, 16
        %v1832 = vrot.slane %v1830, 4
        %v1833 = vshll.u32 %v1736, 16
        %v1835 = vrot.slane %v1833, 5
        %v1836 = vor.u32 %v1832, %v1835
        %v1837 = vrot.slane %v1836, 4
        %v1839 = vshll.u32 %v1737, 16
        %v1841 = vrot.slane %v1839, 5
        %v1842 = vsel %vm1780, %v1837, %v1841
        %v1843 = vshrl.u32 %v1737, 16
        %v1845 = vrot.slane %v1843, 4
        %v1846 = vor.u32 %v1845, %v1841
        %v1847 = vrot.slane %v1846, 4
        %v1849 = vshll.u32 %v1738, 16
        %v1851 = vrot.slane %v1849, 5
        %v1852 = vsel %vm1780, %v1847, %v1851
        %v1854 = vshrl.u32 %v1739, 16
        %v1856 = vrot.slane %v1854, 4
        %v1857 = vshll.u32 %v1739, 16
        %v1859 = vrot.slane %v1857, 5
        %v1860 = vor.u32 %v1856, %v1859
        %v1861 = vrot.slane %v1860, 4
        %v1863 = vshll.u32 %v1740, 16
        %v1865 = vrot.slane %v1863, 5
        %v1866 = vsel %vm1780, %v1861, %v1865
        %v1867 = vshrl.u32 %v1740, 16
        %v1869 = vrot.slane %v1867, 4
        %v1870 = vor.u32 %v1869, %v1865
        %v1871 = vrot.slane %v1870, 4
        %v1873 = vshll.u32 %v1741, 16
        %v1875 = vrot.slane %v1873, 5
        %v1876 = vsel %vm1780, %v1871, %v1875
        %v1878 = vshrl.u32 %v1742, 16
        %v1880 = vrot.slane %v1878, 4
        %v1881 = vshll.u32 %v1742, 16
        %v1883 = vrot.slane %v1881, 5
        %v1884 = vor.u32 %v1880, %v1883
        %v1885 = vrot.slane %v1884, 4
        %v1887 = vshll.u32 %v1743, 16
        %v1889 = vrot.slane %v1887, 5
        %v1890 = vsel %vm1780, %v1885, %v1889
        %v1891 = vshrl.u32 %v1743, 16
        %v1893 = vrot.slane %v1891, 4
        %v1894 = vor.u32 %v1893, %v1889
        %v1895 = vrot.slane %v1894, 4
        %v1897 = vshll.u32 %v1744, 16
        %v1899 = vrot.slane %v1897, 5
        %v1900 = vsel %vm1780, %v1895, %v1899
        %v1902 = vshrl.u32 %v1745, 16
        %v1904 = vrot.slane %v1902, 4
        %v1905 = vshll.u32 %v1745, 16
        %v1907 = vrot.slane %v1905, 5
        %v1908 = vor.u32 %v1904, %v1907
        %v1909 = vrot.slane %v1908, 4
        %v1911 = vshll.u32 %v1746, 16
        %v1913 = vrot.slane %v1911, 5
        %v1914 = vsel %vm1780, %v1909, %v1913
        %v1915 = vshrl.u32 %v1746, 16
        %v1917 = vrot.slane %v1915, 4
        %v1918 = vor.u32 %v1917, %v1913
        %v1919 = vrot.slane %v1918, 4
        %v1921 = vshll.u32 %v1747, 16
        %v1923 = vrot.slane %v1921, 5
        %v1924 = vsel %vm1780, %v1919, %v1923
        %v1926 = vshrl.u32 %v1748, 16
        %v1928 = vrot.slane %v1926, 4
        %v1929 = vshll.u32 %v1748, 16
        %v1931 = vrot.slane %v1929, 5
        %v1932 = vor.u32 %v1928, %v1931
        %v1933 = vrot.slane %v1932, 4
        %v1935 = vshll.u32 %v1749, 16
        %v1937 = vrot.slane %v1935, 5
        %v1938 = vsel %vm1780, %v1933, %v1937
        %v1939 = vshrl.u32 %v1749, 16
        %v1941 = vrot.slane %v1939, 4
        %v1942 = vor.u32 %v1941, %v1937
        %v1943 = vrot.slane %v1942, 4
        %v1945 = vshll.u32 %v1750, 16
        %v1947 = vrot.slane %v1945, 5
        %v1948 = vsel %vm1780, %v1943, %v1947
        %v1950 = vshrl.u32 %v1751, 16
        %v1952 = vrot.slane %v1950, 4
        %v1953 = vshll.u32 %v1751, 16
        %v1955 = vrot.slane %v1953, 5
        %v1956 = vor.u32 %v1952, %v1955
        %v1957 = vrot.slane %v1956, 4
        %v1959 = vshll.u32 %v1752, 16
        %v1961 = vrot.slane %v1959, 5
        %v1962 = vsel %vm1780, %v1957, %v1961
        %v1963 = vshrl.u32 %v1752, 16
        %v1965 = vrot.slane %v1963, 4
        %v1966 = vor.u32 %v1965, %v1961
        %v1967 = vrot.slane %v1966, 4
        %v1969 = vshll.u32 %v1753, 16
        %v1971 = vrot.slane %v1969, 5
        %v1972 = vsel %vm1780, %v1967, %v1971
        %v1974 = vshrl.u32 %v1754, 16
        %v1976 = vrot.slane %v1974, 4
        %v1977 = vshll.u32 %v1754, 16
        %v1979 = vrot.slane %v1977, 5
        %v1980 = vor.u32 %v1976, %v1979
        %v1981 = vrot.slane %v1980, 4
        %v1983 = vshll.u32 %v1755, 16
        %v1985 = vrot.slane %v1983, 5
        %v1986 = vsel %vm1780, %v1981, %v1985
        %v1987 = vshrl.u32 %v1755, 16
        %v1989 = vrot.slane %v1987, 4
        %v1990 = vor.u32 %v1989, %v1985
        %v1991 = vrot.slane %v1990, 4
        %v1993 = vshll.u32 %v1756, 16
        %v1995 = vrot.slane %v1993, 5
        %v1996 = vsel %vm1780, %v1991, %v1995
        %v1998 = vshrl.u32 %v1757, 16
        %v2000 = vrot.slane %v1998, 4
        %v2001 = vshll.u32 %v1757, 16
        %v2003 = vrot.slane %v2001, 5
        %v2004 = vor.u32 %v2000, %v2003
        %v2005 = vrot.slane %v2004, 4
        %v2007 = vshll.u32 %v1758, 16
        %v2009 = vrot.slane %v2007, 5
        %v2010 = vsel %vm1780, %v2005, %v2009
        %v2011 = vshrl.u32 %v1758, 16
        %v2013 = vrot.slane %v2011, 4
        %v2014 = vor.u32 %v2013, %v2009
        %v2015 = vrot.slane %v2014, 4
        %v2017 = vshll.u32 %v1759, 16
        %v2019 = vrot.slane %v2017, 5
        %v2020 = vsel %vm1780, %v2015, %v2019
        %v2022 = vshrl.u32 %v1760, 16
        %v2024 = vrot.slane %v2022, 4
        %v2025 = vshll.u32 %v1760, 16
        %v2027 = vrot.slane %v2025, 5
        %v2028 = vor.u32 %v2024, %v2027
        %v2029 = vrot.slane %v2028, 4
        %v2031 = vshll.u32 %v1761, 16
        %v2033 = vrot.slane %v2031, 5
        %v2034 = vsel %vm1780, %v2029, %v2033
        %v2035 = vshrl.u32 %v1761, 16
        %v2037 = vrot.slane %v2035, 4
        %v2038 = vor.u32 %v2037, %v2033
        %v2039 = vrot.slane %v2038, 4
        %v2041 = vshll.u32 %v1762, 16
        %v2043 = vrot.slane %v2041, 5
        %v2044 = vsel %vm1780, %v2039, %v2043
        %v2046 = vshrl.u32 %v1763, 16
        %v2048 = vrot.slane %v2046, 4
        %v2049 = vshll.u32 %v1763, 16
        %v2051 = vrot.slane %v2049, 5
        %v2052 = vor.u32 %v2048, %v2051
        %v2053 = vrot.slane %v2052, 4
        %v2055 = vshll.u32 %v1764, 16
        %v2057 = vrot.slane %v2055, 5
        %v2058 = vsel %vm1780, %v2053, %v2057
        %v2059 = vshrl.u32 %v1764, 16
        %v2061 = vrot.slane %v2059, 4
        %v2062 = vor.u32 %v2061, %v2057
        %v2063 = vrot.slane %v2062, 4
        %v2065 = vshll.u32 %v1765, 16
        %v2067 = vrot.slane %v2065, 5
        %v2068 = vsel %vm1780, %v2063, %v2067
        %v2070 = vshrl.u32 %v1766, 16
        %v2072 = vrot.slane %v2070, 4
        %v2073 = vshll.u32 %v1766, 16
        %v2075 = vrot.slane %v2073, 5
        %v2076 = vor.u32 %v2072, %v2075
        %v2077 = vrot.slane %v2076, 4
        %v2079 = vshll.u32 %v1767, 16
        %v2081 = vrot.slane %v2079, 5
        %v2082 = vsel %vm1780, %v2077, %v2081
        %v2083 = vshrl.u32 %v1767, 16
        %v2085 = vrot.slane %v2083, 4
        %v2086 = vor.u32 %v2085, %v2081
        %v2087 = vrot.slane %v2086, 4
        %v2089 = vshll.u32 %v1768, 16
        %v2091 = vrot.slane %v2089, 5
        %v2092 = vsel %vm1780, %v2087, %v2091
        %v2094 = vshrl.u32 %v1769, 16
        %v2096 = vrot.slane %v2094, 4
        %v2097 = vshll.u32 %v1769, 16
        %v2099 = vrot.slane %v2097, 5
        %v2100 = vor.u32 %v2096, %v2099
        %v2101 = vrot.slane %v2100, 4
        %v2103 = vshll.u32 %v1770, 16
        %v2105 = vrot.slane %v2103, 5
        %v2106 = vsel %vm1780, %v2101, %v2105
        %v2107 = vshrl.u32 %v1770, 16
        %v2109 = vrot.slane %v2107, 4
        %v2110 = vor.u32 %v2109, %v2105
        %v2111 = vrot.slane %v2110, 4
        %v2113 = vshll.u32 %v1771, 16
        %v2115 = vrot.slane %v2113, 5
        %v2116 = vsel %vm1780, %v2111, %v2115
        %v2118 = vshrl.u32 %v1772, 16
        %v2120 = vrot.slane %v2118, 4
        %v2121 = vshll.u32 %v1772, 16
        %v2123 = vrot.slane %v2121, 5
        %v2124 = vor.u32 %v2120, %v2123
        %v2125 = vrot.slane %v2124, 4
        %v2127 = vshll.u32 %v1773, 16
        %v2129 = vrot.slane %v2127, 5
        %v2130 = vsel %vm1780, %v2125, %v2129
        %v2131 = vshrl.u32 %v1773, 16
        %v2133 = vrot.slane %v2131, 4
        %v2134 = vor.u32 %v2133, %v2129
        %v2135 = vrot.slane %v2134, 4
        %v2137 = vshll.u32 %v1774, 16
        %v2139 = vrot.slane %v2137, 5
        %v2140 = vsel %vm1780, %v2135, %v2139
        %v2142 = vshrl.u32 %v1775, 16
        %v2144 = vrot.slane %v2142, 4
        %v2145 = vshll.u32 %v1775, 16
        %v2147 = vrot.slane %v2145, 5
        %v2148 = vor.u32 %v2144, %v2147
        %v2149 = vrot.slane %v2148, 4
        %v2151 = vshll.u32 %v1776, 16
        %v2153 = vrot.slane %v2151, 5
        %v2154 = vsel %vm1780, %v2149, %v2153
        %v2155 = vshrl.u32 %v1776, 16
        %v2157 = vrot.slane %v2155, 4
        %v2158 = vor.u32 %v2157, %v2153
        %v2159 = vrot.slane %v2158, 4
        %v2161 = vshll.u32 %v1777, 16
        %v2163 = vrot.slane %v2161, 5
        %v2164 = vsel %vm1780, %v2159, %v2163
        %v2165 = vld [vmem:[#allocation3] sm:$0xff]
        %v2166 = vld [vmem:[#allocation3 + $0x8] sm:$0xff]
        %v2167 = vld [vmem:[#allocation3 + $0x10] sm:$0xff]
        %v2168 = vld [vmem:[#allocation3 + $0x18] sm:$0xff]
        %v2169 = vld [vmem:[#allocation3 + $0x20] sm:$0xff]
        %v2170 = vld [vmem:[#allocation3 + $0x28] sm:$0xff]
        %v2171 = vld [vmem:[#allocation3 + $0x30] sm:$0xff]
        %v2172 = vld [vmem:[#allocation3 + $0x38] sm:$0xff]
        %v2173 = vld [vmem:[#allocation3 + $0x40] sm:$0xff]
        %v2174 = vld [vmem:[#allocation3 + $0x48] sm:$0xff]
        %v2175 = vld [vmem:[#allocation3 + $0x50] sm:$0xff]
        %v2176 = vld [vmem:[#allocation3 + $0x58] sm:$0xff]
        %v2177 = vld [vmem:[#allocation3 + $0x60] sm:$0xff]
        %v2178 = vld [vmem:[#allocation3 + $0x68] sm:$0xff]
        %v2179 = vld [vmem:[#allocation3 + $0x70] sm:$0xff]
        %v2180 = vld [vmem:[#allocation3 + $0x78] sm:$0xff]
        %v2181 = vld [vmem:[#allocation3 + $0x80] sm:$0xff]
        %v2182 = vld [vmem:[#allocation3 + $0x88] sm:$0xff]
        %v2183 = vld [vmem:[#allocation3 + $0x90] sm:$0xff]
        %v2184 = vld [vmem:[#allocation3 + $0x98] sm:$0xff]
        %v2185 = vld [vmem:[#allocation3 + $0xa0] sm:$0xff]
        %v2186 = vld [vmem:[#allocation3 + $0xa8] sm:$0xff]
        %v2187 = vld [vmem:[#allocation3 + $0xb0] sm:$0xff]
        %v2188 = vld [vmem:[#allocation3 + $0xb8] sm:$0xff]
        %v2189 = vld [vmem:[#allocation3 + $0xc0] sm:$0xff]
        %v2190 = vld [vmem:[#allocation3 + $0xc8] sm:$0xff]
        %v2191 = vld [vmem:[#allocation3 + $0xd0] sm:$0xff]
        %v2192 = vld [vmem:[#allocation3 + $0xd8] sm:$0xff]
        %v2193 = vld [vmem:[#allocation3 + $0xe0] sm:$0xff]
        %v2194 = vld [vmem:[#allocation3 + $0xe8] sm:$0xff]
        %v2195 = vld [vmem:[#allocation3 + $0xf0] sm:$0xff]
        %v2196 = vld [vmem:[#allocation3 + $0xf8] sm:$0xff]
        %s2197 = scalar_lea.vmem [#allocation7], 2
        %v2198 = vld [vmem:[%s2197] sm:$0x3]
        %v2199 = vunpack.c.l.b16 %v1794
        %v2200 = vunpack.c.l.b16 %v1804
        %v2201 = vunpack.c.l.b16 %v1818
        %v2202 = vunpack.c.l.b16 %v1828
        %v2203 = vunpack.c.l.b16 %v1842
        %v2204 = vunpack.c.l.b16 %v1852
        %v2205 = vunpack.c.l.b16 %v1866
        %v2206 = vunpack.c.l.b16 %v1876
        %v2207 = vunpack.c.l.b16 %v1890
        %v2208 = vunpack.c.l.b16 %v1900
        %v2209 = vunpack.c.l.b16 %v1914
        %v2210 = vunpack.c.l.b16 %v1924
        %v2211 = vunpack.c.l.b16 %v1938
        %v2212 = vunpack.c.l.b16 %v1948
        %v2213 = vunpack.c.l.b16 %v1962
        %v2214 = vunpack.c.l.b16 %v1972
        %v2215 = vunpack.c.l.b16 %v1986
        %v2216 = vunpack.c.l.b16 %v1996
        %v2217 = vunpack.c.l.b16 %v2010
        %v2218 = vunpack.c.l.b16 %v2020
        %v2219 = vunpack.c.l.b16 %v2034
        %v2220 = vunpack.c.l.b16 %v2044
        %v2221 = vunpack.c.l.b16 %v2058
        %v2222 = vunpack.c.l.b16 %v2068
        %v2223 = vunpack.c.l.b16 %v2082
        %v2224 = vunpack.c.l.b16 %v2092
        %v2225 = vunpack.c.l.b16 %v2106
        %v2226 = vunpack.c.l.b16 %v2116
        %v2227 = vunpack.c.l.b16 %v2130
        %v2228 = vunpack.c.l.b16 %v2140
        %v2229 = vunpack.c.l.b16 %v2154
        %v2230 = vunpack.c.l.b16 %v2164
        %v2231 = vpack.c.b16 %v2200, %v2199
        %v2232 = vpack.c.b16 %v2202, %v2201
        %v2233 = vpack.c.b16 %v2204, %v2203
        %v2234 = vpack.c.b16 %v2206, %v2205
        %v2235 = vpack.c.b16 %v2208, %v2207
        %v2236 = vpack.c.b16 %v2210, %v2209
        %v2237 = vpack.c.b16 %v2212, %v2211
        %v2238 = vpack.c.b16 %v2214, %v2213
        %v2239 = vpack.c.b16 %v2216, %v2215
        %v2240 = vpack.c.b16 %v2218, %v2217
        %v2241 = vpack.c.b16 %v2220, %v2219
        %v2242 = vpack.c.b16 %v2222, %v2221
        %v2243 = vpack.c.b16 %v2224, %v2223
        %v2244 = vpack.c.b16 %v2226, %v2225
        %v2245 = vpack.c.b16 %v2228, %v2227
        %v2246 = vpack.c.b16 %v2230, %v2229
        %v2248 = vsel %vm1275, %v2231, 0
        %v2251 = vsel %vm1275, %v2232, 0
        %v2254 = vsel %vm1275, %v2233, 0
        %v2257 = vsel %vm1275, %v2234, 0
        %v2260 = vsel %vm1275, %v2235, 0
        %v2263 = vsel %vm1275, %v2236, 0
        %v2266 = vsel %vm1275, %v2237, 0
        %v2269 = vsel %vm1275, %v2238, 0
        %v2272 = vsel %vm1275, %v2239, 0
        %v2275 = vsel %vm1275, %v2240, 0
        %v2278 = vsel %vm1275, %v2241, 0
        %v2281 = vsel %vm1275, %v2242, 0
        %v2284 = vsel %vm1275, %v2243, 0
        %v2287 = vsel %vm1275, %v2244, 0
        %v2290 = vsel %vm1275, %v2245, 0
        %v2293 = vsel %vm1275, %v2246, 0
        %v2296 = vsel %vm1501, %v2198, 0
        %2298 = vmatprep.subr.bf16.mxu0 0
        %2299 = vmatpush1.bf16.msra.mxu0 %v2296
        %2300 = vmatprep.subr.bf16.mxu0 0
        %2301 = vmatpush1.bf16.msra.mxu0 0
        %2302 = vmatprep.subr.bf16.mxu0 0
        %2303 = vmatpush1.bf16.msra.mxu0 0
        %2304 = vmatprep.subr.bf16.mxu0 0
        %2305 = vmatpush1.bf16.msra.mxu0 0
        %2306 = vmatprep.subr.bf16.mxu0 0
        %2307 = vmatpush1.bf16.msra.mxu0 0
        %2308 = vmatprep.subr.bf16.mxu0 0
        %2309 = vmatpush1.bf16.msra.mxu0 0
        %2310 = vmatprep.subr.bf16.mxu0 0
        %2311 = vmatpush1.bf16.msra.mxu0 0
        %2312 = vmatprep.subr.bf16.mxu0 0
        %2313 = vmatpush1.bf16.msra.mxu0 0
        %2314 = vmatprep.subr.bf16.mxu0 0
        %2315 = vmatpush1.bf16.msra.mxu0 0
        %2316 = vmatprep.subr.bf16.mxu0 0
        %2317 = vmatpush1.bf16.msra.mxu0 0
        %2318 = vmatprep.subr.bf16.mxu0 0
        %2319 = vmatpush1.bf16.msra.mxu0 0
        %2320 = vmatprep.subr.bf16.mxu0 0
        %2321 = vmatpush1.bf16.msra.mxu0 0
        %2322 = vmatprep.subr.bf16.mxu0 0
        %2323 = vmatpush1.bf16.msra.mxu0 0
        %2324 = vmatprep.subr.bf16.mxu0 0
        %2325 = vmatpush1.bf16.msra.mxu0 0
        %2326 = vmatprep.subr.bf16.mxu0 0
        %2327 = vmatpush1.bf16.msra.mxu0 0
        %2328 = vmatprep.subr.bf16.mxu0 0
        %2329 = vmatpush1.bf16.msra.mxu0 0
        %2330 = vmatprep.mubr.bf16.mxu0 0
        %2331 = vmatmul.mubr.bf16.gmra.mrb[0].mxu0 %v2248
        %v2332 = vpop.f32.mrb[0].mxu0
        %v2333 = vadd.f32 0.0, %v2332
        %v2334 = vpop.f32.mrb[0].mxu0
        %v2335 = vpop.f32.mrb[0].mxu0
        %v2336 = vadd.f32 0.0, %v2335
        %v2337 = vpop.f32.mrb[0].mxu0
        %2338 = vmatprep.mubr.bf16.mxu0 0
        %2339 = vmatmul.mubr.bf16.gmra.mrb[0].mxu0 %v2251
        %v2340 = vpop.f32.mrb[0].mxu0
        %v2341 = vadd.f32 0.0, %v2340
        %v2342 = vpop.f32.mrb[0].mxu0
        %v2343 = vpop.f32.mrb[0].mxu0
        %v2344 = vadd.f32 0.0, %v2343
        %v2345 = vpop.f32.mrb[0].mxu0
        %2346 = vmatprep.mubr.bf16.mxu0 0
        %2347 = vmatmul.mubr.bf16.gmra.mrb[0].mxu0 %v2254
        %v2348 = vpop.f32.mrb[0].mxu0
        %v2349 = vadd.f32 0.0, %v2348
        %v2350 = vpop.f32.mrb[0].mxu0
        %v2351 = vpop.f32.mrb[0].mxu0
        %v2352 = vadd.f32 0.0, %v2351
        %v2353 = vpop.f32.mrb[0].mxu0
        %2354 = vmatprep.mubr.bf16.mxu0 0
        %2355 = vmatmul.mubr.bf16.gmra.mrb[0].mxu0 %v2257
        %v2356 = vpop.f32.mrb[0].mxu0
        %v2357 = vadd.f32 0.0, %v2356
        %v2358 = vpop.f32.mrb[0].mxu0
        %v2359 = vpop.f32.mrb[0].mxu0
        %v2360 = vadd.f32 0.0, %v2359
        %v2361 = vpop.f32.mrb[0].mxu0
        %2362 = vmatprep.mubr.bf16.mxu0 0
        %2363 = vmatmul.mubr.bf16.gmra.mrb[0].mxu0 %v2260
        %v2364 = vpop.f32.mrb[0].mxu0
        %v2365 = vadd.f32 0.0, %v2364
        %v2366 = vpop.f32.mrb[0].mxu0
        %v2367 = vpop.f32.mrb[0].mxu0
        %v2368 = vadd.f32 0.0, %v2367
        %v2369 = vpop.f32.mrb[0].mxu0
        %2370 = vmatprep.mubr.bf16.mxu0 0
        %2371 = vmatmul.mubr.bf16.gmra.mrb[0].mxu0 %v2263
        %v2372 = vpop.f32.mrb[0].mxu0
        %v2373 = vadd.f32 0.0, %v2372
        %v2374 = vpop.f32.mrb[0].mxu0
        %v2375 = vpop.f32.mrb[0].mxu0
        %v2376 = vadd.f32 0.0, %v2375
        %v2377 = vpop.f32.mrb[0].mxu0
        %2378 = vmatprep.mubr.bf16.mxu0 0
        %2379 = vmatmul.mubr.bf16.gmra.mrb[0].mxu0 %v2266
        %v2380 = vpop.f32.mrb[0].mxu0
        %v2381 = vadd.f32 0.0, %v2380
        %v2382 = vpop.f32.mrb[0].mxu0
        %v2383 = vpop.f32.mrb[0].mxu0
        %v2384 = vadd.f32 0.0, %v2383
        %v2385 = vpop.f32.mrb[0].mxu0
        %2386 = vmatprep.mubr.bf16.mxu0 0
        %2387 = vmatmul.mubr.bf16.gmra.mrb[0].mxu0 %v2269
        %v2388 = vpop.f32.mrb[0].mxu0
        %v2389 = vadd.f32 0.0, %v2388
        %v2390 = vpop.f32.mrb[0].mxu0
        %v2391 = vpop.f32.mrb[0].mxu0
        %v2392 = vadd.f32 0.0, %v2391
        %v2393 = vpop.f32.mrb[0].mxu0
        %2394 = vmatprep.mubr.bf16.mxu0 0
        %2395 = vmatmul.mubr.bf16.gmra.mrb[0].mxu0 %v2272
        %v2396 = vpop.f32.mrb[0].mxu0
        %v2397 = vadd.f32 0.0, %v2396
        %v2398 = vpop.f32.mrb[0].mxu0
        %v2399 = vpop.f32.mrb[0].mxu0
        %v2400 = vadd.f32 0.0, %v2399
        %v2401 = vpop.f32.mrb[0].mxu0
        %2402 = vmatprep.mubr.bf16.mxu0 0
        %2403 = vmatmul.mubr.bf16.gmra.mrb[0].mxu0 %v2275
        %v2404 = vpop.f32.mrb[0].mxu0
        %v2405 = vadd.f32 0.0, %v2404
        %v2406 = vpop.f32.mrb[0].mxu0
        %v2407 = vpop.f32.mrb[0].mxu0
        %v2408 = vadd.f32 0.0, %v2407
        %v2409 = vpop.f32.mrb[0].mxu0
        %2410 = vmatprep.mubr.bf16.mxu0 0
        %2411 = vmatmul.mubr.bf16.gmra.mrb[0].mxu0 %v2278
        %v2412 = vpop.f32.mrb[0].mxu0
        %v2413 = vadd.f32 0.0, %v2412
        %v2414 = vpop.f32.mrb[0].mxu0
        %v2415 = vpop.f32.mrb[0].mxu0
        %v2416 = vadd.f32 0.0, %v2415
        %v2417 = vpop.f32.mrb[0].mxu0
        %2418 = vmatprep.mubr.bf16.mxu0 0
        %2419 = vmatmul.mubr.bf16.gmra.mrb[0].mxu0 %v2281
        %v2420 = vpop.f32.mrb[0].mxu0
        %v2421 = vadd.f32 0.0, %v2420
        %v2422 = vpop.f32.mrb[0].mxu0
        %v2423 = vpop.f32.mrb[0].mxu0
        %v2424 = vadd.f32 0.0, %v2423
        %v2425 = vpop.f32.mrb[0].mxu0
        %2426 = vmatprep.mubr.bf16.mxu0 0
        %2427 = vmatmul.mubr.bf16.gmra.mrb[0].mxu0 %v2284
        %v2428 = vpop.f32.mrb[0].mxu0
        %v2429 = vadd.f32 0.0, %v2428
        %v2430 = vpop.f32.mrb[0].mxu0
        %v2431 = vpop.f32.mrb[0].mxu0
        %v2432 = vadd.f32 0.0, %v2431
        %v2433 = vpop.f32.mrb[0].mxu0
        %2434 = vmatprep.mubr.bf16.mxu0 0
        %2435 = vmatmul.mubr.bf16.gmra.mrb[0].mxu0 %v2287
        %v2436 = vpop.f32.mrb[0].mxu0
        %v2437 = vadd.f32 0.0, %v2436
        %v2438 = vpop.f32.mrb[0].mxu0
        %v2439 = vpop.f32.mrb[0].mxu0
        %v2440 = vadd.f32 0.0, %v2439
        %v2441 = vpop.f32.mrb[0].mxu0
        %2442 = vmatprep.mubr.bf16.mxu0 0
        %2443 = vmatmul.mubr.bf16.gmra.mrb[0].mxu0 %v2290
        %v2444 = vpop.f32.mrb[0].mxu0
        %v2445 = vadd.f32 0.0, %v2444
        %v2446 = vpop.f32.mrb[0].mxu0
        %v2447 = vpop.f32.mrb[0].mxu0
        %v2448 = vadd.f32 0.0, %v2447
        %v2449 = vpop.f32.mrb[0].mxu0
        %2450 = vmatprep.mubr.bf16.mxu0 0
        %2451 = vmatmul.mubr.bf16.gmra.mrb[0].mxu0 %v2293
        %v2452 = vpop.f32.mrb[0].mxu0
        %v2453 = vadd.f32 0.0, %v2452
        %v2454 = vpop.f32.mrb[0].mxu0
        %v2455 = vpop.f32.mrb[0].mxu0
        %v2456 = vadd.f32 0.0, %v2455
        %v2457 = vpop.f32.mrb[0].mxu0
        %2458 = vdwg.mxu0
        %v2459 = vadd.f32 %v2165, %v2333
        %v2460 = vadd.f32 %v2166, %v2336
        %v2461 = vadd.f32 %v2167, %v2341
        %v2462 = vadd.f32 %v2168, %v2344
        %v2463 = vadd.f32 %v2169, %v2349
        %v2464 = vadd.f32 %v2170, %v2352
        %v2465 = vadd.f32 %v2171, %v2357
        %v2466 = vadd.f32 %v2172, %v2360
        %v2467 = vadd.f32 %v2173, %v2365
        %v2468 = vadd.f32 %v2174, %v2368
        %v2469 = vadd.f32 %v2175, %v2373
        %v2470 = vadd.f32 %v2176, %v2376
        %v2471 = vadd.f32 %v2177, %v2381
        %v2472 = vadd.f32 %v2178, %v2384
        %v2473 = vadd.f32 %v2179, %v2389
        %v2474 = vadd.f32 %v2180, %v2392
        %v2475 = vadd.f32 %v2181, %v2397
        %v2476 = vadd.f32 %v2182, %v2400
        %v2477 = vadd.f32 %v2183, %v2405
        %v2478 = vadd.f32 %v2184, %v2408
        %v2479 = vadd.f32 %v2185, %v2413
        %v2480 = vadd.f32 %v2186, %v2416
        %v2481 = vadd.f32 %v2187, %v2421
        %v2482 = vadd.f32 %v2188, %v2424
        %v2483 = vadd.f32 %v2189, %v2429
        %v2484 = vadd.f32 %v2190, %v2432
        %v2485 = vadd.f32 %v2191, %v2437
        %v2486 = vadd.f32 %v2192, %v2440
        %v2487 = vadd.f32 %v2193, %v2445
        %v2488 = vadd.f32 %v2194, %v2448
        %v2489 = vadd.f32 %v2195, %v2453
        %v2490 = vadd.f32 %v2196, %v2456
        %2491 = vst.msk [vmem:[#allocation3] sm:$0xff] %vm1275, %v2459
        %2492 = vst.msk [vmem:[#allocation3 + $0x8] sm:$0xff] %vm1275, %v2460
        %2493 = vst.msk [vmem:[#allocation3 + $0x10] sm:$0xff] %vm1275, %v2461
        %2494 = vst.msk [vmem:[#allocation3 + $0x18] sm:$0xff] %vm1275, %v2462
        %2495 = vst.msk [vmem:[#allocation3 + $0x20] sm:$0xff] %vm1275, %v2463
        %2496 = vst.msk [vmem:[#allocation3 + $0x28] sm:$0xff] %vm1275, %v2464
        %2497 = vst.msk [vmem:[#allocation3 + $0x30] sm:$0xff] %vm1275, %v2465
        %2498 = vst.msk [vmem:[#allocation3 + $0x38] sm:$0xff] %vm1275, %v2466
        %2499 = vst.msk [vmem:[#allocation3 + $0x40] sm:$0xff] %vm1275, %v2467
        %2500 = vst.msk [vmem:[#allocation3 + $0x48] sm:$0xff] %vm1275, %v2468
        %2501 = vst.msk [vmem:[#allocation3 + $0x50] sm:$0xff] %vm1275, %v2469
        %2502 = vst.msk [vmem:[#allocation3 + $0x58] sm:$0xff] %vm1275, %v2470
        %2503 = vst.msk [vmem:[#allocation3 + $0x60] sm:$0xff] %vm1275, %v2471
        %2504 = vst.msk [vmem:[#allocation3 + $0x68] sm:$0xff] %vm1275, %v2472
        %2505 = vst.msk [vmem:[#allocation3 + $0x70] sm:$0xff] %vm1275, %v2473
        %2506 = vst.msk [vmem:[#allocation3 + $0x78] sm:$0xff] %vm1275, %v2474
        %2507 = vst.msk [vmem:[#allocation3 + $0x80] sm:$0xff] %vm1275, %v2475
        %2508 = vst.msk [vmem:[#allocation3 + $0x88] sm:$0xff] %vm1275, %v2476
        %2509 = vst.msk [vmem:[#allocation3 + $0x90] sm:$0xff] %vm1275, %v2477
        %2510 = vst.msk [vmem:[#allocation3 + $0x98] sm:$0xff] %vm1275, %v2478
        %2511 = vst.msk [vmem:[#allocation3 + $0xa0] sm:$0xff] %vm1275, %v2479
        %2512 = vst.msk [vmem:[#allocation3 + $0xa8] sm:$0xff] %vm1275, %v2480
        %2513 = vst.msk [vmem:[#allocation3 + $0xb0] sm:$0xff] %vm1275, %v2481
        %2514 = vst.msk [vmem:[#allocation3 + $0xb8] sm:$0xff] %vm1275, %v2482
        %2515 = vst.msk [vmem:[#allocation3 + $0xc0] sm:$0xff] %vm1275, %v2483
        %2516 = vst.msk [vmem:[#allocation3 + $0xc8] sm:$0xff] %vm1275, %v2484
        %2517 = vst.msk [vmem:[#allocation3 + $0xd0] sm:$0xff] %vm1275, %v2485
        %2518 = vst.msk [vmem:[#allocation3 + $0xd8] sm:$0xff] %vm1275, %v2486
        %2519 = vst.msk [vmem:[#allocation3 + $0xe0] sm:$0xff] %vm1275, %v2487
        %2520 = vst.msk [vmem:[#allocation3 + $0xe8] sm:$0xff] %vm1275, %v2488
        %2521 = vst.msk [vmem:[#allocation3 + $0xf0] sm:$0xff] %vm1275, %v2489
        %2522 = vst.msk [vmem:[#allocation3 + $0xf8] sm:$0xff] %vm1275, %v2490
        %v2523 = vld [vmem:[#allocation2] sm:$0xe]
        %v2524 = vld [vmem:[#allocation2 + $0x4] sm:$0xf]
        %v2525 = vld [vmem:[#allocation2 + $0x8] sm:$0x1]
        %v2526 = vld [vmem:[#allocation2 + $0xc] sm:$0xe]
        %v2527 = vld [vmem:[#allocation2 + $0x10] sm:$0xf]
        %v2528 = vld [vmem:[#allocation2 + $0x14] sm:$0x1]
        %v2529 = vld [vmem:[#allocation2 + $0x18] sm:$0xe]
        %v2530 = vld [vmem:[#allocation2 + $0x1c] sm:$0xf]
        %v2531 = vld [vmem:[#allocation2 + $0x20] sm:$0x1]
        %v2532 = vld [vmem:[#allocation2 + $0x24] sm:$0xe]
        %v2533 = vld [vmem:[#allocation2 + $0x28] sm:$0xf]
        %v2534 = vld [vmem:[#allocation2 + $0x2c] sm:$0x1]
        %v2535 = vld [vmem:[#allocation2 + $0x30] sm:$0xe]
        %v2536 = vld [vmem:[#allocation2 + $0x34] sm:$0xf]
        %v2537 = vld [vmem:[#allocation2 + $0x38] sm:$0x1]
        %v2538 = vld [vmem:[#allocation2 + $0x3c] sm:$0xe]
        %v2539 = vld [vmem:[#allocation2 + $0x40] sm:$0xf]
        %v2540 = vld [vmem:[#allocation2 + $0x44] sm:$0x1]
        %v2541 = vld [vmem:[#allocation2 + $0x48] sm:$0xe]
        %v2542 = vld [vmem:[#allocation2 + $0x4c] sm:$0xf]
        %v2543 = vld [vmem:[#allocation2 + $0x50] sm:$0x1]
        %v2544 = vld [vmem:[#allocation2 + $0x54] sm:$0xe]
        %v2545 = vld [vmem:[#allocation2 + $0x58] sm:$0xf]
        %v2546 = vld [vmem:[#allocation2 + $0x5c] sm:$0x1]
        %v2547 = vld [vmem:[#allocation2 + $0x60] sm:$0xe]
        %v2548 = vld [vmem:[#allocation2 + $0x64] sm:$0xf]
        %v2549 = vld [vmem:[#allocation2 + $0x68] sm:$0x1]
        %v2550 = vld [vmem:[#allocation2 + $0x6c] sm:$0xe]
        %v2551 = vld [vmem:[#allocation2 + $0x70] sm:$0xf]
        %v2552 = vld [vmem:[#allocation2 + $0x74] sm:$0x1]
        %v2553 = vld [vmem:[#allocation2 + $0x78] sm:$0xe]
        %v2554 = vld [vmem:[#allocation2 + $0x7c] sm:$0xf]
        %v2555 = vld [vmem:[#allocation2 + $0x80] sm:$0x1]
        %v2556 = vld [vmem:[#allocation2 + $0x84] sm:$0xe]
        %v2557 = vld [vmem:[#allocation2 + $0x88] sm:$0xf]
        %v2558 = vld [vmem:[#allocation2 + $0x8c] sm:$0x1]
        %v2559 = vld [vmem:[#allocation2 + $0x90] sm:$0xe]
        %v2560 = vld [vmem:[#allocation2 + $0x94] sm:$0xf]
        %v2561 = vld [vmem:[#allocation2 + $0x98] sm:$0x1]
        %v2562 = vld [vmem:[#allocation2 + $0x9c] sm:$0xe]
        %v2563 = vld [vmem:[#allocation2 + $0xa0] sm:$0xf]
        %v2564 = vld [vmem:[#allocation2 + $0xa4] sm:$0x1]
        %v2565 = vld [vmem:[#allocation2 + $0xa8] sm:$0xe]
        %v2566 = vld [vmem:[#allocation2 + $0xac] sm:$0xf]
        %v2567 = vld [vmem:[#allocation2 + $0xb0] sm:$0x1]
        %v2568 = vld [vmem:[#allocation2 + $0xb4] sm:$0xe]
        %v2569 = vld [vmem:[#allocation2 + $0xb8] sm:$0xf]
        %v2570 = vld [vmem:[#allocation2 + $0xbc] sm:$0x1]
        %vm2619 = vcmask 1042432
        %vm2620 = vcmask 1046532
        %vm2621 = vmor %vm2619, %vm2620
        %v2622 = vrot.slane %v2523, 5
        %v2623 = vrot.slane %v2622, 4
        %v2624 = vrot.slane %v2524, 5
        %v2625 = vsel %vm2621, %v2623, %v2624
        %v2626 = vrot.slane %v2624, 4
        %v2627 = vrot.slane %v2525, 5
        %v2628 = vsel %vm2621, %v2626, %v2627
        %v2629 = vrot.slane %v2526, 5
        %v2630 = vrot.slane %v2629, 4
        %v2631 = vrot.slane %v2527, 5
        %v2632 = vsel %vm2621, %v2630, %v2631
        %v2633 = vrot.slane %v2631, 4
        %v2634 = vrot.slane %v2528, 5
        %v2635 = vsel %vm2621, %v2633, %v2634
        %v2636 = vrot.slane %v2529, 5
        %v2637 = vrot.slane %v2636, 4
        %v2638 = vrot.slane %v2530, 5
        %v2639 = vsel %vm2621, %v2637, %v2638
        %v2640 = vrot.slane %v2638, 4
        %v2641 = vrot.slane %v2531, 5
        %v2642 = vsel %vm2621, %v2640, %v2641
        %v2643 = vrot.slane %v2532, 5
        %v2644 = vrot.slane %v2643, 4
        %v2645 = vrot.slane %v2533, 5
        %v2646 = vsel %vm2621, %v2644, %v2645
        %v2647 = vrot.slane %v2645, 4
        %v2648 = vrot.slane %v2534, 5
        %v2649 = vsel %vm2621, %v2647, %v2648
        %v2650 = vrot.slane %v2535, 5
        %v2651 = vrot.slane %v2650, 4
        %v2652 = vrot.slane %v2536, 5
        %v2653 = vsel %vm2621, %v2651, %v2652
        %v2654 = vrot.slane %v2652, 4
        %v2655 = vrot.slane %v2537, 5
        %v2656 = vsel %vm2621, %v2654, %v2655
        %v2657 = vrot.slane %v2538, 5
        %v2658 = vrot.slane %v2657, 4
        %v2659 = vrot.slane %v2539, 5
        %v2660 = vsel %vm2621, %v2658, %v2659
        %v2661 = vrot.slane %v2659, 4
        %v2662 = vrot.slane %v2540, 5
        %v2663 = vsel %vm2621, %v2661, %v2662
        %v2664 = vrot.slane %v2541, 5
        %v2665 = vrot.slane %v2664, 4
        %v2666 = vrot.slane %v2542, 5
        %v2667 = vsel %vm2621, %v2665, %v2666
        %v2668 = vrot.slane %v2666, 4
        %v2669 = vrot.slane %v2543, 5
        %v2670 = vsel %vm2621, %v2668, %v2669
        %v2671 = vrot.slane %v2544, 5
        %v2672 = vrot.slane %v2671, 4
        %v2673 = vrot.slane %v2545, 5
        %v2674 = vsel %vm2621, %v2672, %v2673
        %v2675 = vrot.slane %v2673, 4
        %v2676 = vrot.slane %v2546, 5
        %v2677 = vsel %vm2621, %v2675, %v2676
        %v2678 = vrot.slane %v2547, 5
        %v2679 = vrot.slane %v2678, 4
        %v2680 = vrot.slane %v2548, 5
        %v2681 = vsel %vm2621, %v2679, %v2680
        %v2682 = vrot.slane %v2680, 4
        %v2683 = vrot.slane %v2549, 5
        %v2684 = vsel %vm2621, %v2682, %v2683
        %v2685 = vrot.slane %v2550, 5
        %v2686 = vrot.slane %v2685, 4
        %v2687 = vrot.slane %v2551, 5
        %v2688 = vsel %vm2621, %v2686, %v2687
        %v2689 = vrot.slane %v2687, 4
        %v2690 = vrot.slane %v2552, 5
        %v2691 = vsel %vm2621, %v2689, %v2690
        %v2692 = vrot.slane %v2553, 5
        %v2693 = vrot.slane %v2692, 4
        %v2694 = vrot.slane %v2554, 5
        %v2695 = vsel %vm2621, %v2693, %v2694
        %v2696 = vrot.slane %v2694, 4
        %v2697 = vrot.slane %v2555, 5
        %v2698 = vsel %vm2621, %v2696, %v2697
        %v2699 = vrot.slane %v2556, 5
        %v2700 = vrot.slane %v2699, 4
        %v2701 = vrot.slane %v2557, 5
        %v2702 = vsel %vm2621, %v2700, %v2701
        %v2703 = vrot.slane %v2701, 4
        %v2704 = vrot.slane %v2558, 5
        %v2705 = vsel %vm2621, %v2703, %v2704
        %v2706 = vrot.slane %v2559, 5
        %v2707 = vrot.slane %v2706, 4
        %v2708 = vrot.slane %v2560, 5
        %v2709 = vsel %vm2621, %v2707, %v2708
        %v2710 = vrot.slane %v2708, 4
        %v2711 = vrot.slane %v2561, 5
        %v2712 = vsel %vm2621, %v2710, %v2711
        %v2713 = vrot.slane %v2562, 5
        %v2714 = vrot.slane %v2713, 4
        %v2715 = vrot.slane %v2563, 5
        %v2716 = vsel %vm2621, %v2714, %v2715
        %v2717 = vrot.slane %v2715, 4
        %v2718 = vrot.slane %v2564, 5
        %v2719 = vsel %vm2621, %v2717, %v2718
        %v2720 = vrot.slane %v2565, 5
        %v2721 = vrot.slane %v2720, 4
        %v2722 = vrot.slane %v2566, 5
        %v2723 = vsel %vm2621, %v2721, %v2722
        %v2724 = vrot.slane %v2722, 4
        %v2725 = vrot.slane %v2567, 5
        %v2726 = vsel %vm2621, %v2724, %v2725
        %v2727 = vrot.slane %v2568, 5
        %v2728 = vrot.slane %v2727, 4
        %v2729 = vrot.slane %v2569, 5
        %v2730 = vsel %vm2621, %v2728, %v2729
        %v2731 = vrot.slane %v2729, 4
        %v2732 = vrot.slane %v2570, 5
        %v2733 = vsel %vm2621, %v2731, %v2732
        %v2734 = vld [vmem:[#allocation3] sm:$0xff]
        %v2735 = vld [vmem:[#allocation3 + $0x8] sm:$0xff]
        %v2736 = vld [vmem:[#allocation3 + $0x10] sm:$0xff]
        %v2737 = vld [vmem:[#allocation3 + $0x18] sm:$0xff]
        %v2738 = vld [vmem:[#allocation3 + $0x20] sm:$0xff]
        %v2739 = vld [vmem:[#allocation3 + $0x28] sm:$0xff]
        %v2740 = vld [vmem:[#allocation3 + $0x30] sm:$0xff]
        %v2741 = vld [vmem:[#allocation3 + $0x38] sm:$0xff]
        %v2742 = vld [vmem:[#allocation3 + $0x40] sm:$0xff]
        %v2743 = vld [vmem:[#allocation3 + $0x48] sm:$0xff]
        %v2744 = vld [vmem:[#allocation3 + $0x50] sm:$0xff]
        %v2745 = vld [vmem:[#allocation3 + $0x58] sm:$0xff]
        %v2746 = vld [vmem:[#allocation3 + $0x60] sm:$0xff]
        %v2747 = vld [vmem:[#allocation3 + $0x68] sm:$0xff]
        %v2748 = vld [vmem:[#allocation3 + $0x70] sm:$0xff]
        %v2749 = vld [vmem:[#allocation3 + $0x78] sm:$0xff]
        %v2750 = vld [vmem:[#allocation3 + $0x80] sm:$0xff]
        %v2751 = vld [vmem:[#allocation3 + $0x88] sm:$0xff]
        %v2752 = vld [vmem:[#allocation3 + $0x90] sm:$0xff]
        %v2753 = vld [vmem:[#allocation3 + $0x98] sm:$0xff]
        %v2754 = vld [vmem:[#allocation3 + $0xa0] sm:$0xff]
        %v2755 = vld [vmem:[#allocation3 + $0xa8] sm:$0xff]
        %v2756 = vld [vmem:[#allocation3 + $0xb0] sm:$0xff]
        %v2757 = vld [vmem:[#allocation3 + $0xb8] sm:$0xff]
        %v2758 = vld [vmem:[#allocation3 + $0xc0] sm:$0xff]
        %v2759 = vld [vmem:[#allocation3 + $0xc8] sm:$0xff]
        %v2760 = vld [vmem:[#allocation3 + $0xd0] sm:$0xff]
        %v2761 = vld [vmem:[#allocation3 + $0xd8] sm:$0xff]
        %v2762 = vld [vmem:[#allocation3 + $0xe0] sm:$0xff]
        %v2763 = vld [vmem:[#allocation3 + $0xe8] sm:$0xff]
        %v2764 = vld [vmem:[#allocation3 + $0xf0] sm:$0xff]
        %v2765 = vld [vmem:[#allocation3 + $0xf8] sm:$0xff]
        %s2766 = scalar_lea.vmem [#allocation7], 4
        %v2767 = vld [vmem:[%s2766] sm:$0x3]
        %v2768 = vunpack.c.l.b16 %v2625
        %v2769 = vunpack.c.l.b16 %v2628
        %v2770 = vunpack.c.l.b16 %v2632
        %v2771 = vunpack.c.l.b16 %v2635
        %v2772 = vunpack.c.l.b16 %v2639
        %v2773 = vunpack.c.l.b16 %v2642
        %v2774 = vunpack.c.l.b16 %v2646
        %v2775 = vunpack.c.l.b16 %v2649
        %v2776 = vunpack.c.l.b16 %v2653
        %v2777 = vunpack.c.l.b16 %v2656
        %v2778 = vunpack.c.l.b16 %v2660
        %v2779 = vunpack.c.l.b16 %v2663
        %v2780 = vunpack.c.l.b16 %v2667
        %v2781 = vunpack.c.l.b16 %v2670
        %v2782 = vunpack.c.l.b16 %v2674
        %v2783 = vunpack.c.l.b16 %v2677
        %v2784 = vunpack.c.l.b16 %v2681
        %v2785 = vunpack.c.l.b16 %v2684
        %v2786 = vunpack.c.l.b16 %v2688
        %v2787 = vunpack.c.l.b16 %v2691
        %v2788 = vunpack.c.l.b16 %v2695
        %v2789 = vunpack.c.l.b16 %v2698
        %v2790 = vunpack.c.l.b16 %v2702
        %v2791 = vunpack.c.l.b16 %v2705
        %v2792 = vunpack.c.l.b16 %v2709
        %v2793 = vunpack.c.l.b16 %v2712
        %v2794 = vunpack.c.l.b16 %v2716
        %v2795 = vunpack.c.l.b16 %v2719
        %v2796 = vunpack.c.l.b16 %v2723
        %v2797 = vunpack.c.l.b16 %v2726
        %v2798 = vunpack.c.l.b16 %v2730
        %v2799 = vunpack.c.l.b16 %v2733
        %v2800 = vpack.c.b16 %v2769, %v2768
        %v2801 = vpack.c.b16 %v2771, %v2770
        %v2802 = vpack.c.b16 %v2773, %v2772
        %v2803 = vpack.c.b16 %v2775, %v2774
        %v2804 = vpack.c.b16 %v2777, %v2776
        %v2805 = vpack.c.b16 %v2779, %v2778
        %v2806 = vpack.c.b16 %v2781, %v2780
        %v2807 = vpack.c.b16 %v2783, %v2782
        %v2808 = vpack.c.b16 %v2785, %v2784
        %v2809 = vpack.c.b16 %v2787, %v2786
        %v2810 = vpack.c.b16 %v2789, %v2788
        %v2811 = vpack.c.b16 %v2791, %v2790
        %v2812 = vpack.c.b16 %v2793, %v2792
        %v2813 = vpack.c.b16 %v2795, %v2794
        %v2814 = vpack.c.b16 %v2797, %v2796
        %v2815 = vpack.c.b16 %v2799, %v2798
        %v2817 = vsel %vm1275, %v2800, 0
        %v2820 = vsel %vm1275, %v2801, 0
        %v2823 = vsel %vm1275, %v2802, 0
        %v2826 = vsel %vm1275, %v2803, 0
        %v2829 = vsel %vm1275, %v2804, 0
        %v2832 = vsel %vm1275, %v2805, 0
        %v2835 = vsel %vm1275, %v2806, 0
        %v2838 = vsel %vm1275, %v2807, 0
        %v2841 = vsel %vm1275, %v2808, 0
        %v2844 = vsel %vm1275, %v2809, 0
        %v2847 = vsel %vm1275, %v2810, 0
        %v2850 = vsel %vm1275, %v2811, 0
        %v2853 = vsel %vm1275, %v2812, 0
        %v2856 = vsel %vm1275, %v2813, 0
        %v2859 = vsel %vm1275, %v2814, 0
        %v2862 = vsel %vm1275, %v2815, 0
        %v2865 = vsel %vm1501, %v2767, 0
        %2867 = vmatprep.subr.bf16.mxu0 0
        %2868 = vmatpush1.bf16.msra.mxu0 %v2865
        %2869 = vmatprep.subr.bf16.mxu0 0
        %2870 = vmatpush1.bf16.msra.mxu0 0
        %2871 = vmatprep.subr.bf16.mxu0 0
        %2872 = vmatpush1.bf16.msra.mxu0 0
        %2873 = vmatprep.subr.bf16.mxu0 0
        %2874 = vmatpush1.bf16.msra.mxu0 0
        %2875 = vmatprep.subr.bf16.mxu0 0
        %2876 = vmatpush1.bf16.msra.mxu0 0
        %2877 = vmatprep.subr.bf16.mxu0 0
        %2878 = vmatpush1.bf16.msra.mxu0 0
        %2879 = vmatprep.subr.bf16.mxu0 0
        %2880 = vmatpush1.bf16.msra.mxu0 0
        %2881 = vmatprep.subr.bf16.mxu0 0
        %2882 = vmatpush1.bf16.msra.mxu0 0
        %2883 = vmatprep.subr.bf16.mxu0 0
        %2884 = vmatpush1.bf16.msra.mxu0 0
        %2885 = vmatprep.subr.bf16.mxu0 0
        %2886 = vmatpush1.bf16.msra.mxu0 0
        %2887 = vmatprep.subr.bf16.mxu0 0
        %2888 = vmatpush1.bf16.msra.mxu0 0
        %2889 = vmatprep.subr.bf16.mxu0 0
        %2890 = vmatpush1.bf16.msra.mxu0 0
        %2891 = vmatprep.subr.bf16.mxu0 0
        %2892 = vmatpush1.bf16.msra.mxu0 0
        %2893 = vmatprep.subr.bf16.mxu0 0
        %2894 = vmatpush1.bf16.msra.mxu0 0
        %2895 = vmatprep.subr.bf16.mxu0 0
        %2896 = vmatpush1.bf16.msra.mxu0 0
        %2897 = vmatprep.subr.bf16.mxu0 0
        %2898 = vmatpush1.bf16.msra.mxu0 0
        %2899 = vmatprep.mubr.bf16.mxu0 0
        %2900 = vmatmul.mubr.bf16.gmra.mrb[0].mxu0 %v2817
        %v2901 = vpop.f32.mrb[0].mxu0
        %v2902 = vadd.f32 0.0, %v2901
        %v2903 = vpop.f32.mrb[0].mxu0
        %v2904 = vpop.f32.mrb[0].mxu0
        %v2905 = vadd.f32 0.0, %v2904
        %v2906 = vpop.f32.mrb[0].mxu0
        %2907 = vmatprep.mubr.bf16.mxu0 0
        %2908 = vmatmul.mubr.bf16.gmra.mrb[0].mxu0 %v2820
        %v2909 = vpop.f32.mrb[0].mxu0
        %v2910 = vadd.f32 0.0, %v2909
        %v2911 = vpop.f32.mrb[0].mxu0
        %v2912 = vpop.f32.mrb[0].mxu0
        %v2913 = vadd.f32 0.0, %v2912
        %v2914 = vpop.f32.mrb[0].mxu0
        %2915 = vmatprep.mubr.bf16.mxu0 0
        %2916 = vmatmul.mubr.bf16.gmra.mrb[0].mxu0 %v2823
        %v2917 = vpop.f32.mrb[0].mxu0
        %v2918 = vadd.f32 0.0, %v2917
        %v2919 = vpop.f32.mrb[0].mxu0
        %v2920 = vpop.f32.mrb[0].mxu0
        %v2921 = vadd.f32 0.0, %v2920
        %v2922 = vpop.f32.mrb[0].mxu0
        %2923 = vmatprep.mubr.bf16.mxu0 0
        %2924 = vmatmul.mubr.bf16.gmra.mrb[0].mxu0 %v2826
        %v2925 = vpop.f32.mrb[0].mxu0
        %v2926 = vadd.f32 0.0, %v2925
        %v2927 = vpop.f32.mrb[0].mxu0
        %v2928 = vpop.f32.mrb[0].mxu0
        %v2929 = vadd.f32 0.0, %v2928
        %v2930 = vpop.f32.mrb[0].mxu0
        %2931 = vmatprep.mubr.bf16.mxu0 0
        %2932 = vmatmul.mubr.bf16.gmra.mrb[0].mxu0 %v2829
        %v2933 = vpop.f32.mrb[0].mxu0
        %v2934 = vadd.f32 0.0, %v2933
        %v2935 = vpop.f32.mrb[0].mxu0
        %v2936 = vpop.f32.mrb[0].mxu0
        %v2937 = vadd.f32 0.0, %v2936
        %v2938 = vpop.f32.mrb[0].mxu0
        %2939 = vmatprep.mubr.bf16.mxu0 0
        %2940 = vmatmul.mubr.bf16.gmra.mrb[0].mxu0 %v2832
        %v2941 = vpop.f32.mrb[0].mxu0
        %v2942 = vadd.f32 0.0, %v2941
        %v2943 = vpop.f32.mrb[0].mxu0
        %v2944 = vpop.f32.mrb[0].mxu0
        %v2945 = vadd.f32 0.0, %v2944
        %v2946 = vpop.f32.mrb[0].mxu0
        %2947 = vmatprep.mubr.bf16.mxu0 0
        %2948 = vmatmul.mubr.bf16.gmra.mrb[0].mxu0 %v2835
        %v2949 = vpop.f32.mrb[0].mxu0
        %v2950 = vadd.f32 0.0, %v2949
        %v2951 = vpop.f32.mrb[0].mxu0
        %v2952 = vpop.f32.mrb[0].mxu0
        %v2953 = vadd.f32 0.0, %v2952
        %v2954 = vpop.f32.mrb[0].mxu0
        %2955 = vmatprep.mubr.bf16.mxu0 0
        %2956 = vmatmul.mubr.bf16.gmra.mrb[0].mxu0 %v2838
        %v2957 = vpop.f32.mrb[0].mxu0
        %v2958 = vadd.f32 0.0, %v2957
        %v2959 = vpop.f32.mrb[0].mxu0
        %v2960 = vpop.f32.mrb[0].mxu0
        %v2961 = vadd.f32 0.0, %v2960
        %v2962 = vpop.f32.mrb[0].mxu0
        %2963 = vmatprep.mubr.bf16.mxu0 0
        %2964 = vmatmul.mubr.bf16.gmra.mrb[0].mxu0 %v2841
        %v2965 = vpop.f32.mrb[0].mxu0
        %v2966 = vadd.f32 0.0, %v2965
        %v2967 = vpop.f32.mrb[0].mxu0
        %v2968 = vpop.f32.mrb[0].mxu0
        %v2969 = vadd.f32 0.0, %v2968
        %v2970 = vpop.f32.mrb[0].mxu0
        %2971 = vmatprep.mubr.bf16.mxu0 0
        %2972 = vmatmul.mubr.bf16.gmra.mrb[0].mxu0 %v2844
        %v2973 = vpop.f32.mrb[0].mxu0
        %v2974 = vadd.f32 0.0, %v2973
        %v2975 = vpop.f32.mrb[0].mxu0
        %v2976 = vpop.f32.mrb[0].mxu0
        %v2977 = vadd.f32 0.0, %v2976
        %v2978 = vpop.f32.mrb[0].mxu0
        %2979 = vmatprep.mubr.bf16.mxu0 0
        %2980 = vmatmul.mubr.bf16.gmra.mrb[0].mxu0 %v2847
        %v2981 = vpop.f32.mrb[0].mxu0
        %v2982 = vadd.f32 0.0, %v2981
        %v2983 = vpop.f32.mrb[0].mxu0
        %v2984 = vpop.f32.mrb[0].mxu0
        %v2985 = vadd.f32 0.0, %v2984
        %v2986 = vpop.f32.mrb[0].mxu0
        %2987 = vmatprep.mubr.bf16.mxu0 0
        %2988 = vmatmul.mubr.bf16.gmra.mrb[0].mxu0 %v2850
        %v2989 = vpop.f32.mrb[0].mxu0
        %v2990 = vadd.f32 0.0, %v2989
        %v2991 = vpop.f32.mrb[0].mxu0
        %v2992 = vpop.f32.mrb[0].mxu0
        %v2993 = vadd.f32 0.0, %v2992
        %v2994 = vpop.f32.mrb[0].mxu0
        %2995 = vmatprep.mubr.bf16.mxu0 0
        %2996 = vmatmul.mubr.bf16.gmra.mrb[0].mxu0 %v2853
        %v2997 = vpop.f32.mrb[0].mxu0
        %v2998 = vadd.f32 0.0, %v2997
        %v2999 = vpop.f32.mrb[0].mxu0
        %v3000 = vpop.f32.mrb[0].mxu0
        %v3001 = vadd.f32 0.0, %v3000
        %v3002 = vpop.f32.mrb[0].mxu0
        %3003 = vmatprep.mubr.bf16.mxu0 0
        %3004 = vmatmul.mubr.bf16.gmra.mrb[0].mxu0 %v2856
        %v3005 = vpop.f32.mrb[0].mxu0
        %v3006 = vadd.f32 0.0, %v3005
        %v3007 = vpop.f32.mrb[0].mxu0
        %v3008 = vpop.f32.mrb[0].mxu0
        %v3009 = vadd.f32 0.0, %v3008
        %v3010 = vpop.f32.mrb[0].mxu0
        %3011 = vmatprep.mubr.bf16.mxu0 0
        %3012 = vmatmul.mubr.bf16.gmra.mrb[0].mxu0 %v2859
        %v3013 = vpop.f32.mrb[0].mxu0
        %v3014 = vadd.f32 0.0, %v3013
        %v3015 = vpop.f32.mrb[0].mxu0
        %v3016 = vpop.f32.mrb[0].mxu0
        %v3017 = vadd.f32 0.0, %v3016
        %v3018 = vpop.f32.mrb[0].mxu0
        %3019 = vmatprep.mubr.bf16.mxu0 0
        %3020 = vmatmul.mubr.bf16.gmra.mrb[0].mxu0 %v2862
        %v3021 = vpop.f32.mrb[0].mxu0
        %v3022 = vadd.f32 0.0, %v3021
        %v3023 = vpop.f32.mrb[0].mxu0
        %v3024 = vpop.f32.mrb[0].mxu0
        %v3025 = vadd.f32 0.0, %v3024
        %v3026 = vpop.f32.mrb[0].mxu0
        %3027 = vdwg.mxu0
        %v3028 = vadd.f32 %v2734, %v2902
        %v3029 = vadd.f32 %v2735, %v2905
        %v3030 = vadd.f32 %v2736, %v2910
        %v3031 = vadd.f32 %v2737, %v2913
        %v3032 = vadd.f32 %v2738, %v2918
        %v3033 = vadd.f32 %v2739, %v2921
        %v3034 = vadd.f32 %v2740, %v2926
        %v3035 = vadd.f32 %v2741, %v2929
        %v3036 = vadd.f32 %v2742, %v2934
        %v3037 = vadd.f32 %v2743, %v2937
        %v3038 = vadd.f32 %v2744, %v2942
        %v3039 = vadd.f32 %v2745, %v2945
        %v3040 = vadd.f32 %v2746, %v2950
        %v3041 = vadd.f32 %v2747, %v2953
        %v3042 = vadd.f32 %v2748, %v2958
        %v3043 = vadd.f32 %v2749, %v2961
        %v3044 = vadd.f32 %v2750, %v2966
        %v3045 = vadd.f32 %v2751, %v2969
        %v3046 = vadd.f32 %v2752, %v2974
        %v3047 = vadd.f32 %v2753, %v2977
        %v3048 = vadd.f32 %v2754, %v2982
        %v3049 = vadd.f32 %v2755, %v2985
        %v3050 = vadd.f32 %v2756, %v2990
        %v3051 = vadd.f32 %v2757, %v2993
        %v3052 = vadd.f32 %v2758, %v2998
        %v3053 = vadd.f32 %v2759, %v3001
        %v3054 = vadd.f32 %v2760, %v3006
        %v3055 = vadd.f32 %v2761, %v3009
        %v3056 = vadd.f32 %v2762, %v3014
        %v3057 = vadd.f32 %v2763, %v3017
        %v3058 = vadd.f32 %v2764, %v3022
        %v3059 = vadd.f32 %v2765, %v3025
        %3060 = vst.msk [vmem:[#allocation3] sm:$0xff] %vm1275, %v3028
        %3061 = vst.msk [vmem:[#allocation3 + $0x8] sm:$0xff] %vm1275, %v3029
        %3062 = vst.msk [vmem:[#allocation3 + $0x10] sm:$0xff] %vm1275, %v3030
        %3063 = vst.msk [vmem:[#allocation3 + $0x18] sm:$0xff] %vm1275, %v3031
        %3064 = vst.msk [vmem:[#allocation3 + $0x20] sm:$0xff] %vm1275, %v3032
        %3065 = vst.msk [vmem:[#allocation3 + $0x28] sm:$0xff] %vm1275, %v3033
        %3066 = vst.msk [vmem:[#allocation3 + $0x30] sm:$0xff] %vm1275, %v3034
        %3067 = vst.msk [vmem:[#allocation3 + $0x38] sm:$0xff] %vm1275, %v3035
        %3068 = vst.msk [vmem:[#allocation3 + $0x40] sm:$0xff] %vm1275, %v3036
        %3069 = vst.msk [vmem:[#allocation3 + $0x48] sm:$0xff] %vm1275, %v3037
        %3070 = vst.msk [vmem:[#allocation3 + $0x50] sm:$0xff] %vm1275, %v3038
        %3071 = vst.msk [vmem:[#allocation3 + $0x58] sm:$0xff] %vm1275, %v3039
        %3072 = vst.msk [vmem:[#allocation3 + $0x60] sm:$0xff] %vm1275, %v3040
        %3073 = vst.msk [vmem:[#allocation3 + $0x68] sm:$0xff] %vm1275, %v3041
        %3074 = vst.msk [vmem:[#allocation3 + $0x70] sm:$0xff] %vm1275, %v3042
        %3075 = vst.msk [vmem:[#allocation3 + $0x78] sm:$0xff] %vm1275, %v3043
        %3076 = vst.msk [vmem:[#allocation3 + $0x80] sm:$0xff] %vm1275, %v3044
        %3077 = vst.msk [vmem:[#allocation3 + $0x88] sm:$0xff] %vm1275, %v3045
        %3078 = vst.msk [vmem:[#allocation3 + $0x90] sm:$0xff] %vm1275, %v3046
        %3079 = vst.msk [vmem:[#allocation3 + $0x98] sm:$0xff] %vm1275, %v3047
        %3080 = vst.msk [vmem:[#allocation3 + $0xa0] sm:$0xff] %vm1275, %v3048
        %3081 = vst.msk [vmem:[#allocation3 + $0xa8] sm:$0xff] %vm1275, %v3049
        %3082 = vst.msk [vmem:[#allocation3 + $0xb0] sm:$0xff] %vm1275, %v3050
        %3083 = vst.msk [vmem:[#allocation3 + $0xb8] sm:$0xff] %vm1275, %v3051
        %3084 = vst.msk [vmem:[#allocation3 + $0xc0] sm:$0xff] %vm1275, %v3052
        %3085 = vst.msk [vmem:[#allocation3 + $0xc8] sm:$0xff] %vm1275, %v3053
        %3086 = vst.msk [vmem:[#allocation3 + $0xd0] sm:$0xff] %vm1275, %v3054
        %3087 = vst.msk [vmem:[#allocation3 + $0xd8] sm:$0xff] %vm1275, %v3055
        %3088 = vst.msk [vmem:[#allocation3 + $0xe0] sm:$0xff] %vm1275, %v3056
        %3089 = vst.msk [vmem:[#allocation3 + $0xe8] sm:$0xff] %vm1275, %v3057
        %3090 = vst.msk [vmem:[#allocation3 + $0xf0] sm:$0xff] %vm1275, %v3058
        %3091 = vst.msk [vmem:[#allocation3 + $0xf8] sm:$0xff] %vm1275, %v3059
        %v3092 = vld [vmem:[%s1157] sm:$0xf]
        %v3093 = vld [vmem:[%s1157 + $0x4] sm:$0xf]
        %v3094 = vld [vmem:[%s1157 + $0xc] sm:$0xf]
        %v3095 = vld [vmem:[%s1157 + $0x10] sm:$0xf]
        %v3096 = vld [vmem:[%s1157 + $0x18] sm:$0xf]
        %v3097 = vld [vmem:[%s1157 + $0x1c] sm:$0xf]
        %v3098 = vld [vmem:[%s1157 + $0x24] sm:$0xf]
        %v3099 = vld [vmem:[%s1157 + $0x28] sm:$0xf]
        %v3100 = vld [vmem:[%s1157 + $0x30] sm:$0xf]
        %v3101 = vld [vmem:[%s1157 + $0x34] sm:$0xf]
        %v3102 = vld [vmem:[%s1157 + $0x3c] sm:$0xf]
        %v3103 = vld [vmem:[%s1157 + $0x40] sm:$0xf]
        %v3104 = vld [vmem:[%s1157 + $0x48] sm:$0xf]
        %v3105 = vld [vmem:[%s1157 + $0x4c] sm:$0xf]
        %v3106 = vld [vmem:[%s1157 + $0x54] sm:$0xf]
        %v3107 = vld [vmem:[%s1157 + $0x58] sm:$0xf]
        %v3108 = vld [vmem:[%s1157 + $0x60] sm:$0xf]
        %v3109 = vld [vmem:[%s1157 + $0x64] sm:$0xf]
        %v3110 = vld [vmem:[%s1157 + $0x6c] sm:$0xf]
        %v3111 = vld [vmem:[%s1157 + $0x70] sm:$0xf]
        %v3112 = vld [vmem:[%s1157 + $0x78] sm:$0xf]
        %v3113 = vld [vmem:[%s1157 + $0x7c] sm:$0xf]
        %v3114 = vld [vmem:[%s1157 + $0x84] sm:$0xf]
        %v3115 = vld [vmem:[%s1157 + $0x88] sm:$0xf]
        %v3116 = vld [vmem:[%s1157 + $0x90] sm:$0xf]
        %v3117 = vld [vmem:[%s1157 + $0x94] sm:$0xf]
        %v3118 = vld [vmem:[%s1157 + $0x9c] sm:$0xf]
        %v3119 = vld [vmem:[%s1157 + $0xa0] sm:$0xf]
        %v3120 = vld [vmem:[%s1157 + $0xa8] sm:$0xf]
        %v3121 = vld [vmem:[%s1157 + $0xac] sm:$0xf]
        %v3122 = vld [vmem:[%s1157 + $0xb4] sm:$0xf]
        %v3123 = vld [vmem:[%s1157 + $0xb8] sm:$0xf]
        %v3124 = vld [vmem:[#allocation3] sm:$0xff]
        %v3125 = vld [vmem:[#allocation3 + $0x8] sm:$0xff]
        %v3126 = vld [vmem:[#allocation3 + $0x10] sm:$0xff]
        %v3127 = vld [vmem:[#allocation3 + $0x18] sm:$0xff]
        %v3128 = vld [vmem:[#allocation3 + $0x20] sm:$0xff]
        %v3129 = vld [vmem:[#allocation3 + $0x28] sm:$0xff]
        %v3130 = vld [vmem:[#allocation3 + $0x30] sm:$0xff]
        %v3131 = vld [vmem:[#allocation3 + $0x38] sm:$0xff]
        %v3132 = vld [vmem:[#allocation3 + $0x40] sm:$0xff]
        %v3133 = vld [vmem:[#allocation3 + $0x48] sm:$0xff]
        %v3134 = vld [vmem:[#allocation3 + $0x50] sm:$0xff]
        %v3135 = vld [vmem:[#allocation3 + $0x58] sm:$0xff]
        %v3136 = vld [vmem:[#allocation3 + $0x60] sm:$0xff]
        %v3137 = vld [vmem:[#allocation3 + $0x68] sm:$0xff]
        %v3138 = vld [vmem:[#allocation3 + $0x70] sm:$0xff]
        %v3139 = vld [vmem:[#allocation3 + $0x78] sm:$0xff]
        %v3140 = vld [vmem:[#allocation3 + $0x80] sm:$0xff]
        %v3141 = vld [vmem:[#allocation3 + $0x88] sm:$0xff]
        %v3142 = vld [vmem:[#allocation3 + $0x90] sm:$0xff]
        %v3143 = vld [vmem:[#allocation3 + $0x98] sm:$0xff]
        %v3144 = vld [vmem:[#allocation3 + $0xa0] sm:$0xff]
        %v3145 = vld [vmem:[#allocation3 + $0xa8] sm:$0xff]
        %v3146 = vld [vmem:[#allocation3 + $0xb0] sm:$0xff]
        %v3147 = vld [vmem:[#allocation3 + $0xb8] sm:$0xff]
        %v3148 = vld [vmem:[#allocation3 + $0xc0] sm:$0xff]
        %v3149 = vld [vmem:[#allocation3 + $0xc8] sm:$0xff]
        %v3150 = vld [vmem:[#allocation3 + $0xd0] sm:$0xff]
        %v3151 = vld [vmem:[#allocation3 + $0xd8] sm:$0xff]
        %v3152 = vld [vmem:[#allocation3 + $0xe0] sm:$0xff]
        %v3153 = vld [vmem:[#allocation3 + $0xe8] sm:$0xff]
        %v3154 = vld [vmem:[#allocation3 + $0xf0] sm:$0xff]
        %v3155 = vld [vmem:[#allocation3 + $0xf8] sm:$0xff]
        %s3156 = scalar_lea.vmem [#allocation7], 6
        %v3157 = vld [vmem:[%s3156] sm:$0x3]
        %v3190 = vunpack.c.l.b16 %v3092
        %v3191 = vunpack.c.l.b16 %v3093
        %v3192 = vunpack.c.l.b16 %v3094
        %v3193 = vunpack.c.l.b16 %v3095
        %v3194 = vunpack.c.l.b16 %v3096
        %v3195 = vunpack.c.l.b16 %v3097
        %v3196 = vunpack.c.l.b16 %v3098
        %v3197 = vunpack.c.l.b16 %v3099
        %v3198 = vunpack.c.l.b16 %v3100
        %v3199 = vunpack.c.l.b16 %v3101
        %v3200 = vunpack.c.l.b16 %v3102
        %v3201 = vunpack.c.l.b16 %v3103
        %v3202 = vunpack.c.l.b16 %v3104
        %v3203 = vunpack.c.l.b16 %v3105
        %v3204 = vunpack.c.l.b16 %v3106
        %v3205 = vunpack.c.l.b16 %v3107
        %v3206 = vunpack.c.l.b16 %v3108
        %v3207 = vunpack.c.l.b16 %v3109
        %v3208 = vunpack.c.l.b16 %v3110
        %v3209 = vunpack.c.l.b16 %v3111
        %v3210 = vunpack.c.l.b16 %v3112
        %v3211 = vunpack.c.l.b16 %v3113
        %v3212 = vunpack.c.l.b16 %v3114
        %v3213 = vunpack.c.l.b16 %v3115
        %v3214 = vunpack.c.l.b16 %v3116
        %v3215 = vunpack.c.l.b16 %v3117
        %v3216 = vunpack.c.l.b16 %v3118
        %v3217 = vunpack.c.l.b16 %v3119
        %v3218 = vunpack.c.l.b16 %v3120
        %v3219 = vunpack.c.l.b16 %v3121
        %v3220 = vunpack.c.l.b16 %v3122
        %v3221 = vunpack.c.l.b16 %v3123
        %v3222 = vpack.c.b16 %v3191, %v3190
        %v3223 = vpack.c.b16 %v3193, %v3192
        %v3224 = vpack.c.b16 %v3195, %v3194
        %v3225 = vpack.c.b16 %v3197, %v3196
        %v3226 = vpack.c.b16 %v3199, %v3198
        %v3227 = vpack.c.b16 %v3201, %v3200
        %v3228 = vpack.c.b16 %v3203, %v3202
        %v3229 = vpack.c.b16 %v3205, %v3204
        %v3230 = vpack.c.b16 %v3207, %v3206
        %v3231 = vpack.c.b16 %v3209, %v3208
        %v3232 = vpack.c.b16 %v3211, %v3210
        %v3233 = vpack.c.b16 %v3213, %v3212
        %v3234 = vpack.c.b16 %v3215, %v3214
        %v3235 = vpack.c.b16 %v3217, %v3216
        %v3236 = vpack.c.b16 %v3219, %v3218
        %v3237 = vpack.c.b16 %v3221, %v3220
        %v3239 = vsel %vm1275, %v3222, 0
        %v3242 = vsel %vm1275, %v3223, 0
        %v3245 = vsel %vm1275, %v3224, 0
        %v3248 = vsel %vm1275, %v3225, 0
        %v3251 = vsel %vm1275, %v3226, 0
        %v3254 = vsel %vm1275, %v3227, 0
        %v3257 = vsel %vm1275, %v3228, 0
        %v3260 = vsel %vm1275, %v3229, 0
        %v3263 = vsel %vm1275, %v3230, 0
        %v3266 = vsel %vm1275, %v3231, 0
        %v3269 = vsel %vm1275, %v3232, 0
        %v3272 = vsel %vm1275, %v3233, 0
        %v3275 = vsel %vm1275, %v3234, 0
        %v3278 = vsel %vm1275, %v3235, 0
        %v3281 = vsel %vm1275, %v3236, 0
        %v3284 = vsel %vm1275, %v3237, 0
        %v3287 = vsel %vm1501, %v3157, 0
        %3289 = vmatprep.subr.bf16.mxu0 0
        %3290 = vmatpush1.bf16.msra.mxu0 %v3287
        %3291 = vmatprep.subr.bf16.mxu0 0
        %3292 = vmatpush1.bf16.msra.mxu0 0
        %3293 = vmatprep.subr.bf16.mxu0 0
        %3294 = vmatpush1.bf16.msra.mxu0 0
        %3295 = vmatprep.subr.bf16.mxu0 0
        %3296 = vmatpush1.bf16.msra.mxu0 0
        %3297 = vmatprep.subr.bf16.mxu0 0
        %3298 = vmatpush1.bf16.msra.mxu0 0
        %3299 = vmatprep.subr.bf16.mxu0 0
        %3300 = vmatpush1.bf16.msra.mxu0 0
        %3301 = vmatprep.subr.bf16.mxu0 0
        %3302 = vmatpush1.bf16.msra.mxu0 0
        %3303 = vmatprep.subr.bf16.mxu0 0
        %3304 = vmatpush1.bf16.msra.mxu0 0
        %3305 = vmatprep.subr.bf16.mxu0 0
        %3306 = vmatpush1.bf16.msra.mxu0 0
        %3307 = vmatprep.subr.bf16.mxu0 0
        %3308 = vmatpush1.bf16.msra.mxu0 0
        %3309 = vmatprep.subr.bf16.mxu0 0
        %3310 = vmatpush1.bf16.msra.mxu0 0
        %3311 = vmatprep.subr.bf16.mxu0 0
        %3312 = vmatpush1.bf16.msra.mxu0 0
        %3313 = vmatprep.subr.bf16.mxu0 0
        %3314 = vmatpush1.bf16.msra.mxu0 0
        %3315 = vmatprep.subr.bf16.mxu0 0
        %3316 = vmatpush1.bf16.msra.mxu0 0
        %3317 = vmatprep.subr.bf16.mxu0 0
        %3318 = vmatpush1.bf16.msra.mxu0 0
        %3319 = vmatprep.subr.bf16.mxu0 0
        %3320 = vmatpush1.bf16.msra.mxu0 0
        %3321 = vmatprep.mubr.bf16.mxu0 0
        %3322 = vmatmul.mubr.bf16.gmra.mrb[0].mxu0 %v3239
        %v3323 = vpop.f32.mrb[0].mxu0
        %v3324 = vadd.f32 0.0, %v3323
        %v3325 = vpop.f32.mrb[0].mxu0
        %v3326 = vpop.f32.mrb[0].mxu0
        %v3327 = vadd.f32 0.0, %v3326
        %v3328 = vpop.f32.mrb[0].mxu0
        %3329 = vmatprep.mubr.bf16.mxu0 0
        %3330 = vmatmul.mubr.bf16.gmra.mrb[0].mxu0 %v3242
        %v3331 = vpop.f32.mrb[0].mxu0
        %v3332 = vadd.f32 0.0, %v3331
        %v3333 = vpop.f32.mrb[0].mxu0
        %v3334 = vpop.f32.mrb[0].mxu0
        %v3335 = vadd.f32 0.0, %v3334
        %v3336 = vpop.f32.mrb[0].mxu0
        %3337 = vmatprep.mubr.bf16.mxu0 0
        %3338 = vmatmul.mubr.bf16.gmra.mrb[0].mxu0 %v3245
        %v3339 = vpop.f32.mrb[0].mxu0
        %v3340 = vadd.f32 0.0, %v3339
        %v3341 = vpop.f32.mrb[0].mxu0
        %v3342 = vpop.f32.mrb[0].mxu0
        %v3343 = vadd.f32 0.0, %v3342
        %v3344 = vpop.f32.mrb[0].mxu0
        %3345 = vmatprep.mubr.bf16.mxu0 0
        %3346 = vmatmul.mubr.bf16.gmra.mrb[0].mxu0 %v3248
        %v3347 = vpop.f32.mrb[0].mxu0
        %v3348 = vadd.f32 0.0, %v3347
        %v3349 = vpop.f32.mrb[0].mxu0
        %v3350 = vpop.f32.mrb[0].mxu0
        %v3351 = vadd.f32 0.0, %v3350
        %v3352 = vpop.f32.mrb[0].mxu0
        %3353 = vmatprep.mubr.bf16.mxu0 0
        %3354 = vmatmul.mubr.bf16.gmra.mrb[0].mxu0 %v3251
        %v3355 = vpop.f32.mrb[0].mxu0
        %v3356 = vadd.f32 0.0, %v3355
        %v3357 = vpop.f32.mrb[0].mxu0
        %v3358 = vpop.f32.mrb[0].mxu0
        %v3359 = vadd.f32 0.0, %v3358
        %v3360 = vpop.f32.mrb[0].mxu0
        %3361 = vmatprep.mubr.bf16.mxu0 0
        %3362 = vmatmul.mubr.bf16.gmra.mrb[0].mxu0 %v3254
        %v3363 = vpop.f32.mrb[0].mxu0
        %v3364 = vadd.f32 0.0, %v3363
        %v3365 = vpop.f32.mrb[0].mxu0
        %v3366 = vpop.f32.mrb[0].mxu0
        %v3367 = vadd.f32 0.0, %v3366
        %v3368 = vpop.f32.mrb[0].mxu0
        %3369 = vmatprep.mubr.bf16.mxu0 0
        %3370 = vmatmul.mubr.bf16.gmra.mrb[0].mxu0 %v3257
        %v3371 = vpop.f32.mrb[0].mxu0
        %v3372 = vadd.f32 0.0, %v3371
        %v3373 = vpop.f32.mrb[0].mxu0
        %v3374 = vpop.f32.mrb[0].mxu0
        %v3375 = vadd.f32 0.0, %v3374
        %v3376 = vpop.f32.mrb[0].mxu0
        %3377 = vmatprep.mubr.bf16.mxu0 0
        %3378 = vmatmul.mubr.bf16.gmra.mrb[0].mxu0 %v3260
        %v3379 = vpop.f32.mrb[0].mxu0
        %v3380 = vadd.f32 0.0, %v3379
        %v3381 = vpop.f32.mrb[0].mxu0
        %v3382 = vpop.f32.mrb[0].mxu0
        %v3383 = vadd.f32 0.0, %v3382
        %v3384 = vpop.f32.mrb[0].mxu0
        %3385 = vmatprep.mubr.bf16.mxu0 0
        %3386 = vmatmul.mubr.bf16.gmra.mrb[0].mxu0 %v3263
        %v3387 = vpop.f32.mrb[0].mxu0
        %v3388 = vadd.f32 0.0, %v3387
        %v3389 = vpop.f32.mrb[0].mxu0
        %v3390 = vpop.f32.mrb[0].mxu0
        %v3391 = vadd.f32 0.0, %v3390
        %v3392 = vpop.f32.mrb[0].mxu0
        %3393 = vmatprep.mubr.bf16.mxu0 0
        %3394 = vmatmul.mubr.bf16.gmra.mrb[0].mxu0 %v3266
        %v3395 = vpop.f32.mrb[0].mxu0
        %v3396 = vadd.f32 0.0, %v3395
        %v3397 = vpop.f32.mrb[0].mxu0
        %v3398 = vpop.f32.mrb[0].mxu0
        %v3399 = vadd.f32 0.0, %v3398
        %v3400 = vpop.f32.mrb[0].mxu0
        %3401 = vmatprep.mubr.bf16.mxu0 0
        %3402 = vmatmul.mubr.bf16.gmra.mrb[0].mxu0 %v3269
        %v3403 = vpop.f32.mrb[0].mxu0
        %v3404 = vadd.f32 0.0, %v3403
        %v3405 = vpop.f32.mrb[0].mxu0
        %v3406 = vpop.f32.mrb[0].mxu0
        %v3407 = vadd.f32 0.0, %v3406
        %v3408 = vpop.f32.mrb[0].mxu0
        %3409 = vmatprep.mubr.bf16.mxu0 0
        %3410 = vmatmul.mubr.bf16.gmra.mrb[0].mxu0 %v3272
        %v3411 = vpop.f32.mrb[0].mxu0
        %v3412 = vadd.f32 0.0, %v3411
        %v3413 = vpop.f32.mrb[0].mxu0
        %v3414 = vpop.f32.mrb[0].mxu0
        %v3415 = vadd.f32 0.0, %v3414
        %v3416 = vpop.f32.mrb[0].mxu0
        %3417 = vmatprep.mubr.bf16.mxu0 0
        %3418 = vmatmul.mubr.bf16.gmra.mrb[0].mxu0 %v3275
        %v3419 = vpop.f32.mrb[0].mxu0
        %v3420 = vadd.f32 0.0, %v3419
        %v3421 = vpop.f32.mrb[0].mxu0
        %v3422 = vpop.f32.mrb[0].mxu0
        %v3423 = vadd.f32 0.0, %v3422
        %v3424 = vpop.f32.mrb[0].mxu0
        %3425 = vmatprep.mubr.bf16.mxu0 0
        %3426 = vmatmul.mubr.bf16.gmra.mrb[0].mxu0 %v3278
        %v3427 = vpop.f32.mrb[0].mxu0
        %v3428 = vadd.f32 0.0, %v3427
        %v3429 = vpop.f32.mrb[0].mxu0
        %v3430 = vpop.f32.mrb[0].mxu0
        %v3431 = vadd.f32 0.0, %v3430
        %v3432 = vpop.f32.mrb[0].mxu0
        %3433 = vmatprep.mubr.bf16.mxu0 0
        %3434 = vmatmul.mubr.bf16.gmra.mrb[0].mxu0 %v3281
        %v3435 = vpop.f32.mrb[0].mxu0
        %v3436 = vadd.f32 0.0, %v3435
        %v3437 = vpop.f32.mrb[0].mxu0
        %v3438 = vpop.f32.mrb[0].mxu0
        %v3439 = vadd.f32 0.0, %v3438
        %v3440 = vpop.f32.mrb[0].mxu0
        %3441 = vmatprep.mubr.bf16.mxu0 0
        %3442 = vmatmul.mubr.bf16.gmra.mrb[0].mxu0 %v3284
        %v3443 = vpop.f32.mrb[0].mxu0
        %v3444 = vadd.f32 0.0, %v3443
        %v3445 = vpop.f32.mrb[0].mxu0
        %v3446 = vpop.f32.mrb[0].mxu0
        %v3447 = vadd.f32 0.0, %v3446
        %v3448 = vpop.f32.mrb[0].mxu0
        %3449 = vdwg.mxu0
        %v3450 = vadd.f32 %v3124, %v3324
        %v3451 = vadd.f32 %v3125, %v3327
        %v3452 = vadd.f32 %v3126, %v3332
        %v3453 = vadd.f32 %v3127, %v3335
        %v3454 = vadd.f32 %v3128, %v3340
        %v3455 = vadd.f32 %v3129, %v3343
        %v3456 = vadd.f32 %v3130, %v3348
        %v3457 = vadd.f32 %v3131, %v3351
        %v3458 = vadd.f32 %v3132, %v3356
        %v3459 = vadd.f32 %v3133, %v3359
        %v3460 = vadd.f32 %v3134, %v3364
        %v3461 = vadd.f32 %v3135, %v3367
        %v3462 = vadd.f32 %v3136, %v3372
        %v3463 = vadd.f32 %v3137, %v3375
        %v3464 = vadd.f32 %v3138, %v3380
        %v3465 = vadd.f32 %v3139, %v3383
        %v3466 = vadd.f32 %v3140, %v3388
        %v3467 = vadd.f32 %v3141, %v3391
        %v3468 = vadd.f32 %v3142, %v3396
        %v3469 = vadd.f32 %v3143, %v3399
        %v3470 = vadd.f32 %v3144, %v3404
        %v3471 = vadd.f32 %v3145, %v3407
        %v3472 = vadd.f32 %v3146, %v3412
        %v3473 = vadd.f32 %v3147, %v3415
        %v3474 = vadd.f32 %v3148, %v3420
        %v3475 = vadd.f32 %v3149, %v3423
        %v3476 = vadd.f32 %v3150, %v3428
        %v3477 = vadd.f32 %v3151, %v3431
        %v3478 = vadd.f32 %v3152, %v3436
        %v3479 = vadd.f32 %v3153, %v3439
        %v3480 = vadd.f32 %v3154, %v3444
        %v3481 = vadd.f32 %v3155, %v3447
        %3482 = vst.msk [vmem:[#allocation3] sm:$0xff] %vm1275, %v3450
        %3483 = vst.msk [vmem:[#allocation3 + $0x8] sm:$0xff] %vm1275, %v3451
        %3484 = vst.msk [vmem:[#allocation3 + $0x10] sm:$0xff] %vm1275, %v3452
        %3485 = vst.msk [vmem:[#allocation3 + $0x18] sm:$0xff] %vm1275, %v3453
        %3486 = vst.msk [vmem:[#allocation3 + $0x20] sm:$0xff] %vm1275, %v3454
        %3487 = vst.msk [vmem:[#allocation3 + $0x28] sm:$0xff] %vm1275, %v3455
        %3488 = vst.msk [vmem:[#allocation3 + $0x30] sm:$0xff] %vm1275, %v3456
        %3489 = vst.msk [vmem:[#allocation3 + $0x38] sm:$0xff] %vm1275, %v3457
        %3490 = vst.msk [vmem:[#allocation3 + $0x40] sm:$0xff] %vm1275, %v3458
        %3491 = vst.msk [vmem:[#allocation3 + $0x48] sm:$0xff] %vm1275, %v3459
        %3492 = vst.msk [vmem:[#allocation3 + $0x50] sm:$0xff] %vm1275, %v3460
        %3493 = vst.msk [vmem:[#allocation3 + $0x58] sm:$0xff] %vm1275, %v3461
        %3494 = vst.msk [vmem:[#allocation3 + $0x60] sm:$0xff] %vm1275, %v3462
        %3495 = vst.msk [vmem:[#allocation3 + $0x68] sm:$0xff] %vm1275, %v3463
        %3496 = vst.msk [vmem:[#allocation3 + $0x70] sm:$0xff] %vm1275, %v3464
        %3497 = vst.msk [vmem:[#allocation3 + $0x78] sm:$0xff] %vm1275, %v3465
        %3498 = vst.msk [vmem:[#allocation3 + $0x80] sm:$0xff] %vm1275, %v3466
        %3499 = vst.msk [vmem:[#allocation3 + $0x88] sm:$0xff] %vm1275, %v3467
        %3500 = vst.msk [vmem:[#allocation3 + $0x90] sm:$0xff] %vm1275, %v3468
        %3501 = vst.msk [vmem:[#allocation3 + $0x98] sm:$0xff] %vm1275, %v3469
        %3502 = vst.msk [vmem:[#allocation3 + $0xa0] sm:$0xff] %vm1275, %v3470
        %3503 = vst.msk [vmem:[#allocation3 + $0xa8] sm:$0xff] %vm1275, %v3471
        %3504 = vst.msk [vmem:[#allocation3 + $0xb0] sm:$0xff] %vm1275, %v3472
        %3505 = vst.msk [vmem:[#allocation3 + $0xb8] sm:$0xff] %vm1275, %v3473
        %3506 = vst.msk [vmem:[#allocation3 + $0xc0] sm:$0xff] %vm1275, %v3474
        %3507 = vst.msk [vmem:[#allocation3 + $0xc8] sm:$0xff] %vm1275, %v3475
        %3508 = vst.msk [vmem:[#allocation3 + $0xd0] sm:$0xff] %vm1275, %v3476
        %3509 = vst.msk [vmem:[#allocation3 + $0xd8] sm:$0xff] %vm1275, %v3477
        %3510 = vst.msk [vmem:[#allocation3 + $0xe0] sm:$0xff] %vm1275, %v3478
        %3511 = vst.msk [vmem:[#allocation3 + $0xe8] sm:$0xff] %vm1275, %v3479
        %3512 = vst.msk [vmem:[#allocation3 + $0xf0] sm:$0xff] %vm1275, %v3480
        %3513 = vst.msk [vmem:[#allocation3 + $0xf8] sm:$0xff] %vm1275, %v3481
        %v3514 = vld [vmem:[%s1157] sm:$0xf]
        %v3515 = vld [vmem:[%s1157 + $0x4] sm:$0xf]
        %v3516 = vld [vmem:[%s1157 + $0x8] sm:$0x1]
        %v3517 = vld [vmem:[%s1157 + $0xc] sm:$0xf]
        %v3518 = vld [vmem:[%s1157 + $0x10] sm:$0xf]
        %v3519 = vld [vmem:[%s1157 + $0x14] sm:$0x1]
        %v3520 = vld [vmem:[%s1157 + $0x18] sm:$0xf]
        %v3521 = vld [vmem:[%s1157 + $0x1c] sm:$0xf]
        %v3522 = vld [vmem:[%s1157 + $0x20] sm:$0x1]
        %v3523 = vld [vmem:[%s1157 + $0x24] sm:$0xf]
        %v3524 = vld [vmem:[%s1157 + $0x28] sm:$0xf]
        %v3525 = vld [vmem:[%s1157 + $0x2c] sm:$0x1]
        %v3526 = vld [vmem:[%s1157 + $0x30] sm:$0xf]
        %v3527 = vld [vmem:[%s1157 + $0x34] sm:$0xf]
        %v3528 = vld [vmem:[%s1157 + $0x38] sm:$0x1]
        %v3529 = vld [vmem:[%s1157 + $0x3c] sm:$0xf]
        %v3530 = vld [vmem:[%s1157 + $0x40] sm:$0xf]
        %v3531 = vld [vmem:[%s1157 + $0x44] sm:$0x1]
        %v3532 = vld [vmem:[%s1157 + $0x48] sm:$0xf]
        %v3533 = vld [vmem:[%s1157 + $0x4c] sm:$0xf]
        %v3534 = vld [vmem:[%s1157 + $0x50] sm:$0x1]
        %v3535 = vld [vmem:[%s1157 + $0x54] sm:$0xf]
        %v3536 = vld [vmem:[%s1157 + $0x58] sm:$0xf]
        %v3537 = vld [vmem:[%s1157 + $0x5c] sm:$0x1]
        %v3538 = vld [vmem:[%s1157 + $0x60] sm:$0xf]
        %v3539 = vld [vmem:[%s1157 + $0x64] sm:$0xf]
        %v3540 = vld [vmem:[%s1157 + $0x68] sm:$0x1]
        %v3541 = vld [vmem:[%s1157 + $0x6c] sm:$0xf]
        %v3542 = vld [vmem:[%s1157 + $0x70] sm:$0xf]
        %v3543 = vld [vmem:[%s1157 + $0x74] sm:$0x1]
        %v3544 = vld [vmem:[%s1157 + $0x78] sm:$0xf]
        %v3545 = vld [vmem:[%s1157 + $0x7c] sm:$0xf]
        %v3546 = vld [vmem:[%s1157 + $0x80] sm:$0x1]
        %v3547 = vld [vmem:[%s1157 + $0x84] sm:$0xf]
        %v3548 = vld [vmem:[%s1157 + $0x88] sm:$0xf]
        %v3549 = vld [vmem:[%s1157 + $0x8c] sm:$0x1]
        %v3550 = vld [vmem:[%s1157 + $0x90] sm:$0xf]
        %v3551 = vld [vmem:[%s1157 + $0x94] sm:$0xf]
        %v3552 = vld [vmem:[%s1157 + $0x98] sm:$0x1]
        %v3553 = vld [vmem:[%s1157 + $0x9c] sm:$0xf]
        %v3554 = vld [vmem:[%s1157 + $0xa0] sm:$0xf]
        %v3555 = vld [vmem:[%s1157 + $0xa4] sm:$0x1]
        %v3556 = vld [vmem:[%s1157 + $0xa8] sm:$0xf]
        %v3557 = vld [vmem:[%s1157 + $0xac] sm:$0xf]
        %v3558 = vld [vmem:[%s1157 + $0xb0] sm:$0x1]
        %v3559 = vld [vmem:[%s1157 + $0xb4] sm:$0xf]
        %v3560 = vld [vmem:[%s1157 + $0xb8] sm:$0xf]
        %v3561 = vld [vmem:[%s1157 + $0xbc] sm:$0x1]
        %v3563 = vshrl.u32 %v3514, 16
        %v3565 = vrot.slane %v3563, 4
        %v3566 = vshll.u32 %v3514, 16
        %v3568 = vrot.slane %v3566, 5
        %v3569 = vor.u32 %v3565, %v3568
        %v3570 = vrot.slane %v3569, 4
        %v3572 = vshll.u32 %v3515, 16
        %v3574 = vrot.slane %v3572, 5
        %v3575 = vsel %vm1780, %v3570, %v3574
        %v3576 = vshrl.u32 %v3515, 16
        %v3578 = vrot.slane %v3576, 4
        %v3579 = vor.u32 %v3578, %v3574
        %v3580 = vrot.slane %v3579, 4
        %v3582 = vshll.u32 %v3516, 16
        %v3584 = vrot.slane %v3582, 5
        %v3585 = vsel %vm1780, %v3580, %v3584
        %v3587 = vshrl.u32 %v3517, 16
        %v3589 = vrot.slane %v3587, 4
        %v3590 = vshll.u32 %v3517, 16
        %v3592 = vrot.slane %v3590, 5
        %v3593 = vor.u32 %v3589, %v3592
        %v3594 = vrot.slane %v3593, 4
        %v3596 = vshll.u32 %v3518, 16
        %v3598 = vrot.slane %v3596, 5
        %v3599 = vsel %vm1780, %v3594, %v3598
        %v3600 = vshrl.u32 %v3518, 16
        %v3602 = vrot.slane %v3600, 4
        %v3603 = vor.u32 %v3602, %v3598
        %v3604 = vrot.slane %v3603, 4
        %v3606 = vshll.u32 %v3519, 16
        %v3608 = vrot.slane %v3606, 5
        %v3609 = vsel %vm1780, %v3604, %v3608
        %v3611 = vshrl.u32 %v3520, 16
        %v3613 = vrot.slane %v3611, 4
        %v3614 = vshll.u32 %v3520, 16
        %v3616 = vrot.slane %v3614, 5
        %v3617 = vor.u32 %v3613, %v3616
        %v3618 = vrot.slane %v3617, 4
        %v3620 = vshll.u32 %v3521, 16
        %v3622 = vrot.slane %v3620, 5
        %v3623 = vsel %vm1780, %v3618, %v3622
        %v3624 = vshrl.u32 %v3521, 16
        %v3626 = vrot.slane %v3624, 4
        %v3627 = vor.u32 %v3626, %v3622
        %v3628 = vrot.slane %v3627, 4
        %v3630 = vshll.u32 %v3522, 16
        %v3632 = vrot.slane %v3630, 5
        %v3633 = vsel %vm1780, %v3628, %v3632
        %v3635 = vshrl.u32 %v3523, 16
        %v3637 = vrot.slane %v3635, 4
        %v3638 = vshll.u32 %v3523, 16
        %v3640 = vrot.slane %v3638, 5
        %v3641 = vor.u32 %v3637, %v3640
        %v3642 = vrot.slane %v3641, 4
        %v3644 = vshll.u32 %v3524, 16
        %v3646 = vrot.slane %v3644, 5
        %v3647 = vsel %vm1780, %v3642, %v3646
        %v3648 = vshrl.u32 %v3524, 16
        %v3650 = vrot.slane %v3648, 4
        %v3651 = vor.u32 %v3650, %v3646
        %v3652 = vrot.slane %v3651, 4
        %v3654 = vshll.u32 %v3525, 16
        %v3656 = vrot.slane %v3654, 5
        %v3657 = vsel %vm1780, %v3652, %v3656
        %v3659 = vshrl.u32 %v3526, 16
        %v3661 = vrot.slane %v3659, 4
        %v3662 = vshll.u32 %v3526, 16
        %v3664 = vrot.slane %v3662, 5
        %v3665 = vor.u32 %v3661, %v3664
        %v3666 = vrot.slane %v3665, 4
        %v3668 = vshll.u32 %v3527, 16
        %v3670 = vrot.slane %v3668, 5
        %v3671 = vsel %vm1780, %v3666, %v3670
        %v3672 = vshrl.u32 %v3527, 16
        %v3674 = vrot.slane %v3672, 4
        %v3675 = vor.u32 %v3674, %v3670
        %v3676 = vrot.slane %v3675, 4
        %v3678 = vshll.u32 %v3528, 16
        %v3680 = vrot.slane %v3678, 5
        %v3681 = vsel %vm1780, %v3676, %v3680
        %v3683 = vshrl.u32 %v3529, 16
        %v3685 = vrot.slane %v3683, 4
        %v3686 = vshll.u32 %v3529, 16
        %v3688 = vrot.slane %v3686, 5
        %v3689 = vor.u32 %v3685, %v3688
        %v3690 = vrot.slane %v3689, 4
        %v3692 = vshll.u32 %v3530, 16
        %v3694 = vrot.slane %v3692, 5
        %v3695 = vsel %vm1780, %v3690, %v3694
        %v3696 = vshrl.u32 %v3530, 16
        %v3698 = vrot.slane %v3696, 4
        %v3699 = vor.u32 %v3698, %v3694
        %v3700 = vrot.slane %v3699, 4
        %v3702 = vshll.u32 %v3531, 16
        %v3704 = vrot.slane %v3702, 5
        %v3705 = vsel %vm1780, %v3700, %v3704
        %v3707 = vshrl.u32 %v3532, 16
        %v3709 = vrot.slane %v3707, 4
        %v3710 = vshll.u32 %v3532, 16
        %v3712 = vrot.slane %v3710, 5
        %v3713 = vor.u32 %v3709, %v3712
        %v3714 = vrot.slane %v3713, 4
        %v3716 = vshll.u32 %v3533, 16
        %v3718 = vrot.slane %v3716, 5
        %v3719 = vsel %vm1780, %v3714, %v3718
        %v3720 = vshrl.u32 %v3533, 16
        %v3722 = vrot.slane %v3720, 4
        %v3723 = vor.u32 %v3722, %v3718
        %v3724 = vrot.slane %v3723, 4
        %v3726 = vshll.u32 %v3534, 16
        %v3728 = vrot.slane %v3726, 5
        %v3729 = vsel %vm1780, %v3724, %v3728
        %v3731 = vshrl.u32 %v3535, 16
        %v3733 = vrot.slane %v3731, 4
        %v3734 = vshll.u32 %v3535, 16
        %v3736 = vrot.slane %v3734, 5
        %v3737 = vor.u32 %v3733, %v3736
        %v3738 = vrot.slane %v3737, 4
        %v3740 = vshll.u32 %v3536, 16
        %v3742 = vrot.slane %v3740, 5
        %v3743 = vsel %vm1780, %v3738, %v3742
        %v3744 = vshrl.u32 %v3536, 16
        %v3746 = vrot.slane %v3744, 4
        %v3747 = vor.u32 %v3746, %v3742
        %v3748 = vrot.slane %v3747, 4
        %v3750 = vshll.u32 %v3537, 16
        %v3752 = vrot.slane %v3750, 5
        %v3753 = vsel %vm1780, %v3748, %v3752
        %v3755 = vshrl.u32 %v3538, 16
        %v3757 = vrot.slane %v3755, 4
        %v3758 = vshll.u32 %v3538, 16
        %v3760 = vrot.slane %v3758, 5
        %v3761 = vor.u32 %v3757, %v3760
        %v3762 = vrot.slane %v3761, 4
        %v3764 = vshll.u32 %v3539, 16
        %v3766 = vrot.slane %v3764, 5
        %v3767 = vsel %vm1780, %v3762, %v3766
        %v3768 = vshrl.u32 %v3539, 16
        %v3770 = vrot.slane %v3768, 4
        %v3771 = vor.u32 %v3770, %v3766
        %v3772 = vrot.slane %v3771, 4
        %v3774 = vshll.u32 %v3540, 16
        %v3776 = vrot.slane %v3774, 5
        %v3777 = vsel %vm1780, %v3772, %v3776
        %v3779 = vshrl.u32 %v3541, 16
        %v3781 = vrot.slane %v3779, 4
        %v3782 = vshll.u32 %v3541, 16
        %v3784 = vrot.slane %v3782, 5
        %v3785 = vor.u32 %v3781, %v3784
        %v3786 = vrot.slane %v3785, 4
        %v3788 = vshll.u32 %v3542, 16
        %v3790 = vrot.slane %v3788, 5
        %v3791 = vsel %vm1780, %v3786, %v3790
        %v3792 = vshrl.u32 %v3542, 16
        %v3794 = vrot.slane %v3792, 4
        %v3795 = vor.u32 %v3794, %v3790
        %v3796 = vrot.slane %v3795, 4
        %v3798 = vshll.u32 %v3543, 16
        %v3800 = vrot.slane %v3798, 5
        %v3801 = vsel %vm1780, %v3796, %v3800
        %v3803 = vshrl.u32 %v3544, 16
        %v3805 = vrot.slane %v3803, 4
        %v3806 = vshll.u32 %v3544, 16
        %v3808 = vrot.slane %v3806, 5
        %v3809 = vor.u32 %v3805, %v3808
        %v3810 = vrot.slane %v3809, 4
        %v3812 = vshll.u32 %v3545, 16
        %v3814 = vrot.slane %v3812, 5
        %v3815 = vsel %vm1780, %v3810, %v3814
        %v3816 = vshrl.u32 %v3545, 16
        %v3818 = vrot.slane %v3816, 4
        %v3819 = vor.u32 %v3818, %v3814
        %v3820 = vrot.slane %v3819, 4
        %v3822 = vshll.u32 %v3546, 16
        %v3824 = vrot.slane %v3822, 5
        %v3825 = vsel %vm1780, %v3820, %v3824
        %v3827 = vshrl.u32 %v3547, 16
        %v3829 = vrot.slane %v3827, 4
        %v3830 = vshll.u32 %v3547, 16
        %v3832 = vrot.slane %v3830, 5
        %v3833 = vor.u32 %v3829, %v3832
        %v3834 = vrot.slane %v3833, 4
        %v3836 = vshll.u32 %v3548, 16
        %v3838 = vrot.slane %v3836, 5
        %v3839 = vsel %vm1780, %v3834, %v3838
        %v3840 = vshrl.u32 %v3548, 16
        %v3842 = vrot.slane %v3840, 4
        %v3843 = vor.u32 %v3842, %v3838
        %v3844 = vrot.slane %v3843, 4
        %v3846 = vshll.u32 %v3549, 16
        %v3848 = vrot.slane %v3846, 5
        %v3849 = vsel %vm1780, %v3844, %v3848
        %v3851 = vshrl.u32 %v3550, 16
        %v3853 = vrot.slane %v3851, 4
        %v3854 = vshll.u32 %v3550, 16
        %v3856 = vrot.slane %v3854, 5
        %v3857 = vor.u32 %v3853, %v3856
        %v3858 = vrot.slane %v3857, 4
        %v3860 = vshll.u32 %v3551, 16
        %v3862 = vrot.slane %v3860, 5
        %v3863 = vsel %vm1780, %v3858, %v3862
        %v3864 = vshrl.u32 %v3551, 16
        %v3866 = vrot.slane %v3864, 4
        %v3867 = vor.u32 %v3866, %v3862
        %v3868 = vrot.slane %v3867, 4
        %v3870 = vshll.u32 %v3552, 16
        %v3872 = vrot.slane %v3870, 5
        %v3873 = vsel %vm1780, %v3868, %v3872
        %v3875 = vshrl.u32 %v3553, 16
        %v3877 = vrot.slane %v3875, 4
        %v3878 = vshll.u32 %v3553, 16
        %v3880 = vrot.slane %v3878, 5
        %v3881 = vor.u32 %v3877, %v3880
        %v3882 = vrot.slane %v3881, 4
        %v3884 = vshll.u32 %v3554, 16
        %v3886 = vrot.slane %v3884, 5
        %v3887 = vsel %vm1780, %v3882, %v3886
        %v3888 = vshrl.u32 %v3554, 16
        %v3890 = vrot.slane %v3888, 4
        %v3891 = vor.u32 %v3890, %v3886
        %v3892 = vrot.slane %v3891, 4
        %v3894 = vshll.u32 %v3555, 16
        %v3896 = vrot.slane %v3894, 5
        %v3897 = vsel %vm1780, %v3892, %v3896
        %v3899 = vshrl.u32 %v3556, 16
        %v3901 = vrot.slane %v3899, 4
        %v3902 = vshll.u32 %v3556, 16
        %v3904 = vrot.slane %v3902, 5
        %v3905 = vor.u32 %v3901, %v3904
        %v3906 = vrot.slane %v3905, 4
        %v3908 = vshll.u32 %v3557, 16
        %v3910 = vrot.slane %v3908, 5
        %v3911 = vsel %vm1780, %v3906, %v3910
        %v3912 = vshrl.u32 %v3557, 16
        %v3914 = vrot.slane %v3912, 4
        %v3915 = vor.u32 %v3914, %v3910
        %v3916 = vrot.slane %v3915, 4
        %v3918 = vshll.u32 %v3558, 16
        %v3920 = vrot.slane %v3918, 5
        %v3921 = vsel %vm1780, %v3916, %v3920
        %v3923 = vshrl.u32 %v3559, 16
        %v3925 = vrot.slane %v3923, 4
        %v3926 = vshll.u32 %v3559, 16
        %v3928 = vrot.slane %v3926, 5
        %v3929 = vor.u32 %v3925, %v3928
        %v3930 = vrot.slane %v3929, 4
        %v3932 = vshll.u32 %v3560, 16
        %v3934 = vrot.slane %v3932, 5
        %v3935 = vsel %vm1780, %v3930, %v3934
        %v3936 = vshrl.u32 %v3560, 16
        %v3938 = vrot.slane %v3936, 4
        %v3939 = vor.u32 %v3938, %v3934
        %v3940 = vrot.slane %v3939, 4
        %v3942 = vshll.u32 %v3561, 16
        %v3944 = vrot.slane %v3942, 5
        %v3945 = vsel %vm1780, %v3940, %v3944
        %v3946 = vld [vmem:[#allocation3] sm:$0xff]
        %v3947 = vld [vmem:[#allocation3 + $0x8] sm:$0xff]
        %v3948 = vld [vmem:[#allocation3 + $0x10] sm:$0xff]
        %v3949 = vld [vmem:[#allocation3 + $0x18] sm:$0xff]
        %v3950 = vld [vmem:[#allocation3 + $0x20] sm:$0xff]
        %v3951 = vld [vmem:[#allocation3 + $0x28] sm:$0xff]
        %v3952 = vld [vmem:[#allocation3 + $0x30] sm:$0xff]
        %v3953 = vld [vmem:[#allocation3 + $0x38] sm:$0xff]
        %v3954 = vld [vmem:[#allocation3 + $0x40] sm:$0xff]
        %v3955 = vld [vmem:[#allocation3 + $0x48] sm:$0xff]
        %v3956 = vld [vmem:[#allocation3 + $0x50] sm:$0xff]
        %v3957 = vld [vmem:[#allocation3 + $0x58] sm:$0xff]
        %v3958 = vld [vmem:[#allocation3 + $0x60] sm:$0xff]
        %v3959 = vld [vmem:[#allocation3 + $0x68] sm:$0xff]
        %v3960 = vld [vmem:[#allocation3 + $0x70] sm:$0xff]
        %v3961 = vld [vmem:[#allocation3 + $0x78] sm:$0xff]
        %v3962 = vld [vmem:[#allocation3 + $0x80] sm:$0xff]
        %v3963 = vld [vmem:[#allocation3 + $0x88] sm:$0xff]
        %v3964 = vld [vmem:[#allocation3 + $0x90] sm:$0xff]
        %v3965 = vld [vmem:[#allocation3 + $0x98] sm:$0xff]
        %v3966 = vld [vmem:[#allocation3 + $0xa0] sm:$0xff]
        %v3967 = vld [vmem:[#allocation3 + $0xa8] sm:$0xff]
        %v3968 = vld [vmem:[#allocation3 + $0xb0] sm:$0xff]
        %v3969 = vld [vmem:[#allocation3 + $0xb8] sm:$0xff]
        %v3970 = vld [vmem:[#allocation3 + $0xc0] sm:$0xff]
        %v3971 = vld [vmem:[#allocation3 + $0xc8] sm:$0xff]
        %v3972 = vld [vmem:[#allocation3 + $0xd0] sm:$0xff]
        %v3973 = vld [vmem:[#allocation3 + $0xd8] sm:$0xff]
        %v3974 = vld [vmem:[#allocation3 + $0xe0] sm:$0xff]
        %v3975 = vld [vmem:[#allocation3 + $0xe8] sm:$0xff]
        %v3976 = vld [vmem:[#allocation3 + $0xf0] sm:$0xff]
        %v3977 = vld [vmem:[#allocation3 + $0xf8] sm:$0xff]
        %s3978 = scalar_lea.vmem [#allocation7], 8
        %v3979 = vld [vmem:[%s3978] sm:$0x3]
        %v3980 = vunpack.c.l.b16 %v3575
        %v3981 = vunpack.c.l.b16 %v3585
        %v3982 = vunpack.c.l.b16 %v3599
        %v3983 = vunpack.c.l.b16 %v3609
        %v3984 = vunpack.c.l.b16 %v3623
        %v3985 = vunpack.c.l.b16 %v3633
        %v3986 = vunpack.c.l.b16 %v3647
        %v3987 = vunpack.c.l.b16 %v3657
        %v3988 = vunpack.c.l.b16 %v3671
        %v3989 = vunpack.c.l.b16 %v3681
        %v3990 = vunpack.c.l.b16 %v3695
        %v3991 = vunpack.c.l.b16 %v3705
        %v3992 = vunpack.c.l.b16 %v3719
        %v3993 = vunpack.c.l.b16 %v3729
        %v3994 = vunpack.c.l.b16 %v3743
        %v3995 = vunpack.c.l.b16 %v3753
        %v3996 = vunpack.c.l.b16 %v3767
        %v3997 = vunpack.c.l.b16 %v3777
        %v3998 = vunpack.c.l.b16 %v3791
        %v3999 = vunpack.c.l.b16 %v3801
        %v4000 = vunpack.c.l.b16 %v3815
        %v4001 = vunpack.c.l.b16 %v3825
        %v4002 = vunpack.c.l.b16 %v3839
        %v4003 = vunpack.c.l.b16 %v3849
        %v4004 = vunpack.c.l.b16 %v3863
        %v4005 = vunpack.c.l.b16 %v3873
        %v4006 = vunpack.c.l.b16 %v3887
        %v4007 = vunpack.c.l.b16 %v3897
        %v4008 = vunpack.c.l.b16 %v3911
        %v4009 = vunpack.c.l.b16 %v3921
        %v4010 = vunpack.c.l.b16 %v3935
        %v4011 = vunpack.c.l.b16 %v3945
        %v4012 = vpack.c.b16 %v3981, %v3980
        %v4013 = vpack.c.b16 %v3983, %v3982
        %v4014 = vpack.c.b16 %v3985, %v3984
        %v4015 = vpack.c.b16 %v3987, %v3986
        %v4016 = vpack.c.b16 %v3989, %v3988
        %v4017 = vpack.c.b16 %v3991, %v3990
        %v4018 = vpack.c.b16 %v3993, %v3992
        %v4019 = vpack.c.b16 %v3995, %v3994
        %v4020 = vpack.c.b16 %v3997, %v3996
        %v4021 = vpack.c.b16 %v3999, %v3998
        %v4022 = vpack.c.b16 %v4001, %v4000
        %v4023 = vpack.c.b16 %v4003, %v4002
        %v4024 = vpack.c.b16 %v4005, %v4004
        %v4025 = vpack.c.b16 %v4007, %v4006
        %v4026 = vpack.c.b16 %v4009, %v4008
        %v4027 = vpack.c.b16 %v4011, %v4010
        %v4029 = vsel %vm1275, %v4012, 0
        %v4032 = vsel %vm1275, %v4013, 0
        %v4035 = vsel %vm1275, %v4014, 0
        %v4038 = vsel %vm1275, %v4015, 0
        %v4041 = vsel %vm1275, %v4016, 0
        %v4044 = vsel %vm1275, %v4017, 0
        %v4047 = vsel %vm1275, %v4018, 0
        %v4050 = vsel %vm1275, %v4019, 0
        %v4053 = vsel %vm1275, %v4020, 0
        %v4056 = vsel %vm1275, %v4021, 0
        %v4059 = vsel %vm1275, %v4022, 0
        %v4062 = vsel %vm1275, %v4023, 0
        %v4065 = vsel %vm1275, %v4024, 0
        %v4068 = vsel %vm1275, %v4025, 0
        %v4071 = vsel %vm1275, %v4026, 0
        %v4074 = vsel %vm1275, %v4027, 0
        %v4077 = vsel %vm1501, %v3979, 0
        %4079 = vmatprep.subr.bf16.mxu0 0
        %4080 = vmatpush1.bf16.msra.mxu0 %v4077
        %4081 = vmatprep.subr.bf16.mxu0 0
        %4082 = vmatpush1.bf16.msra.mxu0 0
        %4083 = vmatprep.subr.bf16.mxu0 0
        %4084 = vmatpush1.bf16.msra.mxu0 0
        %4085 = vmatprep.subr.bf16.mxu0 0
        %4086 = vmatpush1.bf16.msra.mxu0 0
        %4087 = vmatprep.subr.bf16.mxu0 0
        %4088 = vmatpush1.bf16.msra.mxu0 0
        %4089 = vmatprep.subr.bf16.mxu0 0
        %4090 = vmatpush1.bf16.msra.mxu0 0
        %4091 = vmatprep.subr.bf16.mxu0 0
        %4092 = vmatpush1.bf16.msra.mxu0 0
        %4093 = vmatprep.subr.bf16.mxu0 0
        %4094 = vmatpush1.bf16.msra.mxu0 0
        %4095 = vmatprep.subr.bf16.mxu0 0
        %4096 = vmatpush1.bf16.msra.mxu0 0
        %4097 = vmatprep.subr.bf16.mxu0 0
        %4098 = vmatpush1.bf16.msra.mxu0 0
        %4099 = vmatprep.subr.bf16.mxu0 0
        %4100 = vmatpush1.bf16.msra.mxu0 0
        %4101 = vmatprep.subr.bf16.mxu0 0
        %4102 = vmatpush1.bf16.msra.mxu0 0
        %4103 = vmatprep.subr.bf16.mxu0 0
        %4104 = vmatpush1.bf16.msra.mxu0 0
        %4105 = vmatprep.subr.bf16.mxu0 0
        %4106 = vmatpush1.bf16.msra.mxu0 0
        %4107 = vmatprep.subr.bf16.mxu0 0
        %4108 = vmatpush1.bf16.msra.mxu0 0
        %4109 = vmatprep.subr.bf16.mxu0 0
        %4110 = vmatpush1.bf16.msra.mxu0 0
        %4111 = vmatprep.mubr.bf16.mxu0 0
        %4112 = vmatmul.mubr.bf16.gmra.mrb[0].mxu0 %v4029
        %v4113 = vpop.f32.mrb[0].mxu0
        %v4114 = vadd.f32 0.0, %v4113
        %v4115 = vpop.f32.mrb[0].mxu0
        %v4116 = vpop.f32.mrb[0].mxu0
        %v4117 = vadd.f32 0.0, %v4116
        %v4118 = vpop.f32.mrb[0].mxu0
        %4119 = vmatprep.mubr.bf16.mxu0 0
        %4120 = vmatmul.mubr.bf16.gmra.mrb[0].mxu0 %v4032
        %v4121 = vpop.f32.mrb[0].mxu0
        %v4122 = vadd.f32 0.0, %v4121
        %v4123 = vpop.f32.mrb[0].mxu0
        %v4124 = vpop.f32.mrb[0].mxu0
        %v4125 = vadd.f32 0.0, %v4124
        %v4126 = vpop.f32.mrb[0].mxu0
        %4127 = vmatprep.mubr.bf16.mxu0 0
        %4128 = vmatmul.mubr.bf16.gmra.mrb[0].mxu0 %v4035
        %v4129 = vpop.f32.mrb[0].mxu0
        %v4130 = vadd.f32 0.0, %v4129
        %v4131 = vpop.f32.mrb[0].mxu0
        %v4132 = vpop.f32.mrb[0].mxu0
        %v4133 = vadd.f32 0.0, %v4132
        %v4134 = vpop.f32.mrb[0].mxu0
        %4135 = vmatprep.mubr.bf16.mxu0 0
        %4136 = vmatmul.mubr.bf16.gmra.mrb[0].mxu0 %v4038
        %v4137 = vpop.f32.mrb[0].mxu0
        %v4138 = vadd.f32 0.0, %v4137
        %v4139 = vpop.f32.mrb[0].mxu0
        %v4140 = vpop.f32.mrb[0].mxu0
        %v4141 = vadd.f32 0.0, %v4140
        %v4142 = vpop.f32.mrb[0].mxu0
        %4143 = vmatprep.mubr.bf16.mxu0 0
        %4144 = vmatmul.mubr.bf16.gmra.mrb[0].mxu0 %v4041
        %v4145 = vpop.f32.mrb[0].mxu0
        %v4146 = vadd.f32 0.0, %v4145
        %v4147 = vpop.f32.mrb[0].mxu0
        %v4148 = vpop.f32.mrb[0].mxu0
        %v4149 = vadd.f32 0.0, %v4148
        %v4150 = vpop.f32.mrb[0].mxu0
        %4151 = vmatprep.mubr.bf16.mxu0 0
        %4152 = vmatmul.mubr.bf16.gmra.mrb[0].mxu0 %v4044
        %v4153 = vpop.f32.mrb[0].mxu0
        %v4154 = vadd.f32 0.0, %v4153
        %v4155 = vpop.f32.mrb[0].mxu0
        %v4156 = vpop.f32.mrb[0].mxu0
        %v4157 = vadd.f32 0.0, %v4156
        %v4158 = vpop.f32.mrb[0].mxu0
        %4159 = vmatprep.mubr.bf16.mxu0 0
        %4160 = vmatmul.mubr.bf16.gmra.mrb[0].mxu0 %v4047
        %v4161 = vpop.f32.mrb[0].mxu0
        %v4162 = vadd.f32 0.0, %v4161
        %v4163 = vpop.f32.mrb[0].mxu0
        %v4164 = vpop.f32.mrb[0].mxu0
        %v4165 = vadd.f32 0.0, %v4164
        %v4166 = vpop.f32.mrb[0].mxu0
        %4167 = vmatprep.mubr.bf16.mxu0 0
        %4168 = vmatmul.mubr.bf16.gmra.mrb[0].mxu0 %v4050
        %v4169 = vpop.f32.mrb[0].mxu0
        %v4170 = vadd.f32 0.0, %v4169
        %v4171 = vpop.f32.mrb[0].mxu0
        %v4172 = vpop.f32.mrb[0].mxu0
        %v4173 = vadd.f32 0.0, %v4172
        %v4174 = vpop.f32.mrb[0].mxu0
        %4175 = vmatprep.mubr.bf16.mxu0 0
        %4176 = vmatmul.mubr.bf16.gmra.mrb[0].mxu0 %v4053
        %v4177 = vpop.f32.mrb[0].mxu0
        %v4178 = vadd.f32 0.0, %v4177
        %v4179 = vpop.f32.mrb[0].mxu0
        %v4180 = vpop.f32.mrb[0].mxu0
        %v4181 = vadd.f32 0.0, %v4180
        %v4182 = vpop.f32.mrb[0].mxu0
        %4183 = vmatprep.mubr.bf16.mxu0 0
        %4184 = vmatmul.mubr.bf16.gmra.mrb[0].mxu0 %v4056
        %v4185 = vpop.f32.mrb[0].mxu0
        %v4186 = vadd.f32 0.0, %v4185
        %v4187 = vpop.f32.mrb[0].mxu0
        %v4188 = vpop.f32.mrb[0].mxu0
        %v4189 = vadd.f32 0.0, %v4188
        %v4190 = vpop.f32.mrb[0].mxu0
        %4191 = vmatprep.mubr.bf16.mxu0 0
        %4192 = vmatmul.mubr.bf16.gmra.mrb[0].mxu0 %v4059
        %v4193 = vpop.f32.mrb[0].mxu0
        %v4194 = vadd.f32 0.0, %v4193
        %v4195 = vpop.f32.mrb[0].mxu0
        %v4196 = vpop.f32.mrb[0].mxu0
        %v4197 = vadd.f32 0.0, %v4196
        %v4198 = vpop.f32.mrb[0].mxu0
        %4199 = vmatprep.mubr.bf16.mxu0 0
        %4200 = vmatmul.mubr.bf16.gmra.mrb[0].mxu0 %v4062
        %v4201 = vpop.f32.mrb[0].mxu0
        %v4202 = vadd.f32 0.0, %v4201
        %v4203 = vpop.f32.mrb[0].mxu0
        %v4204 = vpop.f32.mrb[0].mxu0
        %v4205 = vadd.f32 0.0, %v4204
        %v4206 = vpop.f32.mrb[0].mxu0
        %4207 = vmatprep.mubr.bf16.mxu0 0
        %4208 = vmatmul.mubr.bf16.gmra.mrb[0].mxu0 %v4065
        %v4209 = vpop.f32.mrb[0].mxu0
        %v4210 = vadd.f32 0.0, %v4209
        %v4211 = vpop.f32.mrb[0].mxu0
        %v4212 = vpop.f32.mrb[0].mxu0
        %v4213 = vadd.f32 0.0, %v4212
        %v4214 = vpop.f32.mrb[0].mxu0
        %4215 = vmatprep.mubr.bf16.mxu0 0
        %4216 = vmatmul.mubr.bf16.gmra.mrb[0].mxu0 %v4068
        %v4217 = vpop.f32.mrb[0].mxu0
        %v4218 = vadd.f32 0.0, %v4217
        %v4219 = vpop.f32.mrb[0].mxu0
        %v4220 = vpop.f32.mrb[0].mxu0
        %v4221 = vadd.f32 0.0, %v4220
        %v4222 = vpop.f32.mrb[0].mxu0
        %4223 = vmatprep.mubr.bf16.mxu0 0
        %4224 = vmatmul.mubr.bf16.gmra.mrb[0].mxu0 %v4071
        %v4225 = vpop.f32.mrb[0].mxu0
        %v4226 = vadd.f32 0.0, %v4225
        %v4227 = vpop.f32.mrb[0].mxu0
        %v4228 = vpop.f32.mrb[0].mxu0
        %v4229 = vadd.f32 0.0, %v4228
        %v4230 = vpop.f32.mrb[0].mxu0
        %4231 = vmatprep.mubr.bf16.mxu0 0
        %4232 = vmatmul.mubr.bf16.gmra.mrb[0].mxu0 %v4074
        %v4233 = vpop.f32.mrb[0].mxu0
        %v4234 = vadd.f32 0.0, %v4233
        %v4235 = vpop.f32.mrb[0].mxu0
        %v4236 = vpop.f32.mrb[0].mxu0
        %v4237 = vadd.f32 0.0, %v4236
        %v4238 = vpop.f32.mrb[0].mxu0
        %4239 = vdwg.mxu0
        %v4240 = vadd.f32 %v3946, %v4114
        %v4241 = vadd.f32 %v3947, %v4117
        %v4242 = vadd.f32 %v3948, %v4122
        %v4243 = vadd.f32 %v3949, %v4125
        %v4244 = vadd.f32 %v3950, %v4130
        %v4245 = vadd.f32 %v3951, %v4133
        %v4246 = vadd.f32 %v3952, %v4138
        %v4247 = vadd.f32 %v3953, %v4141
        %v4248 = vadd.f32 %v3954, %v4146
        %v4249 = vadd.f32 %v3955, %v4149
        %v4250 = vadd.f32 %v3956, %v4154
        %v4251 = vadd.f32 %v3957, %v4157
        %v4252 = vadd.f32 %v3958, %v4162
        %v4253 = vadd.f32 %v3959, %v4165
        %v4254 = vadd.f32 %v3960, %v4170
        %v4255 = vadd.f32 %v3961, %v4173
        %v4256 = vadd.f32 %v3962, %v4178
        %v4257 = vadd.f32 %v3963, %v4181
        %v4258 = vadd.f32 %v3964, %v4186
        %v4259 = vadd.f32 %v3965, %v4189
        %v4260 = vadd.f32 %v3966, %v4194
        %v4261 = vadd.f32 %v3967, %v4197
        %v4262 = vadd.f32 %v3968, %v4202
        %v4263 = vadd.f32 %v3969, %v4205
        %v4264 = vadd.f32 %v3970, %v4210
        %v4265 = vadd.f32 %v3971, %v4213
        %v4266 = vadd.f32 %v3972, %v4218
        %v4267 = vadd.f32 %v3973, %v4221
        %v4268 = vadd.f32 %v3974, %v4226
        %v4269 = vadd.f32 %v3975, %v4229
        %v4270 = vadd.f32 %v3976, %v4234
        %v4271 = vadd.f32 %v3977, %v4237
        %4272 = vst.msk [vmem:[#allocation3] sm:$0xff] %vm1275, %v4240
        %4273 = vst.msk [vmem:[#allocation3 + $0x8] sm:$0xff] %vm1275, %v4241
        %4274 = vst.msk [vmem:[#allocation3 + $0x10] sm:$0xff] %vm1275, %v4242
        %4275 = vst.msk [vmem:[#allocation3 + $0x18] sm:$0xff] %vm1275, %v4243
        %4276 = vst.msk [vmem:[#allocation3 + $0x20] sm:$0xff] %vm1275, %v4244
        %4277 = vst.msk [vmem:[#allocation3 + $0x28] sm:$0xff] %vm1275, %v4245
        %4278 = vst.msk [vmem:[#allocation3 + $0x30] sm:$0xff] %vm1275, %v4246
        %4279 = vst.msk [vmem:[#allocation3 + $0x38] sm:$0xff] %vm1275, %v4247
        %4280 = vst.msk [vmem:[#allocation3 + $0x40] sm:$0xff] %vm1275, %v4248
        %4281 = vst.msk [vmem:[#allocation3 + $0x48] sm:$0xff] %vm1275, %v4249
        %4282 = vst.msk [vmem:[#allocation3 + $0x50] sm:$0xff] %vm1275, %v4250
        %4283 = vst.msk [vmem:[#allocation3 + $0x58] sm:$0xff] %vm1275, %v4251
        %4284 = vst.msk [vmem:[#allocation3 + $0x60] sm:$0xff] %vm1275, %v4252
        %4285 = vst.msk [vmem:[#allocation3 + $0x68] sm:$0xff] %vm1275, %v4253
        %4286 = vst.msk [vmem:[#allocation3 + $0x70] sm:$0xff] %vm1275, %v4254
        %4287 = vst.msk [vmem:[#allocation3 + $0x78] sm:$0xff] %vm1275, %v4255
        %4288 = vst.msk [vmem:[#allocation3 + $0x80] sm:$0xff] %vm1275, %v4256
        %4289 = vst.msk [vmem:[#allocation3 + $0x88] sm:$0xff] %vm1275, %v4257
        %4290 = vst.msk [vmem:[#allocation3 + $0x90] sm:$0xff] %vm1275, %v4258
        %4291 = vst.msk [vmem:[#allocation3 + $0x98] sm:$0xff] %vm1275, %v4259
        %4292 = vst.msk [vmem:[#allocation3 + $0xa0] sm:$0xff] %vm1275, %v4260
        %4293 = vst.msk [vmem:[#allocation3 + $0xa8] sm:$0xff] %vm1275, %v4261
        %4294 = vst.msk [vmem:[#allocation3 + $0xb0] sm:$0xff] %vm1275, %v4262
        %4295 = vst.msk [vmem:[#allocation3 + $0xb8] sm:$0xff] %vm1275, %v4263
        %4296 = vst.msk [vmem:[#allocation3 + $0xc0] sm:$0xff] %vm1275, %v4264
        %4297 = vst.msk [vmem:[#allocation3 + $0xc8] sm:$0xff] %vm1275, %v4265
        %4298 = vst.msk [vmem:[#allocation3 + $0xd0] sm:$0xff] %vm1275, %v4266
        %4299 = vst.msk [vmem:[#allocation3 + $0xd8] sm:$0xff] %vm1275, %v4267
        %4300 = vst.msk [vmem:[#allocation3 + $0xe0] sm:$0xff] %vm1275, %v4268
        %4301 = vst.msk [vmem:[#allocation3 + $0xe8] sm:$0xff] %vm1275, %v4269
        %4302 = vst.msk [vmem:[#allocation3 + $0xf0] sm:$0xff] %vm1275, %v4270
        %4303 = vst.msk [vmem:[#allocation3 + $0xf8] sm:$0xff] %vm1275, %v4271
        %v4304 = vld [vmem:[%s1157] sm:$0xe]
        %v4305 = vld [vmem:[%s1157 + $0x4] sm:$0xf]
        %v4306 = vld [vmem:[%s1157 + $0x8] sm:$0x1]
        %v4307 = vld [vmem:[%s1157 + $0xc] sm:$0xe]
        %v4308 = vld [vmem:[%s1157 + $0x10] sm:$0xf]
        %v4309 = vld [vmem:[%s1157 + $0x14] sm:$0x1]
        %v4310 = vld [vmem:[%s1157 + $0x18] sm:$0xe]
        %v4311 = vld [vmem:[%s1157 + $0x1c] sm:$0xf]
        %v4312 = vld [vmem:[%s1157 + $0x20] sm:$0x1]
        %v4313 = vld [vmem:[%s1157 + $0x24] sm:$0xe]
        %v4314 = vld [vmem:[%s1157 + $0x28] sm:$0xf]
        %v4315 = vld [vmem:[%s1157 + $0x2c] sm:$0x1]
        %v4316 = vld [vmem:[%s1157 + $0x30] sm:$0xe]
        %v4317 = vld [vmem:[%s1157 + $0x34] sm:$0xf]
        %v4318 = vld [vmem:[%s1157 + $0x38] sm:$0x1]
        %v4319 = vld [vmem:[%s1157 + $0x3c] sm:$0xe]
        %v4320 = vld [vmem:[%s1157 + $0x40] sm:$0xf]
        %v4321 = vld [vmem:[%s1157 + $0x44] sm:$0x1]
        %v4322 = vld [vmem:[%s1157 + $0x48] sm:$0xe]
        %v4323 = vld [vmem:[%s1157 + $0x4c] sm:$0xf]
        %v4324 = vld [vmem:[%s1157 + $0x50] sm:$0x1]
        %v4325 = vld [vmem:[%s1157 + $0x54] sm:$0xe]
        %v4326 = vld [vmem:[%s1157 + $0x58] sm:$0xf]
        %v4327 = vld [vmem:[%s1157 + $0x5c] sm:$0x1]
        %v4328 = vld [vmem:[%s1157 + $0x60] sm:$0xe]
        %v4329 = vld [vmem:[%s1157 + $0x64] sm:$0xf]
        %v4330 = vld [vmem:[%s1157 + $0x68] sm:$0x1]
        %v4331 = vld [vmem:[%s1157 + $0x6c] sm:$0xe]
        %v4332 = vld [vmem:[%s1157 + $0x70] sm:$0xf]
        %v4333 = vld [vmem:[%s1157 + $0x74] sm:$0x1]
        %v4334 = vld [vmem:[%s1157 + $0x78] sm:$0xe]
        %v4335 = vld [vmem:[%s1157 + $0x7c] sm:$0xf]
        %v4336 = vld [vmem:[%s1157 + $0x80] sm:$0x1]
        %v4337 = vld [vmem:[%s1157 + $0x84] sm:$0xe]
        %v4338 = vld [vmem:[%s1157 + $0x88] sm:$0xf]
        %v4339 = vld [vmem:[%s1157 + $0x8c] sm:$0x1]
        %v4340 = vld [vmem:[%s1157 + $0x90] sm:$0xe]
        %v4341 = vld [vmem:[%s1157 + $0x94] sm:$0xf]
        %v4342 = vld [vmem:[%s1157 + $0x98] sm:$0x1]
        %v4343 = vld [vmem:[%s1157 + $0x9c] sm:$0xe]
        %v4344 = vld [vmem:[%s1157 + $0xa0] sm:$0xf]
        %v4345 = vld [vmem:[%s1157 + $0xa4] sm:$0x1]
        %v4346 = vld [vmem:[%s1157 + $0xa8] sm:$0xe]
        %v4347 = vld [vmem:[%s1157 + $0xac] sm:$0xf]
        %v4348 = vld [vmem:[%s1157 + $0xb0] sm:$0x1]
        %v4349 = vld [vmem:[%s1157 + $0xb4] sm:$0xe]
        %v4350 = vld [vmem:[%s1157 + $0xb8] sm:$0xf]
        %v4351 = vld [vmem:[%s1157 + $0xbc] sm:$0x1]
        %v4400 = vrot.slane %v4304, 5
        %v4401 = vrot.slane %v4400, 4
        %v4402 = vrot.slane %v4305, 5
        %v4403 = vsel %vm2621, %v4401, %v4402
        %v4404 = vrot.slane %v4402, 4
        %v4405 = vrot.slane %v4306, 5
        %v4406 = vsel %vm2621, %v4404, %v4405
        %v4407 = vrot.slane %v4307, 5
        %v4408 = vrot.slane %v4407, 4
        %v4409 = vrot.slane %v4308, 5
        %v4410 = vsel %vm2621, %v4408, %v4409
        %v4411 = vrot.slane %v4409, 4
        %v4412 = vrot.slane %v4309, 5
        %v4413 = vsel %vm2621, %v4411, %v4412
        %v4414 = vrot.slane %v4310, 5
        %v4415 = vrot.slane %v4414, 4
        %v4416 = vrot.slane %v4311, 5
        %v4417 = vsel %vm2621, %v4415, %v4416
        %v4418 = vrot.slane %v4416, 4
        %v4419 = vrot.slane %v4312, 5
        %v4420 = vsel %vm2621, %v4418, %v4419
        %v4421 = vrot.slane %v4313, 5
        %v4422 = vrot.slane %v4421, 4
        %v4423 = vrot.slane %v4314, 5
        %v4424 = vsel %vm2621, %v4422, %v4423
        %v4425 = vrot.slane %v4423, 4
        %v4426 = vrot.slane %v4315, 5
        %v4427 = vsel %vm2621, %v4425, %v4426
        %v4428 = vrot.slane %v4316, 5
        %v4429 = vrot.slane %v4428, 4
        %v4430 = vrot.slane %v4317, 5
        %v4431 = vsel %vm2621, %v4429, %v4430
        %v4432 = vrot.slane %v4430, 4
        %v4433 = vrot.slane %v4318, 5
        %v4434 = vsel %vm2621, %v4432, %v4433
        %v4435 = vrot.slane %v4319, 5
        %v4436 = vrot.slane %v4435, 4
        %v4437 = vrot.slane %v4320, 5
        %v4438 = vsel %vm2621, %v4436, %v4437
        %v4439 = vrot.slane %v4437, 4
        %v4440 = vrot.slane %v4321, 5
        %v4441 = vsel %vm2621, %v4439, %v4440
        %v4442 = vrot.slane %v4322, 5
        %v4443 = vrot.slane %v4442, 4
        %v4444 = vrot.slane %v4323, 5
        %v4445 = vsel %vm2621, %v4443, %v4444
        %v4446 = vrot.slane %v4444, 4
        %v4447 = vrot.slane %v4324, 5
        %v4448 = vsel %vm2621, %v4446, %v4447
        %v4449 = vrot.slane %v4325, 5
        %v4450 = vrot.slane %v4449, 4
        %v4451 = vrot.slane %v4326, 5
        %v4452 = vsel %vm2621, %v4450, %v4451
        %v4453 = vrot.slane %v4451, 4
        %v4454 = vrot.slane %v4327, 5
        %v4455 = vsel %vm2621, %v4453, %v4454
        %v4456 = vrot.slane %v4328, 5
        %v4457 = vrot.slane %v4456, 4
        %v4458 = vrot.slane %v4329, 5
        %v4459 = vsel %vm2621, %v4457, %v4458
        %v4460 = vrot.slane %v4458, 4
        %v4461 = vrot.slane %v4330, 5
        %v4462 = vsel %vm2621, %v4460, %v4461
        %v4463 = vrot.slane %v4331, 5
        %v4464 = vrot.slane %v4463, 4
        %v4465 = vrot.slane %v4332, 5
        %v4466 = vsel %vm2621, %v4464, %v4465
        %v4467 = vrot.slane %v4465, 4
        %v4468 = vrot.slane %v4333, 5
        %v4469 = vsel %vm2621, %v4467, %v4468
        %v4470 = vrot.slane %v4334, 5
        %v4471 = vrot.slane %v4470, 4
        %v4472 = vrot.slane %v4335, 5
        %v4473 = vsel %vm2621, %v4471, %v4472
        %v4474 = vrot.slane %v4472, 4
        %v4475 = vrot.slane %v4336, 5
        %v4476 = vsel %vm2621, %v4474, %v4475
        %v4477 = vrot.slane %v4337, 5
        %v4478 = vrot.slane %v4477, 4
        %v4479 = vrot.slane %v4338, 5
        %v4480 = vsel %vm2621, %v4478, %v4479
        %v4481 = vrot.slane %v4479, 4
        %v4482 = vrot.slane %v4339, 5
        %v4483 = vsel %vm2621, %v4481, %v4482
        %v4484 = vrot.slane %v4340, 5
        %v4485 = vrot.slane %v4484, 4
        %v4486 = vrot.slane %v4341, 5
        %v4487 = vsel %vm2621, %v4485, %v4486
        %v4488 = vrot.slane %v4486, 4
        %v4489 = vrot.slane %v4342, 5
        %v4490 = vsel %vm2621, %v4488, %v4489
        %v4491 = vrot.slane %v4343, 5
        %v4492 = vrot.slane %v4491, 4
        %v4493 = vrot.slane %v4344, 5
        %v4494 = vsel %vm2621, %v4492, %v4493
        %v4495 = vrot.slane %v4493, 4
        %v4496 = vrot.slane %v4345, 5
        %v4497 = vsel %vm2621, %v4495, %v4496
        %v4498 = vrot.slane %v4346, 5
        %v4499 = vrot.slane %v4498, 4
        %v4500 = vrot.slane %v4347, 5
        %v4501 = vsel %vm2621, %v4499, %v4500
        %v4502 = vrot.slane %v4500, 4
        %v4503 = vrot.slane %v4348, 5
        %v4504 = vsel %vm2621, %v4502, %v4503
        %v4505 = vrot.slane %v4349, 5
        %v4506 = vrot.slane %v4505, 4
        %v4507 = vrot.slane %v4350, 5
        %v4508 = vsel %vm2621, %v4506, %v4507
        %v4509 = vrot.slane %v4507, 4
        %v4510 = vrot.slane %v4351, 5
        %v4511 = vsel %vm2621, %v4509, %v4510
        %v4512 = vld [vmem:[#allocation3] sm:$0xff]
        %v4513 = vld [vmem:[#allocation3 + $0x8] sm:$0xff]
        %v4514 = vld [vmem:[#allocation3 + $0x10] sm:$0xff]
        %v4515 = vld [vmem:[#allocation3 + $0x18] sm:$0xff]
        %v4516 = vld [vmem:[#allocation3 + $0x20] sm:$0xff]
        %v4517 = vld [vmem:[#allocation3 + $0x28] sm:$0xff]
        %v4518 = vld [vmem:[#allocation3 + $0x30] sm:$0xff]
        %v4519 = vld [vmem:[#allocation3 + $0x38] sm:$0xff]
        %v4520 = vld [vmem:[#allocation3 + $0x40] sm:$0xff]
        %v4521 = vld [vmem:[#allocation3 + $0x48] sm:$0xff]
        %v4522 = vld [vmem:[#allocation3 + $0x50] sm:$0xff]
        %v4523 = vld [vmem:[#allocation3 + $0x58] sm:$0xff]
        %v4524 = vld [vmem:[#allocation3 + $0x60] sm:$0xff]
        %v4525 = vld [vmem:[#allocation3 + $0x68] sm:$0xff]
        %v4526 = vld [vmem:[#allocation3 + $0x70] sm:$0xff]
        %v4527 = vld [vmem:[#allocation3 + $0x78] sm:$0xff]
        %v4528 = vld [vmem:[#allocation3 + $0x80] sm:$0xff]
        %v4529 = vld [vmem:[#allocation3 + $0x88] sm:$0xff]
        %v4530 = vld [vmem:[#allocation3 + $0x90] sm:$0xff]
        %v4531 = vld [vmem:[#allocation3 + $0x98] sm:$0xff]
        %v4532 = vld [vmem:[#allocation3 + $0xa0] sm:$0xff]
        %v4533 = vld [vmem:[#allocation3 + $0xa8] sm:$0xff]
        %v4534 = vld [vmem:[#allocation3 + $0xb0] sm:$0xff]
        %v4535 = vld [vmem:[#allocation3 + $0xb8] sm:$0xff]
        %v4536 = vld [vmem:[#allocation3 + $0xc0] sm:$0xff]
        %v4537 = vld [vmem:[#allocation3 + $0xc8] sm:$0xff]
        %v4538 = vld [vmem:[#allocation3 + $0xd0] sm:$0xff]
        %v4539 = vld [vmem:[#allocation3 + $0xd8] sm:$0xff]
        %v4540 = vld [vmem:[#allocation3 + $0xe0] sm:$0xff]
        %v4541 = vld [vmem:[#allocation3 + $0xe8] sm:$0xff]
        %v4542 = vld [vmem:[#allocation3 + $0xf0] sm:$0xff]
        %v4543 = vld [vmem:[#allocation3 + $0xf8] sm:$0xff]
        %s4544 = scalar_lea.vmem [#allocation7], 10
        %v4545 = vld [vmem:[%s4544] sm:$0x3]
        %v4546 = vunpack.c.l.b16 %v4403
        %v4547 = vunpack.c.l.b16 %v4406
        %v4548 = vunpack.c.l.b16 %v4410
        %v4549 = vunpack.c.l.b16 %v4413
        %v4550 = vunpack.c.l.b16 %v4417
        %v4551 = vunpack.c.l.b16 %v4420
        %v4552 = vunpack.c.l.b16 %v4424
        %v4553 = vunpack.c.l.b16 %v4427
        %v4554 = vunpack.c.l.b16 %v4431
        %v4555 = vunpack.c.l.b16 %v4434
        %v4556 = vunpack.c.l.b16 %v4438
        %v4557 = vunpack.c.l.b16 %v4441
        %v4558 = vunpack.c.l.b16 %v4445
        %v4559 = vunpack.c.l.b16 %v4448
        %v4560 = vunpack.c.l.b16 %v4452
        %v4561 = vunpack.c.l.b16 %v4455
        %v4562 = vunpack.c.l.b16 %v4459
        %v4563 = vunpack.c.l.b16 %v4462
        %v4564 = vunpack.c.l.b16 %v4466
        %v4565 = vunpack.c.l.b16 %v4469
        %v4566 = vunpack.c.l.b16 %v4473
        %v4567 = vunpack.c.l.b16 %v4476
        %v4568 = vunpack.c.l.b16 %v4480
        %v4569 = vunpack.c.l.b16 %v4483
        %v4570 = vunpack.c.l.b16 %v4487
        %v4571 = vunpack.c.l.b16 %v4490
        %v4572 = vunpack.c.l.b16 %v4494
        %v4573 = vunpack.c.l.b16 %v4497
        %v4574 = vunpack.c.l.b16 %v4501
        %v4575 = vunpack.c.l.b16 %v4504
        %v4576 = vunpack.c.l.b16 %v4508
        %v4577 = vunpack.c.l.b16 %v4511
        %v4578 = vpack.c.b16 %v4547, %v4546
        %v4579 = vpack.c.b16 %v4549, %v4548
        %v4580 = vpack.c.b16 %v4551, %v4550
        %v4581 = vpack.c.b16 %v4553, %v4552
        %v4582 = vpack.c.b16 %v4555, %v4554
        %v4583 = vpack.c.b16 %v4557, %v4556
        %v4584 = vpack.c.b16 %v4559, %v4558
        %v4585 = vpack.c.b16 %v4561, %v4560
        %v4586 = vpack.c.b16 %v4563, %v4562
        %v4587 = vpack.c.b16 %v4565, %v4564
        %v4588 = vpack.c.b16 %v4567, %v4566
        %v4589 = vpack.c.b16 %v4569, %v4568
        %v4590 = vpack.c.b16 %v4571, %v4570
        %v4591 = vpack.c.b16 %v4573, %v4572
        %v4592 = vpack.c.b16 %v4575, %v4574
        %v4593 = vpack.c.b16 %v4577, %v4576
        %v4595 = vsel %vm1275, %v4578, 0
        %v4598 = vsel %vm1275, %v4579, 0
        %v4601 = vsel %vm1275, %v4580, 0
        %v4604 = vsel %vm1275, %v4581, 0
        %v4607 = vsel %vm1275, %v4582, 0
        %v4610 = vsel %vm1275, %v4583, 0
        %v4613 = vsel %vm1275, %v4584, 0
        %v4616 = vsel %vm1275, %v4585, 0
        %v4619 = vsel %vm1275, %v4586, 0
        %v4622 = vsel %vm1275, %v4587, 0
        %v4625 = vsel %vm1275, %v4588, 0
        %v4628 = vsel %vm1275, %v4589, 0
        %v4631 = vsel %vm1275, %v4590, 0
        %v4634 = vsel %vm1275, %v4591, 0
        %v4637 = vsel %vm1275, %v4592, 0
        %v4640 = vsel %vm1275, %v4593, 0
        %v4643 = vsel %vm1501, %v4545, 0
        %4645 = vmatprep.subr.bf16.mxu0 0
        %4646 = vmatpush1.bf16.msra.mxu0 %v4643
        %4647 = vmatprep.subr.bf16.mxu0 0
        %4648 = vmatpush1.bf16.msra.mxu0 0
        %4649 = vmatprep.subr.bf16.mxu0 0
        %4650 = vmatpush1.bf16.msra.mxu0 0
        %4651 = vmatprep.subr.bf16.mxu0 0
        %4652 = vmatpush1.bf16.msra.mxu0 0
        %4653 = vmatprep.subr.bf16.mxu0 0
        %4654 = vmatpush1.bf16.msra.mxu0 0
        %4655 = vmatprep.subr.bf16.mxu0 0
        %4656 = vmatpush1.bf16.msra.mxu0 0
        %4657 = vmatprep.subr.bf16.mxu0 0
        %4658 = vmatpush1.bf16.msra.mxu0 0
        %4659 = vmatprep.subr.bf16.mxu0 0
        %4660 = vmatpush1.bf16.msra.mxu0 0
        %4661 = vmatprep.subr.bf16.mxu0 0
        %4662 = vmatpush1.bf16.msra.mxu0 0
        %4663 = vmatprep.subr.bf16.mxu0 0
        %4664 = vmatpush1.bf16.msra.mxu0 0
        %4665 = vmatprep.subr.bf16.mxu0 0
        %4666 = vmatpush1.bf16.msra.mxu0 0
        %4667 = vmatprep.subr.bf16.mxu0 0
        %4668 = vmatpush1.bf16.msra.mxu0 0
        %4669 = vmatprep.subr.bf16.mxu0 0
        %4670 = vmatpush1.bf16.msra.mxu0 0
        %4671 = vmatprep.subr.bf16.mxu0 0
        %4672 = vmatpush1.bf16.msra.mxu0 0
        %4673 = vmatprep.subr.bf16.mxu0 0
        %4674 = vmatpush1.bf16.msra.mxu0 0
        %4675 = vmatprep.subr.bf16.mxu0 0
        %4676 = vmatpush1.bf16.msra.mxu0 0
        %4677 = vmatprep.mubr.bf16.mxu0 0
        %4678 = vmatmul.mubr.bf16.gmra.mrb[0].mxu0 %v4595
        %v4679 = vpop.f32.mrb[0].mxu0
        %v4680 = vadd.f32 0.0, %v4679
        %v4681 = vpop.f32.mrb[0].mxu0
        %v4682 = vpop.f32.mrb[0].mxu0
        %v4683 = vadd.f32 0.0, %v4682
        %v4684 = vpop.f32.mrb[0].mxu0
        %4685 = vmatprep.mubr.bf16.mxu0 0
        %4686 = vmatmul.mubr.bf16.gmra.mrb[0].mxu0 %v4598
        %v4687 = vpop.f32.mrb[0].mxu0
        %v4688 = vadd.f32 0.0, %v4687
        %v4689 = vpop.f32.mrb[0].mxu0
        %v4690 = vpop.f32.mrb[0].mxu0
        %v4691 = vadd.f32 0.0, %v4690
        %v4692 = vpop.f32.mrb[0].mxu0
        %4693 = vmatprep.mubr.bf16.mxu0 0
        %4694 = vmatmul.mubr.bf16.gmra.mrb[0].mxu0 %v4601
        %v4695 = vpop.f32.mrb[0].mxu0
        %v4696 = vadd.f32 0.0, %v4695
        %v4697 = vpop.f32.mrb[0].mxu0
        %v4698 = vpop.f32.mrb[0].mxu0
        %v4699 = vadd.f32 0.0, %v4698
        %v4700 = vpop.f32.mrb[0].mxu0
        %4701 = vmatprep.mubr.bf16.mxu0 0
        %4702 = vmatmul.mubr.bf16.gmra.mrb[0].mxu0 %v4604
        %v4703 = vpop.f32.mrb[0].mxu0
        %v4704 = vadd.f32 0.0, %v4703
        %v4705 = vpop.f32.mrb[0].mxu0
        %v4706 = vpop.f32.mrb[0].mxu0
        %v4707 = vadd.f32 0.0, %v4706
        %v4708 = vpop.f32.mrb[0].mxu0
        %4709 = vmatprep.mubr.bf16.mxu0 0
        %4710 = vmatmul.mubr.bf16.gmra.mrb[0].mxu0 %v4607
        %v4711 = vpop.f32.mrb[0].mxu0
        %v4712 = vadd.f32 0.0, %v4711
        %v4713 = vpop.f32.mrb[0].mxu0
        %v4714 = vpop.f32.mrb[0].mxu0
        %v4715 = vadd.f32 0.0, %v4714
        %v4716 = vpop.f32.mrb[0].mxu0
        %4717 = vmatprep.mubr.bf16.mxu0 0
        %4718 = vmatmul.mubr.bf16.gmra.mrb[0].mxu0 %v4610
        %v4719 = vpop.f32.mrb[0].mxu0
        %v4720 = vadd.f32 0.0, %v4719
        %v4721 = vpop.f32.mrb[0].mxu0
        %v4722 = vpop.f32.mrb[0].mxu0
        %v4723 = vadd.f32 0.0, %v4722
        %v4724 = vpop.f32.mrb[0].mxu0
        %4725 = vmatprep.mubr.bf16.mxu0 0
        %4726 = vmatmul.mubr.bf16.gmra.mrb[0].mxu0 %v4613
        %v4727 = vpop.f32.mrb[0].mxu0
        %v4728 = vadd.f32 0.0, %v4727
        %v4729 = vpop.f32.mrb[0].mxu0
        %v4730 = vpop.f32.mrb[0].mxu0
        %v4731 = vadd.f32 0.0, %v4730
        %v4732 = vpop.f32.mrb[0].mxu0
        %4733 = vmatprep.mubr.bf16.mxu0 0
        %4734 = vmatmul.mubr.bf16.gmra.mrb[0].mxu0 %v4616
        %v4735 = vpop.f32.mrb[0].mxu0
        %v4736 = vadd.f32 0.0, %v4735
        %v4737 = vpop.f32.mrb[0].mxu0
        %v4738 = vpop.f32.mrb[0].mxu0
        %v4739 = vadd.f32 0.0, %v4738
        %v4740 = vpop.f32.mrb[0].mxu0
        %4741 = vmatprep.mubr.bf16.mxu0 0
        %4742 = vmatmul.mubr.bf16.gmra.mrb[0].mxu0 %v4619
        %v4743 = vpop.f32.mrb[0].mxu0
        %v4744 = vadd.f32 0.0, %v4743
        %v4745 = vpop.f32.mrb[0].mxu0
        %v4746 = vpop.f32.mrb[0].mxu0
        %v4747 = vadd.f32 0.0, %v4746
        %v4748 = vpop.f32.mrb[0].mxu0
        %4749 = vmatprep.mubr.bf16.mxu0 0
        %4750 = vmatmul.mubr.bf16.gmra.mrb[0].mxu0 %v4622
        %v4751 = vpop.f32.mrb[0].mxu0
        %v4752 = vadd.f32 0.0, %v4751
        %v4753 = vpop.f32.mrb[0].mxu0
        %v4754 = vpop.f32.mrb[0].mxu0
        %v4755 = vadd.f32 0.0, %v4754
        %v4756 = vpop.f32.mrb[0].mxu0
        %4757 = vmatprep.mubr.bf16.mxu0 0
        %4758 = vmatmul.mubr.bf16.gmra.mrb[0].mxu0 %v4625
        %v4759 = vpop.f32.mrb[0].mxu0
        %v4760 = vadd.f32 0.0, %v4759
        %v4761 = vpop.f32.mrb[0].mxu0
        %v4762 = vpop.f32.mrb[0].mxu0
        %v4763 = vadd.f32 0.0, %v4762
        %v4764 = vpop.f32.mrb[0].mxu0
        %4765 = vmatprep.mubr.bf16.mxu0 0
        %4766 = vmatmul.mubr.bf16.gmra.mrb[0].mxu0 %v4628
        %v4767 = vpop.f32.mrb[0].mxu0
        %v4768 = vadd.f32 0.0, %v4767
        %v4769 = vpop.f32.mrb[0].mxu0
        %v4770 = vpop.f32.mrb[0].mxu0
        %v4771 = vadd.f32 0.0, %v4770
        %v4772 = vpop.f32.mrb[0].mxu0
        %4773 = vmatprep.mubr.bf16.mxu0 0
        %4774 = vmatmul.mubr.bf16.gmra.mrb[0].mxu0 %v4631
        %v4775 = vpop.f32.mrb[0].mxu0
        %v4776 = vadd.f32 0.0, %v4775
        %v4777 = vpop.f32.mrb[0].mxu0
        %v4778 = vpop.f32.mrb[0].mxu0
        %v4779 = vadd.f32 0.0, %v4778
        %v4780 = vpop.f32.mrb[0].mxu0
        %4781 = vmatprep.mubr.bf16.mxu0 0
        %4782 = vmatmul.mubr.bf16.gmra.mrb[0].mxu0 %v4634
        %v4783 = vpop.f32.mrb[0].mxu0
        %v4784 = vadd.f32 0.0, %v4783
        %v4785 = vpop.f32.mrb[0].mxu0
        %v4786 = vpop.f32.mrb[0].mxu0
        %v4787 = vadd.f32 0.0, %v4786
        %v4788 = vpop.f32.mrb[0].mxu0
        %4789 = vmatprep.mubr.bf16.mxu0 0
        %4790 = vmatmul.mubr.bf16.gmra.mrb[0].mxu0 %v4637
        %v4791 = vpop.f32.mrb[0].mxu0
        %v4792 = vadd.f32 0.0, %v4791
        %v4793 = vpop.f32.mrb[0].mxu0
        %v4794 = vpop.f32.mrb[0].mxu0
        %v4795 = vadd.f32 0.0, %v4794
        %v4796 = vpop.f32.mrb[0].mxu0
        %4797 = vmatprep.mubr.bf16.mxu0 0
        %4798 = vmatmul.mubr.bf16.gmra.mrb[0].mxu0 %v4640
        %v4799 = vpop.f32.mrb[0].mxu0
        %v4800 = vadd.f32 0.0, %v4799
        %v4801 = vpop.f32.mrb[0].mxu0
        %v4802 = vpop.f32.mrb[0].mxu0
        %v4803 = vadd.f32 0.0, %v4802
        %v4804 = vpop.f32.mrb[0].mxu0
        %4805 = vdwg.mxu0
        %v4806 = vadd.f32 %v4512, %v4680
        %v4807 = vadd.f32 %v4513, %v4683
        %v4808 = vadd.f32 %v4514, %v4688
        %v4809 = vadd.f32 %v4515, %v4691
        %v4810 = vadd.f32 %v4516, %v4696
        %v4811 = vadd.f32 %v4517, %v4699
        %v4812 = vadd.f32 %v4518, %v4704
        %v4813 = vadd.f32 %v4519, %v4707
        %v4814 = vadd.f32 %v4520, %v4712
        %v4815 = vadd.f32 %v4521, %v4715
        %v4816 = vadd.f32 %v4522, %v4720
        %v4817 = vadd.f32 %v4523, %v4723
        %v4818 = vadd.f32 %v4524, %v4728
        %v4819 = vadd.f32 %v4525, %v4731
        %v4820 = vadd.f32 %v4526, %v4736
        %v4821 = vadd.f32 %v4527, %v4739
        %v4822 = vadd.f32 %v4528, %v4744
        %v4823 = vadd.f32 %v4529, %v4747
        %v4824 = vadd.f32 %v4530, %v4752
        %v4825 = vadd.f32 %v4531, %v4755
        %v4826 = vadd.f32 %v4532, %v4760
        %v4827 = vadd.f32 %v4533, %v4763
        %v4828 = vadd.f32 %v4534, %v4768
        %v4829 = vadd.f32 %v4535, %v4771
        %v4830 = vadd.f32 %v4536, %v4776
        %v4831 = vadd.f32 %v4537, %v4779
        %v4832 = vadd.f32 %v4538, %v4784
        %v4833 = vadd.f32 %v4539, %v4787
        %v4834 = vadd.f32 %v4540, %v4792
        %v4835 = vadd.f32 %v4541, %v4795
        %v4836 = vadd.f32 %v4542, %v4800
        %v4837 = vadd.f32 %v4543, %v4803
        %4838 = vst.msk [vmem:[#allocation3] sm:$0xff] %vm1275, %v4806
        %4839 = vst.msk [vmem:[#allocation3 + $0x8] sm:$0xff] %vm1275, %v4807
        %4840 = vst.msk [vmem:[#allocation3 + $0x10] sm:$0xff] %vm1275, %v4808
        %4841 = vst.msk [vmem:[#allocation3 + $0x18] sm:$0xff] %vm1275, %v4809
        %4842 = vst.msk [vmem:[#allocation3 + $0x20] sm:$0xff] %vm1275, %v4810
        %4843 = vst.msk [vmem:[#allocation3 + $0x28] sm:$0xff] %vm1275, %v4811
        %4844 = vst.msk [vmem:[#allocation3 + $0x30] sm:$0xff] %vm1275, %v4812
        %4845 = vst.msk [vmem:[#allocation3 + $0x38] sm:$0xff] %vm1275, %v4813
        %4846 = vst.msk [vmem:[#allocation3 + $0x40] sm:$0xff] %vm1275, %v4814
        %4847 = vst.msk [vmem:[#allocation3 + $0x48] sm:$0xff] %vm1275, %v4815
        %4848 = vst.msk [vmem:[#allocation3 + $0x50] sm:$0xff] %vm1275, %v4816
        %4849 = vst.msk [vmem:[#allocation3 + $0x58] sm:$0xff] %vm1275, %v4817
        %4850 = vst.msk [vmem:[#allocation3 + $0x60] sm:$0xff] %vm1275, %v4818
        %4851 = vst.msk [vmem:[#allocation3 + $0x68] sm:$0xff] %vm1275, %v4819
        %4852 = vst.msk [vmem:[#allocation3 + $0x70] sm:$0xff] %vm1275, %v4820
        %4853 = vst.msk [vmem:[#allocation3 + $0x78] sm:$0xff] %vm1275, %v4821
        %4854 = vst.msk [vmem:[#allocation3 + $0x80] sm:$0xff] %vm1275, %v4822
        %4855 = vst.msk [vmem:[#allocation3 + $0x88] sm:$0xff] %vm1275, %v4823
        %4856 = vst.msk [vmem:[#allocation3 + $0x90] sm:$0xff] %vm1275, %v4824
        %4857 = vst.msk [vmem:[#allocation3 + $0x98] sm:$0xff] %vm1275, %v4825
        %4858 = vst.msk [vmem:[#allocation3 + $0xa0] sm:$0xff] %vm1275, %v4826
        %4859 = vst.msk [vmem:[#allocation3 + $0xa8] sm:$0xff] %vm1275, %v4827
        %4860 = vst.msk [vmem:[#allocation3 + $0xb0] sm:$0xff] %vm1275, %v4828
        %4861 = vst.msk [vmem:[#allocation3 + $0xb8] sm:$0xff] %vm1275, %v4829
        %4862 = vst.msk [vmem:[#allocation3 + $0xc0] sm:$0xff] %vm1275, %v4830
        %4863 = vst.msk [vmem:[#allocation3 + $0xc8] sm:$0xff] %vm1275, %v4831
        %4864 = vst.msk [vmem:[#allocation3 + $0xd0] sm:$0xff] %vm1275, %v4832
        %4865 = vst.msk [vmem:[#allocation3 + $0xd8] sm:$0xff] %vm1275, %v4833
        %4866 = vst.msk [vmem:[#allocation3 + $0xe0] sm:$0xff] %vm1275, %v4834
        %4867 = vst.msk [vmem:[#allocation3 + $0xe8] sm:$0xff] %vm1275, %v4835
        %4868 = vst.msk [vmem:[#allocation3 + $0xf0] sm:$0xff] %vm1275, %v4836
        %4869 = vst.msk [vmem:[#allocation3 + $0xf8] sm:$0xff] %vm1275, %v4837
        %s4870 = scalar_lea.vmem [#allocation2], 24
        %v4871 = vld [vmem:[%s4870] sm:$0xf]
        %v4872 = vld [vmem:[%s4870 + $0x4] sm:$0xf]
        %v4873 = vld [vmem:[%s4870 + $0xc] sm:$0xf]
        %v4874 = vld [vmem:[%s4870 + $0x10] sm:$0xf]
        %v4875 = vld [vmem:[%s4870 + $0x18] sm:$0xf]
        %v4876 = vld [vmem:[%s4870 + $0x1c] sm:$0xf]
        %v4877 = vld [vmem:[%s4870 + $0x24] sm:$0xf]
        %v4878 = vld [vmem:[%s4870 + $0x28] sm:$0xf]
        %v4879 = vld [vmem:[%s4870 + $0x30] sm:$0xf]
        %v4880 = vld [vmem:[%s4870 + $0x34] sm:$0xf]
        %v4881 = vld [vmem:[%s4870 + $0x3c] sm:$0xf]
        %v4882 = vld [vmem:[%s4870 + $0x40] sm:$0xf]
        %v4883 = vld [vmem:[%s4870 + $0x48] sm:$0xf]
        %v4884 = vld [vmem:[%s4870 + $0x4c] sm:$0xf]
        %v4885 = vld [vmem:[%s4870 + $0x54] sm:$0xf]
        %v4886 = vld [vmem:[%s4870 + $0x58] sm:$0xf]
        %v4887 = vld [vmem:[%s4870 + $0x60] sm:$0xf]
        %v4888 = vld [vmem:[%s4870 + $0x64] sm:$0xf]
        %v4889 = vld [vmem:[%s4870 + $0x6c] sm:$0xf]
        %v4890 = vld [vmem:[%s4870 + $0x70] sm:$0xf]
        %v4891 = vld [vmem:[%s4870 + $0x78] sm:$0xf]
        %v4892 = vld [vmem:[%s4870 + $0x7c] sm:$0xf]
        %v4893 = vld [vmem:[%s4870 + $0x84] sm:$0xf]
        %v4894 = vld [vmem:[%s4870 + $0x88] sm:$0xf]
        %v4895 = vld [vmem:[%s4870 + $0x90] sm:$0xf]
        %v4896 = vld [vmem:[%s4870 + $0x94] sm:$0xf]
        %v4897 = vld [vmem:[%s4870 + $0x9c] sm:$0xf]
        %v4898 = vld [vmem:[%s4870 + $0xa0] sm:$0xf]
        %v4899 = vld [vmem:[%s4870 + $0xa8] sm:$0xf]
        %v4900 = vld [vmem:[%s4870 + $0xac] sm:$0xf]
        %v4901 = vld [vmem:[%s4870 + $0xb4] sm:$0xf]
        %v4902 = vld [vmem:[%s4870 + $0xb8] sm:$0xf]
        %v4903 = vld [vmem:[#allocation3] sm:$0xff]
        %v4904 = vld [vmem:[#allocation3 + $0x8] sm:$0xff]
        %v4905 = vld [vmem:[#allocation3 + $0x10] sm:$0xff]
        %v4906 = vld [vmem:[#allocation3 + $0x18] sm:$0xff]
        %v4907 = vld [vmem:[#allocation3 + $0x20] sm:$0xff]
        %v4908 = vld [vmem:[#allocation3 + $0x28] sm:$0xff]
        %v4909 = vld [vmem:[#allocation3 + $0x30] sm:$0xff]
        %v4910 = vld [vmem:[#allocation3 + $0x38] sm:$0xff]
        %v4911 = vld [vmem:[#allocation3 + $0x40] sm:$0xff]
        %v4912 = vld [vmem:[#allocation3 + $0x48] sm:$0xff]
        %v4913 = vld [vmem:[#allocation3 + $0x50] sm:$0xff]
        %v4914 = vld [vmem:[#allocation3 + $0x58] sm:$0xff]
        %v4915 = vld [vmem:[#allocation3 + $0x60] sm:$0xff]
        %v4916 = vld [vmem:[#allocation3 + $0x68] sm:$0xff]
        %v4917 = vld [vmem:[#allocation3 + $0x70] sm:$0xff]
        %v4918 = vld [vmem:[#allocation3 + $0x78] sm:$0xff]
        %v4919 = vld [vmem:[#allocation3 + $0x80] sm:$0xff]
        %v4920 = vld [vmem:[#allocation3 + $0x88] sm:$0xff]
        %v4921 = vld [vmem:[#allocation3 + $0x90] sm:$0xff]
        %v4922 = vld [vmem:[#allocation3 + $0x98] sm:$0xff]
        %v4923 = vld [vmem:[#allocation3 + $0xa0] sm:$0xff]
        %v4924 = vld [vmem:[#allocation3 + $0xa8] sm:$0xff]
        %v4925 = vld [vmem:[#allocation3 + $0xb0] sm:$0xff]
        %v4926 = vld [vmem:[#allocation3 + $0xb8] sm:$0xff]
        %v4927 = vld [vmem:[#allocation3 + $0xc0] sm:$0xff]
        %v4928 = vld [vmem:[#allocation3 + $0xc8] sm:$0xff]
        %v4929 = vld [vmem:[#allocation3 + $0xd0] sm:$0xff]
        %v4930 = vld [vmem:[#allocation3 + $0xd8] sm:$0xff]
        %v4931 = vld [vmem:[#allocation3 + $0xe0] sm:$0xff]
        %v4932 = vld [vmem:[#allocation3 + $0xe8] sm:$0xff]
        %v4933 = vld [vmem:[#allocation3 + $0xf0] sm:$0xff]
        %v4934 = vld [vmem:[#allocation3 + $0xf8] sm:$0xff]
        %s4935 = scalar_lea.vmem [#allocation7], 12
        %v4936 = vld [vmem:[%s4935] sm:$0x3]
        %v4969 = vunpack.c.l.b16 %v4871
        %v4970 = vunpack.c.l.b16 %v4872
        %v4971 = vunpack.c.l.b16 %v4873
        %v4972 = vunpack.c.l.b16 %v4874
        %v4973 = vunpack.c.l.b16 %v4875
        %v4974 = vunpack.c.l.b16 %v4876
        %v4975 = vunpack.c.l.b16 %v4877
        %v4976 = vunpack.c.l.b16 %v4878
        %v4977 = vunpack.c.l.b16 %v4879
        %v4978 = vunpack.c.l.b16 %v4880
        %v4979 = vunpack.c.l.b16 %v4881
        %v4980 = vunpack.c.l.b16 %v4882
        %v4981 = vunpack.c.l.b16 %v4883
        %v4982 = vunpack.c.l.b16 %v4884
        %v4983 = vunpack.c.l.b16 %v4885
        %v4984 = vunpack.c.l.b16 %v4886
        %v4985 = vunpack.c.l.b16 %v4887
        %v4986 = vunpack.c.l.b16 %v4888
        %v4987 = vunpack.c.l.b16 %v4889
        %v4988 = vunpack.c.l.b16 %v4890
        %v4989 = vunpack.c.l.b16 %v4891
        %v4990 = vunpack.c.l.b16 %v4892
        %v4991 = vunpack.c.l.b16 %v4893
        %v4992 = vunpack.c.l.b16 %v4894
        %v4993 = vunpack.c.l.b16 %v4895
        %v4994 = vunpack.c.l.b16 %v4896
        %v4995 = vunpack.c.l.b16 %v4897
        %v4996 = vunpack.c.l.b16 %v4898
        %v4997 = vunpack.c.l.b16 %v4899
        %v4998 = vunpack.c.l.b16 %v4900
        %v4999 = vunpack.c.l.b16 %v4901
        %v5000 = vunpack.c.l.b16 %v4902
        %v5001 = vpack.c.b16 %v4970, %v4969
        %v5002 = vpack.c.b16 %v4972, %v4971
        %v5003 = vpack.c.b16 %v4974, %v4973
        %v5004 = vpack.c.b16 %v4976, %v4975
        %v5005 = vpack.c.b16 %v4978, %v4977
        %v5006 = vpack.c.b16 %v4980, %v4979
        %v5007 = vpack.c.b16 %v4982, %v4981
        %v5008 = vpack.c.b16 %v4984, %v4983
        %v5009 = vpack.c.b16 %v4986, %v4985
        %v5010 = vpack.c.b16 %v4988, %v4987
        %v5011 = vpack.c.b16 %v4990, %v4989
        %v5012 = vpack.c.b16 %v4992, %v4991
        %v5013 = vpack.c.b16 %v4994, %v4993
        %v5014 = vpack.c.b16 %v4996, %v4995
        %v5015 = vpack.c.b16 %v4998, %v4997
        %v5016 = vpack.c.b16 %v5000, %v4999
        %v5018 = vsel %vm1275, %v5001, 0
        %v5021 = vsel %vm1275, %v5002, 0
        %v5024 = vsel %vm1275, %v5003, 0
        %v5027 = vsel %vm1275, %v5004, 0
        %v5030 = vsel %vm1275, %v5005, 0
        %v5033 = vsel %vm1275, %v5006, 0
        %v5036 = vsel %vm1275, %v5007, 0
        %v5039 = vsel %vm1275, %v5008, 0
        %v5042 = vsel %vm1275, %v5009, 0
        %v5045 = vsel %vm1275, %v5010, 0
        %v5048 = vsel %vm1275, %v5011, 0
        %v5051 = vsel %vm1275, %v5012, 0
        %v5054 = vsel %vm1275, %v5013, 0
        %v5057 = vsel %vm1275, %v5014, 0
        %v5060 = vsel %vm1275, %v5015, 0
        %v5063 = vsel %vm1275, %v5016, 0
        %v5066 = vsel %vm1501, %v4936, 0
        %5068 = vmatprep.subr.bf16.mxu0 0
        %5069 = vmatpush1.bf16.msra.mxu0 %v5066
        %5070 = vmatprep.subr.bf16.mxu0 0
        %5071 = vmatpush1.bf16.msra.mxu0 0
        %5072 = vmatprep.subr.bf16.mxu0 0
        %5073 = vmatpush1.bf16.msra.mxu0 0
        %5074 = vmatprep.subr.bf16.mxu0 0
        %5075 = vmatpush1.bf16.msra.mxu0 0
        %5076 = vmatprep.subr.bf16.mxu0 0
        %5077 = vmatpush1.bf16.msra.mxu0 0
        %5078 = vmatprep.subr.bf16.mxu0 0
        %5079 = vmatpush1.bf16.msra.mxu0 0
        %5080 = vmatprep.subr.bf16.mxu0 0
        %5081 = vmatpush1.bf16.msra.mxu0 0
        %5082 = vmatprep.subr.bf16.mxu0 0
        %5083 = vmatpush1.bf16.msra.mxu0 0
        %5084 = vmatprep.subr.bf16.mxu0 0
        %5085 = vmatpush1.bf16.msra.mxu0 0
        %5086 = vmatprep.subr.bf16.mxu0 0
        %5087 = vmatpush1.bf16.msra.mxu0 0
        %5088 = vmatprep.subr.bf16.mxu0 0
        %5089 = vmatpush1.bf16.msra.mxu0 0
        %5090 = vmatprep.subr.bf16.mxu0 0
        %5091 = vmatpush1.bf16.msra.mxu0 0
        %5092 = vmatprep.subr.bf16.mxu0 0
        %5093 = vmatpush1.bf16.msra.mxu0 0
        %5094 = vmatprep.subr.bf16.mxu0 0
        %5095 = vmatpush1.bf16.msra.mxu0 0
        %5096 = vmatprep.subr.bf16.mxu0 0
        %5097 = vmatpush1.bf16.msra.mxu0 0
        %5098 = vmatprep.subr.bf16.mxu0 0
        %5099 = vmatpush1.bf16.msra.mxu0 0
        %5100 = vmatprep.mubr.bf16.mxu0 0
        %5101 = vmatmul.mubr.bf16.gmra.mrb[0].mxu0 %v5018
        %v5102 = vpop.f32.mrb[0].mxu0
        %v5103 = vadd.f32 0.0, %v5102
        %v5104 = vpop.f32.mrb[0].mxu0
        %v5105 = vpop.f32.mrb[0].mxu0
        %v5106 = vadd.f32 0.0, %v5105
        %v5107 = vpop.f32.mrb[0].mxu0
        %5108 = vmatprep.mubr.bf16.mxu0 0
        %5109 = vmatmul.mubr.bf16.gmra.mrb[0].mxu0 %v5021
        %v5110 = vpop.f32.mrb[0].mxu0
        %v5111 = vadd.f32 0.0, %v5110
        %v5112 = vpop.f32.mrb[0].mxu0
        %v5113 = vpop.f32.mrb[0].mxu0
        %v5114 = vadd.f32 0.0, %v5113
        %v5115 = vpop.f32.mrb[0].mxu0
        %5116 = vmatprep.mubr.bf16.mxu0 0
        %5117 = vmatmul.mubr.bf16.gmra.mrb[0].mxu0 %v5024
        %v5118 = vpop.f32.mrb[0].mxu0
        %v5119 = vadd.f32 0.0, %v5118
        %v5120 = vpop.f32.mrb[0].mxu0
        %v5121 = vpop.f32.mrb[0].mxu0
        %v5122 = vadd.f32 0.0, %v5121
        %v5123 = vpop.f32.mrb[0].mxu0
        %5124 = vmatprep.mubr.bf16.mxu0 0
        %5125 = vmatmul.mubr.bf16.gmra.mrb[0].mxu0 %v5027
        %v5126 = vpop.f32.mrb[0].mxu0
        %v5127 = vadd.f32 0.0, %v5126
        %v5128 = vpop.f32.mrb[0].mxu0
        %v5129 = vpop.f32.mrb[0].mxu0
        %v5130 = vadd.f32 0.0, %v5129
        %v5131 = vpop.f32.mrb[0].mxu0
        %5132 = vmatprep.mubr.bf16.mxu0 0
        %5133 = vmatmul.mubr.bf16.gmra.mrb[0].mxu0 %v5030
        %v5134 = vpop.f32.mrb[0].mxu0
        %v5135 = vadd.f32 0.0, %v5134
        %v5136 = vpop.f32.mrb[0].mxu0
        %v5137 = vpop.f32.mrb[0].mxu0
        %v5138 = vadd.f32 0.0, %v5137
        %v5139 = vpop.f32.mrb[0].mxu0
        %5140 = vmatprep.mubr.bf16.mxu0 0
        %5141 = vmatmul.mubr.bf16.gmra.mrb[0].mxu0 %v5033
        %v5142 = vpop.f32.mrb[0].mxu0
        %v5143 = vadd.f32 0.0, %v5142
        %v5144 = vpop.f32.mrb[0].mxu0
        %v5145 = vpop.f32.mrb[0].mxu0
        %v5146 = vadd.f32 0.0, %v5145
        %v5147 = vpop.f32.mrb[0].mxu0
        %5148 = vmatprep.mubr.bf16.mxu0 0
        %5149 = vmatmul.mubr.bf16.gmra.mrb[0].mxu0 %v5036
        %v5150 = vpop.f32.mrb[0].mxu0
        %v5151 = vadd.f32 0.0, %v5150
        %v5152 = vpop.f32.mrb[0].mxu0
        %v5153 = vpop.f32.mrb[0].mxu0
        %v5154 = vadd.f32 0.0, %v5153
        %v5155 = vpop.f32.mrb[0].mxu0
        %5156 = vmatprep.mubr.bf16.mxu0 0
        %5157 = vmatmul.mubr.bf16.gmra.mrb[0].mxu0 %v5039
        %v5158 = vpop.f32.mrb[0].mxu0
        %v5159 = vadd.f32 0.0, %v5158
        %v5160 = vpop.f32.mrb[0].mxu0
        %v5161 = vpop.f32.mrb[0].mxu0
        %v5162 = vadd.f32 0.0, %v5161
        %v5163 = vpop.f32.mrb[0].mxu0
        %5164 = vmatprep.mubr.bf16.mxu0 0
        %5165 = vmatmul.mubr.bf16.gmra.mrb[0].mxu0 %v5042
        %v5166 = vpop.f32.mrb[0].mxu0
        %v5167 = vadd.f32 0.0, %v5166
        %v5168 = vpop.f32.mrb[0].mxu0
        %v5169 = vpop.f32.mrb[0].mxu0
        %v5170 = vadd.f32 0.0, %v5169
        %v5171 = vpop.f32.mrb[0].mxu0
        %5172 = vmatprep.mubr.bf16.mxu0 0
        %5173 = vmatmul.mubr.bf16.gmra.mrb[0].mxu0 %v5045
        %v5174 = vpop.f32.mrb[0].mxu0
        %v5175 = vadd.f32 0.0, %v5174
        %v5176 = vpop.f32.mrb[0].mxu0
        %v5177 = vpop.f32.mrb[0].mxu0
        %v5178 = vadd.f32 0.0, %v5177
        %v5179 = vpop.f32.mrb[0].mxu0
        %5180 = vmatprep.mubr.bf16.mxu0 0
        %5181 = vmatmul.mubr.bf16.gmra.mrb[0].mxu0 %v5048
        %v5182 = vpop.f32.mrb[0].mxu0
        %v5183 = vadd.f32 0.0, %v5182
        %v5184 = vpop.f32.mrb[0].mxu0
        %v5185 = vpop.f32.mrb[0].mxu0
        %v5186 = vadd.f32 0.0, %v5185
        %v5187 = vpop.f32.mrb[0].mxu0
        %5188 = vmatprep.mubr.bf16.mxu0 0
        %5189 = vmatmul.mubr.bf16.gmra.mrb[0].mxu0 %v5051
        %v5190 = vpop.f32.mrb[0].mxu0
        %v5191 = vadd.f32 0.0, %v5190
        %v5192 = vpop.f32.mrb[0].mxu0
        %v5193 = vpop.f32.mrb[0].mxu0
        %v5194 = vadd.f32 0.0, %v5193
        %v5195 = vpop.f32.mrb[0].mxu0
        %5196 = vmatprep.mubr.bf16.mxu0 0
        %5197 = vmatmul.mubr.bf16.gmra.mrb[0].mxu0 %v5054
        %v5198 = vpop.f32.mrb[0].mxu0
        %v5199 = vadd.f32 0.0, %v5198
        %v5200 = vpop.f32.mrb[0].mxu0
        %v5201 = vpop.f32.mrb[0].mxu0
        %v5202 = vadd.f32 0.0, %v5201
        %v5203 = vpop.f32.mrb[0].mxu0
        %5204 = vmatprep.mubr.bf16.mxu0 0
        %5205 = vmatmul.mubr.bf16.gmra.mrb[0].mxu0 %v5057
        %v5206 = vpop.f32.mrb[0].mxu0
        %v5207 = vadd.f32 0.0, %v5206
        %v5208 = vpop.f32.mrb[0].mxu0
        %v5209 = vpop.f32.mrb[0].mxu0
        %v5210 = vadd.f32 0.0, %v5209
        %v5211 = vpop.f32.mrb[0].mxu0
        %5212 = vmatprep.mubr.bf16.mxu0 0
        %5213 = vmatmul.mubr.bf16.gmra.mrb[0].mxu0 %v5060
        %v5214 = vpop.f32.mrb[0].mxu0
        %v5215 = vadd.f32 0.0, %v5214
        %v5216 = vpop.f32.mrb[0].mxu0
        %v5217 = vpop.f32.mrb[0].mxu0
        %v5218 = vadd.f32 0.0, %v5217
        %v5219 = vpop.f32.mrb[0].mxu0
        %5220 = vmatprep.mubr.bf16.mxu0 0
        %5221 = vmatmul.mubr.bf16.gmra.mrb[0].mxu0 %v5063
        %v5222 = vpop.f32.mrb[0].mxu0
        %v5223 = vadd.f32 0.0, %v5222
        %v5224 = vpop.f32.mrb[0].mxu0
        %v5225 = vpop.f32.mrb[0].mxu0
        %v5226 = vadd.f32 0.0, %v5225
        %v5227 = vpop.f32.mrb[0].mxu0
        %5228 = vdwg.mxu0
        %v5229 = vadd.f32 %v4903, %v5103
        %v5230 = vadd.f32 %v4904, %v5106
        %v5231 = vadd.f32 %v4905, %v5111
        %v5232 = vadd.f32 %v4906, %v5114
        %v5233 = vadd.f32 %v4907, %v5119
        %v5234 = vadd.f32 %v4908, %v5122
        %v5235 = vadd.f32 %v4909, %v5127
        %v5236 = vadd.f32 %v4910, %v5130
        %v5237 = vadd.f32 %v4911, %v5135
        %v5238 = vadd.f32 %v4912, %v5138
        %v5239 = vadd.f32 %v4913, %v5143
        %v5240 = vadd.f32 %v4914, %v5146
        %v5241 = vadd.f32 %v4915, %v5151
        %v5242 = vadd.f32 %v4916, %v5154
        %v5243 = vadd.f32 %v4917, %v5159
        %v5244 = vadd.f32 %v4918, %v5162
        %v5245 = vadd.f32 %v4919, %v5167
        %v5246 = vadd.f32 %v4920, %v5170
        %v5247 = vadd.f32 %v4921, %v5175
        %v5248 = vadd.f32 %v4922, %v5178
        %v5249 = vadd.f32 %v4923, %v5183
        %v5250 = vadd.f32 %v4924, %v5186
        %v5251 = vadd.f32 %v4925, %v5191
        %v5252 = vadd.f32 %v4926, %v5194
        %v5253 = vadd.f32 %v4927, %v5199
        %v5254 = vadd.f32 %v4928, %v5202
        %v5255 = vadd.f32 %v4929, %v5207
        %v5256 = vadd.f32 %v4930, %v5210
        %v5257 = vadd.f32 %v4931, %v5215
        %v5258 = vadd.f32 %v4932, %v5218
        %v5259 = vadd.f32 %v4933, %v5223
        %v5260 = vadd.f32 %v4934, %v5226
        %5261 = vst.msk [vmem:[#allocation3] sm:$0xff] %vm1275, %v5229
        %5262 = vst.msk [vmem:[#allocation3 + $0x8] sm:$0xff] %vm1275, %v5230
        %5263 = vst.msk [vmem:[#allocation3 + $0x10] sm:$0xff] %vm1275, %v5231
        %5264 = vst.msk [vmem:[#allocation3 + $0x18] sm:$0xff] %vm1275, %v5232
        %5265 = vst.msk [vmem:[#allocation3 + $0x20] sm:$0xff] %vm1275, %v5233
        %5266 = vst.msk [vmem:[#allocation3 + $0x28] sm:$0xff] %vm1275, %v5234
        %5267 = vst.msk [vmem:[#allocation3 + $0x30] sm:$0xff] %vm1275, %v5235
        %5268 = vst.msk [vmem:[#allocation3 + $0x38] sm:$0xff] %vm1275, %v5236
        %5269 = vst.msk [vmem:[#allocation3 + $0x40] sm:$0xff] %vm1275, %v5237
        %5270 = vst.msk [vmem:[#allocation3 + $0x48] sm:$0xff] %vm1275, %v5238
        %5271 = vst.msk [vmem:[#allocation3 + $0x50] sm:$0xff] %vm1275, %v5239
        %5272 = vst.msk [vmem:[#allocation3 + $0x58] sm:$0xff] %vm1275, %v5240
        %5273 = vst.msk [vmem:[#allocation3 + $0x60] sm:$0xff] %vm1275, %v5241
        %5274 = vst.msk [vmem:[#allocation3 + $0x68] sm:$0xff] %vm1275, %v5242
        %5275 = vst.msk [vmem:[#allocation3 + $0x70] sm:$0xff] %vm1275, %v5243
        %5276 = vst.msk [vmem:[#allocation3 + $0x78] sm:$0xff] %vm1275, %v5244
        %5277 = vst.msk [vmem:[#allocation3 + $0x80] sm:$0xff] %vm1275, %v5245
        %5278 = vst.msk [vmem:[#allocation3 + $0x88] sm:$0xff] %vm1275, %v5246
        %5279 = vst.msk [vmem:[#allocation3 + $0x90] sm:$0xff] %vm1275, %v5247
        %5280 = vst.msk [vmem:[#allocation3 + $0x98] sm:$0xff] %vm1275, %v5248
        %5281 = vst.msk [vmem:[#allocation3 + $0xa0] sm:$0xff] %vm1275, %v5249
        %5282 = vst.msk [vmem:[#allocation3 + $0xa8] sm:$0xff] %vm1275, %v5250
        %5283 = vst.msk [vmem:[#allocation3 + $0xb0] sm:$0xff] %vm1275, %v5251
        %5284 = vst.msk [vmem:[#allocation3 + $0xb8] sm:$0xff] %vm1275, %v5252
        %5285 = vst.msk [vmem:[#allocation3 + $0xc0] sm:$0xff] %vm1275, %v5253
        %5286 = vst.msk [vmem:[#allocation3 + $0xc8] sm:$0xff] %vm1275, %v5254
        %5287 = vst.msk [vmem:[#allocation3 + $0xd0] sm:$0xff] %vm1275, %v5255
        %5288 = vst.msk [vmem:[#allocation3 + $0xd8] sm:$0xff] %vm1275, %v5256
        %5289 = vst.msk [vmem:[#allocation3 + $0xe0] sm:$0xff] %vm1275, %v5257
        %5290 = vst.msk [vmem:[#allocation3 + $0xe8] sm:$0xff] %vm1275, %v5258
        %5291 = vst.msk [vmem:[#allocation3 + $0xf0] sm:$0xff] %vm1275, %v5259
        %5292 = vst.msk [vmem:[#allocation3 + $0xf8] sm:$0xff] %vm1275, %v5260
        %v5293 = vld [vmem:[%s4870] sm:$0xf]
        %v5294 = vld [vmem:[%s4870 + $0x4] sm:$0xf]
        %v5295 = vld [vmem:[%s4870 + $0x8] sm:$0x1]
        %v5296 = vld [vmem:[%s4870 + $0xc] sm:$0xf]
        %v5297 = vld [vmem:[%s4870 + $0x10] sm:$0xf]
        %v5298 = vld [vmem:[%s4870 + $0x14] sm:$0x1]
        %v5299 = vld [vmem:[%s4870 + $0x18] sm:$0xf]
        %v5300 = vld [vmem:[%s4870 + $0x1c] sm:$0xf]
        %v5301 = vld [vmem:[%s4870 + $0x20] sm:$0x1]
        %v5302 = vld [vmem:[%s4870 + $0x24] sm:$0xf]
        %v5303 = vld [vmem:[%s4870 + $0x28] sm:$0xf]
        %v5304 = vld [vmem:[%s4870 + $0x2c] sm:$0x1]
        %v5305 = vld [vmem:[%s4870 + $0x30] sm:$0xf]
        %v5306 = vld [vmem:[%s4870 + $0x34] sm:$0xf]
        %v5307 = vld [vmem:[%s4870 + $0x38] sm:$0x1]
        %v5308 = vld [vmem:[%s4870 + $0x3c] sm:$0xf]
        %v5309 = vld [vmem:[%s4870 + $0x40] sm:$0xf]
        %v5310 = vld [vmem:[%s4870 + $0x44] sm:$0x1]
        %v5311 = vld [vmem:[%s4870 + $0x48] sm:$0xf]
        %v5312 = vld [vmem:[%s4870 + $0x4c] sm:$0xf]
        %v5313 = vld [vmem:[%s4870 + $0x50] sm:$0x1]
        %v5314 = vld [vmem:[%s4870 + $0x54] sm:$0xf]
        %v5315 = vld [vmem:[%s4870 + $0x58] sm:$0xf]
        %v5316 = vld [vmem:[%s4870 + $0x5c] sm:$0x1]
        %v5317 = vld [vmem:[%s4870 + $0x60] sm:$0xf]
        %v5318 = vld [vmem:[%s4870 + $0x64] sm:$0xf]
        %v5319 = vld [vmem:[%s4870 + $0x68] sm:$0x1]
        %v5320 = vld [vmem:[%s4870 + $0x6c] sm:$0xf]
        %v5321 = vld [vmem:[%s4870 + $0x70] sm:$0xf]
        %v5322 = vld [vmem:[%s4870 + $0x74] sm:$0x1]
        %v5323 = vld [vmem:[%s4870 + $0x78] sm:$0xf]
        %v5324 = vld [vmem:[%s4870 + $0x7c] sm:$0xf]
        %v5325 = vld [vmem:[%s4870 + $0x80] sm:$0x1]
        %v5326 = vld [vmem:[%s4870 + $0x84] sm:$0xf]
        %v5327 = vld [vmem:[%s4870 + $0x88] sm:$0xf]
        %v5328 = vld [vmem:[%s4870 + $0x8c] sm:$0x1]
        %v5329 = vld [vmem:[%s4870 + $0x90] sm:$0xf]
        %v5330 = vld [vmem:[%s4870 + $0x94] sm:$0xf]
        %v5331 = vld [vmem:[%s4870 + $0x98] sm:$0x1]
        %v5332 = vld [vmem:[%s4870 + $0x9c] sm:$0xf]
        %v5333 = vld [vmem:[%s4870 + $0xa0] sm:$0xf]
        %v5334 = vld [vmem:[%s4870 + $0xa4] sm:$0x1]
        %v5335 = vld [vmem:[%s4870 + $0xa8] sm:$0xf]
        %v5336 = vld [vmem:[%s4870 + $0xac] sm:$0xf]
        %v5337 = vld [vmem:[%s4870 + $0xb0] sm:$0x1]
        %v5338 = vld [vmem:[%s4870 + $0xb4] sm:$0xf]
        %v5339 = vld [vmem:[%s4870 + $0xb8] sm:$0xf]
        %v5340 = vld [vmem:[%s4870 + $0xbc] sm:$0x1]
        %v5342 = vshrl.u32 %v5293, 16
        %v5344 = vrot.slane %v5342, 4
        %v5345 = vshll.u32 %v5293, 16
        %v5347 = vrot.slane %v5345, 5
        %v5348 = vor.u32 %v5344, %v5347
        %v5349 = vrot.slane %v5348, 4
        %v5351 = vshll.u32 %v5294, 16
        %v5353 = vrot.slane %v5351, 5
        %v5354 = vsel %vm1780, %v5349, %v5353
        %v5355 = vshrl.u32 %v5294, 16
        %v5357 = vrot.slane %v5355, 4
        %v5358 = vor.u32 %v5357, %v5353
        %v5359 = vrot.slane %v5358, 4
        %v5361 = vshll.u32 %v5295, 16
        %v5363 = vrot.slane %v5361, 5
        %v5364 = vsel %vm1780, %v5359, %v5363
        %v5366 = vshrl.u32 %v5296, 16
        %v5368 = vrot.slane %v5366, 4
        %v5369 = vshll.u32 %v5296, 16
        %v5371 = vrot.slane %v5369, 5
        %v5372 = vor.u32 %v5368, %v5371
        %v5373 = vrot.slane %v5372, 4
        %v5375 = vshll.u32 %v5297, 16
        %v5377 = vrot.slane %v5375, 5
        %v5378 = vsel %vm1780, %v5373, %v5377
        %v5379 = vshrl.u32 %v5297, 16
        %v5381 = vrot.slane %v5379, 4
        %v5382 = vor.u32 %v5381, %v5377
        %v5383 = vrot.slane %v5382, 4
        %v5385 = vshll.u32 %v5298, 16
        %v5387 = vrot.slane %v5385, 5
        %v5388 = vsel %vm1780, %v5383, %v5387
        %v5390 = vshrl.u32 %v5299, 16
        %v5392 = vrot.slane %v5390, 4
        %v5393 = vshll.u32 %v5299, 16
        %v5395 = vrot.slane %v5393, 5
        %v5396 = vor.u32 %v5392, %v5395
        %v5397 = vrot.slane %v5396, 4
        %v5399 = vshll.u32 %v5300, 16
        %v5401 = vrot.slane %v5399, 5
        %v5402 = vsel %vm1780, %v5397, %v5401
        %v5403 = vshrl.u32 %v5300, 16
        %v5405 = vrot.slane %v5403, 4
        %v5406 = vor.u32 %v5405, %v5401
        %v5407 = vrot.slane %v5406, 4
        %v5409 = vshll.u32 %v5301, 16
        %v5411 = vrot.slane %v5409, 5
        %v5412 = vsel %vm1780, %v5407, %v5411
        %v5414 = vshrl.u32 %v5302, 16
        %v5416 = vrot.slane %v5414, 4
        %v5417 = vshll.u32 %v5302, 16
        %v5419 = vrot.slane %v5417, 5
        %v5420 = vor.u32 %v5416, %v5419
        %v5421 = vrot.slane %v5420, 4
        %v5423 = vshll.u32 %v5303, 16
        %v5425 = vrot.slane %v5423, 5
        %v5426 = vsel %vm1780, %v5421, %v5425
        %v5427 = vshrl.u32 %v5303, 16
        %v5429 = vrot.slane %v5427, 4
        %v5430 = vor.u32 %v5429, %v5425
        %v5431 = vrot.slane %v5430, 4
        %v5433 = vshll.u32 %v5304, 16
        %v5435 = vrot.slane %v5433, 5
        %v5436 = vsel %vm1780, %v5431, %v5435
        %v5438 = vshrl.u32 %v5305, 16
        %v5440 = vrot.slane %v5438, 4
        %v5441 = vshll.u32 %v5305, 16
        %v5443 = vrot.slane %v5441, 5
        %v5444 = vor.u32 %v5440, %v5443
        %v5445 = vrot.slane %v5444, 4
        %v5447 = vshll.u32 %v5306, 16
        %v5449 = vrot.slane %v5447, 5
        %v5450 = vsel %vm1780, %v5445, %v5449
        %v5451 = vshrl.u32 %v5306, 16
        %v5453 = vrot.slane %v5451, 4
        %v5454 = vor.u32 %v5453, %v5449
        %v5455 = vrot.slane %v5454, 4
        %v5457 = vshll.u32 %v5307, 16
        %v5459 = vrot.slane %v5457, 5
        %v5460 = vsel %vm1780, %v5455, %v5459
        %v5462 = vshrl.u32 %v5308, 16
        %v5464 = vrot.slane %v5462, 4
        %v5465 = vshll.u32 %v5308, 16
        %v5467 = vrot.slane %v5465, 5
        %v5468 = vor.u32 %v5464, %v5467
        %v5469 = vrot.slane %v5468, 4
        %v5471 = vshll.u32 %v5309, 16
        %v5473 = vrot.slane %v5471, 5
        %v5474 = vsel %vm1780, %v5469, %v5473
        %v5475 = vshrl.u32 %v5309, 16
        %v5477 = vrot.slane %v5475, 4
        %v5478 = vor.u32 %v5477, %v5473
        %v5479 = vrot.slane %v5478, 4
        %v5481 = vshll.u32 %v5310, 16
        %v5483 = vrot.slane %v5481, 5
        %v5484 = vsel %vm1780, %v5479, %v5483
        %v5486 = vshrl.u32 %v5311, 16
        %v5488 = vrot.slane %v5486, 4
        %v5489 = vshll.u32 %v5311, 16
        %v5491 = vrot.slane %v5489, 5
        %v5492 = vor.u32 %v5488, %v5491
        %v5493 = vrot.slane %v5492, 4
        %v5495 = vshll.u32 %v5312, 16
        %v5497 = vrot.slane %v5495, 5
        %v5498 = vsel %vm1780, %v5493, %v5497
        %v5499 = vshrl.u32 %v5312, 16
        %v5501 = vrot.slane %v5499, 4
        %v5502 = vor.u32 %v5501, %v5497
        %v5503 = vrot.slane %v5502, 4
        %v5505 = vshll.u32 %v5313, 16
        %v5507 = vrot.slane %v5505, 5
        %v5508 = vsel %vm1780, %v5503, %v5507
        %v5510 = vshrl.u32 %v5314, 16
        %v5512 = vrot.slane %v5510, 4
        %v5513 = vshll.u32 %v5314, 16
        %v5515 = vrot.slane %v5513, 5
        %v5516 = vor.u32 %v5512, %v5515
        %v5517 = vrot.slane %v5516, 4
        %v5519 = vshll.u32 %v5315, 16
        %v5521 = vrot.slane %v5519, 5
        %v5522 = vsel %vm1780, %v5517, %v5521
        %v5523 = vshrl.u32 %v5315, 16
        %v5525 = vrot.slane %v5523, 4
        %v5526 = vor.u32 %v5525, %v5521
        %v5527 = vrot.slane %v5526, 4
        %v5529 = vshll.u32 %v5316, 16
        %v5531 = vrot.slane %v5529, 5
        %v5532 = vsel %vm1780, %v5527, %v5531
        %v5534 = vshrl.u32 %v5317, 16
        %v5536 = vrot.slane %v5534, 4
        %v5537 = vshll.u32 %v5317, 16
        %v5539 = vrot.slane %v5537, 5
        %v5540 = vor.u32 %v5536, %v5539
        %v5541 = vrot.slane %v5540, 4
        %v5543 = vshll.u32 %v5318, 16
        %v5545 = vrot.slane %v5543, 5
        %v5546 = vsel %vm1780, %v5541, %v5545
        %v5547 = vshrl.u32 %v5318, 16
        %v5549 = vrot.slane %v5547, 4
        %v5550 = vor.u32 %v5549, %v5545
        %v5551 = vrot.slane %v5550, 4
        %v5553 = vshll.u32 %v5319, 16
        %v5555 = vrot.slane %v5553, 5
        %v5556 = vsel %vm1780, %v5551, %v5555
        %v5558 = vshrl.u32 %v5320, 16
        %v5560 = vrot.slane %v5558, 4
        %v5561 = vshll.u32 %v5320, 16
        %v5563 = vrot.slane %v5561, 5
        %v5564 = vor.u32 %v5560, %v5563
        %v5565 = vrot.slane %v5564, 4
        %v5567 = vshll.u32 %v5321, 16
        %v5569 = vrot.slane %v5567, 5
        %v5570 = vsel %vm1780, %v5565, %v5569
        %v5571 = vshrl.u32 %v5321, 16
        %v5573 = vrot.slane %v5571, 4
        %v5574 = vor.u32 %v5573, %v5569
        %v5575 = vrot.slane %v5574, 4
        %v5577 = vshll.u32 %v5322, 16
        %v5579 = vrot.slane %v5577, 5
        %v5580 = vsel %vm1780, %v5575, %v5579
        %v5582 = vshrl.u32 %v5323, 16
        %v5584 = vrot.slane %v5582, 4
        %v5585 = vshll.u32 %v5323, 16
        %v5587 = vrot.slane %v5585, 5
        %v5588 = vor.u32 %v5584, %v5587
        %v5589 = vrot.slane %v5588, 4
        %v5591 = vshll.u32 %v5324, 16
        %v5593 = vrot.slane %v5591, 5
        %v5594 = vsel %vm1780, %v5589, %v5593
        %v5595 = vshrl.u32 %v5324, 16
        %v5597 = vrot.slane %v5595, 4
        %v5598 = vor.u32 %v5597, %v5593
        %v5599 = vrot.slane %v5598, 4
        %v5601 = vshll.u32 %v5325, 16
        %v5603 = vrot.slane %v5601, 5
        %v5604 = vsel %vm1780, %v5599, %v5603
        %v5606 = vshrl.u32 %v5326, 16
        %v5608 = vrot.slane %v5606, 4
        %v5609 = vshll.u32 %v5326, 16
        %v5611 = vrot.slane %v5609, 5
        %v5612 = vor.u32 %v5608, %v5611
        %v5613 = vrot.slane %v5612, 4
        %v5615 = vshll.u32 %v5327, 16
        %v5617 = vrot.slane %v5615, 5
        %v5618 = vsel %vm1780, %v5613, %v5617
        %v5619 = vshrl.u32 %v5327, 16
        %v5621 = vrot.slane %v5619, 4
        %v5622 = vor.u32 %v5621, %v5617
        %v5623 = vrot.slane %v5622, 4
        %v5625 = vshll.u32 %v5328, 16
        %v5627 = vrot.slane %v5625, 5
        %v5628 = vsel %vm1780, %v5623, %v5627
        %v5630 = vshrl.u32 %v5329, 16
        %v5632 = vrot.slane %v5630, 4
        %v5633 = vshll.u32 %v5329, 16
        %v5635 = vrot.slane %v5633, 5
        %v5636 = vor.u32 %v5632, %v5635
        %v5637 = vrot.slane %v5636, 4
        %v5639 = vshll.u32 %v5330, 16
        %v5641 = vrot.slane %v5639, 5
        %v5642 = vsel %vm1780, %v5637, %v5641
        %v5643 = vshrl.u32 %v5330, 16
        %v5645 = vrot.slane %v5643, 4
        %v5646 = vor.u32 %v5645, %v5641
        %v5647 = vrot.slane %v5646, 4
        %v5649 = vshll.u32 %v5331, 16
        %v5651 = vrot.slane %v5649, 5
        %v5652 = vsel %vm1780, %v5647, %v5651
        %v5654 = vshrl.u32 %v5332, 16
        %v5656 = vrot.slane %v5654, 4
        %v5657 = vshll.u32 %v5332, 16
        %v5659 = vrot.slane %v5657, 5
        %v5660 = vor.u32 %v5656, %v5659
        %v5661 = vrot.slane %v5660, 4
        %v5663 = vshll.u32 %v5333, 16
        %v5665 = vrot.slane %v5663, 5
        %v5666 = vsel %vm1780, %v5661, %v5665
        %v5667 = vshrl.u32 %v5333, 16
        %v5669 = vrot.slane %v5667, 4
        %v5670 = vor.u32 %v5669, %v5665
        %v5671 = vrot.slane %v5670, 4
        %v5673 = vshll.u32 %v5334, 16
        %v5675 = vrot.slane %v5673, 5
        %v5676 = vsel %vm1780, %v5671, %v5675
        %v5678 = vshrl.u32 %v5335, 16
        %v5680 = vrot.slane %v5678, 4
        %v5681 = vshll.u32 %v5335, 16
        %v5683 = vrot.slane %v5681, 5
        %v5684 = vor.u32 %v5680, %v5683
        %v5685 = vrot.slane %v5684, 4
        %v5687 = vshll.u32 %v5336, 16
        %v5689 = vrot.slane %v5687, 5
        %v5690 = vsel %vm1780, %v5685, %v5689
        %v5691 = vshrl.u32 %v5336, 16
        %v5693 = vrot.slane %v5691, 4
        %v5694 = vor.u32 %v5693, %v5689
        %v5695 = vrot.slane %v5694, 4
        %v5697 = vshll.u32 %v5337, 16
        %v5699 = vrot.slane %v5697, 5
        %v5700 = vsel %vm1780, %v5695, %v5699
        %v5702 = vshrl.u32 %v5338, 16
        %v5704 = vrot.slane %v5702, 4
        %v5705 = vshll.u32 %v5338, 16
        %v5707 = vrot.slane %v5705, 5
        %v5708 = vor.u32 %v5704, %v5707
        %v5709 = vrot.slane %v5708, 4
        %v5711 = vshll.u32 %v5339, 16
        %v5713 = vrot.slane %v5711, 5
        %v5714 = vsel %vm1780, %v5709, %v5713
        %v5715 = vshrl.u32 %v5339, 16
        %v5717 = vrot.slane %v5715, 4
        %v5718 = vor.u32 %v5717, %v5713
        %v5719 = vrot.slane %v5718, 4
        %v5721 = vshll.u32 %v5340, 16
        %v5723 = vrot.slane %v5721, 5
        %v5724 = vsel %vm1780, %v5719, %v5723
        %v5725 = vld [vmem:[#allocation3] sm:$0xff]
        %v5726 = vld [vmem:[#allocation3 + $0x8] sm:$0xff]
        %v5727 = vld [vmem:[#allocation3 + $0x10] sm:$0xff]
        %v5728 = vld [vmem:[#allocation3 + $0x18] sm:$0xff]
        %v5729 = vld [vmem:[#allocation3 + $0x20] sm:$0xff]
        %v5730 = vld [vmem:[#allocation3 + $0x28] sm:$0xff]
        %v5731 = vld [vmem:[#allocation3 + $0x30] sm:$0xff]
        %v5732 = vld [vmem:[#allocation3 + $0x38] sm:$0xff]
        %v5733 = vld [vmem:[#allocation3 + $0x40] sm:$0xff]
        %v5734 = vld [vmem:[#allocation3 + $0x48] sm:$0xff]
        %v5735 = vld [vmem:[#allocation3 + $0x50] sm:$0xff]
        %v5736 = vld [vmem:[#allocation3 + $0x58] sm:$0xff]
        %v5737 = vld [vmem:[#allocation3 + $0x60] sm:$0xff]
        %v5738 = vld [vmem:[#allocation3 + $0x68] sm:$0xff]
        %v5739 = vld [vmem:[#allocation3 + $0x70] sm:$0xff]
        %v5740 = vld [vmem:[#allocation3 + $0x78] sm:$0xff]
        %v5741 = vld [vmem:[#allocation3 + $0x80] sm:$0xff]
        %v5742 = vld [vmem:[#allocation3 + $0x88] sm:$0xff]
        %v5743 = vld [vmem:[#allocation3 + $0x90] sm:$0xff]
        %v5744 = vld [vmem:[#allocation3 + $0x98] sm:$0xff]
        %v5745 = vld [vmem:[#allocation3 + $0xa0] sm:$0xff]
        %v5746 = vld [vmem:[#allocation3 + $0xa8] sm:$0xff]
        %v5747 = vld [vmem:[#allocation3 + $0xb0] sm:$0xff]
        %v5748 = vld [vmem:[#allocation3 + $0xb8] sm:$0xff]
        %v5749 = vld [vmem:[#allocation3 + $0xc0] sm:$0xff]
        %v5750 = vld [vmem:[#allocation3 + $0xc8] sm:$0xff]
        %v5751 = vld [vmem:[#allocation3 + $0xd0] sm:$0xff]
        %v5752 = vld [vmem:[#allocation3 + $0xd8] sm:$0xff]
        %v5753 = vld [vmem:[#allocation3 + $0xe0] sm:$0xff]
        %v5754 = vld [vmem:[#allocation3 + $0xe8] sm:$0xff]
        %v5755 = vld [vmem:[#allocation3 + $0xf0] sm:$0xff]
        %v5756 = vld [vmem:[#allocation3 + $0xf8] sm:$0xff]
        %s5757 = scalar_lea.vmem [#allocation7], 14
        %v5758 = vld [vmem:[%s5757] sm:$0x3]
        %v5759 = vunpack.c.l.b16 %v5354
        %v5760 = vunpack.c.l.b16 %v5364
        %v5761 = vunpack.c.l.b16 %v5378
        %v5762 = vunpack.c.l.b16 %v5388
        %v5763 = vunpack.c.l.b16 %v5402
        %v5764 = vunpack.c.l.b16 %v5412
        %v5765 = vunpack.c.l.b16 %v5426
        %v5766 = vunpack.c.l.b16 %v5436
        %v5767 = vunpack.c.l.b16 %v5450
        %v5768 = vunpack.c.l.b16 %v5460
        %v5769 = vunpack.c.l.b16 %v5474
        %v5770 = vunpack.c.l.b16 %v5484
        %v5771 = vunpack.c.l.b16 %v5498
        %v5772 = vunpack.c.l.b16 %v5508
        %v5773 = vunpack.c.l.b16 %v5522
        %v5774 = vunpack.c.l.b16 %v5532
        %v5775 = vunpack.c.l.b16 %v5546
        %v5776 = vunpack.c.l.b16 %v5556
        %v5777 = vunpack.c.l.b16 %v5570
        %v5778 = vunpack.c.l.b16 %v5580
        %v5779 = vunpack.c.l.b16 %v5594
        %v5780 = vunpack.c.l.b16 %v5604
        %v5781 = vunpack.c.l.b16 %v5618
        %v5782 = vunpack.c.l.b16 %v5628
        %v5783 = vunpack.c.l.b16 %v5642
        %v5784 = vunpack.c.l.b16 %v5652
        %v5785 = vunpack.c.l.b16 %v5666
        %v5786 = vunpack.c.l.b16 %v5676
        %v5787 = vunpack.c.l.b16 %v5690
        %v5788 = vunpack.c.l.b16 %v5700
        %v5789 = vunpack.c.l.b16 %v5714
        %v5790 = vunpack.c.l.b16 %v5724
        %v5791 = vpack.c.b16 %v5760, %v5759
        %v5792 = vpack.c.b16 %v5762, %v5761
        %v5793 = vpack.c.b16 %v5764, %v5763
        %v5794 = vpack.c.b16 %v5766, %v5765
        %v5795 = vpack.c.b16 %v5768, %v5767
        %v5796 = vpack.c.b16 %v5770, %v5769
        %v5797 = vpack.c.b16 %v5772, %v5771
        %v5798 = vpack.c.b16 %v5774, %v5773
        %v5799 = vpack.c.b16 %v5776, %v5775
        %v5800 = vpack.c.b16 %v5778, %v5777
        %v5801 = vpack.c.b16 %v5780, %v5779
        %v5802 = vpack.c.b16 %v5782, %v5781
        %v5803 = vpack.c.b16 %v5784, %v5783
        %v5804 = vpack.c.b16 %v5786, %v5785
        %v5805 = vpack.c.b16 %v5788, %v5787
        %v5806 = vpack.c.b16 %v5790, %v5789
        %v5808 = vsel %vm1275, %v5791, 0
        %v5811 = vsel %vm1275, %v5792, 0
        %v5814 = vsel %vm1275, %v5793, 0
        %v5817 = vsel %vm1275, %v5794, 0
        %v5820 = vsel %vm1275, %v5795, 0
        %v5823 = vsel %vm1275, %v5796, 0
        %v5826 = vsel %vm1275, %v5797, 0
        %v5829 = vsel %vm1275, %v5798, 0
        %v5832 = vsel %vm1275, %v5799, 0
        %v5835 = vsel %vm1275, %v5800, 0
        %v5838 = vsel %vm1275, %v5801, 0
        %v5841 = vsel %vm1275, %v5802, 0
        %v5844 = vsel %vm1275, %v5803, 0
        %v5847 = vsel %vm1275, %v5804, 0
        %v5850 = vsel %vm1275, %v5805, 0
        %v5853 = vsel %vm1275, %v5806, 0
        %v5856 = vsel %vm1501, %v5758, 0
        %5858 = vmatprep.subr.bf16.mxu0 0
        %5859 = vmatpush1.bf16.msra.mxu0 %v5856
        %5860 = vmatprep.subr.bf16.mxu0 0
        %5861 = vmatpush1.bf16.msra.mxu0 0
        %5862 = vmatprep.subr.bf16.mxu0 0
        %5863 = vmatpush1.bf16.msra.mxu0 0
        %5864 = vmatprep.subr.bf16.mxu0 0
        %5865 = vmatpush1.bf16.msra.mxu0 0
        %5866 = vmatprep.subr.bf16.mxu0 0
        %5867 = vmatpush1.bf16.msra.mxu0 0
        %5868 = vmatprep.subr.bf16.mxu0 0
        %5869 = vmatpush1.bf16.msra.mxu0 0
        %5870 = vmatprep.subr.bf16.mxu0 0
        %5871 = vmatpush1.bf16.msra.mxu0 0
        %5872 = vmatprep.subr.bf16.mxu0 0
        %5873 = vmatpush1.bf16.msra.mxu0 0
        %5874 = vmatprep.subr.bf16.mxu0 0
        %5875 = vmatpush1.bf16.msra.mxu0 0
        %5876 = vmatprep.subr.bf16.mxu0 0
        %5877 = vmatpush1.bf16.msra.mxu0 0
        %5878 = vmatprep.subr.bf16.mxu0 0
        %5879 = vmatpush1.bf16.msra.mxu0 0
        %5880 = vmatprep.subr.bf16.mxu0 0
        %5881 = vmatpush1.bf16.msra.mxu0 0
        %5882 = vmatprep.subr.bf16.mxu0 0
        %5883 = vmatpush1.bf16.msra.mxu0 0
        %5884 = vmatprep.subr.bf16.mxu0 0
        %5885 = vmatpush1.bf16.msra.mxu0 0
        %5886 = vmatprep.subr.bf16.mxu0 0
        %5887 = vmatpush1.bf16.msra.mxu0 0
        %5888 = vmatprep.subr.bf16.mxu0 0
        %5889 = vmatpush1.bf16.msra.mxu0 0
        %5890 = vmatprep.mubr.bf16.mxu0 0
        %5891 = vmatmul.mubr.bf16.gmra.mrb[0].mxu0 %v5808
        %v5892 = vpop.f32.mrb[0].mxu0
        %v5893 = vadd.f32 0.0, %v5892
        %v5894 = vpop.f32.mrb[0].mxu0
        %v5895 = vpop.f32.mrb[0].mxu0
        %v5896 = vadd.f32 0.0, %v5895
        %v5897 = vpop.f32.mrb[0].mxu0
        %5898 = vmatprep.mubr.bf16.mxu0 0
        %5899 = vmatmul.mubr.bf16.gmra.mrb[0].mxu0 %v5811
        %v5900 = vpop.f32.mrb[0].mxu0
        %v5901 = vadd.f32 0.0, %v5900
        %v5902 = vpop.f32.mrb[0].mxu0
        %v5903 = vpop.f32.mrb[0].mxu0
        %v5904 = vadd.f32 0.0, %v5903
        %v5905 = vpop.f32.mrb[0].mxu0
        %5906 = vmatprep.mubr.bf16.mxu0 0
        %5907 = vmatmul.mubr.bf16.gmra.mrb[0].mxu0 %v5814
        %v5908 = vpop.f32.mrb[0].mxu0
        %v5909 = vadd.f32 0.0, %v5908
        %v5910 = vpop.f32.mrb[0].mxu0
        %v5911 = vpop.f32.mrb[0].mxu0
        %v5912 = vadd.f32 0.0, %v5911
        %v5913 = vpop.f32.mrb[0].mxu0
        %5914 = vmatprep.mubr.bf16.mxu0 0
        %5915 = vmatmul.mubr.bf16.gmra.mrb[0].mxu0 %v5817
        %v5916 = vpop.f32.mrb[0].mxu0
        %v5917 = vadd.f32 0.0, %v5916
        %v5918 = vpop.f32.mrb[0].mxu0
        %v5919 = vpop.f32.mrb[0].mxu0
        %v5920 = vadd.f32 0.0, %v5919
        %v5921 = vpop.f32.mrb[0].mxu0
        %5922 = vmatprep.mubr.bf16.mxu0 0
        %5923 = vmatmul.mubr.bf16.gmra.mrb[0].mxu0 %v5820
        %v5924 = vpop.f32.mrb[0].mxu0
        %v5925 = vadd.f32 0.0, %v5924
        %v5926 = vpop.f32.mrb[0].mxu0
        %v5927 = vpop.f32.mrb[0].mxu0
        %v5928 = vadd.f32 0.0, %v5927
        %v5929 = vpop.f32.mrb[0].mxu0
        %5930 = vmatprep.mubr.bf16.mxu0 0
        %5931 = vmatmul.mubr.bf16.gmra.mrb[0].mxu0 %v5823
        %v5932 = vpop.f32.mrb[0].mxu0
        %v5933 = vadd.f32 0.0, %v5932
        %v5934 = vpop.f32.mrb[0].mxu0
        %v5935 = vpop.f32.mrb[0].mxu0
        %v5936 = vadd.f32 0.0, %v5935
        %v5937 = vpop.f32.mrb[0].mxu0
        %5938 = vmatprep.mubr.bf16.mxu0 0
        %5939 = vmatmul.mubr.bf16.gmra.mrb[0].mxu0 %v5826
        %v5940 = vpop.f32.mrb[0].mxu0
        %v5941 = vadd.f32 0.0, %v5940
        %v5942 = vpop.f32.mrb[0].mxu0
        %v5943 = vpop.f32.mrb[0].mxu0
        %v5944 = vadd.f32 0.0, %v5943
        %v5945 = vpop.f32.mrb[0].mxu0
        %5946 = vmatprep.mubr.bf16.mxu0 0
        %5947 = vmatmul.mubr.bf16.gmra.mrb[0].mxu0 %v5829
        %v5948 = vpop.f32.mrb[0].mxu0
        %v5949 = vadd.f32 0.0, %v5948
        %v5950 = vpop.f32.mrb[0].mxu0
        %v5951 = vpop.f32.mrb[0].mxu0
        %v5952 = vadd.f32 0.0, %v5951
        %v5953 = vpop.f32.mrb[0].mxu0
        %5954 = vmatprep.mubr.bf16.mxu0 0
        %5955 = vmatmul.mubr.bf16.gmra.mrb[0].mxu0 %v5832
        %v5956 = vpop.f32.mrb[0].mxu0
        %v5957 = vadd.f32 0.0, %v5956
        %v5958 = vpop.f32.mrb[0].mxu0
        %v5959 = vpop.f32.mrb[0].mxu0
        %v5960 = vadd.f32 0.0, %v5959
        %v5961 = vpop.f32.mrb[0].mxu0
        %5962 = vmatprep.mubr.bf16.mxu0 0
        %5963 = vmatmul.mubr.bf16.gmra.mrb[0].mxu0 %v5835
        %v5964 = vpop.f32.mrb[0].mxu0
        %v5965 = vadd.f32 0.0, %v5964
        %v5966 = vpop.f32.mrb[0].mxu0
        %v5967 = vpop.f32.mrb[0].mxu0
        %v5968 = vadd.f32 0.0, %v5967
        %v5969 = vpop.f32.mrb[0].mxu0
        %5970 = vmatprep.mubr.bf16.mxu0 0
        %5971 = vmatmul.mubr.bf16.gmra.mrb[0].mxu0 %v5838
        %v5972 = vpop.f32.mrb[0].mxu0
        %v5973 = vadd.f32 0.0, %v5972
        %v5974 = vpop.f32.mrb[0].mxu0
        %v5975 = vpop.f32.mrb[0].mxu0
        %v5976 = vadd.f32 0.0, %v5975
        %v5977 = vpop.f32.mrb[0].mxu0
        %5978 = vmatprep.mubr.bf16.mxu0 0
        %5979 = vmatmul.mubr.bf16.gmra.mrb[0].mxu0 %v5841
        %v5980 = vpop.f32.mrb[0].mxu0
        %v5981 = vadd.f32 0.0, %v5980
        %v5982 = vpop.f32.mrb[0].mxu0
        %v5983 = vpop.f32.mrb[0].mxu0
        %v5984 = vadd.f32 0.0, %v5983
        %v5985 = vpop.f32.mrb[0].mxu0
        %5986 = vmatprep.mubr.bf16.mxu0 0
        %5987 = vmatmul.mubr.bf16.gmra.mrb[0].mxu0 %v5844
        %v5988 = vpop.f32.mrb[0].mxu0
        %v5989 = vadd.f32 0.0, %v5988
        %v5990 = vpop.f32.mrb[0].mxu0
        %v5991 = vpop.f32.mrb[0].mxu0
        %v5992 = vadd.f32 0.0, %v5991
        %v5993 = vpop.f32.mrb[0].mxu0
        %5994 = vmatprep.mubr.bf16.mxu0 0
        %5995 = vmatmul.mubr.bf16.gmra.mrb[0].mxu0 %v5847
        %v5996 = vpop.f32.mrb[0].mxu0
        %v5997 = vadd.f32 0.0, %v5996
        %v5998 = vpop.f32.mrb[0].mxu0
        %v5999 = vpop.f32.mrb[0].mxu0
        %v6000 = vadd.f32 0.0, %v5999
        %v6001 = vpop.f32.mrb[0].mxu0
        %6002 = vmatprep.mubr.bf16.mxu0 0
        %6003 = vmatmul.mubr.bf16.gmra.mrb[0].mxu0 %v5850
        %v6004 = vpop.f32.mrb[0].mxu0
        %v6005 = vadd.f32 0.0, %v6004
        %v6006 = vpop.f32.mrb[0].mxu0
        %v6007 = vpop.f32.mrb[0].mxu0
        %v6008 = vadd.f32 0.0, %v6007
        %v6009 = vpop.f32.mrb[0].mxu0
        %6010 = vmatprep.mubr.bf16.mxu0 0
        %6011 = vmatmul.mubr.bf16.gmra.mrb[0].mxu0 %v5853
        %v6012 = vpop.f32.mrb[0].mxu0
        %v6013 = vadd.f32 0.0, %v6012
        %v6014 = vpop.f32.mrb[0].mxu0
        %v6015 = vpop.f32.mrb[0].mxu0
        %v6016 = vadd.f32 0.0, %v6015
        %v6017 = vpop.f32.mrb[0].mxu0
        %6018 = vdwg.mxu0
        %v6019 = vadd.f32 %v5725, %v5893
        %v6020 = vadd.f32 %v5726, %v5896
        %v6021 = vadd.f32 %v5727, %v5901
        %v6022 = vadd.f32 %v5728, %v5904
        %v6023 = vadd.f32 %v5729, %v5909
        %v6024 = vadd.f32 %v5730, %v5912
        %v6025 = vadd.f32 %v5731, %v5917
        %v6026 = vadd.f32 %v5732, %v5920
        %v6027 = vadd.f32 %v5733, %v5925
        %v6028 = vadd.f32 %v5734, %v5928
        %v6029 = vadd.f32 %v5735, %v5933
        %v6030 = vadd.f32 %v5736, %v5936
        %v6031 = vadd.f32 %v5737, %v5941
        %v6032 = vadd.f32 %v5738, %v5944
        %v6033 = vadd.f32 %v5739, %v5949
        %v6034 = vadd.f32 %v5740, %v5952
        %v6035 = vadd.f32 %v5741, %v5957
        %v6036 = vadd.f32 %v5742, %v5960
        %v6037 = vadd.f32 %v5743, %v5965
        %v6038 = vadd.f32 %v5744, %v5968
        %v6039 = vadd.f32 %v5745, %v5973
        %v6040 = vadd.f32 %v5746, %v5976
        %v6041 = vadd.f32 %v5747, %v5981
        %v6042 = vadd.f32 %v5748, %v5984
        %v6043 = vadd.f32 %v5749, %v5989
        %v6044 = vadd.f32 %v5750, %v5992
        %v6045 = vadd.f32 %v5751, %v5997
        %v6046 = vadd.f32 %v5752, %v6000
        %v6047 = vadd.f32 %v5753, %v6005
        %v6048 = vadd.f32 %v5754, %v6008
        %v6049 = vadd.f32 %v5755, %v6013
        %v6050 = vadd.f32 %v5756, %v6016
        %6051 = vst.msk [vmem:[#allocation3] sm:$0xff] %vm1275, %v6019
        %6052 = vst.msk [vmem:[#allocation3 + $0x8] sm:$0xff] %vm1275, %v6020
        %6053 = vst.msk [vmem:[#allocation3 + $0x10] sm:$0xff] %vm1275, %v6021
        %6054 = vst.msk [vmem:[#allocation3 + $0x18] sm:$0xff] %vm1275, %v6022
        %6055 = vst.msk [vmem:[#allocation3 + $0x20] sm:$0xff] %vm1275, %v6023
        %6056 = vst.msk [vmem:[#allocation3 + $0x28] sm:$0xff] %vm1275, %v6024
        %6057 = vst.msk [vmem:[#allocation3 + $0x30] sm:$0xff] %vm1275, %v6025
        %6058 = vst.msk [vmem:[#allocation3 + $0x38] sm:$0xff] %vm1275, %v6026
        %6059 = vst.msk [vmem:[#allocation3 + $0x40] sm:$0xff] %vm1275, %v6027
        %6060 = vst.msk [vmem:[#allocation3 + $0x48] sm:$0xff] %vm1275, %v6028
        %6061 = vst.msk [vmem:[#allocation3 + $0x50] sm:$0xff] %vm1275, %v6029
        %6062 = vst.msk [vmem:[#allocation3 + $0x58] sm:$0xff] %vm1275, %v6030
        %6063 = vst.msk [vmem:[#allocation3 + $0x60] sm:$0xff] %vm1275, %v6031
        %6064 = vst.msk [vmem:[#allocation3 + $0x68] sm:$0xff] %vm1275, %v6032
        %6065 = vst.msk [vmem:[#allocation3 + $0x70] sm:$0xff] %vm1275, %v6033
        %6066 = vst.msk [vmem:[#allocation3 + $0x78] sm:$0xff] %vm1275, %v6034
        %6067 = vst.msk [vmem:[#allocation3 + $0x80] sm:$0xff] %vm1275, %v6035
        %6068 = vst.msk [vmem:[#allocation3 + $0x88] sm:$0xff] %vm1275, %v6036
        %6069 = vst.msk [vmem:[#allocation3 + $0x90] sm:$0xff] %vm1275, %v6037
        %6070 = vst.msk [vmem:[#allocation3 + $0x98] sm:$0xff] %vm1275, %v6038
        %6071 = vst.msk [vmem:[#allocation3 + $0xa0] sm:$0xff] %vm1275, %v6039
        %6072 = vst.msk [vmem:[#allocation3 + $0xa8] sm:$0xff] %vm1275, %v6040
        %6073 = vst.msk [vmem:[#allocation3 + $0xb0] sm:$0xff] %vm1275, %v6041
        %6074 = vst.msk [vmem:[#allocation3 + $0xb8] sm:$0xff] %vm1275, %v6042
        %6075 = vst.msk [vmem:[#allocation3 + $0xc0] sm:$0xff] %vm1275, %v6043
        %6076 = vst.msk [vmem:[#allocation3 + $0xc8] sm:$0xff] %vm1275, %v6044
        %6077 = vst.msk [vmem:[#allocation3 + $0xd0] sm:$0xff] %vm1275, %v6045
        %6078 = vst.msk [vmem:[#allocation3 + $0xd8] sm:$0xff] %vm1275, %v6046
        %6079 = vst.msk [vmem:[#allocation3 + $0xe0] sm:$0xff] %vm1275, %v6047
        %6080 = vst.msk [vmem:[#allocation3 + $0xe8] sm:$0xff] %vm1275, %v6048
        %6081 = vst.msk [vmem:[#allocation3 + $0xf0] sm:$0xff] %vm1275, %v6049
        %6082 = vst.msk [vmem:[#allocation3 + $0xf8] sm:$0xff] %vm1275, %v6050
        %v6083 = vld [vmem:[%s4870] sm:$0xe]
        %v6084 = vld [vmem:[%s4870 + $0x4] sm:$0xf]
        %v6085 = vld [vmem:[%s4870 + $0x8] sm:$0x1]
        %v6086 = vld [vmem:[%s4870 + $0xc] sm:$0xe]
        %v6087 = vld [vmem:[%s4870 + $0x10] sm:$0xf]
        %v6088 = vld [vmem:[%s4870 + $0x14] sm:$0x1]
        %v6089 = vld [vmem:[%s4870 + $0x18] sm:$0xe]
        %v6090 = vld [vmem:[%s4870 + $0x1c] sm:$0xf]
        %v6091 = vld [vmem:[%s4870 + $0x20] sm:$0x1]
        %v6092 = vld [vmem:[%s4870 + $0x24] sm:$0xe]
        %v6093 = vld [vmem:[%s4870 + $0x28] sm:$0xf]
        %v6094 = vld [vmem:[%s4870 + $0x2c] sm:$0x1]
        %v6095 = vld [vmem:[%s4870 + $0x30] sm:$0xe]
        %v6096 = vld [vmem:[%s4870 + $0x34] sm:$0xf]
        %v6097 = vld [vmem:[%s4870 + $0x38] sm:$0x1]
        %v6098 = vld [vmem:[%s4870 + $0x3c] sm:$0xe]
        %v6099 = vld [vmem:[%s4870 + $0x40] sm:$0xf]
        %v6100 = vld [vmem:[%s4870 + $0x44] sm:$0x1]
        %v6101 = vld [vmem:[%s4870 + $0x48] sm:$0xe]
        %v6102 = vld [vmem:[%s4870 + $0x4c] sm:$0xf]
        %v6103 = vld [vmem:[%s4870 + $0x50] sm:$0x1]
        %v6104 = vld [vmem:[%s4870 + $0x54] sm:$0xe]
        %v6105 = vld [vmem:[%s4870 + $0x58] sm:$0xf]
        %v6106 = vld [vmem:[%s4870 + $0x5c] sm:$0x1]
        %v6107 = vld [vmem:[%s4870 + $0x60] sm:$0xe]
        %v6108 = vld [vmem:[%s4870 + $0x64] sm:$0xf]
        %v6109 = vld [vmem:[%s4870 + $0x68] sm:$0x1]
        %v6110 = vld [vmem:[%s4870 + $0x6c] sm:$0xe]
        %v6111 = vld [vmem:[%s4870 + $0x70] sm:$0xf]
        %v6112 = vld [vmem:[%s4870 + $0x74] sm:$0x1]
        %v6113 = vld [vmem:[%s4870 + $0x78] sm:$0xe]
        %v6114 = vld [vmem:[%s4870 + $0x7c] sm:$0xf]
        %v6115 = vld [vmem:[%s4870 + $0x80] sm:$0x1]
        %v6116 = vld [vmem:[%s4870 + $0x84] sm:$0xe]
        %v6117 = vld [vmem:[%s4870 + $0x88] sm:$0xf]
        %v6118 = vld [vmem:[%s4870 + $0x8c] sm:$0x1]
        %v6119 = vld [vmem:[%s4870 + $0x90] sm:$0xe]
        %v6120 = vld [vmem:[%s4870 + $0x94] sm:$0xf]
        %v6121 = vld [vmem:[%s4870 + $0x98] sm:$0x1]
        %v6122 = vld [vmem:[%s4870 + $0x9c] sm:$0xe]
        %v6123 = vld [vmem:[%s4870 + $0xa0] sm:$0xf]
        %v6124 = vld [vmem:[%s4870 + $0xa4] sm:$0x1]
        %v6125 = vld [vmem:[%s4870 + $0xa8] sm:$0xe]
        %v6126 = vld [vmem:[%s4870 + $0xac] sm:$0xf]
        %v6127 = vld [vmem:[%s4870 + $0xb0] sm:$0x1]
        %v6128 = vld [vmem:[%s4870 + $0xb4] sm:$0xe]
        %v6129 = vld [vmem:[%s4870 + $0xb8] sm:$0xf]
        %v6130 = vld [vmem:[%s4870 + $0xbc] sm:$0x1]
        %v6179 = vrot.slane %v6083, 5
        %v6180 = vrot.slane %v6179, 4
        %v6181 = vrot.slane %v6084, 5
        %v6182 = vsel %vm2621, %v6180, %v6181
        %v6183 = vrot.slane %v6181, 4
        %v6184 = vrot.slane %v6085, 5
        %v6185 = vsel %vm2621, %v6183, %v6184
        %v6186 = vrot.slane %v6086, 5
        %v6187 = vrot.slane %v6186, 4
        %v6188 = vrot.slane %v6087, 5
        %v6189 = vsel %vm2621, %v6187, %v6188
        %v6190 = vrot.slane %v6188, 4
        %v6191 = vrot.slane %v6088, 5
        %v6192 = vsel %vm2621, %v6190, %v6191
        %v6193 = vrot.slane %v6089, 5
        %v6194 = vrot.slane %v6193, 4
        %v6195 = vrot.slane %v6090, 5
        %v6196 = vsel %vm2621, %v6194, %v6195
        %v6197 = vrot.slane %v6195, 4
        %v6198 = vrot.slane %v6091, 5
        %v6199 = vsel %vm2621, %v6197, %v6198
        %v6200 = vrot.slane %v6092, 5
        %v6201 = vrot.slane %v6200, 4
        %v6202 = vrot.slane %v6093, 5
        %v6203 = vsel %vm2621, %v6201, %v6202
        %v6204 = vrot.slane %v6202, 4
        %v6205 = vrot.slane %v6094, 5
        %v6206 = vsel %vm2621, %v6204, %v6205
        %v6207 = vrot.slane %v6095, 5
        %v6208 = vrot.slane %v6207, 4
        %v6209 = vrot.slane %v6096, 5
        %v6210 = vsel %vm2621, %v6208, %v6209
        %v6211 = vrot.slane %v6209, 4
        %v6212 = vrot.slane %v6097, 5
        %v6213 = vsel %vm2621, %v6211, %v6212
        %v6214 = vrot.slane %v6098, 5
        %v6215 = vrot.slane %v6214, 4
        %v6216 = vrot.slane %v6099, 5
        %v6217 = vsel %vm2621, %v6215, %v6216
        %v6218 = vrot.slane %v6216, 4
        %v6219 = vrot.slane %v6100, 5
        %v6220 = vsel %vm2621, %v6218, %v6219
        %v6221 = vrot.slane %v6101, 5
        %v6222 = vrot.slane %v6221, 4
        %v6223 = vrot.slane %v6102, 5
        %v6224 = vsel %vm2621, %v6222, %v6223
        %v6225 = vrot.slane %v6223, 4
        %v6226 = vrot.slane %v6103, 5
        %v6227 = vsel %vm2621, %v6225, %v6226
        %v6228 = vrot.slane %v6104, 5
        %v6229 = vrot.slane %v6228, 4
        %v6230 = vrot.slane %v6105, 5
        %v6231 = vsel %vm2621, %v6229, %v6230
        %v6232 = vrot.slane %v6230, 4
        %v6233 = vrot.slane %v6106, 5
        %v6234 = vsel %vm2621, %v6232, %v6233
        %v6235 = vrot.slane %v6107, 5
        %v6236 = vrot.slane %v6235, 4
        %v6237 = vrot.slane %v6108, 5
        %v6238 = vsel %vm2621, %v6236, %v6237
        %v6239 = vrot.slane %v6237, 4
        %v6240 = vrot.slane %v6109, 5
        %v6241 = vsel %vm2621, %v6239, %v6240
        %v6242 = vrot.slane %v6110, 5
        %v6243 = vrot.slane %v6242, 4
        %v6244 = vrot.slane %v6111, 5
        %v6245 = vsel %vm2621, %v6243, %v6244
        %v6246 = vrot.slane %v6244, 4
        %v6247 = vrot.slane %v6112, 5
        %v6248 = vsel %vm2621, %v6246, %v6247
        %v6249 = vrot.slane %v6113, 5
        %v6250 = vrot.slane %v6249, 4
        %v6251 = vrot.slane %v6114, 5
        %v6252 = vsel %vm2621, %v6250, %v6251
        %v6253 = vrot.slane %v6251, 4
        %v6254 = vrot.slane %v6115, 5
        %v6255 = vsel %vm2621, %v6253, %v6254
        %v6256 = vrot.slane %v6116, 5
        %v6257 = vrot.slane %v6256, 4
        %v6258 = vrot.slane %v6117, 5
        %v6259 = vsel %vm2621, %v6257, %v6258
        %v6260 = vrot.slane %v6258, 4
        %v6261 = vrot.slane %v6118, 5
        %v6262 = vsel %vm2621, %v6260, %v6261
        %v6263 = vrot.slane %v6119, 5
        %v6264 = vrot.slane %v6263, 4
        %v6265 = vrot.slane %v6120, 5
        %v6266 = vsel %vm2621, %v6264, %v6265
        %v6267 = vrot.slane %v6265, 4
        %v6268 = vrot.slane %v6121, 5
        %v6269 = vsel %vm2621, %v6267, %v6268
        %v6270 = vrot.slane %v6122, 5
        %v6271 = vrot.slane %v6270, 4
        %v6272 = vrot.slane %v6123, 5
        %v6273 = vsel %vm2621, %v6271, %v6272
        %v6274 = vrot.slane %v6272, 4
        %v6275 = vrot.slane %v6124, 5
        %v6276 = vsel %vm2621, %v6274, %v6275
        %v6277 = vrot.slane %v6125, 5
        %v6278 = vrot.slane %v6277, 4
        %v6279 = vrot.slane %v6126, 5
        %v6280 = vsel %vm2621, %v6278, %v6279
        %v6281 = vrot.slane %v6279, 4
        %v6282 = vrot.slane %v6127, 5
        %v6283 = vsel %vm2621, %v6281, %v6282
        %v6284 = vrot.slane %v6128, 5
        %v6285 = vrot.slane %v6284, 4
        %v6286 = vrot.slane %v6129, 5
        %v6287 = vsel %vm2621, %v6285, %v6286
        %v6288 = vrot.slane %v6286, 4
        %v6289 = vrot.slane %v6130, 5
        %v6290 = vsel %vm2621, %v6288, %v6289
        %v6291 = vld [vmem:[#allocation3] sm:$0xff]
        %v6292 = vld [vmem:[#allocation3 + $0x8] sm:$0xff]
        %v6293 = vld [vmem:[#allocation3 + $0x10] sm:$0xff]
        %v6294 = vld [vmem:[#allocation3 + $0x18] sm:$0xff]
        %v6295 = vld [vmem:[#allocation3 + $0x20] sm:$0xff]
        %v6296 = vld [vmem:[#allocation3 + $0x28] sm:$0xff]
        %v6297 = vld [vmem:[#allocation3 + $0x30] sm:$0xff]
        %v6298 = vld [vmem:[#allocation3 + $0x38] sm:$0xff]
        %v6299 = vld [vmem:[#allocation3 + $0x40] sm:$0xff]
        %v6300 = vld [vmem:[#allocation3 + $0x48] sm:$0xff]
        %v6301 = vld [vmem:[#allocation3 + $0x50] sm:$0xff]
        %v6302 = vld [vmem:[#allocation3 + $0x58] sm:$0xff]
        %v6303 = vld [vmem:[#allocation3 + $0x60] sm:$0xff]
        %v6304 = vld [vmem:[#allocation3 + $0x68] sm:$0xff]
        %v6305 = vld [vmem:[#allocation3 + $0x70] sm:$0xff]
        %v6306 = vld [vmem:[#allocation3 + $0x78] sm:$0xff]
        %v6307 = vld [vmem:[#allocation3 + $0x80] sm:$0xff]
        %v6308 = vld [vmem:[#allocation3 + $0x88] sm:$0xff]
        %v6309 = vld [vmem:[#allocation3 + $0x90] sm:$0xff]
        %v6310 = vld [vmem:[#allocation3 + $0x98] sm:$0xff]
        %v6311 = vld [vmem:[#allocation3 + $0xa0] sm:$0xff]
        %v6312 = vld [vmem:[#allocation3 + $0xa8] sm:$0xff]
        %v6313 = vld [vmem:[#allocation3 + $0xb0] sm:$0xff]
        %v6314 = vld [vmem:[#allocation3 + $0xb8] sm:$0xff]
        %v6315 = vld [vmem:[#allocation3 + $0xc0] sm:$0xff]
        %v6316 = vld [vmem:[#allocation3 + $0xc8] sm:$0xff]
        %v6317 = vld [vmem:[#allocation3 + $0xd0] sm:$0xff]
        %v6318 = vld [vmem:[#allocation3 + $0xd8] sm:$0xff]
        %v6319 = vld [vmem:[#allocation3 + $0xe0] sm:$0xff]
        %v6320 = vld [vmem:[#allocation3 + $0xe8] sm:$0xff]
        %v6321 = vld [vmem:[#allocation3 + $0xf0] sm:$0xff]
        %v6322 = vld [vmem:[#allocation3 + $0xf8] sm:$0xff]
        %s6323 = scalar_lea.vmem [#allocation7], 16
        %v6324 = vld [vmem:[%s6323] sm:$0x3]
        %v6325 = vunpack.c.l.b16 %v6182
        %v6326 = vunpack.c.l.b16 %v6185
        %v6327 = vunpack.c.l.b16 %v6189
        %v6328 = vunpack.c.l.b16 %v6192
        %v6329 = vunpack.c.l.b16 %v6196
        %v6330 = vunpack.c.l.b16 %v6199
        %v6331 = vunpack.c.l.b16 %v6203
        %v6332 = vunpack.c.l.b16 %v6206
        %v6333 = vunpack.c.l.b16 %v6210
        %v6334 = vunpack.c.l.b16 %v6213
        %v6335 = vunpack.c.l.b16 %v6217
        %v6336 = vunpack.c.l.b16 %v6220
        %v6337 = vunpack.c.l.b16 %v6224
        %v6338 = vunpack.c.l.b16 %v6227
        %v6339 = vunpack.c.l.b16 %v6231
        %v6340 = vunpack.c.l.b16 %v6234
        %v6341 = vunpack.c.l.b16 %v6238
        %v6342 = vunpack.c.l.b16 %v6241
        %v6343 = vunpack.c.l.b16 %v6245
        %v6344 = vunpack.c.l.b16 %v6248
        %v6345 = vunpack.c.l.b16 %v6252
        %v6346 = vunpack.c.l.b16 %v6255
        %v6347 = vunpack.c.l.b16 %v6259
        %v6348 = vunpack.c.l.b16 %v6262
        %v6349 = vunpack.c.l.b16 %v6266
        %v6350 = vunpack.c.l.b16 %v6269
        %v6351 = vunpack.c.l.b16 %v6273
        %v6352 = vunpack.c.l.b16 %v6276
        %v6353 = vunpack.c.l.b16 %v6280
        %v6354 = vunpack.c.l.b16 %v6283
        %v6355 = vunpack.c.l.b16 %v6287
        %v6356 = vunpack.c.l.b16 %v6290
        %v6357 = vpack.c.b16 %v6326, %v6325
        %v6358 = vpack.c.b16 %v6328, %v6327
        %v6359 = vpack.c.b16 %v6330, %v6329
        %v6360 = vpack.c.b16 %v6332, %v6331
        %v6361 = vpack.c.b16 %v6334, %v6333
        %v6362 = vpack.c.b16 %v6336, %v6335
        %v6363 = vpack.c.b16 %v6338, %v6337
        %v6364 = vpack.c.b16 %v6340, %v6339
        %v6365 = vpack.c.b16 %v6342, %v6341
        %v6366 = vpack.c.b16 %v6344, %v6343
        %v6367 = vpack.c.b16 %v6346, %v6345
        %v6368 = vpack.c.b16 %v6348, %v6347
        %v6369 = vpack.c.b16 %v6350, %v6349
        %v6370 = vpack.c.b16 %v6352, %v6351
        %v6371 = vpack.c.b16 %v6354, %v6353
        %v6372 = vpack.c.b16 %v6356, %v6355
        %v6374 = vsel %vm1275, %v6357, 0
        %v6377 = vsel %vm1275, %v6358, 0
        %v6380 = vsel %vm1275, %v6359, 0
        %v6383 = vsel %vm1275, %v6360, 0
        %v6386 = vsel %vm1275, %v6361, 0
        %v6389 = vsel %vm1275, %v6362, 0
        %v6392 = vsel %vm1275, %v6363, 0
        %v6395 = vsel %vm1275, %v6364, 0
        %v6398 = vsel %vm1275, %v6365, 0
        %v6401 = vsel %vm1275, %v6366, 0
        %v6404 = vsel %vm1275, %v6367, 0
        %v6407 = vsel %vm1275, %v6368, 0
        %v6410 = vsel %vm1275, %v6369, 0
        %v6413 = vsel %vm1275, %v6370, 0
        %v6416 = vsel %vm1275, %v6371, 0
        %v6419 = vsel %vm1275, %v6372, 0
        %v6422 = vsel %vm1501, %v6324, 0
        %6424 = vmatprep.subr.bf16.mxu0 0
        %6425 = vmatpush1.bf16.msra.mxu0 %v6422
        %6426 = vmatprep.subr.bf16.mxu0 0
        %6427 = vmatpush1.bf16.msra.mxu0 0
        %6428 = vmatprep.subr.bf16.mxu0 0
        %6429 = vmatpush1.bf16.msra.mxu0 0
        %6430 = vmatprep.subr.bf16.mxu0 0
        %6431 = vmatpush1.bf16.msra.mxu0 0
        %6432 = vmatprep.subr.bf16.mxu0 0
        %6433 = vmatpush1.bf16.msra.mxu0 0
        %6434 = vmatprep.subr.bf16.mxu0 0
        %6435 = vmatpush1.bf16.msra.mxu0 0
        %6436 = vmatprep.subr.bf16.mxu0 0
        %6437 = vmatpush1.bf16.msra.mxu0 0
        %6438 = vmatprep.subr.bf16.mxu0 0
        %6439 = vmatpush1.bf16.msra.mxu0 0
        %6440 = vmatprep.subr.bf16.mxu0 0
        %6441 = vmatpush1.bf16.msra.mxu0 0
        %6442 = vmatprep.subr.bf16.mxu0 0
        %6443 = vmatpush1.bf16.msra.mxu0 0
        %6444 = vmatprep.subr.bf16.mxu0 0
        %6445 = vmatpush1.bf16.msra.mxu0 0
        %6446 = vmatprep.subr.bf16.mxu0 0
        %6447 = vmatpush1.bf16.msra.mxu0 0
        %6448 = vmatprep.subr.bf16.mxu0 0
        %6449 = vmatpush1.bf16.msra.mxu0 0
        %6450 = vmatprep.subr.bf16.mxu0 0
        %6451 = vmatpush1.bf16.msra.mxu0 0
        %6452 = vmatprep.subr.bf16.mxu0 0
        %6453 = vmatpush1.bf16.msra.mxu0 0
        %6454 = vmatprep.subr.bf16.mxu0 0
        %6455 = vmatpush1.bf16.msra.mxu0 0
        %6456 = vmatprep.mubr.bf16.mxu0 0
        %6457 = vmatmul.mubr.bf16.gmra.mrb[0].mxu0 %v6374
        %v6458 = vpop.f32.mrb[0].mxu0
        %v6459 = vadd.f32 0.0, %v6458
        %v6460 = vpop.f32.mrb[0].mxu0
        %v6461 = vpop.f32.mrb[0].mxu0
        %v6462 = vadd.f32 0.0, %v6461
        %v6463 = vpop.f32.mrb[0].mxu0
        %6464 = vmatprep.mubr.bf16.mxu0 0
        %6465 = vmatmul.mubr.bf16.gmra.mrb[0].mxu0 %v6377
        %v6466 = vpop.f32.mrb[0].mxu0
        %v6467 = vadd.f32 0.0, %v6466
        %v6468 = vpop.f32.mrb[0].mxu0
        %v6469 = vpop.f32.mrb[0].mxu0
        %v6470 = vadd.f32 0.0, %v6469
        %v6471 = vpop.f32.mrb[0].mxu0
        %6472 = vmatprep.mubr.bf16.mxu0 0
        %6473 = vmatmul.mubr.bf16.gmra.mrb[0].mxu0 %v6380
        %v6474 = vpop.f32.mrb[0].mxu0
        %v6475 = vadd.f32 0.0, %v6474
        %v6476 = vpop.f32.mrb[0].mxu0
        %v6477 = vpop.f32.mrb[0].mxu0
        %v6478 = vadd.f32 0.0, %v6477
        %v6479 = vpop.f32.mrb[0].mxu0
        %6480 = vmatprep.mubr.bf16.mxu0 0
        %6481 = vmatmul.mubr.bf16.gmra.mrb[0].mxu0 %v6383
        %v6482 = vpop.f32.mrb[0].mxu0
        %v6483 = vadd.f32 0.0, %v6482
        %v6484 = vpop.f32.mrb[0].mxu0
        %v6485 = vpop.f32.mrb[0].mxu0
        %v6486 = vadd.f32 0.0, %v6485
        %v6487 = vpop.f32.mrb[0].mxu0
        %6488 = vmatprep.mubr.bf16.mxu0 0
        %6489 = vmatmul.mubr.bf16.gmra.mrb[0].mxu0 %v6386
        %v6490 = vpop.f32.mrb[0].mxu0
        %v6491 = vadd.f32 0.0, %v6490
        %v6492 = vpop.f32.mrb[0].mxu0
        %v6493 = vpop.f32.mrb[0].mxu0
        %v6494 = vadd.f32 0.0, %v6493
        %v6495 = vpop.f32.mrb[0].mxu0
        %6496 = vmatprep.mubr.bf16.mxu0 0
        %6497 = vmatmul.mubr.bf16.gmra.mrb[0].mxu0 %v6389
        %v6498 = vpop.f32.mrb[0].mxu0
        %v6499 = vadd.f32 0.0, %v6498
        %v6500 = vpop.f32.mrb[0].mxu0
        %v6501 = vpop.f32.mrb[0].mxu0
        %v6502 = vadd.f32 0.0, %v6501
        %v6503 = vpop.f32.mrb[0].mxu0
        %6504 = vmatprep.mubr.bf16.mxu0 0
        %6505 = vmatmul.mubr.bf16.gmra.mrb[0].mxu0 %v6392
        %v6506 = vpop.f32.mrb[0].mxu0
        %v6507 = vadd.f32 0.0, %v6506
        %v6508 = vpop.f32.mrb[0].mxu0
        %v6509 = vpop.f32.mrb[0].mxu0
        %v6510 = vadd.f32 0.0, %v6509
        %v6511 = vpop.f32.mrb[0].mxu0
        %6512 = vmatprep.mubr.bf16.mxu0 0
        %6513 = vmatmul.mubr.bf16.gmra.mrb[0].mxu0 %v6395
        %v6514 = vpop.f32.mrb[0].mxu0
        %v6515 = vadd.f32 0.0, %v6514
        %v6516 = vpop.f32.mrb[0].mxu0
        %v6517 = vpop.f32.mrb[0].mxu0
        %v6518 = vadd.f32 0.0, %v6517
        %v6519 = vpop.f32.mrb[0].mxu0
        %6520 = vmatprep.mubr.bf16.mxu0 0
        %6521 = vmatmul.mubr.bf16.gmra.mrb[0].mxu0 %v6398
        %v6522 = vpop.f32.mrb[0].mxu0
        %v6523 = vadd.f32 0.0, %v6522
        %v6524 = vpop.f32.mrb[0].mxu0
        %v6525 = vpop.f32.mrb[0].mxu0
        %v6526 = vadd.f32 0.0, %v6525
        %v6527 = vpop.f32.mrb[0].mxu0
        %6528 = vmatprep.mubr.bf16.mxu0 0
        %6529 = vmatmul.mubr.bf16.gmra.mrb[0].mxu0 %v6401
        %v6530 = vpop.f32.mrb[0].mxu0
        %v6531 = vadd.f32 0.0, %v6530
        %v6532 = vpop.f32.mrb[0].mxu0
        %v6533 = vpop.f32.mrb[0].mxu0
        %v6534 = vadd.f32 0.0, %v6533
        %v6535 = vpop.f32.mrb[0].mxu0
        %6536 = vmatprep.mubr.bf16.mxu0 0
        %6537 = vmatmul.mubr.bf16.gmra.mrb[0].mxu0 %v6404
        %v6538 = vpop.f32.mrb[0].mxu0
        %v6539 = vadd.f32 0.0, %v6538
        %v6540 = vpop.f32.mrb[0].mxu0
        %v6541 = vpop.f32.mrb[0].mxu0
        %v6542 = vadd.f32 0.0, %v6541
        %v6543 = vpop.f32.mrb[0].mxu0
        %6544 = vmatprep.mubr.bf16.mxu0 0
        %6545 = vmatmul.mubr.bf16.gmra.mrb[0].mxu0 %v6407
        %v6546 = vpop.f32.mrb[0].mxu0
        %v6547 = vadd.f32 0.0, %v6546
        %v6548 = vpop.f32.mrb[0].mxu0
        %v6549 = vpop.f32.mrb[0].mxu0
        %v6550 = vadd.f32 0.0, %v6549
        %v6551 = vpop.f32.mrb[0].mxu0
        %6552 = vmatprep.mubr.bf16.mxu0 0
        %6553 = vmatmul.mubr.bf16.gmra.mrb[0].mxu0 %v6410
        %v6554 = vpop.f32.mrb[0].mxu0
        %v6555 = vadd.f32 0.0, %v6554
        %v6556 = vpop.f32.mrb[0].mxu0
        %v6557 = vpop.f32.mrb[0].mxu0
        %v6558 = vadd.f32 0.0, %v6557
        %v6559 = vpop.f32.mrb[0].mxu0
        %6560 = vmatprep.mubr.bf16.mxu0 0
        %6561 = vmatmul.mubr.bf16.gmra.mrb[0].mxu0 %v6413
        %v6562 = vpop.f32.mrb[0].mxu0
        %v6563 = vadd.f32 0.0, %v6562
        %v6564 = vpop.f32.mrb[0].mxu0
        %v6565 = vpop.f32.mrb[0].mxu0
        %v6566 = vadd.f32 0.0, %v6565
        %v6567 = vpop.f32.mrb[0].mxu0
        %6568 = vmatprep.mubr.bf16.mxu0 0
        %6569 = vmatmul.mubr.bf16.gmra.mrb[0].mxu0 %v6416
        %v6570 = vpop.f32.mrb[0].mxu0
        %v6571 = vadd.f32 0.0, %v6570
        %v6572 = vpop.f32.mrb[0].mxu0
        %v6573 = vpop.f32.mrb[0].mxu0
        %v6574 = vadd.f32 0.0, %v6573
        %v6575 = vpop.f32.mrb[0].mxu0
        %6576 = vmatprep.mubr.bf16.mxu0 0
        %6577 = vmatmul.mubr.bf16.gmra.mrb[0].mxu0 %v6419
        %v6578 = vpop.f32.mrb[0].mxu0
        %v6579 = vadd.f32 0.0, %v6578
        %v6580 = vpop.f32.mrb[0].mxu0
        %v6581 = vpop.f32.mrb[0].mxu0
        %v6582 = vadd.f32 0.0, %v6581
        %v6583 = vpop.f32.mrb[0].mxu0
        %6584 = vdwg.mxu0
        %v6585 = vadd.f32 %v6291, %v6459
        %v6586 = vadd.f32 %v6292, %v6462
        %v6587 = vadd.f32 %v6293, %v6467
        %v6588 = vadd.f32 %v6294, %v6470
        %v6589 = vadd.f32 %v6295, %v6475
        %v6590 = vadd.f32 %v6296, %v6478
        %v6591 = vadd.f32 %v6297, %v6483
        %v6592 = vadd.f32 %v6298, %v6486
        %v6593 = vadd.f32 %v6299, %v6491
        %v6594 = vadd.f32 %v6300, %v6494
        %v6595 = vadd.f32 %v6301, %v6499
        %v6596 = vadd.f32 %v6302, %v6502
        %v6597 = vadd.f32 %v6303, %v6507
        %v6598 = vadd.f32 %v6304, %v6510
        %v6599 = vadd.f32 %v6305, %v6515
        %v6600 = vadd.f32 %v6306, %v6518
        %v6601 = vadd.f32 %v6307, %v6523
        %v6602 = vadd.f32 %v6308, %v6526
        %v6603 = vadd.f32 %v6309, %v6531
        %v6604 = vadd.f32 %v6310, %v6534
        %v6605 = vadd.f32 %v6311, %v6539
        %v6606 = vadd.f32 %v6312, %v6542
        %v6607 = vadd.f32 %v6313, %v6547
        %v6608 = vadd.f32 %v6314, %v6550
        %v6609 = vadd.f32 %v6315, %v6555
        %v6610 = vadd.f32 %v6316, %v6558
        %v6611 = vadd.f32 %v6317, %v6563
        %v6612 = vadd.f32 %v6318, %v6566
        %v6613 = vadd.f32 %v6319, %v6571
        %v6614 = vadd.f32 %v6320, %v6574
        %v6615 = vadd.f32 %v6321, %v6579
        %v6616 = vadd.f32 %v6322, %v6582
        %6617 = vst.msk [vmem:[#allocation3] sm:$0xff] %vm1275, %v6585
        %6618 = vst.msk [vmem:[#allocation3 + $0x8] sm:$0xff] %vm1275, %v6586
        %6619 = vst.msk [vmem:[#allocation3 + $0x10] sm:$0xff] %vm1275, %v6587
        %6620 = vst.msk [vmem:[#allocation3 + $0x18] sm:$0xff] %vm1275, %v6588
        %6621 = vst.msk [vmem:[#allocation3 + $0x20] sm:$0xff] %vm1275, %v6589
        %6622 = vst.msk [vmem:[#allocation3 + $0x28] sm:$0xff] %vm1275, %v6590
        %6623 = vst.msk [vmem:[#allocation3 + $0x30] sm:$0xff] %vm1275, %v6591
        %6624 = vst.msk [vmem:[#allocation3 + $0x38] sm:$0xff] %vm1275, %v6592
        %6625 = vst.msk [vmem:[#allocation3 + $0x40] sm:$0xff] %vm1275, %v6593
        %6626 = vst.msk [vmem:[#allocation3 + $0x48] sm:$0xff] %vm1275, %v6594
        %6627 = vst.msk [vmem:[#allocation3 + $0x50] sm:$0xff] %vm1275, %v6595
        %6628 = vst.msk [vmem:[#allocation3 + $0x58] sm:$0xff] %vm1275, %v6596
        %6629 = vst.msk [vmem:[#allocation3 + $0x60] sm:$0xff] %vm1275, %v6597
        %6630 = vst.msk [vmem:[#allocation3 + $0x68] sm:$0xff] %vm1275, %v6598
        %6631 = vst.msk [vmem:[#allocation3 + $0x70] sm:$0xff] %vm1275, %v6599
        %6632 = vst.msk [vmem:[#allocation3 + $0x78] sm:$0xff] %vm1275, %v6600
        %6633 = vst.msk [vmem:[#allocation3 + $0x80] sm:$0xff] %vm1275, %v6601
        %6634 = vst.msk [vmem:[#allocation3 + $0x88] sm:$0xff] %vm1275, %v6602
        %6635 = vst.msk [vmem:[#allocation3 + $0x90] sm:$0xff] %vm1275, %v6603
        %6636 = vst.msk [vmem:[#allocation3 + $0x98] sm:$0xff] %vm1275, %v6604
        %6637 = vst.msk [vmem:[#allocation3 + $0xa0] sm:$0xff] %vm1275, %v6605
        %6638 = vst.msk [vmem:[#allocation3 + $0xa8] sm:$0xff] %vm1275, %v6606
        %6639 = vst.msk [vmem:[#allocation3 + $0xb0] sm:$0xff] %vm1275, %v6607
        %6640 = vst.msk [vmem:[#allocation3 + $0xb8] sm:$0xff] %vm1275, %v6608
        %6641 = vst.msk [vmem:[#allocation3 + $0xc0] sm:$0xff] %vm1275, %v6609
        %6642 = vst.msk [vmem:[#allocation3 + $0xc8] sm:$0xff] %vm1275, %v6610
        %6643 = vst.msk [vmem:[#allocation3 + $0xd0] sm:$0xff] %vm1275, %v6611
        %6644 = vst.msk [vmem:[#allocation3 + $0xd8] sm:$0xff] %vm1275, %v6612
        %6645 = vst.msk [vmem:[#allocation3 + $0xe0] sm:$0xff] %vm1275, %v6613
        %6646 = vst.msk [vmem:[#allocation3 + $0xe8] sm:$0xff] %vm1275, %v6614
        %6647 = vst.msk [vmem:[#allocation3 + $0xf0] sm:$0xff] %vm1275, %v6615
        %6648 = vst.msk [vmem:[#allocation3 + $0xf8] sm:$0xff] %vm1275, %v6616
        %v6649 = vld [vmem:[#allocation3] sm:$0xff]
        %v6650 = vld [vmem:[#allocation3 + $0x8] sm:$0xff]
        %v6651 = vld [vmem:[#allocation3 + $0x10] sm:$0xff]
        %v6652 = vld [vmem:[#allocation3 + $0x18] sm:$0xff]
        %v6653 = vld [vmem:[#allocation3 + $0x20] sm:$0xff]
        %v6654 = vld [vmem:[#allocation3 + $0x28] sm:$0xff]
        %v6655 = vld [vmem:[#allocation3 + $0x30] sm:$0xff]
        %v6656 = vld [vmem:[#allocation3 + $0x38] sm:$0xff]
        %v6657 = vld [vmem:[#allocation3 + $0x40] sm:$0xff]
        %v6658 = vld [vmem:[#allocation3 + $0x48] sm:$0xff]
        %v6659 = vld [vmem:[#allocation3 + $0x50] sm:$0xff]
        %v6660 = vld [vmem:[#allocation3 + $0x58] sm:$0xff]
        %v6661 = vld [vmem:[#allocation3 + $0x60] sm:$0xff]
        %v6662 = vld [vmem:[#allocation3 + $0x68] sm:$0xff]
        %v6663 = vld [vmem:[#allocation3 + $0x70] sm:$0xff]
        %v6664 = vld [vmem:[#allocation3 + $0x78] sm:$0xff]
        %v6665 = vld [vmem:[#allocation3 + $0x80] sm:$0xff]
        %v6666 = vld [vmem:[#allocation3 + $0x88] sm:$0xff]
        %v6667 = vld [vmem:[#allocation3 + $0x90] sm:$0xff]
        %v6668 = vld [vmem:[#allocation3 + $0x98] sm:$0xff]
        %v6669 = vld [vmem:[#allocation3 + $0xa0] sm:$0xff]
        %v6670 = vld [vmem:[#allocation3 + $0xa8] sm:$0xff]
        %v6671 = vld [vmem:[#allocation3 + $0xb0] sm:$0xff]
        %v6672 = vld [vmem:[#allocation3 + $0xb8] sm:$0xff]
        %v6673 = vld [vmem:[#allocation3 + $0xc0] sm:$0xff]
        %v6674 = vld [vmem:[#allocation3 + $0xc8] sm:$0xff]
        %v6675 = vld [vmem:[#allocation3 + $0xd0] sm:$0xff]
        %v6676 = vld [vmem:[#allocation3 + $0xd8] sm:$0xff]
        %v6677 = vld [vmem:[#allocation3 + $0xe0] sm:$0xff]
        %v6678 = vld [vmem:[#allocation3 + $0xe8] sm:$0xff]
        %v6679 = vld [vmem:[#allocation3 + $0xf0] sm:$0xff]
        %v6680 = vld [vmem:[#allocation3 + $0xf8] sm:$0xff]
        %v6681 = vld [vmem:[%s5] sm:$0x1]
        %v6683 = vlaneseq
        %v6684 = vshrl.u32 %v6683, 7
        %v6685 = vsub.s32 0, %v6684
        %v6686 = vrot.slane %v6681, %v6685
        %v6688 = vadd.f32 %v6649, %v6686
        %v6689 = vadd.f32 %v6650, %v6686
        %v6690 = vadd.f32 %v6651, %v6686
        %v6691 = vadd.f32 %v6652, %v6686
        %v6692 = vadd.f32 %v6653, %v6686
        %v6693 = vadd.f32 %v6654, %v6686
        %v6694 = vadd.f32 %v6655, %v6686
        %v6695 = vadd.f32 %v6656, %v6686
        %v6696 = vadd.f32 %v6657, %v6686
        %v6697 = vadd.f32 %v6658, %v6686
        %v6698 = vadd.f32 %v6659, %v6686
        %v6699 = vadd.f32 %v6660, %v6686
        %v6700 = vadd.f32 %v6661, %v6686
        %v6701 = vadd.f32 %v6662, %v6686
        %v6702 = vadd.f32 %v6663, %v6686
        %v6703 = vadd.f32 %v6664, %v6686
        %v6704 = vadd.f32 %v6665, %v6686
        %v6705 = vadd.f32 %v6666, %v6686
        %v6706 = vadd.f32 %v6667, %v6686
        %v6707 = vadd.f32 %v6668, %v6686
        %v6708 = vadd.f32 %v6669, %v6686
        %v6709 = vadd.f32 %v6670, %v6686
        %v6710 = vadd.f32 %v6671, %v6686
        %v6711 = vadd.f32 %v6672, %v6686
        %v6712 = vadd.f32 %v6673, %v6686
        %v6713 = vadd.f32 %v6674, %v6686
        %v6714 = vadd.f32 %v6675, %v6686
        %v6715 = vadd.f32 %v6676, %v6686
        %v6716 = vadd.f32 %v6677, %v6686
        %v6717 = vadd.f32 %v6678, %v6686
        %v6718 = vadd.f32 %v6679, %v6686
        %v6719 = vadd.f32 %v6680, %v6686
        %v6720 = vmax.f32 %v6688, 0.0
        %v6721 = vmax.f32 %v6689, 0.0
        %v6722 = vmax.f32 %v6690, 0.0
        %v6723 = vmax.f32 %v6691, 0.0
        %v6724 = vmax.f32 %v6692, 0.0
        %v6725 = vmax.f32 %v6693, 0.0
        %v6726 = vmax.f32 %v6694, 0.0
        %v6727 = vmax.f32 %v6695, 0.0
        %v6728 = vmax.f32 %v6696, 0.0
        %v6729 = vmax.f32 %v6697, 0.0
        %v6730 = vmax.f32 %v6698, 0.0
        %v6731 = vmax.f32 %v6699, 0.0
        %v6732 = vmax.f32 %v6700, 0.0
        %v6733 = vmax.f32 %v6701, 0.0
        %v6734 = vmax.f32 %v6702, 0.0
        %v6735 = vmax.f32 %v6703, 0.0
        %v6736 = vmax.f32 %v6704, 0.0
        %v6737 = vmax.f32 %v6705, 0.0
        %v6738 = vmax.f32 %v6706, 0.0
        %v6739 = vmax.f32 %v6707, 0.0
        %v6740 = vmax.f32 %v6708, 0.0
        %v6741 = vmax.f32 %v6709, 0.0
        %v6742 = vmax.f32 %v6710, 0.0
        %v6743 = vmax.f32 %v6711, 0.0
        %v6744 = vmax.f32 %v6712, 0.0
        %v6745 = vmax.f32 %v6713, 0.0
        %v6746 = vmax.f32 %v6714, 0.0
        %v6747 = vmax.f32 %v6715, 0.0
        %v6748 = vmax.f32 %v6716, 0.0
        %v6749 = vmax.f32 %v6717, 0.0
        %v6750 = vmax.f32 %v6718, 0.0
        %v6751 = vmax.f32 %v6719, 0.0
        %v6752 = vpack.c.bf16 %v6721, %v6720
        %v6753 = vpack.c.bf16 %v6723, %v6722
        %v6754 = vpack.c.bf16 %v6725, %v6724
        %v6755 = vpack.c.bf16 %v6727, %v6726
        %v6756 = vpack.c.bf16 %v6729, %v6728
        %v6757 = vpack.c.bf16 %v6731, %v6730
        %v6758 = vpack.c.bf16 %v6733, %v6732
        %v6759 = vpack.c.bf16 %v6735, %v6734
        %v6760 = vpack.c.bf16 %v6737, %v6736
        %v6761 = vpack.c.bf16 %v6739, %v6738
        %v6762 = vpack.c.bf16 %v6741, %v6740
        %v6763 = vpack.c.bf16 %v6743, %v6742
        %v6764 = vpack.c.bf16 %v6745, %v6744
        %v6765 = vpack.c.bf16 %v6747, %v6746
        %v6766 = vpack.c.bf16 %v6749, %v6748
        %v6767 = vpack.c.bf16 %v6751, %v6750
        %v6768 = vld [vmem:[%s3] sm:$0x3]
        %v6769 = vld [vmem:[%s6] sm:$0x1]
        %v6771 = vlaneseq
        %v6772 = vshrl.u32 %v6771, 7
        %v6773 = vsub.s32 0, %v6772
        %v6774 = vrot.slane %v6769, %v6773
        %v6777 = vsel %vm1275, %v6752, 0
        %v6780 = vsel %vm1275, %v6753, 0
        %v6783 = vsel %vm1275, %v6754, 0
        %v6786 = vsel %vm1275, %v6755, 0
        %v6789 = vsel %vm1275, %v6756, 0
        %v6792 = vsel %vm1275, %v6757, 0
        %v6795 = vsel %vm1275, %v6758, 0
        %v6798 = vsel %vm1275, %v6759, 0
        %v6801 = vsel %vm1275, %v6760, 0
        %v6804 = vsel %vm1275, %v6761, 0
        %v6807 = vsel %vm1275, %v6762, 0
        %v6810 = vsel %vm1275, %v6763, 0
        %v6813 = vsel %vm1275, %v6764, 0
        %v6816 = vsel %vm1275, %v6765, 0
        %v6819 = vsel %vm1275, %v6766, 0
        %v6822 = vsel %vm1275, %v6767, 0
        %v6825 = vsel %vm1501, %v6768, 0
        %6827 = vmatprep.subr.bf16.mxu0 0
        %6828 = vmatpush1.bf16.msra.mxu0 %v6825
        %6829 = vmatprep.subr.bf16.mxu0 0
        %6830 = vmatpush1.bf16.msra.mxu0 0
        %6831 = vmatprep.subr.bf16.mxu0 0
        %6832 = vmatpush1.bf16.msra.mxu0 0
        %6833 = vmatprep.subr.bf16.mxu0 0
        %6834 = vmatpush1.bf16.msra.mxu0 0
        %6835 = vmatprep.subr.bf16.mxu0 0
        %6836 = vmatpush1.bf16.msra.mxu0 0
        %6837 = vmatprep.subr.bf16.mxu0 0
        %6838 = vmatpush1.bf16.msra.mxu0 0
        %6839 = vmatprep.subr.bf16.mxu0 0
        %6840 = vmatpush1.bf16.msra.mxu0 0
        %6841 = vmatprep.subr.bf16.mxu0 0
        %6842 = vmatpush1.bf16.msra.mxu0 0
        %6843 = vmatprep.subr.bf16.mxu0 0
        %6844 = vmatpush1.bf16.msra.mxu0 0
        %6845 = vmatprep.subr.bf16.mxu0 0
        %6846 = vmatpush1.bf16.msra.mxu0 0
        %6847 = vmatprep.subr.bf16.mxu0 0
        %6848 = vmatpush1.bf16.msra.mxu0 0
        %6849 = vmatprep.subr.bf16.mxu0 0
        %6850 = vmatpush1.bf16.msra.mxu0 0
        %6851 = vmatprep.subr.bf16.mxu0 0
        %6852 = vmatpush1.bf16.msra.mxu0 0
        %6853 = vmatprep.subr.bf16.mxu0 0
        %6854 = vmatpush1.bf16.msra.mxu0 0
        %6855 = vmatprep.subr.bf16.mxu0 0
        %6856 = vmatpush1.bf16.msra.mxu0 0
        %6857 = vmatprep.subr.bf16.mxu0 0
        %6858 = vmatpush1.bf16.msra.mxu0 0
        %6859 = vmatprep.mubr.bf16.mxu0 0
        %6860 = vmatmul.mubr.bf16.gmra.mrb[0].mxu0 %v6777
        %v6861 = vpop.f32.mrb[0].mxu0
        %v6862 = vadd.f32 %v6774, %v6861
        %v6863 = vpop.f32.mrb[0].mxu0
        %v6864 = vpop.f32.mrb[0].mxu0
        %v6865 = vadd.f32 %v6774, %v6864
        %v6866 = vpop.f32.mrb[0].mxu0
        %6867 = vmatprep.mubr.bf16.mxu0 0
        %6868 = vmatmul.mubr.bf16.gmra.mrb[0].mxu0 %v6780
        %v6869 = vpop.f32.mrb[0].mxu0
        %v6870 = vadd.f32 %v6774, %v6869
        %v6871 = vpop.f32.mrb[0].mxu0
        %v6872 = vpop.f32.mrb[0].mxu0
        %v6873 = vadd.f32 %v6774, %v6872
        %v6874 = vpop.f32.mrb[0].mxu0
        %6875 = vmatprep.mubr.bf16.mxu0 0
        %6876 = vmatmul.mubr.bf16.gmra.mrb[0].mxu0 %v6783
        %v6877 = vpop.f32.mrb[0].mxu0
        %v6878 = vadd.f32 %v6774, %v6877
        %v6879 = vpop.f32.mrb[0].mxu0
        %v6880 = vpop.f32.mrb[0].mxu0
        %v6881 = vadd.f32 %v6774, %v6880
        %v6882 = vpop.f32.mrb[0].mxu0
        %6883 = vmatprep.mubr.bf16.mxu0 0
        %6884 = vmatmul.mubr.bf16.gmra.mrb[0].mxu0 %v6786
        %v6885 = vpop.f32.mrb[0].mxu0
        %v6886 = vadd.f32 %v6774, %v6885
        %v6887 = vpop.f32.mrb[0].mxu0
        %v6888 = vpop.f32.mrb[0].mxu0
        %v6889 = vadd.f32 %v6774, %v6888
        %v6890 = vpop.f32.mrb[0].mxu0
        %6891 = vmatprep.mubr.bf16.mxu0 0
        %6892 = vmatmul.mubr.bf16.gmra.mrb[0].mxu0 %v6789
        %v6893 = vpop.f32.mrb[0].mxu0
        %v6894 = vadd.f32 %v6774, %v6893
        %v6895 = vpop.f32.mrb[0].mxu0
        %v6896 = vpop.f32.mrb[0].mxu0
        %v6897 = vadd.f32 %v6774, %v6896
        %v6898 = vpop.f32.mrb[0].mxu0
        %6899 = vmatprep.mubr.bf16.mxu0 0
        %6900 = vmatmul.mubr.bf16.gmra.mrb[0].mxu0 %v6792
        %v6901 = vpop.f32.mrb[0].mxu0
        %v6902 = vadd.f32 %v6774, %v6901
        %v6903 = vpop.f32.mrb[0].mxu0
        %v6904 = vpop.f32.mrb[0].mxu0
        %v6905 = vadd.f32 %v6774, %v6904
        %v6906 = vpop.f32.mrb[0].mxu0
        %6907 = vmatprep.mubr.bf16.mxu0 0
        %6908 = vmatmul.mubr.bf16.gmra.mrb[0].mxu0 %v6795
        %v6909 = vpop.f32.mrb[0].mxu0
        %v6910 = vadd.f32 %v6774, %v6909
        %v6911 = vpop.f32.mrb[0].mxu0
        %v6912 = vpop.f32.mrb[0].mxu0
        %v6913 = vadd.f32 %v6774, %v6912
        %v6914 = vpop.f32.mrb[0].mxu0
        %6915 = vmatprep.mubr.bf16.mxu0 0
        %6916 = vmatmul.mubr.bf16.gmra.mrb[0].mxu0 %v6798
        %v6917 = vpop.f32.mrb[0].mxu0
        %v6918 = vadd.f32 %v6774, %v6917
        %v6919 = vpop.f32.mrb[0].mxu0
        %v6920 = vpop.f32.mrb[0].mxu0
        %v6921 = vadd.f32 %v6774, %v6920
        %v6922 = vpop.f32.mrb[0].mxu0
        %6923 = vmatprep.mubr.bf16.mxu0 0
        %6924 = vmatmul.mubr.bf16.gmra.mrb[0].mxu0 %v6801
        %v6925 = vpop.f32.mrb[0].mxu0
        %v6926 = vadd.f32 %v6774, %v6925
        %v6927 = vpop.f32.mrb[0].mxu0
        %v6928 = vpop.f32.mrb[0].mxu0
        %v6929 = vadd.f32 %v6774, %v6928
        %v6930 = vpop.f32.mrb[0].mxu0
        %6931 = vmatprep.mubr.bf16.mxu0 0
        %6932 = vmatmul.mubr.bf16.gmra.mrb[0].mxu0 %v6804
        %v6933 = vpop.f32.mrb[0].mxu0
        %v6934 = vadd.f32 %v6774, %v6933
        %v6935 = vpop.f32.mrb[0].mxu0
        %v6936 = vpop.f32.mrb[0].mxu0
        %v6937 = vadd.f32 %v6774, %v6936
        %v6938 = vpop.f32.mrb[0].mxu0
        %6939 = vmatprep.mubr.bf16.mxu0 0
        %6940 = vmatmul.mubr.bf16.gmra.mrb[0].mxu0 %v6807
        %v6941 = vpop.f32.mrb[0].mxu0
        %v6942 = vadd.f32 %v6774, %v6941
        %v6943 = vpop.f32.mrb[0].mxu0
        %v6944 = vpop.f32.mrb[0].mxu0
        %v6945 = vadd.f32 %v6774, %v6944
        %v6946 = vpop.f32.mrb[0].mxu0
        %6947 = vmatprep.mubr.bf16.mxu0 0
        %6948 = vmatmul.mubr.bf16.gmra.mrb[0].mxu0 %v6810
        %v6949 = vpop.f32.mrb[0].mxu0
        %v6950 = vadd.f32 %v6774, %v6949
        %v6951 = vpop.f32.mrb[0].mxu0
        %v6952 = vpop.f32.mrb[0].mxu0
        %v6953 = vadd.f32 %v6774, %v6952
        %v6954 = vpop.f32.mrb[0].mxu0
        %6955 = vmatprep.mubr.bf16.mxu0 0
        %6956 = vmatmul.mubr.bf16.gmra.mrb[0].mxu0 %v6813
        %v6957 = vpop.f32.mrb[0].mxu0
        %v6958 = vadd.f32 %v6774, %v6957
        %v6959 = vpop.f32.mrb[0].mxu0
        %v6960 = vpop.f32.mrb[0].mxu0
        %v6961 = vadd.f32 %v6774, %v6960
        %v6962 = vpop.f32.mrb[0].mxu0
        %6963 = vmatprep.mubr.bf16.mxu0 0
        %6964 = vmatmul.mubr.bf16.gmra.mrb[0].mxu0 %v6816
        %v6965 = vpop.f32.mrb[0].mxu0
        %v6966 = vadd.f32 %v6774, %v6965
        %v6967 = vpop.f32.mrb[0].mxu0
        %v6968 = vpop.f32.mrb[0].mxu0
        %v6969 = vadd.f32 %v6774, %v6968
        %v6970 = vpop.f32.mrb[0].mxu0
        %6971 = vmatprep.mubr.bf16.mxu0 0
        %6972 = vmatmul.mubr.bf16.gmra.mrb[0].mxu0 %v6819
        %v6973 = vpop.f32.mrb[0].mxu0
        %v6974 = vadd.f32 %v6774, %v6973
        %v6975 = vpop.f32.mrb[0].mxu0
        %v6976 = vpop.f32.mrb[0].mxu0
        %v6977 = vadd.f32 %v6774, %v6976
        %v6978 = vpop.f32.mrb[0].mxu0
        %6979 = vmatprep.mubr.bf16.mxu0 0
        %6980 = vmatmul.mubr.bf16.gmra.mrb[0].mxu0 %v6822
        %v6981 = vpop.f32.mrb[0].mxu0
        %v6982 = vadd.f32 %v6774, %v6981
        %v6983 = vpop.f32.mrb[0].mxu0
        %v6984 = vpop.f32.mrb[0].mxu0
        %v6985 = vadd.f32 %v6774, %v6984
        %v6986 = vpop.f32.mrb[0].mxu0
        %6987 = vdwg.mxu0
        %v6988 = vunpack.c.l.bf16 %v369
        %v6989 = vunpack.c.l.bf16 %v370
        %v6990 = vunpack.c.l.bf16 %v371
        %v6991 = vunpack.c.l.bf16 %v372
        %v6992 = vunpack.c.l.bf16 %v373
        %v6993 = vunpack.c.l.bf16 %v374
        %v6994 = vunpack.c.l.bf16 %v375
        %v6995 = vunpack.c.l.bf16 %v376
        %v6996 = vunpack.c.l.bf16 %v377
        %v6997 = vunpack.c.l.bf16 %v378
        %v6998 = vunpack.c.l.bf16 %v379
        %v6999 = vunpack.c.l.bf16 %v380
        %v7000 = vunpack.c.l.bf16 %v381
        %v7001 = vunpack.c.l.bf16 %v382
        %v7002 = vunpack.c.l.bf16 %v383
        %v7003 = vunpack.c.l.bf16 %v384
        %v7004 = vunpack.c.l.bf16 %v385
        %v7005 = vunpack.c.l.bf16 %v386
        %v7006 = vunpack.c.l.bf16 %v387
        %v7007 = vunpack.c.l.bf16 %v388
        %v7008 = vunpack.c.l.bf16 %v389
        %v7009 = vunpack.c.l.bf16 %v390
        %v7010 = vunpack.c.l.bf16 %v391
        %v7011 = vunpack.c.l.bf16 %v392
        %v7012 = vunpack.c.l.bf16 %v393
        %v7013 = vunpack.c.l.bf16 %v394
        %v7014 = vunpack.c.l.bf16 %v395
        %v7015 = vunpack.c.l.bf16 %v396
        %v7016 = vunpack.c.l.bf16 %v397
        %v7017 = vunpack.c.l.bf16 %v398
        %v7018 = vunpack.c.l.bf16 %v399
        %v7019 = vunpack.c.l.bf16 %v400
        %v7020 = vadd.f32 %v6862, %v6988
        %v7021 = vadd.f32 %v6865, %v6989
        %v7022 = vadd.f32 %v6870, %v6990
        %v7023 = vadd.f32 %v6873, %v6991
        %v7024 = vadd.f32 %v6878, %v6992
        %v7025 = vadd.f32 %v6881, %v6993
        %v7026 = vadd.f32 %v6886, %v6994
        %v7027 = vadd.f32 %v6889, %v6995
        %v7028 = vadd.f32 %v6894, %v6996
        %v7029 = vadd.f32 %v6897, %v6997
        %v7030 = vadd.f32 %v6902, %v6998
        %v7031 = vadd.f32 %v6905, %v6999
        %v7032 = vadd.f32 %v6910, %v7000
        %v7033 = vadd.f32 %v6913, %v7001
        %v7034 = vadd.f32 %v6918, %v7002
        %v7035 = vadd.f32 %v6921, %v7003
        %v7036 = vadd.f32 %v6926, %v7004
        %v7037 = vadd.f32 %v6929, %v7005
        %v7038 = vadd.f32 %v6934, %v7006
        %v7039 = vadd.f32 %v6937, %v7007
        %v7040 = vadd.f32 %v6942, %v7008
        %v7041 = vadd.f32 %v6945, %v7009
        %v7042 = vadd.f32 %v6950, %v7010
        %v7043 = vadd.f32 %v6953, %v7011
        %v7044 = vadd.f32 %v6958, %v7012
        %v7045 = vadd.f32 %v6961, %v7013
        %v7046 = vadd.f32 %v6966, %v7014
        %v7047 = vadd.f32 %v6969, %v7015
        %v7048 = vadd.f32 %v6974, %v7016
        %v7049 = vadd.f32 %v6977, %v7017
        %v7050 = vadd.f32 %v6982, %v7018
        %v7051 = vadd.f32 %v6985, %v7019
        %v7052 = vmax.f32 %v7020, 0.0
        %v7053 = vmax.f32 %v7021, 0.0
        %v7054 = vmax.f32 %v7022, 0.0
        %v7055 = vmax.f32 %v7023, 0.0
        %v7056 = vmax.f32 %v7024, 0.0
        %v7057 = vmax.f32 %v7025, 0.0
        %v7058 = vmax.f32 %v7026, 0.0
        %v7059 = vmax.f32 %v7027, 0.0
        %v7060 = vmax.f32 %v7028, 0.0
        %v7061 = vmax.f32 %v7029, 0.0
        %v7062 = vmax.f32 %v7030, 0.0
        %v7063 = vmax.f32 %v7031, 0.0
        %v7064 = vmax.f32 %v7032, 0.0
        %v7065 = vmax.f32 %v7033, 0.0
        %v7066 = vmax.f32 %v7034, 0.0
        %v7067 = vmax.f32 %v7035, 0.0
        %v7068 = vmax.f32 %v7036, 0.0
        %v7069 = vmax.f32 %v7037, 0.0
        %v7070 = vmax.f32 %v7038, 0.0
        %v7071 = vmax.f32 %v7039, 0.0
        %v7072 = vmax.f32 %v7040, 0.0
        %v7073 = vmax.f32 %v7041, 0.0
        %v7074 = vmax.f32 %v7042, 0.0
        %v7075 = vmax.f32 %v7043, 0.0
        %v7076 = vmax.f32 %v7044, 0.0
        %v7077 = vmax.f32 %v7045, 0.0
        %v7078 = vmax.f32 %v7046, 0.0
        %v7079 = vmax.f32 %v7047, 0.0
        %v7080 = vmax.f32 %v7048, 0.0
        %v7081 = vmax.f32 %v7049, 0.0
        %v7082 = vmax.f32 %v7050, 0.0
        %v7083 = vmax.f32 %v7051, 0.0
        %7084 = vst.msk [vmem:[%s311] sm:$0xff] %vm496, %v7052
        %7085 = vst.msk [vmem:[%s311 + $0x8] sm:$0xff] %vm496, %v7053
        %7086 = vst.msk [vmem:[%s311 + $0x10] sm:$0xff] %vm496, %v7054
        %7087 = vst.msk [vmem:[%s311 + $0x18] sm:$0xff] %vm496, %v7055
        %7088 = vst.msk [vmem:[%s311 + $0x20] sm:$0xff] %vm496, %v7056
        %7089 = vst.msk [vmem:[%s311 + $0x28] sm:$0xff] %vm496, %v7057
        %7090 = vst.msk [vmem:[%s311 + $0x30] sm:$0xff] %vm496, %v7058
        %7091 = vst.msk [vmem:[%s311 + $0x38] sm:$0xff] %vm496, %v7059
        %7092 = vst.msk [vmem:[%s311 + $0x40] sm:$0xff] %vm496, %v7060
        %7093 = vst.msk [vmem:[%s311 + $0x48] sm:$0xff] %vm496, %v7061
        %7094 = vst.msk [vmem:[%s311 + $0x50] sm:$0xff] %vm496, %v7062
        %7095 = vst.msk [vmem:[%s311 + $0x58] sm:$0xff] %vm496, %v7063
        %7096 = vst.msk [vmem:[%s311 + $0x60] sm:$0xff] %vm496, %v7064
        %7097 = vst.msk [vmem:[%s311 + $0x68] sm:$0xff] %vm496, %v7065
        %7098 = vst.msk [vmem:[%s311 + $0x70] sm:$0xff] %vm496, %v7066
        %7099 = vst.msk [vmem:[%s311 + $0x78] sm:$0xff] %vm496, %v7067
        %7100 = vst.msk [vmem:[%s311 + $0x80] sm:$0xff] %vm496, %v7068
        %7101 = vst.msk [vmem:[%s311 + $0x88] sm:$0xff] %vm496, %v7069
        %7102 = vst.msk [vmem:[%s311 + $0x90] sm:$0xff] %vm496, %v7070
        %7103 = vst.msk [vmem:[%s311 + $0x98] sm:$0xff] %vm496, %v7071
        %7104 = vst.msk [vmem:[%s311 + $0xa0] sm:$0xff] %vm496, %v7072
        %7105 = vst.msk [vmem:[%s311 + $0xa8] sm:$0xff] %vm496, %v7073
        %7106 = vst.msk [vmem:[%s311 + $0xb0] sm:$0xff] %vm496, %v7074
        %7107 = vst.msk [vmem:[%s311 + $0xb8] sm:$0xff] %vm496, %v7075
        %7108 = vst.msk [vmem:[%s311 + $0xc0] sm:$0xff] %vm496, %v7076
        %7109 = vst.msk [vmem:[%s311 + $0xc8] sm:$0xff] %vm496, %v7077
        %7110 = vst.msk [vmem:[%s311 + $0xd0] sm:$0xff] %vm496, %v7078
        %7111 = vst.msk [vmem:[%s311 + $0xd8] sm:$0xff] %vm496, %v7079
        %7112 = vst.msk [vmem:[%s311 + $0xe0] sm:$0xff] %vm496, %v7080
        %7113 = vst.msk [vmem:[%s311 + $0xe8] sm:$0xff] %vm496, %v7081
        %7114 = vst.msk [vmem:[%s311 + $0xf0] sm:$0xff] %vm496, %v7082
        %7115 = vst.msk [vmem:[%s311 + $0xf8] sm:$0xff] %vm496, %v7083
        %s7116 = sand.u32 %s185, 1
        %s7117 = scalar_lea.sflag [#allocation6], %s7116
        %s7118 = sand.u32 %s185, 1
        %s7119 = smul.addr %s7118, 256
        %s7120 = scalar_lea.vmem [#allocation9], %s7119
        // Predicated region
        $region57: #{tpu_custom_call.1} parent=47 // pred_check
          %p7121 = pneg %p195
        $region58: #{tpu_custom_call.1} parent=47 // pred_check_branch
          %7123 = sbr.rel (%p7121) target = $region60
        $region59: #{tpu_custom_call.1} parent=47 // pred_region
          %s7125 = ssub.s32 4096, 4096
          %7126 = vsyncadd %s7117, %s7125
          %s7127 = smul.addr %s25, 32
          %s7128 = smul.addr %s7127, 128
          %s7129 = scalar_lea.hbm %s7, %s7128
          %s7130 = sshll.u32 %s7120, 4
          %s7131 = int_to_ptr.vmem [resolvable:$true] %s7130
          %7136 = dma.vmem_to_hbm [thread:$0]  %s7131, 4096, %s7129, %s7117, 128, 128, 8
        $region60: #{tpu_custom_call.1} parent=47 // pred_fallthru
          _
      $region48: #{tpu_custom_call.1} parent=5 // pred_fallthru
        _
      %p7137 = scmp.le.s32.totalorder 2, %s20
      // Predicated region
      $region61: #{tpu_custom_call.1} parent=5 // pred_check
        %p7138 = pneg %p7137
      $region62: #{tpu_custom_call.1} parent=5 // pred_check_branch
        %7140 = sbr.rel (%p7138) target = $region64
      $region63: #{tpu_custom_call.1} parent=5 // pred_region
        %s7141 = ssub.s32 %s20, 2
        // Predicated region
        $region65: #{tpu_custom_call.1} parent=63 // pred_check
          %p7142 = pneg %p201
        $region66: #{tpu_custom_call.1} parent=63 // pred_check_branch
          %7144 = sbr.rel (%p7142) target = $region68
        $region67: #{tpu_custom_call.1} parent=63 // pred_region
          %s7145 = sand.u32 %s186, 1
          %s7146 = scalar_lea.sflag [#allocation6], %s7145
          %s7147 = sand.u32 %s186, 1
          %s7148 = smul.addr %s7147, 256
          %s7149 = scalar_lea.vmem [#allocation9], %s7148
          %7150 = dma.done %s7146, 4096
        $region68: #{tpu_custom_call.1} parent=63 // pred_fallthru
          _
      $region64: #{tpu_custom_call.1} parent=5 // pred_fallthru
        _
    $region6: #{tpu_custom_call.1} parent=1 // loop_footer
      %s24 = sadd.s32 1, %s20
    $region7: #{tpu_custom_call.1} parent=1 // loop_footer_branch
      %19 = sbr.rel target = $region3
    $region8: #{tpu_custom_call.1} parent=1 // loop_exit
      _
    %7151 = vsyncpa [#allocation5], 1
    %s7152 = scalar_lea.sflag [#allocation5], 1
    %7153 = vsyncpa %s7152, 1
    %7154 = vsyncpa [#allocation8], 1
    %7155 = vsyncpa [#allocation6], 1
    %s7156 = scalar_lea.sflag [#allocation6], 1
    %7157 = vsyncpa %s7156, 1

</llo_original>
